<compile_context>
chip_gen: v5e
topology: v5e:2x2
jax: 0.10.0
libtpu: 0.0.40
codegen_flags: <defaults>
</compile_context>

<pallas_src>
import jax
import jax.numpy as jnp
from jax import lax
from jax.experimental import pallas as pl
from jax.experimental.pallas import tpu as pltpu

EPS = 1e-6


# ----------------------------------------------------------------------------- BlockSpec helpers
def _full_spec(shape):
    nd = len(shape)
    return pl.BlockSpec(shape, lambda b, _nd=nd: (0,) * _nd)


def _batch_spec(shape):
    nd = len(shape)
    return pl.BlockSpec(shape, lambda b, _nd=nd: (b,) + (0,) * (_nd - 1))


# ----------------------------------------------------------------------------- kernels
def _conv3x3_kernel(xp_ref, w_ref, b_ref, o_ref):
    """3x3 conv (padding already applied), NHWC, one batch element per grid step."""
    H, W, Co = o_ref.shape[1], o_ref.shape[2], o_ref.shape[3]
    Ci = xp_ref.shape[3]
    xp = xp_ref[0]                                          # (H+2, W+2, Ci)
    acc = jnp.zeros((H * W, Co), jnp.float32)
    for i in range(3):
        for j in range(3):
            patch = xp[i:i + H, j:j + W, :].reshape(H * W, Ci)
            acc = acc + jnp.dot(patch, w_ref[i * 3 + j],
                                preferred_element_type=jnp.float32)
    acc = acc + b_ref[...]
    o_ref[0] = acc.reshape(H, W, Co)


def _layer_norm_c(x2d, w_ref, b_ref):
    """LayerNorm2d: normalize over the channel (lane) dim of a (H*W, C) slab."""
    mu = jnp.mean(x2d, axis=-1, keepdims=True)
    xc = x2d - mu
    var = jnp.mean(xc * xc, axis=-1, keepdims=True)
    return xc * lax.rsqrt(var + EPS) * w_ref[...] + b_ref[...]


def _nafblock_kernel(x_ref,
                     ln1w_ref, ln1b_ref,
                     w1_ref, b1_ref,
                     wd_ref, bd_ref,
                     wsca_ref, bsca_ref,
                     w3_ref, b3_ref,
                     beta_ref,
                     ln2w_ref, ln2b_ref,
                     w4_ref, b4_ref,
                     w5_ref, b5_ref,
                     gamma_ref,
                     o_ref,
                     pad_ref):
    """One fused NAFBlock on a single batch element (NHWC)."""
    H, W, C = o_ref.shape[1], o_ref.shape[2], o_ref.shape[3]
    C2 = 2 * C

    x = x_ref[0]                                            # (H, W, C)
    x2d = x.reshape(H * W, C)

    # ---- branch 1: norm1 -> conv1 (1x1) -> depthwise 3x3 -> SimpleGate -> SCA -> conv3 ----
    t = _layer_norm_c(x2d, ln1w_ref, ln1b_ref)                                       # (HW, C)
    t = jnp.dot(t, w1_ref[...], preferred_element_type=jnp.float32) + b1_ref[...]    # (HW, 2C)

    # depthwise 3x3, padding 1, via a zero-padded VMEM scratch
    pad_ref[...] = jnp.zeros_like(pad_ref)
    pad_ref[1:H + 1, 1:W + 1, :] = t.reshape(H, W, C2)
    acc = jnp.zeros((H, W, C2), jnp.float32)
    for i in range(3):
        for j in range(3):
            acc = acc + pad_ref[i:i + H, j:j + W, :] * wd_ref[i * 3 + j, :].reshape(1, 1, C2)
    acc = acc + bd_ref[...].reshape(1, 1, C2)

    g = acc[:, :, :C] * acc[:, :, C:]                       # SimpleGate -> (H, W, C)
    g2d = g.reshape(H * W, C)

    pooled = jnp.mean(g2d, axis=0, keepdims=True)           # global avg pool -> (1, C)
    sca = jnp.dot(pooled, wsca_ref[...],
                  preferred_element_type=jnp.float32) + bsca_ref[...]                # (1, C)
    g2d = g2d * sca                                         # channel attention

    x3 = jnp.dot(g2d, w3_ref[...], preferred_element_type=jnp.float32) + b3_ref[...]
    y = x2d + x3 * beta_ref[...]                            # residual 1

    # ---- branch 2: norm2 -> conv4 (1x1) -> SimpleGate -> conv5 (1x1) ----
    t2 = _layer_norm_c(y, ln2w_ref, ln2b_ref)
    f = jnp.dot(t2, w4_ref[...], preferred_element_type=jnp.float32) + b4_ref[...]   # (HW, 2C)
    fg = f[:, :C] * f[:, C:]
    x5 = jnp.dot(fg, w5_ref[...], preferred_element_type=jnp.float32) + b5_ref[...]

    out = y + x5 * gamma_ref[...]                           # residual 2
    o_ref[0] = out.reshape(H, W, C)


def _down_kernel(xs_ref, w_ref, b_ref, o_ref):
    """2x2 stride-2 conv expressed as one matmul on the space-to-depth input."""
    Ho, Wo, Co = o_ref.shape[1], o_ref.shape[2], o_ref.shape[3]
    K = xs_ref.shape[3]
    xs = xs_ref[0].reshape(Ho * Wo, K)
    out = jnp.dot(xs, w_ref[...], preferred_element_type=jnp.float32) + b_ref[...]
    o_ref[0] = out.reshape(Ho, Wo, Co)


# ----------------------------------------------------------------------------- pallas_call wrappers
def _intro_conv(x_nhwc, w_oihw, bias):
    N, H, W, Ci = x_nhwc.shape
    Co = w_oihw.shape[0]
    Cip = ((Ci + 7) // 8) * 8                               # zero-pad the K dim for the MXU
    xp = jnp.pad(x_nhwc, ((0, 0), (1, 1), (1, 1), (0, Cip - Ci)))
    wk = jnp.transpose(w_oihw, (2, 3, 1, 0)).reshape(9, Ci, Co)
    wk = jnp.pad(wk, ((0, 0), (0, Cip - Ci), (0, 0)))
    bk = bias.reshape(1, Co)
    return pl.pallas_call(
        _conv3x3_kernel,
        out_shape=jax.ShapeDtypeStruct((N, H, W, Co), jnp.float32),
        grid=(N,),
        in_specs=[_batch_spec((1, H + 2, W + 2, Cip)),
                  _full_spec((9, Cip, Co)),
                  _full_spec((1, Co))],
        out_specs=_batch_spec((1, H, W, Co)),
        compiler_params=pltpu.CompilerParams(dimension_semantics=("parallel",)),
    )(xp, wk, bk)


def _nafblock(x_nhwc, p):
    N, H, W, C = x_nhwc.shape
    C2 = 2 * C
    # convert PyTorch-layout params to kernel (matmul) layout — tiny, fused by XLA
    ln1w = p["ln1_w"].reshape(1, C)
    ln1b = p["ln1_b"].reshape(1, C)
    w1 = p["w1"][:, :, 0, 0].T                              # (C, 2C)
    b1 = p["b1"].reshape(1, C2)
    wd = jnp.transpose(p["w2"][:, 0], (1, 2, 0)).reshape(9, C2)
    bd = p["b2"].reshape(1, C2)
    wsca = p["wsca"][:, :, 0, 0].T
    bsca = p["bsca"].reshape(1, C)
    w3 = p["w3"][:, :, 0, 0].T
    b3 = p["b3"].reshape(1, C)
    beta = p["beta"].reshape(1, C)
    ln2w = p["ln2_w"].reshape(1, C)
    ln2b = p["ln2_b"].reshape(1, C)
    w4 = p["w4"][:, :, 0, 0].T                              # (C, 2C)
    b4 = p["b4"].reshape(1, C2)
    w5 = p["w5"][:, :, 0, 0].T
    b5 = p["b5"].reshape(1, C)
    gamma = p["gamma"].reshape(1, C)

    in_specs = [
        _batch_spec((1, H, W, C)),
        _full_spec((1, C)), _full_spec((1, C)),
        _full_spec((C, C2)), _full_spec((1, C2)),
        _full_spec((9, C2)), _full_spec((1, C2)),
        _full_spec((C, C)), _full_spec((1, C)),
        _full_spec((C, C)), _full_spec((1, C)),
        _full_spec((1, C)),
        _full_spec((1, C)), _full_spec((1, C)),
        _full_spec((C, C2)), _full_spec((1, C2)),
        _full_spec((C, C)), _full_spec((1, C)),
        _full_spec((1, C)),
    ]
    return pl.pallas_call(
        _nafblock_kernel,
        out_shape=jax.ShapeDtypeStruct((N, H, W, C), jnp.float32),
        grid=(N,),
        in_specs=in_specs,
        out_specs=_batch_spec((1, H, W, C)),
        scratch_shapes=[pltpu.VMEM((H + 2, W + 2, C2), jnp.float32)],
        compiler_params=pltpu.CompilerParams(dimension_semantics=("parallel",)),
    )(x_nhwc, ln1w, ln1b, w1, b1, wd, bd, wsca, bsca, w3, b3, beta,
      ln2w, ln2b, w4, b4, w5, b5, gamma)


def _down_conv(x_nhwc, w_oihw, bias):
    N, H, W, C = x_nhwc.shape
    Ho, Wo = H // 2, W // 2
    Co = w_oihw.shape[0]
    # space-to-depth (layout plumbing) so the 2x2/stride-2 conv is a single MXU matmul
    xs = x_nhwc.reshape(N, Ho, 2, Wo, 2, C).transpose(0, 1, 3, 2, 4, 5)
    xs = xs.reshape(N, Ho, Wo, 4 * C)
    wk = jnp.transpose(w_oihw, (2, 3, 1, 0)).reshape(4 * C, Co)
    bk = bias.reshape(1, Co)
    return pl.pallas_call(
        _down_kernel,
        out_shape=jax.ShapeDtypeStruct((N, Ho, Wo, Co), jnp.float32),
        grid=(N,),
        in_specs=[_batch_spec((1, Ho, Wo, 4 * C)),
                  _full_spec((4 * C, Co)),
                  _full_spec((1, Co))],
        out_specs=_batch_spec((1, Ho, Wo, Co)),
        compiler_params=pltpu.CompilerParams(dimension_semantics=("parallel",)),
    )(xs, wk, bk)


@jax.jit
def encoder_forward(x_nchw, params):
    """Encoder.forward: NCHW in, (NCHW final, [NCHW per-stage enc outputs]) out."""
    x = jnp.transpose(x_nchw, (0, 2, 3, 1)).astype(jnp.float32)   # NHWC inside
    x = _intro_conv(x, params["intro"]["w"], params["intro"]["b"])
    encs = []
    for stage in params["stages"]:
        for blk in stage["blocks"]:
            x = _nafblock(x, blk)
        encs.append(x)
        x = _down_conv(x, stage["down"]["w"], stage["down"]["b"])
    to_nchw = lambda a: jnp.transpose(a, (0, 3, 1, 2))
    return to_nchw(x), [to_nchw(e) for e in encs]


# ----------------------------------------------------------------------------- parameters
def _rand(key, shape, scale=0.1):
    return scale * jax.random.normal(key, shape, jnp.float32)


def init_nafblock_params(key, c):
    ks = jax.random.split(key, 18)
    dw = 2 * c
    return {
        "ln1_w": 1.0 + _rand(ks[0], (c,)), "ln1_b": _rand(ks[1], (c,)),
        "w1": _rand(ks[2], (dw, c, 1, 1)), "b1": _rand(ks[3], (dw,)),
        "w2": _rand(ks[4], (dw, 1, 3, 3)), "b2": _rand(ks[5], (dw,)),
        "wsca": _rand(ks[6], (c, c, 1, 1)), "bsca": _rand(ks[7], (c,)),
        "w3": _rand(ks[8], (c, c, 1, 1)), "b3": _rand(ks[9], (c,)),
        "beta": _rand(ks[10], (c,)),
        "ln2_w": 1.0 + _rand(ks[11], (c,)), "ln2_b": _rand(ks[12], (c,)),
        "w4": _rand(ks[13], (dw, c, 1, 1)), "b4": _rand(ks[14], (dw,)),
        "w5": _rand(ks[15], (c, c, 1, 1)), "b5": _rand(ks[16], (c,)),
        "gamma": _rand(ks[17], (c,)),
    }


def init_encoder_params(key, img_channel, width, enc_blk_nums):
    k_intro, key = jax.random.split(key)
    kw, kb = jax.random.split(k_intro)
    params = {"intro": {"w": _rand(kw, (width, img_channel, 3, 3)),
                        "b": _rand(kb, (width,))},
              "stages": []}
    chan = width
    for num in enc_blk_nums:
        blocks = []
        for _ in range(num):
            key, kblk = jax.random.split(key)
            blocks.append(init_nafblock_params(kblk, chan))
        key, kd = jax.random.split(key)
        kdw, kdb = jax.random.split(kd)
        params["stages"].append({
            "blocks": blocks,
            "down": {"w": _rand(kdw, (2 * chan, chan, 2, 2)),
                     "b": _rand(kdb, (2 * chan,))},
        })
        chan *= 2
    return params


# ----------------------------------------------------------------------------- pure-JAX reference
def _conv_ref(x, w, b, stride=1, padding=0, groups=1):
    out = lax.conv_general_dilated(
        x, w, (stride, stride), [(padding, padding), (padding, padding)],
        feature_group_count=groups,
        dimension_numbers=("NCHW", "OIHW", "NCHW"))
    return out + b[None, :, None, None]


def _layer_norm2d_ref(x, w, b):
    mu = jnp.mean(x, axis=1, keepdims=True)
    var = jnp.mean((x - mu) ** 2, axis=1, keepdims=True)
    y = (x - mu) / jnp.sqrt(var + EPS)
    return w[None, :, None, None] * y + b[None, :, None, None]


def _nafblock_ref(inp, p):
    c = inp.shape[1]
    x = _layer_norm2d_ref(inp, p["ln1_w"], p["ln1_b"])
    x = _conv_ref(x, p["w1"], p["b1"])
    x = _conv_ref(x, p["w2"], p["b2"], padding=1, groups=2 * c)
    x1, x2 = jnp.split(x, 2, axis=1)
    x = x1 * x2
    pooled = jnp.mean(x, axis=(2, 3), keepdims=True)
    sca = _conv_ref(pooled, p["wsca"], p["bsca"])
    x = x * sca
    x = _conv_ref(x, p["w3"], p["b3"])
    y = inp + x * p["beta"][None, :, None, None]
    x = _layer_norm2d_ref(y, p["ln2_w"], p["ln2_b"])
    x = _conv_ref(x, p["w4"], p["b4"])
    x1, x2 = jnp.split(x, 2, axis=1)
    x = x1 * x2
    x = _conv_ref(x, p["w5"], p["b5"])
    return y + x * p["gamma"][None, :, None, None]


def encoder_ref(x, params):
    x = _conv_ref(x, params["intro"]["w"], params["intro"]["b"], padding=1)
    encs = []
    for stage in params["stages"]:
        for blk in stage["blocks"]:
            x = _nafblock_ref(x, blk)
        encs.append(x)
        x = _conv_ref(x, stage["down"]["w"], stage["down"]["b"], stride=2)
    return x, encs


# ----------------------------------------------------------------------------- test
if __name__ == "__main__":
    key = jax.random.PRNGKey(0)
    kx, kp = jax.random.split(key)
    N, IMG_C, H, W = 2, 9, 16, 16          # img_channel=9 as in the module default
    WIDTH = 16
    ENC_BLK_NUMS = [1, 1]                  # two encoder stages (width -> 2*width -> 4*width)

    x = jax.random.normal(kx, (N, IMG_C, H, W), jnp.float32)
    params = init_encoder_params(kp, IMG_C, WIDTH, ENC_BLK_NUMS)

    out, encs = encoder_forward(x, params)
    out = jax.block_until_ready(out)
    encs = [jax.block_until_ready(e) for e in encs]

    ref_out, ref_encs = encoder_ref(x, params)

    assert out.shape == ref_out.shape, (out.shape, ref_out.shape)
    assert len(encs) == len(ref_encs)

    def _check(a, b, name):
        err = float(jnp.max(jnp.abs(a - b)))
        assert jnp.allclose(a, b, atol=2e-3, rtol=2e-3), f"{name}: max abs err {err}"

    _check(out, ref_out, "final")
    for i, (a, b) in enumerate(zip(encs, ref_encs)):
        _check(a, b, f"enc{i}")
    print("KERNEL_OK")
</pallas_src>

<mosaic_0001>
module attributes {stable_mosaic.version = 11 : i64} {
  func.func @_conv3x3_kernel(%arg0: i32, %arg1: memref<1x18x18x16xf32, #tpu.memory_space<vmem>>, %arg2: memref<9x16x16xf32, #tpu.memory_space<vmem>>, %arg3: memref<1x16xf32, #tpu.memory_space<vmem>>, %arg4: memref<1x16x16x16xf32, #tpu.memory_space<vmem>>) attributes {dimension_semantics = [#tpu.dimension_semantics<parallel>], iteration_bounds = array<i64: 2>, scalar_prefetch = 0 : i64, scratch_operands = 0 : i64, tpu.core_type = #tpu.core_type<tc>, window_params = [{transform_indices = @transform_0, window_bounds = array<i64: 1, 18, 18, 16>}, {pipeline_mode = #tpu.pipeline_mode<synchronous>, transform_indices = @transform_1, window_bounds = array<i64: 9, 16, 16>}, {pipeline_mode = #tpu.pipeline_mode<synchronous>, transform_indices = @transform_2, window_bounds = array<i64: 1, 16>}, {transform_indices = @transform_3, window_bounds = array<i64: 1, 16, 16, 16>}]} {
    %c0 = arith.constant 0 : index
    %c0_0 = arith.constant 0 : index
    %c0_1 = arith.constant 0 : index
    %c0_2 = arith.constant 0 : index
    %0 = vector.load %arg1[%c0, %c0_0, %c0_1, %c0_2] : memref<1x18x18x16xf32, #tpu.memory_space<vmem>>, vector<1x18x18x16xf32>
    %1 = vector.shape_cast %0 : vector<1x18x18x16xf32> to vector<18x18x16xf32>
    %cst = arith.constant 0.000000e+00 : f32
    %2 = vector.broadcast %cst : f32 to vector<256x16xf32>
    %3 = vector.extract_strided_slice %1 {offsets = [0, 0, 0], sizes = [16, 16, 16], strides = [1, 1, 1]} : vector<18x18x16xf32> to vector<16x16x16xf32>
    %4 = vector.shape_cast %3 : vector<16x16x16xf32> to vector<256x16xf32>
    %c0_3 = arith.constant 0 : index
    %c0_4 = arith.constant 0 : index
    %c0_5 = arith.constant 0 : index
    %5 = vector.load %arg2[%c0_3, %c0_4, %c0_5] : memref<9x16x16xf32, #tpu.memory_space<vmem>>, vector<1x16x16xf32>
    %6 = vector.shape_cast %5 : vector<1x16x16xf32> to vector<16x16xf32>
    %cst_6 = arith.constant dense<0.000000e+00> : vector<256x16xf32>
    %7 = tpu.matmul %4, %6, %cst_6 {dimension_numbers = #tpu.dot_dimension_numbers<[1], [0], [0], [1], [0, 0, 1, 1], [], []>} : vector<256x16xf32>, vector<16x16xf32>, vector<256x16xf32> -> vector<256x16xf32>
    %8 = arith.addf %2, %7 : vector<256x16xf32>
    %9 = vector.extract_strided_slice %1 {offsets = [0, 1, 0], sizes = [16, 16, 16], strides = [1, 1, 1]} : vector<18x18x16xf32> to vector<16x16x16xf32>
    %10 = vector.shape_cast %9 : vector<16x16x16xf32> to vector<256x16xf32>
    %c1 = arith.constant 1 : index
    %c0_7 = arith.constant 0 : index
    %c0_8 = arith.constant 0 : index
    %11 = vector.load %arg2[%c1, %c0_7, %c0_8] : memref<9x16x16xf32, #tpu.memory_space<vmem>>, vector<1x16x16xf32>
    %12 = vector.shape_cast %11 : vector<1x16x16xf32> to vector<16x16xf32>
    %cst_9 = arith.constant dense<0.000000e+00> : vector<256x16xf32>
    %13 = tpu.matmul %10, %12, %cst_9 {dimension_numbers = #tpu.dot_dimension_numbers<[1], [0], [0], [1], [0, 0, 1, 1], [], []>} : vector<256x16xf32>, vector<16x16xf32>, vector<256x16xf32> -> vector<256x16xf32>
    %14 = arith.addf %8, %13 : vector<256x16xf32>
    %15 = vector.extract_strided_slice %1 {offsets = [0, 2, 0], sizes = [16, 16, 16], strides = [1, 1, 1]} : vector<18x18x16xf32> to vector<16x16x16xf32>
    %16 = vector.shape_cast %15 : vector<16x16x16xf32> to vector<256x16xf32>
    %c2 = arith.constant 2 : index
    %c0_10 = arith.constant 0 : index
    %c0_11 = arith.constant 0 : index
    %17 = vector.load %arg2[%c2, %c0_10, %c0_11] : memref<9x16x16xf32, #tpu.memory_space<vmem>>, vector<1x16x16xf32>
    %18 = vector.shape_cast %17 : vector<1x16x16xf32> to vector<16x16xf32>
    %cst_12 = arith.constant dense<0.000000e+00> : vector<256x16xf32>
    %19 = tpu.matmul %16, %18, %cst_12 {dimension_numbers = #tpu.dot_dimension_numbers<[1], [0], [0], [1], [0, 0, 1, 1], [], []>} : vector<256x16xf32>, vector<16x16xf32>, vector<256x16xf32> -> vector<256x16xf32>
    %20 = arith.addf %14, %19 : vector<256x16xf32>
    %21 = vector.extract_strided_slice %1 {offsets = [1, 0, 0], sizes = [16, 16, 16], strides = [1, 1, 1]} : vector<18x18x16xf32> to vector<16x16x16xf32>
    %22 = vector.shape_cast %21 : vector<16x16x16xf32> to vector<256x16xf32>
    %c3 = arith.constant 3 : index
    %c0_13 = arith.constant 0 : index
    %c0_14 = arith.constant 0 : index
    %23 = vector.load %arg2[%c3, %c0_13, %c0_14] : memref<9x16x16xf32, #tpu.memory_space<vmem>>, vector<1x16x16xf32>
    %24 = vector.shape_cast %23 : vector<1x16x16xf32> to vector<16x16xf32>
    %cst_15 = arith.constant dense<0.000000e+00> : vector<256x16xf32>
    %25 = tpu.matmul %22, %24, %cst_15 {dimension_numbers = #tpu.dot_dimension_numbers<[1], [0], [0], [1], [0, 0, 1, 1], [], []>} : vector<256x16xf32>, vector<16x16xf32>, vector<256x16xf32> -> vector<256x16xf32>
    %26 = arith.addf %20, %25 : vector<256x16xf32>
    %27 = vector.extract_strided_slice %1 {offsets = [1, 1, 0], sizes = [16, 16, 16], strides = [1, 1, 1]} : vector<18x18x16xf32> to vector<16x16x16xf32>
    %28 = vector.shape_cast %27 : vector<16x16x16xf32> to vector<256x16xf32>
    %c4 = arith.constant 4 : index
    %c0_16 = arith.constant 0 : index
    %c0_17 = arith.constant 0 : index
    %29 = vector.load %arg2[%c4, %c0_16, %c0_17] : memref<9x16x16xf32, #tpu.memory_space<vmem>>, vector<1x16x16xf32>
    %30 = vector.shape_cast %29 : vector<1x16x16xf32> to vector<16x16xf32>
    %cst_18 = arith.constant dense<0.000000e+00> : vector<256x16xf32>
    %31 = tpu.matmul %28, %30, %cst_18 {dimension_numbers = #tpu.dot_dimension_numbers<[1], [0], [0], [1], [0, 0, 1, 1], [], []>} : vector<256x16xf32>, vector<16x16xf32>, vector<256x16xf32> -> vector<256x16xf32>
    %32 = arith.addf %26, %31 : vector<256x16xf32>
    %33 = vector.extract_strided_slice %1 {offsets = [1, 2, 0], sizes = [16, 16, 16], strides = [1, 1, 1]} : vector<18x18x16xf32> to vector<16x16x16xf32>
    %34 = vector.shape_cast %33 : vector<16x16x16xf32> to vector<256x16xf32>
    %c5 = arith.constant 5 : index
    %c0_19 = arith.constant 0 : index
    %c0_20 = arith.constant 0 : index
    %35 = vector.load %arg2[%c5, %c0_19, %c0_20] : memref<9x16x16xf32, #tpu.memory_space<vmem>>, vector<1x16x16xf32>
    %36 = vector.shape_cast %35 : vector<1x16x16xf32> to vector<16x16xf32>
    %cst_21 = arith.constant dense<0.000000e+00> : vector<256x16xf32>
    %37 = tpu.matmul %34, %36, %cst_21 {dimension_numbers = #tpu.dot_dimension_numbers<[1], [0], [0], [1], [0, 0, 1, 1], [], []>} : vector<256x16xf32>, vector<16x16xf32>, vector<256x16xf32> -> vector<256x16xf32>
    %38 = arith.addf %32, %37 : vector<256x16xf32>
    %39 = vector.extract_strided_slice %1 {offsets = [2, 0, 0], sizes = [16, 16, 16], strides = [1, 1, 1]} : vector<18x18x16xf32> to vector<16x16x16xf32>
    %40 = vector.shape_cast %39 : vector<16x16x16xf32> to vector<256x16xf32>
    %c6 = arith.constant 6 : index
    %c0_22 = arith.constant 0 : index
    %c0_23 = arith.constant 0 : index
    %41 = vector.load %arg2[%c6, %c0_22, %c0_23] : memref<9x16x16xf32, #tpu.memory_space<vmem>>, vector<1x16x16xf32>
    %42 = vector.shape_cast %41 : vector<1x16x16xf32> to vector<16x16xf32>
    %cst_24 = arith.constant dense<0.000000e+00> : vector<256x16xf32>
    %43 = tpu.matmul %40, %42, %cst_24 {dimension_numbers = #tpu.dot_dimension_numbers<[1], [0], [0], [1], [0, 0, 1, 1], [], []>} : vector<256x16xf32>, vector<16x16xf32>, vector<256x16xf32> -> vector<256x16xf32>
    %44 = arith.addf %38, %43 : vector<256x16xf32>
    %45 = vector.extract_strided_slice %1 {offsets = [2, 1, 0], sizes = [16, 16, 16], strides = [1, 1, 1]} : vector<18x18x16xf32> to vector<16x16x16xf32>
    %46 = vector.shape_cast %45 : vector<16x16x16xf32> to vector<256x16xf32>
    %c7 = arith.constant 7 : index
    %c0_25 = arith.constant 0 : index
    %c0_26 = arith.constant 0 : index
    %47 = vector.load %arg2[%c7, %c0_25, %c0_26] : memref<9x16x16xf32, #tpu.memory_space<vmem>>, vector<1x16x16xf32>
    %48 = vector.shape_cast %47 : vector<1x16x16xf32> to vector<16x16xf32>
    %cst_27 = arith.constant dense<0.000000e+00> : vector<256x16xf32>
    %49 = tpu.matmul %46, %48, %cst_27 {dimension_numbers = #tpu.dot_dimension_numbers<[1], [0], [0], [1], [0, 0, 1, 1], [], []>} : vector<256x16xf32>, vector<16x16xf32>, vector<256x16xf32> -> vector<256x16xf32>
    %50 = arith.addf %44, %49 : vector<256x16xf32>
    %51 = vector.extract_strided_slice %1 {offsets = [2, 2, 0], sizes = [16, 16, 16], strides = [1, 1, 1]} : vector<18x18x16xf32> to vector<16x16x16xf32>
    %52 = vector.shape_cast %51 : vector<16x16x16xf32> to vector<256x16xf32>
    %c8 = arith.constant 8 : index
    %c0_28 = arith.constant 0 : index
    %c0_29 = arith.constant 0 : index
    %53 = vector.load %arg2[%c8, %c0_28, %c0_29] : memref<9x16x16xf32, #tpu.memory_space<vmem>>, vector<1x16x16xf32>
    %54 = vector.shape_cast %53 : vector<1x16x16xf32> to vector<16x16xf32>
    %cst_30 = arith.constant dense<0.000000e+00> : vector<256x16xf32>
    %55 = tpu.matmul %52, %54, %cst_30 {dimension_numbers = #tpu.dot_dimension_numbers<[1], [0], [0], [1], [0, 0, 1, 1], [], []>} : vector<256x16xf32>, vector<16x16xf32>, vector<256x16xf32> -> vector<256x16xf32>
    %56 = arith.addf %50, %55 : vector<256x16xf32>
    %c0_31 = arith.constant 0 : index
    %c0_32 = arith.constant 0 : index
    %57 = vector.load %arg3[%c0_31, %c0_32] : memref<1x16xf32, #tpu.memory_space<vmem>>, vector<1x16xf32>
    %58 = vector.broadcast %57 : vector<1x16xf32> to vector<256x16xf32>
    %59 = arith.addf %56, %58 : vector<256x16xf32>
    %60 = vector.shape_cast %59 : vector<256x16xf32> to vector<16x16x16xf32>
    %c0_33 = arith.constant 0 : index
    %c0_34 = arith.constant 0 : index
    %c0_35 = arith.constant 0 : index
    %c0_36 = arith.constant 0 : index
    %61 = vector.load %arg4[%c0_33, %c0_34, %c0_35, %c0_36] : memref<1x16x16x16xf32, #tpu.memory_space<vmem>>, vector<1x16x16x16xf32>
    %62 = vector.shape_cast %61 : vector<1x16x16x16xf32> to vector<16x16x16xf32>
    %63 = vector.shape_cast %60 : vector<16x16x16xf32> to vector<1x16x16x16xf32>
    tpu.vector_store %arg4[%c0_33, %c0_34, %c0_35, %c0_36], %63 {strides = array<i32>} : memref<1x16x16x16xf32, #tpu.memory_space<vmem>>, vector<1x16x16x16xf32>,
    return
  }
  func.func @transform_0(%arg0: i32) -> (i32, i32, i32, i32) {
    %c0_i32 = arith.constant 0 : i32
    %c0_i32_0 = arith.constant 0 : i32
    %c0_i32_1 = arith.constant 0 : i32
    %c0_i32_2 = arith.constant 0 : i32
    return %arg0, %c0_i32, %c0_i32_0, %c0_i32_1 : i32, i32, i32, i32
  }
  func.func @transform_1(%arg0: i32) -> (i32, i32, i32) {
    %c0_i32 = arith.constant 0 : i32
    %c0_i32_0 = arith.constant 0 : i32
    %c0_i32_1 = arith.constant 0 : i32
    %c0_i32_2 = arith.constant 0 : i32
    return %c0_i32, %c0_i32_0, %c0_i32_1 : i32, i32, i32
  }
  func.func @transform_2(%arg0: i32) -> (i32, i32) {
    %c0_i32 = arith.constant 0 : i32
    %c0_i32_0 = arith.constant 0 : i32
    %c0_i32_1 = arith.constant 0 : i32
    return %c0_i32, %c0_i32_0 : i32, i32
  }
  func.func @transform_3(%arg0: i32) -> (i32, i32, i32, i32) {
    %c0_i32 = arith.constant 0 : i32
    %c0_i32_0 = arith.constant 0 : i32
    %c0_i32_1 = arith.constant 0 : i32
    %c0_i32_2 = arith.constant 0 : i32
    return %arg0, %c0_i32, %c0_i32_0, %c0_i32_1 : i32, i32, i32, i32
  }
}

module attributes {stable_mosaic.version = 11 : i64} {
  func.func @_nafblock_kernel(%arg0: i32, %arg1: memref<1x16x16x16xf32, #tpu.memory_space<vmem>>, %arg2: memref<1x16xf32, #tpu.memory_space<vmem>>, %arg3: memref<1x16xf32, #tpu.memory_space<vmem>>, %arg4: memref<16x32xf32, #tpu.memory_space<vmem>>, %arg5: memref<1x32xf32, #tpu.memory_space<vmem>>, %arg6: memref<9x32xf32, #tpu.memory_space<vmem>>, %arg7: memref<1x32xf32, #tpu.memory_space<vmem>>, %arg8: memref<16x16xf32, #tpu.memory_space<vmem>>, %arg9: memref<1x16xf32, #tpu.memory_space<vmem>>, %arg10: memref<16x16xf32, #tpu.memory_space<vmem>>, %arg11: memref<1x16xf32, #tpu.memory_space<vmem>>, %arg12: memref<1x16xf32, #tpu.memory_space<vmem>>, %arg13: memref<1x16xf32, #tpu.memory_space<vmem>>, %arg14: memref<1x16xf32, #tpu.memory_space<vmem>>, %arg15: memref<16x32xf32, #tpu.memory_space<vmem>>, %arg16: memref<1x32xf32, #tpu.memory_space<vmem>>, %arg17: memref<16x16xf32, #tpu.memory_space<vmem>>, %arg18: memref<1x16xf32, #tpu.memory_space<vmem>>, %arg19: memref<1x16xf32, #tpu.memory_space<vmem>>, %arg20: memref<1x16x16x16xf32, #tpu.memory_space<vmem>>, %arg21: memref<18x18x32xf32, #tpu.memory_space<vmem>>) attributes {dimension_semantics = [#tpu.dimension_semantics<parallel>], iteration_bounds = array<i64: 2>, scalar_prefetch = 0 : i64, scratch_operands = 1 : i64, tpu.core_type = #tpu.core_type<tc>, window_params = [{transform_indices = @transform_0, window_bounds = array<i64: 1, 16, 16, 16>}, {pipeline_mode = #tpu.pipeline_mode<synchronous>, transform_indices = @transform_1, window_bounds = array<i64: 1, 16>}, {pipeline_mode = #tpu.pipeline_mode<synchronous>, transform_indices = @transform_2, window_bounds = array<i64: 1, 16>}, {pipeline_mode = #tpu.pipeline_mode<synchronous>, transform_indices = @transform_3, window_bounds = array<i64: 16, 32>}, {pipeline_mode = #tpu.pipeline_mode<synchronous>, transform_indices = @transform_4, window_bounds = array<i64: 1, 32>}, {pipeline_mode = #tpu.pipeline_mode<synchronous>, transform_indices = @transform_5, window_bounds = array<i64: 9, 32>}, {pipeline_mode = #tpu.pipeline_mode<synchronous>, transform_indices = @transform_6, window_bounds = array<i64: 1, 32>}, {pipeline_mode = #tpu.pipeline_mode<synchronous>, transform_indices = @transform_7, window_bounds = array<i64: 16, 16>}, {pipeline_mode = #tpu.pipeline_mode<synchronous>, transform_indices = @transform_8, window_bounds = array<i64: 1, 16>}, {pipeline_mode = #tpu.pipeline_mode<synchronous>, transform_indices = @transform_9, window_bounds = array<i64: 16, 16>}, {pipeline_mode = #tpu.pipeline_mode<synchronous>, transform_indices = @transform_10, window_bounds = array<i64: 1, 16>}, {pipeline_mode = #tpu.pipeline_mode<synchronous>, transform_indices = @transform_11, window_bounds = array<i64: 1, 16>}, {pipeline_mode = #tpu.pipeline_mode<synchronous>, transform_indices = @transform_12, window_bounds = array<i64: 1, 16>}, {pipeline_mode = #tpu.pipeline_mode<synchronous>, transform_indices = @transform_13, window_bounds = array<i64: 1, 16>}, {pipeline_mode = #tpu.pipeline_mode<synchronous>, transform_indices = @transform_14, window_bounds = array<i64: 16, 32>}, {pipeline_mode = #tpu.pipeline_mode<synchronous>, transform_indices = @transform_15, window_bounds = array<i64: 1, 32>}, {pipeline_mode = #tpu.pipeline_mode<synchronous>, transform_indices = @transform_16, window_bounds = array<i64: 16, 16>}, {pipeline_mode = #tpu.pipeline_mode<synchronous>, transform_indices = @transform_17, window_bounds = array<i64: 1, 16>}, {pipeline_mode = #tpu.pipeline_mode<synchronous>, transform_indices = @transform_18, window_bounds = array<i64: 1, 16>}, {transform_indices = @transform_19, window_bounds = array<i64: 1, 16, 16, 16>}]} {
    %c0 = arith.constant 0 : index
    %c0_0 = arith.constant 0 : index
    %c0_1 = arith.constant 0 : index
    %c0_2 = arith.constant 0 : index
    %0 = vector.load %arg1[%c0, %c0_0, %c0_1, %c0_2] : memref<1x16x16x16xf32, #tpu.memory_space<vmem>>, vector<1x16x16x16xf32>
    %1 = vector.shape_cast %0 : vector<1x16x16x16xf32> to vector<16x16x16xf32>
    %2 = vector.shape_cast %1 : vector<16x16x16xf32> to vector<256x16xf32>
    %cst = arith.constant dense<0.000000e+00> : vector<256xf32>
    %3 = vector.multi_reduction <add>, %2, %cst [1] : vector<256x16xf32> to vector<256xf32>
    %4 = vector.shape_cast %3 : vector<256xf32> to vector<256x1xf32>
    %cst_3 = arith.constant 1.600000e+01 : f32
    %5 = vector.broadcast %cst_3 : f32 to vector<256x1xf32>
    %6 = arith.divf %4, %5 : vector<256x1xf32>
    %7 = vector.broadcast %6 : vector<256x1xf32> to vector<256x16xf32>
    %8 = arith.subf %2, %7 : vector<256x16xf32>
    %9 = arith.mulf %8, %8 : vector<256x16xf32>
    %cst_4 = arith.constant dense<0.000000e+00> : vector<256xf32>
    %10 = vector.multi_reduction <add>, %9, %cst_4 [1] : vector<256x16xf32> to vector<256xf32>
    %11 = vector.shape_cast %10 : vector<256xf32> to vector<256x1xf32>
    %cst_5 = arith.constant 1.600000e+01 : f32
    %12 = vector.broadcast %cst_5 : f32 to vector<256x1xf32>
    %13 = arith.divf %11, %12 : vector<256x1xf32>
    %cst_6 = arith.constant 9.99999997E-7 : f32
    %14 = vector.broadcast %cst_6 : f32 to vector<256x1xf32>
    %15 = arith.addf %13, %14 : vector<256x1xf32>
    %16 = math.rsqrt %15 : vector<256x1xf32>
    %17 = vector.broadcast %16 : vector<256x1xf32> to vector<256x16xf32>
    %18 = arith.mulf %8, %17 : vector<256x16xf32>
    %c0_7 = arith.constant 0 : index
    %c0_8 = arith.constant 0 : index
    %19 = vector.load %arg2[%c0_7, %c0_8] : memref<1x16xf32, #tpu.memory_space<vmem>>, vector<1x16xf32>
    %20 = vector.broadcast %19 : vector<1x16xf32> to vector<256x16xf32>
    %21 = arith.mulf %18, %20 : vector<256x16xf32>
    %c0_9 = arith.constant 0 : index
    %c0_10 = arith.constant 0 : index
    %22 = vector.load %arg3[%c0_9, %c0_10] : memref<1x16xf32, #tpu.memory_space<vmem>>, vector<1x16xf32>
    %23 = vector.broadcast %22 : vector<1x16xf32> to vector<256x16xf32>
    %24 = arith.addf %21, %23 : vector<256x16xf32>
    %c0_11 = arith.constant 0 : index
    %c0_12 = arith.constant 0 : index
    %25 = vector.load %arg4[%c0_11, %c0_12] : memref<16x32xf32, #tpu.memory_space<vmem>>, vector<16x32xf32>
    %cst_13 = arith.constant dense<0.000000e+00> : vector<256x32xf32>
    %26 = tpu.matmul %24, %25, %cst_13 {dimension_numbers = #tpu.dot_dimension_numbers<[1], [0], [0], [1], [0, 0, 1, 1], [], []>} : vector<256x16xf32>, vector<16x32xf32>, vector<256x32xf32> -> vector<256x32xf32>
    %c0_14 = arith.constant 0 : index
    %c0_15 = arith.constant 0 : index
    %27 = vector.load %arg5[%c0_14, %c0_15] : memref<1x32xf32, #tpu.memory_space<vmem>>, vector<1x32xf32>
    %28 = vector.broadcast %27 : vector<1x32xf32> to vector<256x32xf32>
    %29 = arith.addf %26, %28 : vector<256x32xf32>
    %cst_16 = arith.constant 0.000000e+00 : f32
    %30 = vector.broadcast %cst_16 : f32 to vector<18x18x32xf32>
    %c0_17 = arith.constant 0 : index
    %c0_18 = arith.constant 0 : index
    %c0_19 = arith.constant 0 : index
    %31 = vector.load %arg21[%c0_17, %c0_18, %c0_19] : memref<18x18x32xf32, #tpu.memory_space<vmem>>, vector<18x18x32xf32>
    tpu.vector_store %arg21[%c0_17, %c0_18, %c0_19], %30 {strides = array<i32>} : memref<18x18x32xf32, #tpu.memory_space<vmem>>, vector<18x18x32xf32>,
    %32 = vector.shape_cast %29 : vector<256x32xf32> to vector<16x16x32xf32>
    %c1 = arith.constant 1 : index
    %c1_20 = arith.constant 1 : index
    %c0_21 = arith.constant 0 : index
    %33 = vector.load %arg21[%c1, %c1_20, %c0_21] : memref<18x18x32xf32, #tpu.memory_space<vmem>>, vector<16x16x32xf32>
    tpu.vector_store %arg21[%c1, %c1_20, %c0_21], %32 {strides = array<i32>} : memref<18x18x32xf32, #tpu.memory_space<vmem>>, vector<16x16x32xf32>,
    %cst_22 = arith.constant 0.000000e+00 : f32
    %34 = vector.broadcast %cst_22 : f32 to vector<16x16x32xf32>
    %c0_23 = arith.constant 0 : index
    %c0_24 = arith.constant 0 : index
    %c0_25 = arith.constant 0 : index
    %35 = vector.load %arg21[%c0_23, %c0_24, %c0_25] : memref<18x18x32xf32, #tpu.memory_space<vmem>>, vector<16x16x32xf32>
    %c0_26 = arith.constant 0 : index
    %c0_27 = arith.constant 0 : index
    %36 = vector.load %arg6[%c0_26, %c0_27] : memref<9x32xf32, #tpu.memory_space<vmem>>, vector<1x32xf32>
    %37 = vector.shape_cast %36 : vector<1x32xf32> to vector<32xf32>
    %38 = vector.shape_cast %37 : vector<32xf32> to vector<1x1x32xf32>
    %39 = vector.broadcast %38 : vector<1x1x32xf32> to vector<16x16x32xf32>
    %40 = arith.mulf %35, %39 : vector<16x16x32xf32>
    %41 = arith.addf %34, %40 : vector<16x16x32xf32>
    %c0_28 = arith.constant 0 : index
    %c1_29 = arith.constant 1 : index
    %c0_30 = arith.constant 0 : index
    %42 = vector.load %arg21[%c0_28, %c1_29, %c0_30] : memref<18x18x32xf32, #tpu.memory_space<vmem>>, vector<16x16x32xf32>
    %c1_31 = arith.constant 1 : index
    %c0_32 = arith.constant 0 : index
    %43 = vector.load %arg6[%c1_31, %c0_32] : memref<9x32xf32, #tpu.memory_space<vmem>>, vector<1x32xf32>
    %44 = vector.shape_cast %43 : vector<1x32xf32> to vector<32xf32>
    %45 = vector.shape_cast %44 : vector<32xf32> to vector<1x1x32xf32>
    %46 = vector.broadcast %45 : vector<1x1x32xf32> to vector<16x16x32xf32>
    %47 = arith.mulf %42, %46 : vector<16x16x32xf32>
    %48 = arith.addf %41, %47 : vector<16x16x32xf32>
    %c0_33 = arith.constant 0 : index
    %c2 = arith.constant 2 : index
    %c0_34 = arith.constant 0 : index
    %49 = vector.load %arg21[%c0_33, %c2, %c0_34] : memref<18x18x32xf32, #tpu.memory_space<vmem>>, vector<16x16x32xf32>
    %c2_35 = arith.constant 2 : index
    %c0_36 = arith.constant 0 : index
    %50 = vector.load %arg6[%c2_35, %c0_36] : memref<9x32xf32, #tpu.memory_space<vmem>>, vector<1x32xf32>
    %51 = vector.shape_cast %50 : vector<1x32xf32> to vector<32xf32>
    %52 = vector.shape_cast %51 : vector<32xf32> to vector<1x1x32xf32>
    %53 = vector.broadcast %52 : vector<1x1x32xf32> to vector<16x16x32xf32>
    %54 = arith.mulf %49, %53 : vector<16x16x32xf32>
    %55 = arith.addf %48, %54 : vector<16x16x32xf32>
    %c1_37 = arith.constant 1 : index
    %c0_38 = arith.constant 0 : index
    %c0_39 = arith.constant 0 : index
    %56 = vector.load %arg21[%c1_37, %c0_38, %c0_39] : memref<18x18x32xf32, #tpu.memory_space<vmem>>, vector<16x16x32xf32>
    %c3 = arith.constant 3 : index
    %c0_40 = arith.constant 0 : index
    %57 = vector.load %arg6[%c3, %c0_40] : memref<9x32xf32, #tpu.memory_space<vmem>>, vector<1x32xf32>
    %58 = vector.shape_cast %57 : vector<1x32xf32> to vector<32xf32>
    %59 = vector.shape_cast %58 : vector<32xf32> to vector<1x1x32xf32>
    %60 = vector.broadcast %59 : vector<1x1x32xf32> to vector<16x16x32xf32>
    %61 = arith.mulf %56, %60 : vector<16x16x32xf32>
    %62 = arith.addf %55, %61 : vector<16x16x32xf32>
    %c1_41 = arith.constant 1 : index
    %c1_42 = arith.constant 1 : index
    %c0_43 = arith.constant 0 : index
    %63 = vector.load %arg21[%c1_41, %c1_42, %c0_43] : memref<18x18x32xf32, #tpu.memory_space<vmem>>, vector<16x16x32xf32>
    %c4 = arith.constant 4 : index
    %c0_44 = arith.constant 0 : index
    %64 = vector.load %arg6[%c4, %c0_44] : memref<9x32xf32, #tpu.memory_space<vmem>>, vector<1x32xf32>
    %65 = vector.shape_cast %64 : vector<1x32xf32> to vector<32xf32>
    %66 = vector.shape_cast %65 : vector<32xf32> to vector<1x1x32xf32>
    %67 = vector.broadcast %66 : vector<1x1x32xf32> to vector<16x16x32xf32>
    %68 = arith.mulf %63, %67 : vector<16x16x32xf32>
    %69 = arith.addf %62, %68 : vector<16x16x32xf32>
    %c1_45 = arith.constant 1 : index
    %c2_46 = arith.constant 2 : index
    %c0_47 = arith.constant 0 : index
    %70 = vector.load %arg21[%c1_45, %c2_46, %c0_47] : memref<18x18x32xf32, #tpu.memory_space<vmem>>, vector<16x16x32xf32>
    %c5 = arith.constant 5 : index
    %c0_48 = arith.constant 0 : index
    %71 = vector.load %arg6[%c5, %c0_48] : memref<9x32xf32, #tpu.memory_space<vmem>>, vector<1x32xf32>
    %72 = vector.shape_cast %71 : vector<1x32xf32> to vector<32xf32>
    %73 = vector.shape_cast %72 : vector<32xf32> to vector<1x1x32xf32>
    %74 = vector.broadcast %73 : vector<1x1x32xf32> to vector<16x16x32xf32>
    %75 = arith.mulf %70, %74 : vector<16x16x32xf32>
    %76 = arith.addf %69, %75 : vector<16x16x32xf32>
    %c2_49 = arith.constant 2 : index
    %c0_50 = arith.constant 0 : index
    %c0_51 = arith.constant 0 : index
    %77 = vector.load %arg21[%c2_49, %c0_50, %c0_51] : memref<18x18x32xf32, #tpu.memory_space<vmem>>, vector<16x16x32xf32>
    %c6 = arith.constant 6 : index
    %c0_52 = arith.constant 0 : index
    %78 = vector.load %arg6[%c6, %c0_52] : memref<9x32xf32, #tpu.memory_space<vmem>>, vector<1x32xf32>
    %79 = vector.shape_cast %78 : vector<1x32xf32> to vector<32xf32>
    %80 = vector.shape_cast %79 : vector<32xf32> to vector<1x1x32xf32>
    %81 = vector.broadcast %80 : vector<1x1x32xf32> to vector<16x16x32xf32>
    %82 = arith.mulf %77, %81 : vector<16x16x32xf32>
    %83 = arith.addf %76, %82 : vector<16x16x32xf32>
    %c2_53 = arith.constant 2 : index
    %c1_54 = arith.constant 1 : index
    %c0_55 = arith.constant 0 : index
    %84 = vector.load %arg21[%c2_53, %c1_54, %c0_55] : memref<18x18x32xf32, #tpu.memory_space<vmem>>, vector<16x16x32xf32>
    %c7 = arith.constant 7 : index
    %c0_56 = arith.constant 0 : index
    %85 = vector.load %arg6[%c7, %c0_56] : memref<9x32xf32, #tpu.memory_space<vmem>>, vector<1x32xf32>
    %86 = vector.shape_cast %85 : vector<1x32xf32> to vector<32xf32>
    %87 = vector.shape_cast %86 : vector<32xf32> to vector<1x1x32xf32>
    %88 = vector.broadcast %87 : vector<1x1x32xf32> to vector<16x16x32xf32>
    %89 = arith.mulf %84, %88 : vector<16x16x32xf32>
    %90 = arith.addf %83, %89 : vector<16x16x32xf32>
    %c2_57 = arith.constant 2 : index
    %c2_58 = arith.constant 2 : index
    %c0_59 = arith.constant 0 : index
    %91 = vector.load %arg21[%c2_57, %c2_58, %c0_59] : memref<18x18x32xf32, #tpu.memory_space<vmem>>, vector<16x16x32xf32>
    %c8 = arith.constant 8 : index
    %c0_60 = arith.constant 0 : index
    %92 = vector.load %arg6[%c8, %c0_60] : memref<9x32xf32, #tpu.memory_space<vmem>>, vector<1x32xf32>
    %93 = vector.shape_cast %92 : vector<1x32xf32> to vector<32xf32>
    %94 = vector.shape_cast %93 : vector<32xf32> to vector<1x1x32xf32>
    %95 = vector.broadcast %94 : vector<1x1x32xf32> to vector<16x16x32xf32>
    %96 = arith.mulf %91, %95 : vector<16x16x32xf32>
    %97 = arith.addf %90, %96 : vector<16x16x32xf32>
    %c0_61 = arith.constant 0 : index
    %c0_62 = arith.constant 0 : index
    %98 = vector.load %arg7[%c0_61, %c0_62] : memref<1x32xf32, #tpu.memory_space<vmem>>, vector<1x32xf32>
    %99 = vector.shape_cast %98 : vector<1x32xf32> to vector<1x1x32xf32>
    %100 = vector.broadcast %99 : vector<1x1x32xf32> to vector<16x16x32xf32>
    %101 = arith.addf %97, %100 : vector<16x16x32xf32>
    %102 = vector.extract_strided_slice %101 {offsets = [0, 0, 0], sizes = [16, 16, 16], strides = [1, 1, 1]} : vector<16x16x32xf32> to vector<16x16x16xf32>
    %103 = vector.extract_strided_slice %101 {offsets = [0, 0, 16], sizes = [16, 16, 16], strides = [1, 1, 1]} : vector<16x16x32xf32> to vector<16x16x16xf32>
    %104 = arith.mulf %102, %103 : vector<16x16x16xf32>
    %105 = vector.shape_cast %104 : vector<16x16x16xf32> to vector<256x16xf32>
    %cst_63 = arith.constant dense<0.000000e+00> : vector<16xf32>
    %106 = vector.multi_reduction <add>, %105, %cst_63 [0] : vector<256x16xf32> to vector<16xf32>
    %107 = vector.shape_cast %106 : vector<16xf32> to vector<1x16xf32>
    %cst_64 = arith.constant 2.560000e+02 : f32
    %108 = vector.broadcast %cst_64 : f32 to vector<1x16xf32>
    %109 = arith.divf %107, %108 : vector<1x16xf32>
    %c0_65 = arith.constant 0 : index
    %c0_66 = arith.constant 0 : index
    %110 = vector.load %arg8[%c0_65, %c0_66] : memref<16x16xf32, #tpu.memory_space<vmem>>, vector<16x16xf32>
    %cst_67 = arith.constant dense<0.000000e+00> : vector<1x16xf32>
    %111 = tpu.matmul %109, %110, %cst_67 {dimension_numbers = #tpu.dot_dimension_numbers<[1], [0], [0], [1], [0, 0, 1, 1], [], []>} : vector<1x16xf32>, vector<16x16xf32>, vector<1x16xf32> -> vector<1x16xf32>
    %c0_68 = arith.constant 0 : index
    %c0_69 = arith.constant 0 : index
    %112 = vector.load %arg9[%c0_68, %c0_69] : memref<1x16xf32, #tpu.memory_space<vmem>>, vector<1x16xf32>
    %113 = arith.addf %111, %112 : vector<1x16xf32>
    %114 = vector.broadcast %113 : vector<1x16xf32> to vector<256x16xf32>
    %115 = arith.mulf %105, %114 : vector<256x16xf32>
    %c0_70 = arith.constant 0 : index
    %c0_71 = arith.constant 0 : index
    %116 = vector.load %arg10[%c0_70, %c0_71] : memref<16x16xf32, #tpu.memory_space<vmem>>, vector<16x16xf32>
    %cst_72 = arith.constant dense<0.000000e+00> : vector<256x16xf32>
    %117 = tpu.matmul %115, %116, %cst_72 {dimension_numbers = #tpu.dot_dimension_numbers<[1], [0], [0], [1], [0, 0, 1, 1], [], []>} : vector<256x16xf32>, vector<16x16xf32>, vector<256x16xf32> -> vector<256x16xf32>
    %c0_73 = arith.constant 0 : index
    %c0_74 = arith.constant 0 : index
    %118 = vector.load %arg11[%c0_73, %c0_74] : memref<1x16xf32, #tpu.memory_space<vmem>>, vector<1x16xf32>
    %119 = vector.broadcast %118 : vector<1x16xf32> to vector<256x16xf32>
    %120 = arith.addf %117, %119 : vector<256x16xf32>
    %c0_75 = arith.constant 0 : index
    %c0_76 = arith.constant 0 : index
    %121 = vector.load %arg12[%c0_75, %c0_76] : memref<1x16xf32, #tpu.memory_space<vmem>>, vector<1x16xf32>
    %122 = vector.broadcast %121 : vector<1x16xf32> to vector<256x16xf32>
    %123 = arith.mulf %120, %122 : vector<256x16xf32>
    %124 = arith.addf %2, %123 : vector<256x16xf32>
    %cst_77 = arith.constant dense<0.000000e+00> : vector<256xf32>
    %125 = vector.multi_reduction <add>, %124, %cst_77 [1] : vector<256x16xf32> to vector<256xf32>
    %126 = vector.shape_cast %125 : vector<256xf32> to vector<256x1xf32>
    %cst_78 = arith.constant 1.600000e+01 : f32
    %127 = vector.broadcast %cst_78 : f32 to vector<256x1xf32>
    %128 = arith.divf %126, %127 : vector<256x1xf32>
    %129 = vector.broadcast %128 : vector<256x1xf32> to vector<256x16xf32>
    %130 = arith.subf %124, %129 : vector<256x16xf32>
    %131 = arith.mulf %130, %130 : vector<256x16xf32>
    %cst_79 = arith.constant dense<0.000000e+00> : vector<256xf32>
    %132 = vector.multi_reduction <add>, %131, %cst_79 [1] : vector<256x16xf32> to vector<256xf32>
    %133 = vector.shape_cast %132 : vector<256xf32> to vector<256x1xf32>
    %cst_80 = arith.constant 1.600000e+01 : f32
    %134 = vector.broadcast %cst_80 : f32 to vector<256x1xf32>
    %135 = arith.divf %133, %134 : vector<256x1xf32>
    %cst_81 = arith.constant 9.99999997E-7 : f32
    %136 = vector.broadcast %cst_81 : f32 to vector<256x1xf32>
    %137 = arith.addf %135, %136 : vector<256x1xf32>
    %138 = math.rsqrt %137 : vector<256x1xf32>
    %139 = vector.broadcast %138 : vector<256x1xf32> to vector<256x16xf32>
    %140 = arith.mulf %130, %139 : vector<256x16xf32>
    %c0_82 = arith.constant 0 : index
    %c0_83 = arith.constant 0 : index
    %141 = vector.load %arg13[%c0_82, %c0_83] : memref<1x16xf32, #tpu.memory_space<vmem>>, vector<1x16xf32>
    %142 = vector.broadcast %141 : vector<1x16xf32> to vector<256x16xf32>
    %143 = arith.mulf %140, %142 : vector<256x16xf32>
    %c0_84 = arith.constant 0 : index
    %c0_85 = arith.constant 0 : index
    %144 = vector.load %arg14[%c0_84, %c0_85] : memref<1x16xf32, #tpu.memory_space<vmem>>, vector<1x16xf32>
    %145 = vector.broadcast %144 : vector<1x16xf32> to vector<256x16xf32>
    %146 = arith.addf %143, %145 : vector<256x16xf32>
    %c0_86 = arith.constant 0 : index
    %c0_87 = arith.constant 0 : index
    %147 = vector.load %arg15[%c0_86, %c0_87] : memref<16x32xf32, #tpu.memory_space<vmem>>, vector<16x32xf32>
    %cst_88 = arith.constant dense<0.000000e+00> : vector<256x32xf32>
    %148 = tpu.matmul %146, %147, %cst_88 {dimension_numbers = #tpu.dot_dimension_numbers<[1], [0], [0], [1], [0, 0, 1, 1], [], []>} : vector<256x16xf32>, vector<16x32xf32>, vector<256x32xf32> -> vector<256x32xf32>
    %c0_89 = arith.constant 0 : index
    %c0_90 = arith.constant 0 : index
    %149 = vector.load %arg16[%c0_89, %c0_90] : memref<1x32xf32, #tpu.memory_space<vmem>>, vector<1x32xf32>
    %150 = vector.broadcast %149 : vector<1x32xf32> to vector<256x32xf32>
    %151 = arith.addf %148, %150 : vector<256x32xf32>
    %152 = vector.extract_strided_slice %151 {offsets = [0, 0], sizes = [256, 16], strides = [1, 1]} : vector<256x32xf32> to vector<256x16xf32>
    %153 = vector.extract_strided_slice %151 {offsets = [0, 16], sizes = [256, 16], strides = [1, 1]} : vector<256x32xf32> to vector<256x16xf32>
    %154 = arith.mulf %152, %153 : vector<256x16xf32>
    %c0_91 = arith.constant 0 : index
    %c0_92 = arith.constant 0 : index
    %155 = vector.load %arg17[%c0_91, %c0_92] : memref<16x16xf32, #tpu.memory_space<vmem>>, vector<16x16xf32>
    %cst_93 = arith.constant dense<0.000000e+00> : vector<256x16xf32>
    %156 = tpu.matmul %154, %155, %cst_93 {dimension_numbers = #tpu.dot_dimension_numbers<[1], [0], [0], [1], [0, 0, 1, 1], [], []>} : vector<256x16xf32>, vector<16x16xf32>, vector<256x16xf32> -> vector<256x16xf32>
    %c0_94 = arith.constant 0 : index
    %c0_95 = arith.constant 0 : index
    %157 = vector.load %arg18[%c0_94, %c0_95] : memref<1x16xf32, #tpu.memory_space<vmem>>, vector<1x16xf32>
    %158 = vector.broadcast %157 : vector<1x16xf32> to vector<256x16xf32>
    %159 = arith.addf %156, %158 : vector<256x16xf32>
    %c0_96 = arith.constant 0 : index
    %c0_97 = arith.constant 0 : index
    %160 = vector.load %arg19[%c0_96, %c0_97] : memref<1x16xf32, #tpu.memory_space<vmem>>, vector<1x16xf32>
    %161 = vector.broadcast %160 : vector<1x16xf32> to vector<256x16xf32>
    %162 = arith.mulf %159, %161 : vector<256x16xf32>
    %163 = arith.addf %124, %162 : vector<256x16xf32>
    %164 = vector.shape_cast %163 : vector<256x16xf32> to vector<16x16x16xf32>
    %c0_98 = arith.constant 0 : index
    %c0_99 = arith.constant 0 : index
    %c0_100 = arith.constant 0 : index
    %c0_101 = arith.constant 0 : index
    %165 = vector.load %arg20[%c0_98, %c0_99, %c0_100, %c0_101] : memref<1x16x16x16xf32, #tpu.memory_space<vmem>>, vector<1x16x16x16xf32>
    %166 = vector.shape_cast %165 : vector<1x16x16x16xf32> to vector<16x16x16xf32>
    %167 = vector.shape_cast %164 : vector<16x16x16xf32> to vector<1x16x16x16xf32>
    tpu.vector_store %arg20[%c0_98, %c0_99, %c0_100, %c0_101], %167 {strides = array<i32>} : memref<1x16x16x16xf32, #tpu.memory_space<vmem>>, vector<1x16x16x16xf32>,
    return
  }
  func.func @transform_0(%arg0: i32) -> (i32, i32, i32, i32) {
    %c0_i32 = arith.constant 0 : i32
    %c0_i32_0 = arith.constant 0 : i32
    %c0_i32_1 = arith.constant 0 : i32
    %c0_i32_2 = arith.constant 0 : i32
    return %arg0, %c0_i32, %c0_i32_0, %c0_i32_1 : i32, i32, i32, i32
  }
  func.func @transform_1(%arg0: i32) -> (i32, i32) {
    %c0_i32 = arith.constant 0 : i32
    %c0_i32_0 = arith.constant 0 : i32
    %c0_i32_1 = arith.constant 0 : i32
    return %c0_i32, %c0_i32_0 : i32, i32
  }
  func.func @transform_2(%arg0: i32) -> (i32, i32) {
    %c0_i32 = arith.constant 0 : i32
    %c0_i32_0 = arith.constant 0 : i32
    %c0_i32_1 = arith.constant 0 : i32
    return %c0_i32, %c0_i32_0 : i32, i32
  }
  func.func @transform_3(%arg0: i32) -> (i32, i32) {
    %c0_i32 = arith.constant 0 : i32
    %c0_i32_0 = arith.constant 0 : i32
    %c0_i32_1 = arith.constant 0 : i32
    return %c0_i32, %c0_i32_0 : i32, i32
  }
  func.func @transform_4(%arg0: i32) -> (i32, i32) {
    %c0_i32 = arith.constant 0 : i32
    %c0_i32_0 = arith.constant 0 : i32
    %c0_i32_1 = arith.constant 0 : i32
    return %c0_i32, %c0_i32_0 : i32, i32
  }
  func.func @transform_5(%arg0: i32) -> (i32, i32) {
    %c0_i32 = arith.constant 0 : i32
    %c0_i32_0 = arith.constant 0 : i32
    %c0_i32_1 = arith.constant 0 : i32
    return %c0_i32, %c0_i32_0 : i32, i32
  }
  func.func @transform_6(%arg0: i32) -> (i32, i32) {
    %c0_i32 = arith.constant 0 : i32
    %c0_i32_0 = arith.constant 0 : i32
    %c0_i32_1 = arith.constant 0 : i32
    return %c0_i32, %c0_i32_0 : i32, i32
  }
  func.func @transform_7(%arg0: i32) -> (i32, i32) {
    %c0_i32 = arith.constant 0 : i32
    %c0_i32_0 = arith.constant 0 : i32
    %c0_i32_1 = arith.constant 0 : i32
    return %c0_i32, %c0_i32_0 : i32, i32
  }
  func.func @transform_8(%arg0: i32) -> (i32, i32) {
    %c0_i32 = arith.constant 0 : i32
    %c0_i32_0 = arith.constant 0 : i32
    %c0_i32_1 = arith.constant 0 : i32
    return %c0_i32, %c0_i32_0 : i32, i32
  }
  func.func @transform_9(%arg0: i32) -> (i32, i32) {
    %c0_i32 = arith.constant 0 : i32
    %c0_i32_0 = arith.constant 0 : i32
    %c0_i32_1 = arith.constant 0 : i32
    return %c0_i32, %c0_i32_0 : i32, i32
  }
  func.func @transform_10(%arg0: i32) -> (i32, i32) {
    %c0_i32 = arith.constant 0 : i32
    %c0_i32_0 = arith.constant 0 : i32
    %c0_i32_1 = arith.constant 0 : i32
    return %c0_i32, %c0_i32_0 : i32, i32
  }
  func.func @transform_11(%arg0: i32) -> (i32, i32) {
    %c0_i32 = arith.constant 0 : i32
    %c0_i32_0 = arith.constant 0 : i32
    %c0_i32_1 = arith.constant 0 : i32
    return %c0_i32, %c0_i32_0 : i32, i32
  }
  func.func @transform_12(%arg0: i32) -> (i32, i32) {
    %c0_i32 = arith.constant 0 : i32
    %c0_i32_0 = arith.constant 0 : i32
    %c0_i32_1 = arith.constant 0 : i32
    return %c0_i32, %c0_i32_0 : i32, i32
  }
  func.func @transform_13(%arg0: i32) -> (i32, i32) {
    %c0_i32 = arith.constant 0 : i32
    %c0_i32_0 = arith.constant 0 : i32
    %c0_i32_1 = arith.constant 0 : i32
    return %c0_i32, %c0_i32_0 : i32, i32
  }
  func.func @transform_14(%arg0: i32) -> (i32, i32) {
    %c0_i32 = arith.constant 0 : i32
    %c0_i32_0 = arith.constant 0 : i32
    %c0_i32_1 = arith.constant 0 : i32
    return %c0_i32, %c0_i32_0 : i32, i32
  }
  func.func @transform_15(%arg0: i32) -> (i32, i32) {
    %c0_i32 = arith.constant 0 : i32
    %c0_i32_0 = arith.constant 0 : i32
    %c0_i32_1 = arith.constant 0 : i32
    return %c0_i32, %c0_i32_0 : i32, i32
  }
  func.func @transform_16(%arg0: i32) -> (i32, i32) {
    %c0_i32 = arith.constant 0 : i32
    %c0_i32_0 = arith.constant 0 : i32
    %c0_i32_1 = arith.constant 0 : i32
    return %c0_i32, %c0_i32_0 : i32, i32
  }
  func.func @transform_17(%arg0: i32) -> (i32, i32) {
    %c0_i32 = arith.constant 0 : i32
    %c0_i32_0 = arith.constant 0 : i32
    %c0_i32_1 = arith.constant 0 : i32
    return %c0_i32, %c0_i32_0 : i32, i32
  }
  func.func @transform_18(%arg0: i32) -> (i32, i32) {
    %c0_i32 = arith.constant 0 : i32
    %c0_i32_0 = arith.constant 0 : i32
    %c0_i32_1 = arith.constant 0 : i32
    return %c0_i32, %c0_i32_0 : i32, i32
  }
  func.func @transform_19(%arg0: i32) -> (i32, i32, i32, i32) {
    %c0_i32 = arith.constant 0 : i32
    %c0_i32_0 = arith.constant 0 : i32
    %c0_i32_1 = arith.constant 0 : i32
    %c0_i32_2 = arith.constant 0 : i32
    return %arg0, %c0_i32, %c0_i32_0, %c0_i32_1 : i32, i32, i32, i32
  }
}

module attributes {stable_mosaic.version = 11 : i64} {
  func.func @_down_kernel(%arg0: i32, %arg1: memref<1x8x8x64xf32, #tpu.memory_space<vmem>>, %arg2: memref<64x32xf32, #tpu.memory_space<vmem>>, %arg3: memref<1x32xf32, #tpu.memory_space<vmem>>, %arg4: memref<1x8x8x32xf32, #tpu.memory_space<vmem>>) attributes {dimension_semantics = [#tpu.dimension_semantics<parallel>], iteration_bounds = array<i64: 2>, scalar_prefetch = 0 : i64, scratch_operands = 0 : i64, tpu.core_type = #tpu.core_type<tc>, window_params = [{transform_indices = @transform_0, window_bounds = array<i64: 1, 8, 8, 64>}, {pipeline_mode = #tpu.pipeline_mode<synchronous>, transform_indices = @transform_1, window_bounds = array<i64: 64, 32>}, {pipeline_mode = #tpu.pipeline_mode<synchronous>, transform_indices = @transform_2, window_bounds = array<i64: 1, 32>}, {transform_indices = @transform_3, window_bounds = array<i64: 1, 8, 8, 32>}]} {
    %c0 = arith.constant 0 : index
    %c0_0 = arith.constant 0 : index
    %c0_1 = arith.constant 0 : index
    %c0_2 = arith.constant 0 : index
    %0 = vector.load %arg1[%c0, %c0_0, %c0_1, %c0_2] : memref<1x8x8x64xf32, #tpu.memory_space<vmem>>, vector<1x8x8x64xf32>
    %1 = vector.shape_cast %0 : vector<1x8x8x64xf32> to vector<8x8x64xf32>
    %2 = vector.shape_cast %1 : vector<8x8x64xf32> to vector<64x64xf32>
    %c0_3 = arith.constant 0 : index
    %c0_4 = arith.constant 0 : index
    %3 = vector.load %arg2[%c0_3, %c0_4] : memref<64x32xf32, #tpu.memory_space<vmem>>, vector<64x32xf32>
    %cst = arith.constant dense<0.000000e+00> : vector<64x32xf32>
    %4 = tpu.matmul %2, %3, %cst {dimension_numbers = #tpu.dot_dimension_numbers<[1], [0], [0], [1], [0, 0, 1, 1], [], []>} : vector<64x64xf32>, vector<64x32xf32>, vector<64x32xf32> -> vector<64x32xf32>
    %c0_5 = arith.constant 0 : index
    %c0_6 = arith.constant 0 : index
    %5 = vector.load %arg3[%c0_5, %c0_6] : memref<1x32xf32, #tpu.memory_space<vmem>>, vector<1x32xf32>
    %6 = vector.broadcast %5 : vector<1x32xf32> to vector<64x32xf32>
    %7 = arith.addf %4, %6 : vector<64x32xf32>
    %8 = vector.shape_cast %7 : vector<64x32xf32> to vector<8x8x32xf32>
    %c0_7 = arith.constant 0 : index
    %c0_8 = arith.constant 0 : index
    %c0_9 = arith.constant 0 : index
    %c0_10 = arith.constant 0 : index
    %9 = vector.load %arg4[%c0_7, %c0_8, %c0_9, %c0_10] : memref<1x8x8x32xf32, #tpu.memory_space<vmem>>, vector<1x8x8x32xf32>
    %10 = vector.shape_cast %9 : vector<1x8x8x32xf32> to vector<8x8x32xf32>
    %11 = vector.shape_cast %8 : vector<8x8x32xf32> to vector<1x8x8x32xf32>
    tpu.vector_store %arg4[%c0_7, %c0_8, %c0_9, %c0_10], %11 {strides = array<i32>} : memref<1x8x8x32xf32, #tpu.memory_space<vmem>>, vector<1x8x8x32xf32>,
    return
  }
  func.func @transform_0(%arg0: i32) -> (i32, i32, i32, i32) {
    %c0_i32 = arith.constant 0 : i32
    %c0_i32_0 = arith.constant 0 : i32
    %c0_i32_1 = arith.constant 0 : i32
    %c0_i32_2 = arith.constant 0 : i32
    return %arg0, %c0_i32, %c0_i32_0, %c0_i32_1 : i32, i32, i32, i32
  }
  func.func @transform_1(%arg0: i32) -> (i32, i32) {
    %c0_i32 = arith.constant 0 : i32
    %c0_i32_0 = arith.constant 0 : i32
    %c0_i32_1 = arith.constant 0 : i32
    return %c0_i32, %c0_i32_0 : i32, i32
  }
  func.func @transform_2(%arg0: i32) -> (i32, i32) {
    %c0_i32 = arith.constant 0 : i32
    %c0_i32_0 = arith.constant 0 : i32
    %c0_i32_1 = arith.constant 0 : i32
    return %c0_i32, %c0_i32_0 : i32, i32
  }
  func.func @transform_3(%arg0: i32) -> (i32, i32, i32, i32) {
    %c0_i32 = arith.constant 0 : i32
    %c0_i32_0 = arith.constant 0 : i32
    %c0_i32_1 = arith.constant 0 : i32
    %c0_i32_2 = arith.constant 0 : i32
    return %arg0, %c0_i32, %c0_i32_0, %c0_i32_1 : i32, i32, i32, i32
  }
}

module attributes {stable_mosaic.version = 11 : i64} {
  func.func @_nafblock_kernel(%arg0: i32, %arg1: memref<1x8x8x32xf32, #tpu.memory_space<vmem>>, %arg2: memref<1x32xf32, #tpu.memory_space<vmem>>, %arg3: memref<1x32xf32, #tpu.memory_space<vmem>>, %arg4: memref<32x64xf32, #tpu.memory_space<vmem>>, %arg5: memref<1x64xf32, #tpu.memory_space<vmem>>, %arg6: memref<9x64xf32, #tpu.memory_space<vmem>>, %arg7: memref<1x64xf32, #tpu.memory_space<vmem>>, %arg8: memref<32x32xf32, #tpu.memory_space<vmem>>, %arg9: memref<1x32xf32, #tpu.memory_space<vmem>>, %arg10: memref<32x32xf32, #tpu.memory_space<vmem>>, %arg11: memref<1x32xf32, #tpu.memory_space<vmem>>, %arg12: memref<1x32xf32, #tpu.memory_space<vmem>>, %arg13: memref<1x32xf32, #tpu.memory_space<vmem>>, %arg14: memref<1x32xf32, #tpu.memory_space<vmem>>, %arg15: memref<32x64xf32, #tpu.memory_space<vmem>>, %arg16: memref<1x64xf32, #tpu.memory_space<vmem>>, %arg17: memref<32x32xf32, #tpu.memory_space<vmem>>, %arg18: memref<1x32xf32, #tpu.memory_space<vmem>>, %arg19: memref<1x32xf32, #tpu.memory_space<vmem>>, %arg20: memref<1x8x8x32xf32, #tpu.memory_space<vmem>>, %arg21: memref<10x10x64xf32, #tpu.memory_space<vmem>>) attributes {dimension_semantics = [#tpu.dimension_semantics<parallel>], iteration_bounds = array<i64: 2>, scalar_prefetch = 0 : i64, scratch_operands = 1 : i64, tpu.core_type = #tpu.core_type<tc>, window_params = [{transform_indices = @transform_0, window_bounds = array<i64: 1, 8, 8, 32>}, {pipeline_mode = #tpu.pipeline_mode<synchronous>, transform_indices = @transform_1, window_bounds = array<i64: 1, 32>}, {pipeline_mode = #tpu.pipeline_mode<synchronous>, transform_indices = @transform_2, window_bounds = array<i64: 1, 32>}, {pipeline_mode = #tpu.pipeline_mode<synchronous>, transform_indices = @transform_3, window_bounds = array<i64: 32, 64>}, {pipeline_mode = #tpu.pipeline_mode<synchronous>, transform_indices = @transform_4, window_bounds = array<i64: 1, 64>}, {pipeline_mode = #tpu.pipeline_mode<synchronous>, transform_indices = @transform_5, window_bounds = array<i64: 9, 64>}, {pipeline_mode = #tpu.pipeline_mode<synchronous>, transform_indices = @transform_6, window_bounds = array<i64: 1, 64>}, {pipeline_mode = #tpu.pipeline_mode<synchronous>, transform_indices = @transform_7, window_bounds = array<i64: 32, 32>}, {pipeline_mode = #tpu.pipeline_mode<synchronous>, transform_indices = @transform_8, window_bounds = array<i64: 1, 32>}, {pipeline_mode = #tpu.pipeline_mode<synchronous>, transform_indices = @transform_9, window_bounds = array<i64: 32, 32>}, {pipeline_mode = #tpu.pipeline_mode<synchronous>, transform_indices = @transform_10, window_bounds = array<i64: 1, 32>}, {pipeline_mode = #tpu.pipeline_mode<synchronous>, transform_indices = @transform_11, window_bounds = array<i64: 1, 32>}, {pipeline_mode = #tpu.pipeline_mode<synchronous>, transform_indices = @transform_12, window_bounds = array<i64: 1, 32>}, {pipeline_mode = #tpu.pipeline_mode<synchronous>, transform_indices = @transform_13, window_bounds = array<i64: 1, 32>}, {pipeline_mode = #tpu.pipeline_mode<synchronous>, transform_indices = @transform_14, window_bounds = array<i64: 32, 64>}, {pipeline_mode = #tpu.pipeline_mode<synchronous>, transform_indices = @transform_15, window_bounds = array<i64: 1, 64>}, {pipeline_mode = #tpu.pipeline_mode<synchronous>, transform_indices = @transform_16, window_bounds = array<i64: 32, 32>}, {pipeline_mode = #tpu.pipeline_mode<synchronous>, transform_indices = @transform_17, window_bounds = array<i64: 1, 32>}, {pipeline_mode = #tpu.pipeline_mode<synchronous>, transform_indices = @transform_18, window_bounds = array<i64: 1, 32>}, {transform_indices = @transform_19, window_bounds = array<i64: 1, 8, 8, 32>}]} {
    %c0 = arith.constant 0 : index
    %c0_0 = arith.constant 0 : index
    %c0_1 = arith.constant 0 : index
    %c0_2 = arith.constant 0 : index
    %0 = vector.load %arg1[%c0, %c0_0, %c0_1, %c0_2] : memref<1x8x8x32xf32, #tpu.memory_space<vmem>>, vector<1x8x8x32xf32>
    %1 = vector.shape_cast %0 : vector<1x8x8x32xf32> to vector<8x8x32xf32>
    %2 = vector.shape_cast %1 : vector<8x8x32xf32> to vector<64x32xf32>
    %cst = arith.constant dense<0.000000e+00> : vector<64xf32>
    %3 = vector.multi_reduction <add>, %2, %cst [1] : vector<64x32xf32> to vector<64xf32>
    %4 = vector.shape_cast %3 : vector<64xf32> to vector<64x1xf32>
    %cst_3 = arith.constant 3.200000e+01 : f32
    %5 = vector.broadcast %cst_3 : f32 to vector<64x1xf32>
    %6 = arith.divf %4, %5 : vector<64x1xf32>
    %7 = vector.broadcast %6 : vector<64x1xf32> to vector<64x32xf32>
    %8 = arith.subf %2, %7 : vector<64x32xf32>
    %9 = arith.mulf %8, %8 : vector<64x32xf32>
    %cst_4 = arith.constant dense<0.000000e+00> : vector<64xf32>
    %10 = vector.multi_reduction <add>, %9, %cst_4 [1] : vector<64x32xf32> to vector<64xf32>
    %11 = vector.shape_cast %10 : vector<64xf32> to vector<64x1xf32>
    %cst_5 = arith.constant 3.200000e+01 : f32
    %12 = vector.broadcast %cst_5 : f32 to vector<64x1xf32>
    %13 = arith.divf %11, %12 : vector<64x1xf32>
    %cst_6 = arith.constant 9.99999997E-7 : f32
    %14 = vector.broadcast %cst_6 : f32 to vector<64x1xf32>
    %15 = arith.addf %13, %14 : vector<64x1xf32>
    %16 = math.rsqrt %15 : vector<64x1xf32>
    %17 = vector.broadcast %16 : vector<64x1xf32> to vector<64x32xf32>
    %18 = arith.mulf %8, %17 : vector<64x32xf32>
    %c0_7 = arith.constant 0 : index
    %c0_8 = arith.constant 0 : index
    %19 = vector.load %arg2[%c0_7, %c0_8] : memref<1x32xf32, #tpu.memory_space<vmem>>, vector<1x32xf32>
    %20 = vector.broadcast %19 : vector<1x32xf32> to vector<64x32xf32>
    %21 = arith.mulf %18, %20 : vector<64x32xf32>
    %c0_9 = arith.constant 0 : index
    %c0_10 = arith.constant 0 : index
    %22 = vector.load %arg3[%c0_9, %c0_10] : memref<1x32xf32, #tpu.memory_space<vmem>>, vector<1x32xf32>
    %23 = vector.broadcast %22 : vector<1x32xf32> to vector<64x32xf32>
    %24 = arith.addf %21, %23 : vector<64x32xf32>
    %c0_11 = arith.constant 0 : index
    %c0_12 = arith.constant 0 : index
    %25 = vector.load %arg4[%c0_11, %c0_12] : memref<32x64xf32, #tpu.memory_space<vmem>>, vector<32x64xf32>
    %cst_13 = arith.constant dense<0.000000e+00> : vector<64x64xf32>
    %26 = tpu.matmul %24, %25, %cst_13 {dimension_numbers = #tpu.dot_dimension_numbers<[1], [0], [0], [1], [0, 0, 1, 1], [], []>} : vector<64x32xf32>, vector<32x64xf32>, vector<64x64xf32> -> vector<64x64xf32>
    %c0_14 = arith.constant 0 : index
    %c0_15 = arith.constant 0 : index
    %27 = vector.load %arg5[%c0_14, %c0_15] : memref<1x64xf32, #tpu.memory_space<vmem>>, vector<1x64xf32>
    %28 = vector.broadcast %27 : vector<1x64xf32> to vector<64x64xf32>
    %29 = arith.addf %26, %28 : vector<64x64xf32>
    %cst_16 = arith.constant 0.000000e+00 : f32
    %30 = vector.broadcast %cst_16 : f32 to vector<10x10x64xf32>
    %c0_17 = arith.constant 0 : index
    %c0_18 = arith.constant 0 : index
    %c0_19 = arith.constant 0 : index
    %31 = vector.load %arg21[%c0_17, %c0_18, %c0_19] : memref<10x10x64xf32, #tpu.memory_space<vmem>>, vector<10x10x64xf32>
    tpu.vector_store %arg21[%c0_17, %c0_18, %c0_19], %30 {strides = array<i32>} : memref<10x10x64xf32, #tpu.memory_space<vmem>>, vector<10x10x64xf32>,
    %32 = vector.shape_cast %29 : vector<64x64xf32> to vector<8x8x64xf32>
    %c1 = arith.constant 1 : index
    %c1_20 = arith.constant 1 : index
    %c0_21 = arith.constant 0 : index
    %33 = vector.load %arg21[%c1, %c1_20, %c0_21] : memref<10x10x64xf32, #tpu.memory_space<vmem>>, vector<8x8x64xf32>
    tpu.vector_store %arg21[%c1, %c1_20, %c0_21], %32 {strides = array<i32>} : memref<10x10x64xf32, #tpu.memory_space<vmem>>, vector<8x8x64xf32>,
    %cst_22 = arith.constant 0.000000e+00 : f32
    %34 = vector.broadcast %cst_22 : f32 to vector<8x8x64xf32>
    %c0_23 = arith.constant 0 : index
    %c0_24 = arith.constant 0 : index
    %c0_25 = arith.constant 0 : index
    %35 = vector.load %arg21[%c0_23, %c0_24, %c0_25] : memref<10x10x64xf32, #tpu.memory_space<vmem>>, vector<8x8x64xf32>
    %c0_26 = arith.constant 0 : index
    %c0_27 = arith.constant 0 : index
    %36 = vector.load %arg6[%c0_26, %c0_27] : memref<9x64xf32, #tpu.memory_space<vmem>>, vector<1x64xf32>
    %37 = vector.shape_cast %36 : vector<1x64xf32> to vector<64xf32>
    %38 = vector.shape_cast %37 : vector<64xf32> to vector<1x1x64xf32>
    %39 = vector.broadcast %38 : vector<1x1x64xf32> to vector<8x8x64xf32>
    %40 = arith.mulf %35, %39 : vector<8x8x64xf32>
    %41 = arith.addf %34, %40 : vector<8x8x64xf32>
    %c0_28 = arith.constant 0 : index
    %c1_29 = arith.constant 1 : index
    %c0_30 = arith.constant 0 : index
    %42 = vector.load %arg21[%c0_28, %c1_29, %c0_30] : memref<10x10x64xf32, #tpu.memory_space<vmem>>, vector<8x8x64xf32>
    %c1_31 = arith.constant 1 : index
    %c0_32 = arith.constant 0 : index
    %43 = vector.load %arg6[%c1_31, %c0_32] : memref<9x64xf32, #tpu.memory_space<vmem>>, vector<1x64xf32>
    %44 = vector.shape_cast %43 : vector<1x64xf32> to vector<64xf32>
    %45 = vector.shape_cast %44 : vector<64xf32> to vector<1x1x64xf32>
    %46 = vector.broadcast %45 : vector<1x1x64xf32> to vector<8x8x64xf32>
    %47 = arith.mulf %42, %46 : vector<8x8x64xf32>
    %48 = arith.addf %41, %47 : vector<8x8x64xf32>
    %c0_33 = arith.constant 0 : index
    %c2 = arith.constant 2 : index
    %c0_34 = arith.constant 0 : index
    %49 = vector.load %arg21[%c0_33, %c2, %c0_34] : memref<10x10x64xf32, #tpu.memory_space<vmem>>, vector<8x8x64xf32>
    %c2_35 = arith.constant 2 : index
    %c0_36 = arith.constant 0 : index
    %50 = vector.load %arg6[%c2_35, %c0_36] : memref<9x64xf32, #tpu.memory_space<vmem>>, vector<1x64xf32>
    %51 = vector.shape_cast %50 : vector<1x64xf32> to vector<64xf32>
    %52 = vector.shape_cast %51 : vector<64xf32> to vector<1x1x64xf32>
    %53 = vector.broadcast %52 : vector<1x1x64xf32> to vector<8x8x64xf32>
    %54 = arith.mulf %49, %53 : vector<8x8x64xf32>
    %55 = arith.addf %48, %54 : vector<8x8x64xf32>
    %c1_37 = arith.constant 1 : index
    %c0_38 = arith.constant 0 : index
    %c0_39 = arith.constant 0 : index
    %56 = vector.load %arg21[%c1_37, %c0_38, %c0_39] : memref<10x10x64xf32, #tpu.memory_space<vmem>>, vector<8x8x64xf32>
    %c3 = arith.constant 3 : index
    %c0_40 = arith.constant 0 : index
    %57 = vector.load %arg6[%c3, %c0_40] : memref<9x64xf32, #tpu.memory_space<vmem>>, vector<1x64xf32>
    %58 = vector.shape_cast %57 : vector<1x64xf32> to vector<64xf32>
    %59 = vector.shape_cast %58 : vector<64xf32> to vector<1x1x64xf32>
    %60 = vector.broadcast %59 : vector<1x1x64xf32> to vector<8x8x64xf32>
    %61 = arith.mulf %56, %60 : vector<8x8x64xf32>
    %62 = arith.addf %55, %61 : vector<8x8x64xf32>
    %c1_41 = arith.constant 1 : index
    %c1_42 = arith.constant 1 : index
    %c0_43 = arith.constant 0 : index
    %63 = vector.load %arg21[%c1_41, %c1_42, %c0_43] : memref<10x10x64xf32, #tpu.memory_space<vmem>>, vector<8x8x64xf32>
    %c4 = arith.constant 4 : index
    %c0_44 = arith.constant 0 : index
    %64 = vector.load %arg6[%c4, %c0_44] : memref<9x64xf32, #tpu.memory_space<vmem>>, vector<1x64xf32>
    %65 = vector.shape_cast %64 : vector<1x64xf32> to vector<64xf32>
    %66 = vector.shape_cast %65 : vector<64xf32> to vector<1x1x64xf32>
    %67 = vector.broadcast %66 : vector<1x1x64xf32> to vector<8x8x64xf32>
    %68 = arith.mulf %63, %67 : vector<8x8x64xf32>
    %69 = arith.addf %62, %68 : vector<8x8x64xf32>
    %c1_45 = arith.constant 1 : index
    %c2_46 = arith.constant 2 : index
    %c0_47 = arith.constant 0 : index
    %70 = vector.load %arg21[%c1_45, %c2_46, %c0_47] : memref<10x10x64xf32, #tpu.memory_space<vmem>>, vector<8x8x64xf32>
    %c5 = arith.constant 5 : index
    %c0_48 = arith.constant 0 : index
    %71 = vector.load %arg6[%c5, %c0_48] : memref<9x64xf32, #tpu.memory_space<vmem>>, vector<1x64xf32>
    %72 = vector.shape_cast %71 : vector<1x64xf32> to vector<64xf32>
    %73 = vector.shape_cast %72 : vector<64xf32> to vector<1x1x64xf32>
    %74 = vector.broadcast %73 : vector<1x1x64xf32> to vector<8x8x64xf32>
    %75 = arith.mulf %70, %74 : vector<8x8x64xf32>
    %76 = arith.addf %69, %75 : vector<8x8x64xf32>
    %c2_49 = arith.constant 2 : index
    %c0_50 = arith.constant 0 : index
    %c0_51 = arith.constant 0 : index
    %77 = vector.load %arg21[%c2_49, %c0_50, %c0_51] : memref<10x10x64xf32, #tpu.memory_space<vmem>>, vector<8x8x64xf32>
    %c6 = arith.constant 6 : index
    %c0_52 = arith.constant 0 : index
    %78 = vector.load %arg6[%c6, %c0_52] : memref<9x64xf32, #tpu.memory_space<vmem>>, vector<1x64xf32>
    %79 = vector.shape_cast %78 : vector<1x64xf32> to vector<64xf32>
    %80 = vector.shape_cast %79 : vector<64xf32> to vector<1x1x64xf32>
    %81 = vector.broadcast %80 : vector<1x1x64xf32> to vector<8x8x64xf32>
    %82 = arith.mulf %77, %81 : vector<8x8x64xf32>
    %83 = arith.addf %76, %82 : vector<8x8x64xf32>
    %c2_53 = arith.constant 2 : index
    %c1_54 = arith.constant 1 : index
    %c0_55 = arith.constant 0 : index
    %84 = vector.load %arg21[%c2_53, %c1_54, %c0_55] : memref<10x10x64xf32, #tpu.memory_space<vmem>>, vector<8x8x64xf32>
    %c7 = arith.constant 7 : index
    %c0_56 = arith.constant 0 : index
    %85 = vector.load %arg6[%c7, %c0_56] : memref<9x64xf32, #tpu.memory_space<vmem>>, vector<1x64xf32>
    %86 = vector.shape_cast %85 : vector<1x64xf32> to vector<64xf32>
    %87 = vector.shape_cast %86 : vector<64xf32> to vector<1x1x64xf32>
    %88 = vector.broadcast %87 : vector<1x1x64xf32> to vector<8x8x64xf32>
    %89 = arith.mulf %84, %88 : vector<8x8x64xf32>
    %90 = arith.addf %83, %89 : vector<8x8x64xf32>
    %c2_57 = arith.constant 2 : index
    %c2_58 = arith.constant 2 : index
    %c0_59 = arith.constant 0 : index
    %91 = vector.load %arg21[%c2_57, %c2_58, %c0_59] : memref<10x10x64xf32, #tpu.memory_space<vmem>>, vector<8x8x64xf32>
    %c8 = arith.constant 8 : index
    %c0_60 = arith.constant 0 : index
    %92 = vector.load %arg6[%c8, %c0_60] : memref<9x64xf32, #tpu.memory_space<vmem>>, vector<1x64xf32>
    %93 = vector.shape_cast %92 : vector<1x64xf32> to vector<64xf32>
    %94 = vector.shape_cast %93 : vector<64xf32> to vector<1x1x64xf32>
    %95 = vector.broadcast %94 : vector<1x1x64xf32> to vector<8x8x64xf32>
    %96 = arith.mulf %91, %95 : vector<8x8x64xf32>
    %97 = arith.addf %90, %96 : vector<8x8x64xf32>
    %c0_61 = arith.constant 0 : index
    %c0_62 = arith.constant 0 : index
    %98 = vector.load %arg7[%c0_61, %c0_62] : memref<1x64xf32, #tpu.memory_space<vmem>>, vector<1x64xf32>
    %99 = vector.shape_cast %98 : vector<1x64xf32> to vector<1x1x64xf32>
    %100 = vector.broadcast %99 : vector<1x1x64xf32> to vector<8x8x64xf32>
    %101 = arith.addf %97, %100 : vector<8x8x64xf32>
    %102 = vector.extract_strided_slice %101 {offsets = [0, 0, 0], sizes = [8, 8, 32], strides = [1, 1, 1]} : vector<8x8x64xf32> to vector<8x8x32xf32>
    %103 = vector.extract_strided_slice %101 {offsets = [0, 0, 32], sizes = [8, 8, 32], strides = [1, 1, 1]} : vector<8x8x64xf32> to vector<8x8x32xf32>
    %104 = arith.mulf %102, %103 : vector<8x8x32xf32>
    %105 = vector.shape_cast %104 : vector<8x8x32xf32> to vector<64x32xf32>
    %cst_63 = arith.constant dense<0.000000e+00> : vector<32xf32>
    %106 = vector.multi_reduction <add>, %105, %cst_63 [0] : vector<64x32xf32> to vector<32xf32>
    %107 = vector.shape_cast %106 : vector<32xf32> to vector<1x32xf32>
    %cst_64 = arith.constant 6.400000e+01 : f32
    %108 = vector.broadcast %cst_64 : f32 to vector<1x32xf32>
    %109 = arith.divf %107, %108 : vector<1x32xf32>
    %c0_65 = arith.constant 0 : index
    %c0_66 = arith.constant 0 : index
    %110 = vector.load %arg8[%c0_65, %c0_66] : memref<32x32xf32, #tpu.memory_space<vmem>>, vector<32x32xf32>
    %cst_67 = arith.constant dense<0.000000e+00> : vector<1x32xf32>
    %111 = tpu.matmul %109, %110, %cst_67 {dimension_numbers = #tpu.dot_dimension_numbers<[1], [0], [0], [1], [0, 0, 1, 1], [], []>} : vector<1x32xf32>, vector<32x32xf32>, vector<1x32xf32> -> vector<1x32xf32>
    %c0_68 = arith.constant 0 : index
    %c0_69 = arith.constant 0 : index
    %112 = vector.load %arg9[%c0_68, %c0_69] : memref<1x32xf32, #tpu.memory_space<vmem>>, vector<1x32xf32>
    %113 = arith.addf %111, %112 : vector<1x32xf32>
    %114 = vector.broadcast %113 : vector<1x32xf32> to vector<64x32xf32>
    %115 = arith.mulf %105, %114 : vector<64x32xf32>
    %c0_70 = arith.constant 0 : index
    %c0_71 = arith.constant 0 : index
    %116 = vector.load %arg10[%c0_70, %c0_71] : memref<32x32xf32, #tpu.memory_space<vmem>>, vector<32x32xf32>
    %cst_72 = arith.constant dense<0.000000e+00> : vector<64x32xf32>
    %117 = tpu.matmul %115, %116, %cst_72 {dimension_numbers = #tpu.dot_dimension_numbers<[1], [0], [0], [1], [0, 0, 1, 1], [], []>} : vector<64x32xf32>, vector<32x32xf32>, vector<64x32xf32> -> vector<64x32xf32>
    %c0_73 = arith.constant 0 : index
    %c0_74 = arith.constant 0 : index
    %118 = vector.load %arg11[%c0_73, %c0_74] : memref<1x32xf32, #tpu.memory_space<vmem>>, vector<1x32xf32>
    %119 = vector.broadcast %118 : vector<1x32xf32> to vector<64x32xf32>
    %120 = arith.addf %117, %119 : vector<64x32xf32>
    %c0_75 = arith.constant 0 : index
    %c0_76 = arith.constant 0 : index
    %121 = vector.load %arg12[%c0_75, %c0_76] : memref<1x32xf32, #tpu.memory_space<vmem>>, vector<1x32xf32>
    %122 = vector.broadcast %121 : vector<1x32xf32> to vector<64x32xf32>
    %123 = arith.mulf %120, %122 : vector<64x32xf32>
    %124 = arith.addf %2, %123 : vector<64x32xf32>
    %cst_77 = arith.constant dense<0.000000e+00> : vector<64xf32>
    %125 = vector.multi_reduction <add>, %124, %cst_77 [1] : vector<64x32xf32> to vector<64xf32>
    %126 = vector.shape_cast %125 : vector<64xf32> to vector<64x1xf32>
    %cst_78 = arith.constant 3.200000e+01 : f32
    %127 = vector.broadcast %cst_78 : f32 to vector<64x1xf32>
    %128 = arith.divf %126, %127 : vector<64x1xf32>
    %129 = vector.broadcast %128 : vector<64x1xf32> to vector<64x32xf32>
    %130 = arith.subf %124, %129 : vector<64x32xf32>
    %131 = arith.mulf %130, %130 : vector<64x32xf32>
    %cst_79 = arith.constant dense<0.000000e+00> : vector<64xf32>
    %132 = vector.multi_reduction <add>, %131, %cst_79 [1] : vector<64x32xf32> to vector<64xf32>
    %133 = vector.shape_cast %132 : vector<64xf32> to vector<64x1xf32>
    %cst_80 = arith.constant 3.200000e+01 : f32
    %134 = vector.broadcast %cst_80 : f32 to vector<64x1xf32>
    %135 = arith.divf %133, %134 : vector<64x1xf32>
    %cst_81 = arith.constant 9.99999997E-7 : f32
    %136 = vector.broadcast %cst_81 : f32 to vector<64x1xf32>
    %137 = arith.addf %135, %136 : vector<64x1xf32>
    %138 = math.rsqrt %137 : vector<64x1xf32>
    %139 = vector.broadcast %138 : vector<64x1xf32> to vector<64x32xf32>
    %140 = arith.mulf %130, %139 : vector<64x32xf32>
    %c0_82 = arith.constant 0 : index
    %c0_83 = arith.constant 0 : index
    %141 = vector.load %arg13[%c0_82, %c0_83] : memref<1x32xf32, #tpu.memory_space<vmem>>, vector<1x32xf32>
    %142 = vector.broadcast %141 : vector<1x32xf32> to vector<64x32xf32>
    %143 = arith.mulf %140, %142 : vector<64x32xf32>
    %c0_84 = arith.constant 0 : index
    %c0_85 = arith.constant 0 : index
    %144 = vector.load %arg14[%c0_84, %c0_85] : memref<1x32xf32, #tpu.memory_space<vmem>>, vector<1x32xf32>
    %145 = vector.broadcast %144 : vector<1x32xf32> to vector<64x32xf32>
    %146 = arith.addf %143, %145 : vector<64x32xf32>
    %c0_86 = arith.constant 0 : index
    %c0_87 = arith.constant 0 : index
    %147 = vector.load %arg15[%c0_86, %c0_87] : memref<32x64xf32, #tpu.memory_space<vmem>>, vector<32x64xf32>
    %cst_88 = arith.constant dense<0.000000e+00> : vector<64x64xf32>
    %148 = tpu.matmul %146, %147, %cst_88 {dimension_numbers = #tpu.dot_dimension_numbers<[1], [0], [0], [1], [0, 0, 1, 1], [], []>} : vector<64x32xf32>, vector<32x64xf32>, vector<64x64xf32> -> vector<64x64xf32>
    %c0_89 = arith.constant 0 : index
    %c0_90 = arith.constant 0 : index
    %149 = vector.load %arg16[%c0_89, %c0_90] : memref<1x64xf32, #tpu.memory_space<vmem>>, vector<1x64xf32>
    %150 = vector.broadcast %149 : vector<1x64xf32> to vector<64x64xf32>
    %151 = arith.addf %148, %150 : vector<64x64xf32>
    %152 = vector.extract_strided_slice %151 {offsets = [0, 0], sizes = [64, 32], strides = [1, 1]} : vector<64x64xf32> to vector<64x32xf32>
    %153 = vector.extract_strided_slice %151 {offsets = [0, 32], sizes = [64, 32], strides = [1, 1]} : vector<64x64xf32> to vector<64x32xf32>
    %154 = arith.mulf %152, %153 : vector<64x32xf32>
    %c0_91 = arith.constant 0 : index
    %c0_92 = arith.constant 0 : index
    %155 = vector.load %arg17[%c0_91, %c0_92] : memref<32x32xf32, #tpu.memory_space<vmem>>, vector<32x32xf32>
    %cst_93 = arith.constant dense<0.000000e+00> : vector<64x32xf32>
    %156 = tpu.matmul %154, %155, %cst_93 {dimension_numbers = #tpu.dot_dimension_numbers<[1], [0], [0], [1], [0, 0, 1, 1], [], []>} : vector<64x32xf32>, vector<32x32xf32>, vector<64x32xf32> -> vector<64x32xf32>
    %c0_94 = arith.constant 0 : index
    %c0_95 = arith.constant 0 : index
    %157 = vector.load %arg18[%c0_94, %c0_95] : memref<1x32xf32, #tpu.memory_space<vmem>>, vector<1x32xf32>
    %158 = vector.broadcast %157 : vector<1x32xf32> to vector<64x32xf32>
    %159 = arith.addf %156, %158 : vector<64x32xf32>
    %c0_96 = arith.constant 0 : index
    %c0_97 = arith.constant 0 : index
    %160 = vector.load %arg19[%c0_96, %c0_97] : memref<1x32xf32, #tpu.memory_space<vmem>>, vector<1x32xf32>
    %161 = vector.broadcast %160 : vector<1x32xf32> to vector<64x32xf32>
    %162 = arith.mulf %159, %161 : vector<64x32xf32>
    %163 = arith.addf %124, %162 : vector<64x32xf32>
    %164 = vector.shape_cast %163 : vector<64x32xf32> to vector<8x8x32xf32>
    %c0_98 = arith.constant 0 : index
    %c0_99 = arith.constant 0 : index
    %c0_100 = arith.constant 0 : index
    %c0_101 = arith.constant 0 : index
    %165 = vector.load %arg20[%c0_98, %c0_99, %c0_100, %c0_101] : memref<1x8x8x32xf32, #tpu.memory_space<vmem>>, vector<1x8x8x32xf32>
    %166 = vector.shape_cast %165 : vector<1x8x8x32xf32> to vector<8x8x32xf32>
    %167 = vector.shape_cast %164 : vector<8x8x32xf32> to vector<1x8x8x32xf32>
    tpu.vector_store %arg20[%c0_98, %c0_99, %c0_100, %c0_101], %167 {strides = array<i32>} : memref<1x8x8x32xf32, #tpu.memory_space<vmem>>, vector<1x8x8x32xf32>,
    return
  }
  func.func @transform_0(%arg0: i32) -> (i32, i32, i32, i32) {
    %c0_i32 = arith.constant 0 : i32
    %c0_i32_0 = arith.constant 0 : i32
    %c0_i32_1 = arith.constant 0 : i32
    %c0_i32_2 = arith.constant 0 : i32
    return %arg0, %c0_i32, %c0_i32_0, %c0_i32_1 : i32, i32, i32, i32
  }
  func.func @transform_1(%arg0: i32) -> (i32, i32) {
    %c0_i32 = arith.constant 0 : i32
    %c0_i32_0 = arith.constant 0 : i32
    %c0_i32_1 = arith.constant 0 : i32
    return %c0_i32, %c0_i32_0 : i32, i32
  }
  func.func @transform_2(%arg0: i32) -> (i32, i32) {
    %c0_i32 = arith.constant 0 : i32
    %c0_i32_0 = arith.constant 0 : i32
    %c0_i32_1 = arith.constant 0 : i32
    return %c0_i32, %c0_i32_0 : i32, i32
  }
  func.func @transform_3(%arg0: i32) -> (i32, i32) {
    %c0_i32 = arith.constant 0 : i32
    %c0_i32_0 = arith.constant 0 : i32
    %c0_i32_1 = arith.constant 0 : i32
    return %c0_i32, %c0_i32_0 : i32, i32
  }
  func.func @transform_4(%arg0: i32) -> (i32, i32) {
    %c0_i32 = arith.constant 0 : i32
    %c0_i32_0 = arith.constant 0 : i32
    %c0_i32_1 = arith.constant 0 : i32
    return %c0_i32, %c0_i32_0 : i32, i32
  }
  func.func @transform_5(%arg0: i32) -> (i32, i32) {
    %c0_i32 = arith.constant 0 : i32
    %c0_i32_0 = arith.constant 0 : i32
    %c0_i32_1 = arith.constant 0 : i32
    return %c0_i32, %c0_i32_0 : i32, i32
  }
  func.func @transform_6(%arg0: i32) -> (i32, i32) {
    %c0_i32 = arith.constant 0 : i32
    %c0_i32_0 = arith.constant 0 : i32
    %c0_i32_1 = arith.constant 0 : i32
    return %c0_i32, %c0_i32_0 : i32, i32
  }
  func.func @transform_7(%arg0: i32) -> (i32, i32) {
    %c0_i32 = arith.constant 0 : i32
    %c0_i32_0 = arith.constant 0 : i32
    %c0_i32_1 = arith.constant 0 : i32
    return %c0_i32, %c0_i32_0 : i32, i32
  }
  func.func @transform_8(%arg0: i32) -> (i32, i32) {
    %c0_i32 = arith.constant 0 : i32
    %c0_i32_0 = arith.constant 0 : i32
    %c0_i32_1 = arith.constant 0 : i32
    return %c0_i32, %c0_i32_0 : i32, i32
  }
  func.func @transform_9(%arg0: i32) -> (i32, i32) {
    %c0_i32 = arith.constant 0 : i32
    %c0_i32_0 = arith.constant 0 : i32
    %c0_i32_1 = arith.constant 0 : i32
    return %c0_i32, %c0_i32_0 : i32, i32
  }
  func.func @transform_10(%arg0: i32) -> (i32, i32) {
    %c0_i32 = arith.constant 0 : i32
    %c0_i32_0 = arith.constant 0 : i32
    %c0_i32_1 = arith.constant 0 : i32
    return %c0_i32, %c0_i32_0 : i32, i32
  }
  func.func @transform_11(%arg0: i32) -> (i32, i32) {
    %c0_i32 = arith.constant 0 : i32
    %c0_i32_0 = arith.constant 0 : i32
    %c0_i32_1 = arith.constant 0 : i32
    return %c0_i32, %c0_i32_0 : i32, i32
  }
  func.func @transform_12(%arg0: i32) -> (i32, i32) {
    %c0_i32 = arith.constant 0 : i32
    %c0_i32_0 = arith.constant 0 : i32
    %c0_i32_1 = arith.constant 0 : i32
    return %c0_i32, %c0_i32_0 : i32, i32
  }
  func.func @transform_13(%arg0: i32) -> (i32, i32) {
    %c0_i32 = arith.constant 0 : i32
    %c0_i32_0 = arith.constant 0 : i32
    %c0_i32_1 = arith.constant 0 : i32
    return %c0_i32, %c0_i32_0 : i32, i32
  }
  func.func @transform_14(%arg0: i32) -> (i32, i32) {
    %c0_i32 = arith.constant 0 : i32
    %c0_i32_0 = arith.constant 0 : i32
    %c0_i32_1 = arith.constant 0 : i32
    return %c0_i32, %c0_i32_0 : i32, i32
  }
  func.func @transform_15(%arg0: i32) -> (i32, i32) {
    %c0_i32 = arith.constant 0 : i32
    %c0_i32_0 = arith.constant 0 : i32
    %c0_i32_1 = arith.constant 0 : i32
    return %c0_i32, %c0_i32_0 : i32, i32
  }
  func.func @transform_16(%arg0: i32) -> (i32, i32) {
    %c0_i32 = arith.constant 0 : i32
    %c0_i32_0 = arith.constant 0 : i32
    %c0_i32_1 = arith.constant 0 : i32
    return %c0_i32, %c0_i32_0 : i32, i32
  }
  func.func @transform_17(%arg0: i32) -> (i32, i32) {
    %c0_i32 = arith.constant 0 : i32
    %c0_i32_0 = arith.constant 0 : i32
    %c0_i32_1 = arith.constant 0 : i32
    return %c0_i32, %c0_i32_0 : i32, i32
  }
  func.func @transform_18(%arg0: i32) -> (i32, i32) {
    %c0_i32 = arith.constant 0 : i32
    %c0_i32_0 = arith.constant 0 : i32
    %c0_i32_1 = arith.constant 0 : i32
    return %c0_i32, %c0_i32_0 : i32, i32
  }
  func.func @transform_19(%arg0: i32) -> (i32, i32, i32, i32) {
    %c0_i32 = arith.constant 0 : i32
    %c0_i32_0 = arith.constant 0 : i32
    %c0_i32_1 = arith.constant 0 : i32
    %c0_i32_2 = arith.constant 0 : i32
    return %arg0, %c0_i32, %c0_i32_0, %c0_i32_1 : i32, i32, i32, i32
  }
}

module attributes {stable_mosaic.version = 11 : i64} {
  func.func @_down_kernel(%arg0: i32, %arg1: memref<1x4x4x128xf32, #tpu.memory_space<vmem>>, %arg2: memref<128x64xf32, #tpu.memory_space<vmem>>, %arg3: memref<1x64xf32, #tpu.memory_space<vmem>>, %arg4: memref<1x4x4x64xf32, #tpu.memory_space<vmem>>) attributes {dimension_semantics = [#tpu.dimension_semantics<parallel>], iteration_bounds = array<i64: 2>, scalar_prefetch = 0 : i64, scratch_operands = 0 : i64, tpu.core_type = #tpu.core_type<tc>, window_params = [{transform_indices = @transform_0, window_bounds = array<i64: 1, 4, 4, 128>}, {pipeline_mode = #tpu.pipeline_mode<synchronous>, transform_indices = @transform_1, window_bounds = array<i64: 128, 64>}, {pipeline_mode = #tpu.pipeline_mode<synchronous>, transform_indices = @transform_2, window_bounds = array<i64: 1, 64>}, {transform_indices = @transform_3, window_bounds = array<i64: 1, 4, 4, 64>}]} {
    %c0 = arith.constant 0 : index
    %c0_0 = arith.constant 0 : index
    %c0_1 = arith.constant 0 : index
    %c0_2 = arith.constant 0 : index
    %0 = vector.load %arg1[%c0, %c0_0, %c0_1, %c0_2] : memref<1x4x4x128xf32, #tpu.memory_space<vmem>>, vector<1x4x4x128xf32>
    %1 = vector.shape_cast %0 : vector<1x4x4x128xf32> to vector<4x4x128xf32>
    %2 = vector.shape_cast %1 : vector<4x4x128xf32> to vector<16x128xf32>
    %c0_3 = arith.constant 0 : index
    %c0_4 = arith.constant 0 : index
    %3 = vector.load %arg2[%c0_3, %c0_4] : memref<128x64xf32, #tpu.memory_space<vmem>>, vector<128x64xf32>
    %cst = arith.constant dense<0.000000e+00> : vector<16x64xf32>
    %4 = tpu.matmul %2, %3, %cst {dimension_numbers = #tpu.dot_dimension_numbers<[1], [0], [0], [1], [0, 0, 1, 1], [], []>} : vector<16x128xf32>, vector<128x64xf32>, vector<16x64xf32> -> vector<16x64xf32>
    %c0_5 = arith.constant 0 : index
    %c0_6 = arith.constant 0 : index
    %5 = vector.load %arg3[%c0_5, %c0_6] : memref<1x64xf32, #tpu.memory_space<vmem>>, vector<1x64xf32>
    %6 = vector.broadcast %5 : vector<1x64xf32> to vector<16x64xf32>
    %7 = arith.addf %4, %6 : vector<16x64xf32>
    %8 = vector.shape_cast %7 : vector<16x64xf32> to vector<4x4x64xf32>
    %c0_7 = arith.constant 0 : index
    %c0_8 = arith.constant 0 : index
    %c0_9 = arith.constant 0 : index
    %c0_10 = arith.constant 0 : index
    %9 = vector.load %arg4[%c0_7, %c0_8, %c0_9, %c0_10] : memref<1x4x4x64xf32, #tpu.memory_space<vmem>>, vector<1x4x4x64xf32>
    %10 = vector.shape_cast %9 : vector<1x4x4x64xf32> to vector<4x4x64xf32>
    %11 = vector.shape_cast %8 : vector<4x4x64xf32> to vector<1x4x4x64xf32>
    tpu.vector_store %arg4[%c0_7, %c0_8, %c0_9, %c0_10], %11 {strides = array<i32>} : memref<1x4x4x64xf32, #tpu.memory_space<vmem>>, vector<1x4x4x64xf32>,
    return
  }
  func.func @transform_0(%arg0: i32) -> (i32, i32, i32, i32) {
    %c0_i32 = arith.constant 0 : i32
    %c0_i32_0 = arith.constant 0 : i32
    %c0_i32_1 = arith.constant 0 : i32
    %c0_i32_2 = arith.constant 0 : i32
    return %arg0, %c0_i32, %c0_i32_0, %c0_i32_1 : i32, i32, i32, i32
  }
  func.func @transform_1(%arg0: i32) -> (i32, i32) {
    %c0_i32 = arith.constant 0 : i32
    %c0_i32_0 = arith.constant 0 : i32
    %c0_i32_1 = arith.constant 0 : i32
    return %c0_i32, %c0_i32_0 : i32, i32
  }
  func.func @transform_2(%arg0: i32) -> (i32, i32) {
    %c0_i32 = arith.constant 0 : i32
    %c0_i32_0 = arith.constant 0 : i32
    %c0_i32_1 = arith.constant 0 : i32
    return %c0_i32, %c0_i32_0 : i32, i32
  }
  func.func @transform_3(%arg0: i32) -> (i32, i32, i32, i32) {
    %c0_i32 = arith.constant 0 : i32
    %c0_i32_0 = arith.constant 0 : i32
    %c0_i32_1 = arith.constant 0 : i32
    %c0_i32_2 = arith.constant 0 : i32
    return %arg0, %c0_i32, %c0_i32_0, %c0_i32_1 : i32, i32, i32, i32
  }
}

</mosaic_0001>

<llo_original>
// kernel: encoder_forward.5
$region0: #{encoder_forward.5}
  #allocation0 [shape = 'u32[]', space=smem, size = 0x4, offset = 0x4, fixed_abs, tag = 'smem constant byte address 0x4 - core index']
  #allocation1 [shape = 'u32[72,128]{1,0:T(1,128)}', space=vmem, size = 0x9000, scoped, tag = 'internal scratch']
  %s0 = inlined_call_operand.vmem [shape: f32[2,18,18,16], index: 0, kind: input, shape index: {}]
  %s1 = inlined_call_operand.vmem [shape: f32[9,16,16], index: 1, kind: input, shape index: {}]
  %s2 = inlined_call_operand.vmem [shape: f32[1,16], index: 2, kind: input, shape index: {}]
  %s3 = inlined_call_operand.vmem [shape: f32[2,16,16,16], index: 3, kind: output, shape index: {}]
  %s4 = sld [smem:[#allocation0]]
  $region45: #{encoder_forward.5} parent=0
    _
  %s6 = ssub.s32 1, %s4
  %s7 = scalar_select 0, %s6, %s4
  loop: start=0, step=1, limit=4
  $region2: #{encoder_forward.5} parent=0 // loop_pre_header
    _
  $region3: #{encoder_forward.5} parent=0 // loop_header
    %s9 = sphi 0, %s13
    %p10 = scmp.ge.s32.totalorder %s9, 4
    %s19 = sphi 0, %s21
    %s22 = sphi 0, %s19
    %s23 = sphi 0, %s22
    %s39 = sphi 0, %s23
    %s43 = sphi 0, %s43
    %s45 = sphi 0, %s43
    %s46 = sphi 0, %s45
    %s60 = sphi 0, %s46
    %s64 = sphi 0, %s64
    %s66 = sphi 0, %s64
    %s67 = sphi 0, %s66
    %s81 = sphi 0, %s67
    %s87 = sphi 0, %s89
    %s90 = sphi 0, %s87
    %s91 = sphi 0, %s90
    %s107 = sphi 0, %s91
  $region4: #{encoder_forward.5} parent=0 // loop_header_branch
    %12 = sbr.rel (%p10) target = $region8
  $region5: #{encoder_forward.5} parent=0 // loop_body
    %s14 = ssub.s32 %s9, 1
    %s15 = ssub.s32 %s9, 2
    %s16 = sadd.s32 %s9, 1
    %s17 = ssub.s32 %s9, %s16
    %p18 = scmp.eq.s32.totalorder %s17, 0
    %s20 = sadd.s32 %s19, 1
    %s21 = scalar_select %p18, %s19, %s20
    %p24 = pneg %p18
    %p25 = scmp.eq.s32.totalorder %s9, 1
    %p26 = por %p24, %p25
    %p27 = scmp.ne.s32.totalorder %s19, %s22
    %p28 = scmp.eq.s32.totalorder %s9, 0
    %p29 = por %p27, %p28
    %p30 = scmp.ne.s32.totalorder %s19, %s22
    %p31 = scmp.eq.s32.totalorder %s14, 1
    %p32 = por %p30, %p31
    %p33 = scmp.ne.s32.totalorder %s22, %s23
    %p34 = scmp.eq.s32.totalorder %s14, 0
    %p35 = por %p33, %p34
    %p36 = scmp.ne.s32.totalorder %s22, %s23
    %p37 = scmp.eq.s32.totalorder %s15, 1
    %p38 = por %p36, %p37
    %p40 = scmp.ne.s32.totalorder %s23, %s39
    %p41 = scmp.eq.s32.totalorder %s15, 0
    %p42 = por %p40, %p41
    %s44 = sadd.s32 %s43, 1
    %p47 = scmp.eq.s32.totalorder %s9, 1
    %p48 = scmp.ne.s32.totalorder %s43, %s45
    %p49 = scmp.eq.s32.totalorder %s9, 0
    %p50 = por %p48, %p49
    %p51 = scmp.ne.s32.totalorder %s43, %s45
    %p52 = scmp.eq.s32.totalorder %s14, 1
    %p53 = por %p51, %p52
    %p54 = scmp.ne.s32.totalorder %s45, %s46
    %p55 = scmp.eq.s32.totalorder %s14, 0
    %p56 = por %p54, %p55
    %p57 = scmp.ne.s32.totalorder %s45, %s46
    %p58 = scmp.eq.s32.totalorder %s15, 1
    %p59 = por %p57, %p58
    %p61 = scmp.ne.s32.totalorder %s46, %s60
    %p62 = scmp.eq.s32.totalorder %s15, 0
    %p63 = por %p61, %p62
    %s65 = sadd.s32 %s64, 1
    %p68 = scmp.eq.s32.totalorder %s9, 1
    %p69 = scmp.ne.s32.totalorder %s64, %s66
    %p70 = scmp.eq.s32.totalorder %s9, 0
    %p71 = por %p69, %p70
    %p72 = scmp.ne.s32.totalorder %s64, %s66
    %p73 = scmp.eq.s32.totalorder %s14, 1
    %p74 = por %p72, %p73
    %p75 = scmp.ne.s32.totalorder %s66, %s67
    %p76 = scmp.eq.s32.totalorder %s14, 0
    %p77 = por %p75, %p76
    %p78 = scmp.ne.s32.totalorder %s66, %s67
    %p79 = scmp.eq.s32.totalorder %s15, 1
    %p80 = por %p78, %p79
    %p82 = scmp.ne.s32.totalorder %s67, %s81
    %p83 = scmp.eq.s32.totalorder %s15, 0
    %p84 = por %p82, %p83
    %s85 = ssub.s32 %s9, %s16
    %p86 = scmp.eq.s32.totalorder %s85, 0
    %s88 = sadd.s32 %s87, 1
    %s89 = scalar_select %p86, %s87, %s88
    %p92 = pneg %p86
    %p93 = scmp.eq.s32.totalorder %s9, 1
    %p94 = por %p92, %p93
    %p95 = scmp.ne.s32.totalorder %s87, %s90
    %p96 = scmp.eq.s32.totalorder %s9, 0
    %p97 = por %p95, %p96
    %p98 = scmp.ne.s32.totalorder %s87, %s90
    %p99 = scmp.eq.s32.totalorder %s14, 1
    %p100 = por %p98, %p99
    %p101 = scmp.ne.s32.totalorder %s90, %s91
    %p102 = scmp.eq.s32.totalorder %s14, 0
    %p103 = por %p101, %p102
    %p104 = scmp.ne.s32.totalorder %s90, %s91
    %p105 = scmp.eq.s32.totalorder %s15, 1
    %p106 = por %p104, %p105
    %p108 = scmp.ne.s32.totalorder %s91, %s107
    %p109 = scmp.eq.s32.totalorder %s15, 0
    %p110 = por %p108, %p109
    %p111 = scmp.le.s32.totalorder 1, %s9
    %p112 = scmp.lt.s32.totalorder %s9, 3
    %p113 = pnand %p111, %p112
    %p114 = pneg %p113
    // Predicated region
    $region9: #{encoder_forward.5} parent=5 // pred_check
      _
    $region10: #{encoder_forward.5} parent=5 // pred_check_branch
      %116 = sbr.rel (%p113) target = $region12
    $region11: #{encoder_forward.5} parent=5 // pred_region
      %s117 = ssub.s32 %s9, 1
      // Predicated region
      $region13: #{encoder_forward.5} parent=11 // pred_check
        %p118 = pneg %p56
      $region14: #{encoder_forward.5} parent=11 // pred_check_branch
        %120 = sbr.rel (%p118) target = $region16
      $region15: #{encoder_forward.5} parent=11 // pred_region
        _
      $region16: #{encoder_forward.5} parent=11 // pred_fallthru
        _
      // Predicated region
      $region17: #{encoder_forward.5} parent=11 // pred_check
        %p121 = pneg %p77
      $region18: #{encoder_forward.5} parent=11 // pred_check_branch
        %123 = sbr.rel (%p121) target = $region20
      $region19: #{encoder_forward.5} parent=11 // pred_region
        _
      $region20: #{encoder_forward.5} parent=11 // pred_fallthru
        _
    $region12: #{encoder_forward.5} parent=5 // pred_fallthru
      _
    %p124 = scmp.lt.s32.totalorder %s9, 2
    // Predicated region
    $region21: #{encoder_forward.5} parent=5 // pred_check
      %p125 = pneg %p124
    $region22: #{encoder_forward.5} parent=5 // pred_check_branch
      %127 = sbr.rel (%p125) target = $region24
    $region23: #{encoder_forward.5} parent=5 // pred_region
      // Predicated region
      $region25: #{encoder_forward.5} parent=23 // pred_check
        %p128 = pneg %p29
      $region26: #{encoder_forward.5} parent=23 // pred_check_branch
        %130 = sbr.rel (%p128) target = $region28
      $region27: #{encoder_forward.5} parent=23 // pred_region
        %p131 = scmp.lt.s32.totalorder %s9, 1
        %s132 = scalar_select %p131, %s9, 1
        %s133 = smul.addr %s132, 54
        %s134 = smul.addr %s133, 8
        %s135 = scalar_lea.vmem %s0, %s134
      $region28: #{encoder_forward.5} parent=23 // pred_fallthru
        _
    $region24: #{encoder_forward.5} parent=5 // pred_fallthru
      _
    %p136 = scmp.le.s32.totalorder 1, %s9
    %p137 = scmp.lt.s32.totalorder %s9, 3
    %p138 = pnand %p136, %p137
    %p139 = pneg %p138
    // Predicated region
    $region29: #{encoder_forward.5} parent=5 // pred_check
      _
    $region30: #{encoder_forward.5} parent=5 // pred_check_branch
      %141 = sbr.rel (%p138) target = $region32
    $region31: #{encoder_forward.5} parent=5 // pred_region
      %s142 = ssub.s32 %s9, 1
      %p143 = scmp.lt.s32.totalorder %s14, 1
      %s144 = scalar_select %p143, %s14, 1
      %s145 = smul.addr %s144, 54
      %s146 = smul.addr %s145, 8
      %s147 = scalar_lea.vmem %s0, %s146
      %p148 = pneg %p35
      %p149 = pneg %p32
      %p150 = pneg %p56
      %p151 = pneg %p53
      %p152 = pneg %p77
      %p153 = pneg %p74
      %p154 = pneg %p103
      %p155 = pneg %p100
      %p156 = scmp.lt.s32.totalorder %s14, 1
      %s157 = scalar_select %p156, %s14, 1
      %s158 = smul.addr %s157, 32
      %s159 = smul.addr %s158, 8
      %s160 = scalar_lea.vmem %s3, %s159
      %p161 = scmp.lt.s32.totalorder %s14, 1
      %s162 = scalar_select %p161, %s14, 1
      %s163 = smul.addr %s162, 54
      %s164 = smul.addr %s163, 8
      %s165 = scalar_lea.vmem %s0, %s164
      %p166 = scmp.lt.s32.totalorder %s14, 1
      %s167 = scalar_select %p166, %s14, 1
      %s168 = smul.addr %s167, 32
      %s169 = smul.addr %s168, 8
      %s170 = scalar_lea.vmem %s3, %s169
      %v171 = vld [vmem:[%s165] sm:$0xff]
      %v172 = vld [vmem:[%s165 + $0x8] sm:$0xff]
      %v173 = vld [vmem:[%s165 + $0x10] sm:$0x3]
      %v174 = vld [vmem:[%s165 + $0x18] sm:$0xff]
      %v175 = vld [vmem:[%s165 + $0x20] sm:$0xff]
      %v176 = vld [vmem:[%s165 + $0x28] sm:$0x3]
      %v177 = vld [vmem:[%s165 + $0x30] sm:$0xff]
      %v178 = vld [vmem:[%s165 + $0x38] sm:$0xff]
      %v179 = vld [vmem:[%s165 + $0x40] sm:$0x3]
      %v180 = vld [vmem:[%s165 + $0x48] sm:$0xff]
      %v181 = vld [vmem:[%s165 + $0x50] sm:$0xff]
      %v182 = vld [vmem:[%s165 + $0x58] sm:$0x3]
      %v183 = vld [vmem:[%s165 + $0x60] sm:$0xff]
      %v184 = vld [vmem:[%s165 + $0x68] sm:$0xff]
      %v185 = vld [vmem:[%s165 + $0x70] sm:$0x3]
      %v186 = vld [vmem:[%s165 + $0x78] sm:$0xff]
      %v187 = vld [vmem:[%s165 + $0x80] sm:$0xff]
      %v188 = vld [vmem:[%s165 + $0x88] sm:$0x3]
      %v189 = vld [vmem:[%s165 + $0x90] sm:$0xff]
      %v190 = vld [vmem:[%s165 + $0x98] sm:$0xff]
      %v191 = vld [vmem:[%s165 + $0xa0] sm:$0x3]
      %v192 = vld [vmem:[%s165 + $0xa8] sm:$0xff]
      %v193 = vld [vmem:[%s165 + $0xb0] sm:$0xff]
      %v194 = vld [vmem:[%s165 + $0xb8] sm:$0x3]
      %v195 = vld [vmem:[%s165 + $0xc0] sm:$0xff]
      %v196 = vld [vmem:[%s165 + $0xc8] sm:$0xff]
      %v197 = vld [vmem:[%s165 + $0xd0] sm:$0x3]
      %v198 = vld [vmem:[%s165 + $0xd8] sm:$0xff]
      %v199 = vld [vmem:[%s165 + $0xe0] sm:$0xff]
      %v200 = vld [vmem:[%s165 + $0xe8] sm:$0x3]
      %v201 = vld [vmem:[%s165 + $0xf0] sm:$0xff]
      %v202 = vld [vmem:[%s165 + $0xf8] sm:$0xff]
      %v203 = vld [vmem:[%s165 + $0x100] sm:$0x3]
      %v204 = vld [vmem:[%s165 + $0x108] sm:$0xff]
      %v205 = vld [vmem:[%s165 + $0x110] sm:$0xff]
      %v206 = vld [vmem:[%s165 + $0x118] sm:$0x3]
      %v207 = vld [vmem:[%s165 + $0x120] sm:$0xff]
      %v208 = vld [vmem:[%s165 + $0x128] sm:$0xff]
      %v209 = vld [vmem:[%s165 + $0x130] sm:$0x3]
      %v210 = vld [vmem:[%s165 + $0x138] sm:$0xff]
      %v211 = vld [vmem:[%s165 + $0x140] sm:$0xff]
      %v212 = vld [vmem:[%s165 + $0x148] sm:$0x3]
      %v213 = vld [vmem:[%s165 + $0x150] sm:$0xff]
      %v214 = vld [vmem:[%s165 + $0x158] sm:$0xff]
      %v215 = vld [vmem:[%s165 + $0x160] sm:$0x3]
      %v216 = vld [vmem:[%s165 + $0x168] sm:$0xff]
      %v217 = vld [vmem:[%s165 + $0x170] sm:$0xff]
      %v218 = vld [vmem:[%s165 + $0x178] sm:$0x3]
      %v219 = vld [vmem:[%s165 + $0x180] sm:$0xff]
      %v220 = vld [vmem:[%s165 + $0x188] sm:$0xff]
      %v221 = vld [vmem:[%s165 + $0x190] sm:$0x3]
      %v222 = vld [vmem:[%s165 + $0x198] sm:$0xff]
      %v223 = vld [vmem:[%s165 + $0x1a0] sm:$0xff]
      %v224 = vld [vmem:[%s165 + $0x1a8] sm:$0x3]
      %v225 = vld [vmem:[%s1] sm:$0xff]
      %v226 = vld [vmem:[%s1 + $0x8] sm:$0xff]
      %vm275 = vcmask 1046528
      %v276 = vrot.slane %v171, 1
      %v277 = vrot.slane %v172, 1
      %v278 = vsel %vm275, %v276, %v277
      %v279 = vrot.slane %v173, 1
      %v280 = vsel %vm275, %v277, %v279
      %v281 = vrot.slane %v174, 1
      %v282 = vrot.slane %v175, 1
      %v283 = vsel %vm275, %v281, %v282
      %v284 = vrot.slane %v176, 1
      %v285 = vsel %vm275, %v282, %v284
      %v286 = vrot.slane %v177, 1
      %v287 = vrot.slane %v178, 1
      %v288 = vsel %vm275, %v286, %v287
      %v289 = vrot.slane %v179, 1
      %v290 = vsel %vm275, %v287, %v289
      %v291 = vrot.slane %v180, 1
      %v292 = vrot.slane %v181, 1
      %v293 = vsel %vm275, %v291, %v292
      %v294 = vrot.slane %v182, 1
      %v295 = vsel %vm275, %v292, %v294
      %v296 = vrot.slane %v183, 1
      %v297 = vrot.slane %v184, 1
      %v298 = vsel %vm275, %v296, %v297
      %v299 = vrot.slane %v185, 1
      %v300 = vsel %vm275, %v297, %v299
      %v301 = vrot.slane %v186, 1
      %v302 = vrot.slane %v187, 1
      %v303 = vsel %vm275, %v301, %v302
      %v304 = vrot.slane %v188, 1
      %v305 = vsel %vm275, %v302, %v304
      %v306 = vrot.slane %v189, 1
      %v307 = vrot.slane %v190, 1
      %v308 = vsel %vm275, %v306, %v307
      %v309 = vrot.slane %v191, 1
      %v310 = vsel %vm275, %v307, %v309
      %v311 = vrot.slane %v192, 1
      %v312 = vrot.slane %v193, 1
      %v313 = vsel %vm275, %v311, %v312
      %v314 = vrot.slane %v194, 1
      %v315 = vsel %vm275, %v312, %v314
      %v316 = vrot.slane %v195, 1
      %v317 = vrot.slane %v196, 1
      %v318 = vsel %vm275, %v316, %v317
      %v319 = vrot.slane %v197, 1
      %v320 = vsel %vm275, %v317, %v319
      %v321 = vrot.slane %v198, 1
      %v322 = vrot.slane %v199, 1
      %v323 = vsel %vm275, %v321, %v322
      %v324 = vrot.slane %v200, 1
      %v325 = vsel %vm275, %v322, %v324
      %v326 = vrot.slane %v201, 1
      %v327 = vrot.slane %v202, 1
      %v328 = vsel %vm275, %v326, %v327
      %v329 = vrot.slane %v203, 1
      %v330 = vsel %vm275, %v327, %v329
      %v331 = vrot.slane %v204, 1
      %v332 = vrot.slane %v205, 1
      %v333 = vsel %vm275, %v331, %v332
      %v334 = vrot.slane %v206, 1
      %v335 = vsel %vm275, %v332, %v334
      %v336 = vrot.slane %v207, 1
      %v337 = vrot.slane %v208, 1
      %v338 = vsel %vm275, %v336, %v337
      %v339 = vrot.slane %v209, 1
      %v340 = vsel %vm275, %v337, %v339
      %v341 = vrot.slane %v210, 1
      %v342 = vrot.slane %v211, 1
      %v343 = vsel %vm275, %v341, %v342
      %v344 = vrot.slane %v212, 1
      %v345 = vsel %vm275, %v342, %v344
      %v346 = vrot.slane %v213, 1
      %v347 = vrot.slane %v214, 1
      %v348 = vsel %vm275, %v346, %v347
      %v349 = vrot.slane %v215, 1
      %v350 = vsel %vm275, %v347, %v349
      %v351 = vrot.slane %v216, 1
      %v352 = vrot.slane %v217, 1
      %v353 = vsel %vm275, %v351, %v352
      %v354 = vrot.slane %v218, 1
      %v355 = vsel %vm275, %v352, %v354
      %s356 = scalar_lea.vmem %s1, 16
      %v357 = vld [vmem:[%s356] sm:$0xff]
      %v358 = vld [vmem:[%s356 + $0x8] sm:$0xff]
      %vm359 = vcmask 130048
      %v360 = vsel %vm359, %v278, 0
      %v362 = vsel %vm359, %v280, 0
      %v364 = vsel %vm359, %v283, 0
      %v366 = vsel %vm359, %v285, 0
      %v368 = vsel %vm359, %v288, 0
      %v370 = vsel %vm359, %v290, 0
      %v372 = vsel %vm359, %v293, 0
      %v374 = vsel %vm359, %v295, 0
      %v376 = vsel %vm359, %v298, 0
      %v378 = vsel %vm359, %v300, 0
      %v380 = vsel %vm359, %v303, 0
      %v382 = vsel %vm359, %v305, 0
      %v384 = vsel %vm359, %v308, 0
      %v386 = vsel %vm359, %v310, 0
      %v388 = vsel %vm359, %v313, 0
      %v390 = vsel %vm359, %v315, 0
      %v392 = vsel %vm359, %v318, 0
      %v394 = vsel %vm359, %v320, 0
      %v396 = vsel %vm359, %v323, 0
      %v398 = vsel %vm359, %v325, 0
      %v400 = vsel %vm359, %v328, 0
      %v402 = vsel %vm359, %v330, 0
      %v404 = vsel %vm359, %v333, 0
      %v406 = vsel %vm359, %v335, 0
      %v408 = vsel %vm359, %v338, 0
      %v410 = vsel %vm359, %v340, 0
      %v412 = vsel %vm359, %v343, 0
      %v414 = vsel %vm359, %v345, 0
      %v416 = vsel %vm359, %v348, 0
      %v418 = vsel %vm359, %v350, 0
      %v420 = vsel %vm359, %v353, 0
      %v422 = vsel %vm359, %v355, 0
      %424 = vmatpush.msra.mxu0 0.0
      %425 = vmatpush.msra.mxu0 0.0
      %426 = vmatpush.msra.mxu0 0.0
      %427 = vmatpush.msra.mxu0 0.0
      %428 = vmatpush.msra.mxu0 0.0
      %429 = vmatpush.msra.mxu0 0.0
      %430 = vmatpush.msra.mxu0 0.0
      %431 = vmatpush.msra.mxu0 0.0
      %432 = vmatpush.msra.mxu0 0.0
      %433 = vmatpush.msra.mxu0 0.0
      %434 = vmatpush.msra.mxu0 0.0
      %435 = vmatpush.msra.mxu0 0.0
      %436 = vmatpush.msra.mxu0 0.0
      %437 = vmatpush.msra.mxu0 0.0
      %438 = vmatpush.msra.mxu0 %v358
      %439 = vmatpush.msra.mxu0 %v357
      %440 = vmatmul.f32.gmra.mxu0 %v360
      %v441 = vpop.f32.mrf.mxu0
      %v442 = vadd.f32 0.0, %v441
      %443 = vmatmul.f32.gmra.mxu0 %v362
      %v444 = vpop.f32.mrf.mxu0
      %v445 = vadd.f32 0.0, %v444
      %446 = vmatmul.f32.gmra.mxu0 %v364
      %v447 = vpop.f32.mrf.mxu0
      %v448 = vadd.f32 0.0, %v447
      %449 = vmatmul.f32.gmra.mxu0 %v366
      %v450 = vpop.f32.mrf.mxu0
      %v451 = vadd.f32 0.0, %v450
      %452 = vmatmul.f32.gmra.mxu0 %v368
      %v453 = vpop.f32.mrf.mxu0
      %v454 = vadd.f32 0.0, %v453
      %455 = vmatmul.f32.gmra.mxu0 %v370
      %v456 = vpop.f32.mrf.mxu0
      %v457 = vadd.f32 0.0, %v456
      %458 = vmatmul.f32.gmra.mxu0 %v372
      %v459 = vpop.f32.mrf.mxu0
      %v460 = vadd.f32 0.0, %v459
      %461 = vmatmul.f32.gmra.mxu0 %v374
      %v462 = vpop.f32.mrf.mxu0
      %v463 = vadd.f32 0.0, %v462
      %464 = vmatmul.f32.gmra.mxu0 %v376
      %v465 = vpop.f32.mrf.mxu0
      %v466 = vadd.f32 0.0, %v465
      %467 = vmatmul.f32.gmra.mxu0 %v378
      %v468 = vpop.f32.mrf.mxu0
      %v469 = vadd.f32 0.0, %v468
      %470 = vmatmul.f32.gmra.mxu0 %v380
      %v471 = vpop.f32.mrf.mxu0
      %v472 = vadd.f32 0.0, %v471
      %473 = vmatmul.f32.gmra.mxu0 %v382
      %v474 = vpop.f32.mrf.mxu0
      %v475 = vadd.f32 0.0, %v474
      %476 = vmatmul.f32.gmra.mxu0 %v384
      %v477 = vpop.f32.mrf.mxu0
      %v478 = vadd.f32 0.0, %v477
      %479 = vmatmul.f32.gmra.mxu0 %v386
      %v480 = vpop.f32.mrf.mxu0
      %v481 = vadd.f32 0.0, %v480
      %482 = vmatmul.f32.gmra.mxu0 %v388
      %v483 = vpop.f32.mrf.mxu0
      %v484 = vadd.f32 0.0, %v483
      %485 = vmatmul.f32.gmra.mxu0 %v390
      %v486 = vpop.f32.mrf.mxu0
      %v487 = vadd.f32 0.0, %v486
      %488 = vmatmul.f32.gmra.mxu0 %v392
      %v489 = vpop.f32.mrf.mxu0
      %v490 = vadd.f32 0.0, %v489
      %491 = vmatmul.f32.gmra.mxu0 %v394
      %v492 = vpop.f32.mrf.mxu0
      %v493 = vadd.f32 0.0, %v492
      %494 = vmatmul.f32.gmra.mxu0 %v396
      %v495 = vpop.f32.mrf.mxu0
      %v496 = vadd.f32 0.0, %v495
      %497 = vmatmul.f32.gmra.mxu0 %v398
      %v498 = vpop.f32.mrf.mxu0
      %v499 = vadd.f32 0.0, %v498
      %500 = vmatmul.f32.gmra.mxu0 %v400
      %v501 = vpop.f32.mrf.mxu0
      %v502 = vadd.f32 0.0, %v501
      %503 = vmatmul.f32.gmra.mxu0 %v402
      %v504 = vpop.f32.mrf.mxu0
      %v505 = vadd.f32 0.0, %v504
      %506 = vmatmul.f32.gmra.mxu0 %v404
      %v507 = vpop.f32.mrf.mxu0
      %v508 = vadd.f32 0.0, %v507
      %509 = vmatmul.f32.gmra.mxu0 %v406
      %v510 = vpop.f32.mrf.mxu0
      %v511 = vadd.f32 0.0, %v510
      %512 = vmatmul.f32.gmra.mxu0 %v408
      %v513 = vpop.f32.mrf.mxu0
      %v514 = vadd.f32 0.0, %v513
      %515 = vmatmul.f32.gmra.mxu0 %v410
      %v516 = vpop.f32.mrf.mxu0
      %v517 = vadd.f32 0.0, %v516
      %518 = vmatmul.f32.gmra.mxu0 %v412
      %v519 = vpop.f32.mrf.mxu0
      %v520 = vadd.f32 0.0, %v519
      %521 = vmatmul.f32.gmra.mxu0 %v414
      %v522 = vpop.f32.mrf.mxu0
      %v523 = vadd.f32 0.0, %v522
      %524 = vmatmul.f32.gmra.mxu0 %v416
      %v525 = vpop.f32.mrf.mxu0
      %v526 = vadd.f32 0.0, %v525
      %527 = vmatmul.f32.gmra.mxu0 %v418
      %v528 = vpop.f32.mrf.mxu0
      %v529 = vadd.f32 0.0, %v528
      %530 = vmatmul.f32.gmra.mxu0 %v420
      %v531 = vpop.f32.mrf.mxu0
      %v532 = vadd.f32 0.0, %v531
      %533 = vmatmul.f32.gmra.mxu0 %v422
      %v534 = vpop.f32.mrf.mxu0
      %v535 = vadd.f32 0.0, %v534
      %536 = vdwg.mxu0
      %v537 = vsel %vm359, %v171, 0
      %v539 = vsel %vm359, %v172, 0
      %v541 = vsel %vm359, %v174, 0
      %v543 = vsel %vm359, %v175, 0
      %v545 = vsel %vm359, %v177, 0
      %v547 = vsel %vm359, %v178, 0
      %v549 = vsel %vm359, %v180, 0
      %v551 = vsel %vm359, %v181, 0
      %v553 = vsel %vm359, %v183, 0
      %v555 = vsel %vm359, %v184, 0
      %v557 = vsel %vm359, %v186, 0
      %v559 = vsel %vm359, %v187, 0
      %v561 = vsel %vm359, %v189, 0
      %v563 = vsel %vm359, %v190, 0
      %v565 = vsel %vm359, %v192, 0
      %v567 = vsel %vm359, %v193, 0
      %v569 = vsel %vm359, %v195, 0
      %v571 = vsel %vm359, %v196, 0
      %v573 = vsel %vm359, %v198, 0
      %v575 = vsel %vm359, %v199, 0
      %v577 = vsel %vm359, %v201, 0
      %v579 = vsel %vm359, %v202, 0
      %v581 = vsel %vm359, %v204, 0
      %v583 = vsel %vm359, %v205, 0
      %v585 = vsel %vm359, %v207, 0
      %v587 = vsel %vm359, %v208, 0
      %v589 = vsel %vm359, %v210, 0
      %v591 = vsel %vm359, %v211, 0
      %v593 = vsel %vm359, %v213, 0
      %v595 = vsel %vm359, %v214, 0
      %v597 = vsel %vm359, %v216, 0
      %v599 = vsel %vm359, %v217, 0
      %601 = vmatpush.msra.mxu0 0.0
      %602 = vmatpush.msra.mxu0 0.0
      %603 = vmatpush.msra.mxu0 0.0
      %604 = vmatpush.msra.mxu0 0.0
      %605 = vmatpush.msra.mxu0 0.0
      %606 = vmatpush.msra.mxu0 0.0
      %607 = vmatpush.msra.mxu0 0.0
      %608 = vmatpush.msra.mxu0 0.0
      %609 = vmatpush.msra.mxu0 0.0
      %610 = vmatpush.msra.mxu0 0.0
      %611 = vmatpush.msra.mxu0 0.0
      %612 = vmatpush.msra.mxu0 0.0
      %613 = vmatpush.msra.mxu0 0.0
      %614 = vmatpush.msra.mxu0 0.0
      %615 = vmatpush.msra.mxu0 %v226
      %616 = vmatpush.msra.mxu0 %v225
      %617 = vmatmul.f32.gmra.mxu0 %v537
      %v618 = vpop.f32.mrf.mxu0
      %v619 = vadd.f32 %v442, %v618
      %620 = vmatmul.f32.gmra.mxu0 %v539
      %v621 = vpop.f32.mrf.mxu0
      %v622 = vadd.f32 %v445, %v621
      %623 = vmatmul.f32.gmra.mxu0 %v541
      %v624 = vpop.f32.mrf.mxu0
      %v625 = vadd.f32 %v448, %v624
      %626 = vmatmul.f32.gmra.mxu0 %v543
      %v627 = vpop.f32.mrf.mxu0
      %v628 = vadd.f32 %v451, %v627
      %629 = vmatmul.f32.gmra.mxu0 %v545
      %v630 = vpop.f32.mrf.mxu0
      %v631 = vadd.f32 %v454, %v630
      %632 = vmatmul.f32.gmra.mxu0 %v547
      %v633 = vpop.f32.mrf.mxu0
      %v634 = vadd.f32 %v457, %v633
      %635 = vmatmul.f32.gmra.mxu0 %v549
      %v636 = vpop.f32.mrf.mxu0
      %v637 = vadd.f32 %v460, %v636
      %638 = vmatmul.f32.gmra.mxu0 %v551
      %v639 = vpop.f32.mrf.mxu0
      %v640 = vadd.f32 %v463, %v639
      %641 = vmatmul.f32.gmra.mxu0 %v553
      %v642 = vpop.f32.mrf.mxu0
      %v643 = vadd.f32 %v466, %v642
      %644 = vmatmul.f32.gmra.mxu0 %v555
      %v645 = vpop.f32.mrf.mxu0
      %v646 = vadd.f32 %v469, %v645
      %647 = vmatmul.f32.gmra.mxu0 %v557
      %v648 = vpop.f32.mrf.mxu0
      %v649 = vadd.f32 %v472, %v648
      %650 = vmatmul.f32.gmra.mxu0 %v559
      %v651 = vpop.f32.mrf.mxu0
      %v652 = vadd.f32 %v475, %v651
      %653 = vmatmul.f32.gmra.mxu0 %v561
      %v654 = vpop.f32.mrf.mxu0
      %v655 = vadd.f32 %v478, %v654
      %656 = vmatmul.f32.gmra.mxu0 %v563
      %v657 = vpop.f32.mrf.mxu0
      %v658 = vadd.f32 %v481, %v657
      %659 = vmatmul.f32.gmra.mxu0 %v565
      %v660 = vpop.f32.mrf.mxu0
      %v661 = vadd.f32 %v484, %v660
      %662 = vmatmul.f32.gmra.mxu0 %v567
      %v663 = vpop.f32.mrf.mxu0
      %v664 = vadd.f32 %v487, %v663
      %665 = vmatmul.f32.gmra.mxu0 %v569
      %v666 = vpop.f32.mrf.mxu0
      %v667 = vadd.f32 %v490, %v666
      %668 = vmatmul.f32.gmra.mxu0 %v571
      %v669 = vpop.f32.mrf.mxu0
      %v670 = vadd.f32 %v493, %v669
      %671 = vmatmul.f32.gmra.mxu0 %v573
      %v672 = vpop.f32.mrf.mxu0
      %v673 = vadd.f32 %v496, %v672
      %674 = vmatmul.f32.gmra.mxu0 %v575
      %v675 = vpop.f32.mrf.mxu0
      %v676 = vadd.f32 %v499, %v675
      %677 = vmatmul.f32.gmra.mxu0 %v577
      %v678 = vpop.f32.mrf.mxu0
      %v679 = vadd.f32 %v502, %v678
      %680 = vmatmul.f32.gmra.mxu0 %v579
      %v681 = vpop.f32.mrf.mxu0
      %v682 = vadd.f32 %v505, %v681
      %683 = vmatmul.f32.gmra.mxu0 %v581
      %v684 = vpop.f32.mrf.mxu0
      %v685 = vadd.f32 %v508, %v684
      %686 = vmatmul.f32.gmra.mxu0 %v583
      %v687 = vpop.f32.mrf.mxu0
      %v688 = vadd.f32 %v511, %v687
      %689 = vmatmul.f32.gmra.mxu0 %v585
      %v690 = vpop.f32.mrf.mxu0
      %v691 = vadd.f32 %v514, %v690
      %692 = vmatmul.f32.gmra.mxu0 %v587
      %v693 = vpop.f32.mrf.mxu0
      %v694 = vadd.f32 %v517, %v693
      %695 = vmatmul.f32.gmra.mxu0 %v589
      %v696 = vpop.f32.mrf.mxu0
      %v697 = vadd.f32 %v520, %v696
      %698 = vmatmul.f32.gmra.mxu0 %v591
      %v699 = vpop.f32.mrf.mxu0
      %v700 = vadd.f32 %v523, %v699
      %701 = vmatmul.f32.gmra.mxu0 %v593
      %v702 = vpop.f32.mrf.mxu0
      %v703 = vadd.f32 %v526, %v702
      %704 = vmatmul.f32.gmra.mxu0 %v595
      %v705 = vpop.f32.mrf.mxu0
      %v706 = vadd.f32 %v529, %v705
      %707 = vmatmul.f32.gmra.mxu0 %v597
      %v708 = vpop.f32.mrf.mxu0
      %v709 = vadd.f32 %v532, %v708
      %710 = vmatmul.f32.gmra.mxu0 %v599
      %v711 = vpop.f32.mrf.mxu0
      %v712 = vadd.f32 %v535, %v711
      %713 = vdwg.mxu0
      %vm714 = vcmask 1045504
      %v715 = vrot.slane %v171, 2
      %v716 = vrot.slane %v172, 2
      %v717 = vsel %vm714, %v715, %v716
      %v718 = vrot.slane %v173, 2
      %v719 = vsel %vm714, %v716, %v718
      %v720 = vrot.slane %v174, 2
      %v721 = vrot.slane %v175, 2
      %v722 = vsel %vm714, %v720, %v721
      %v723 = vrot.slane %v176, 2
      %v724 = vsel %vm714, %v721, %v723
      %v725 = vrot.slane %v177, 2
      %v726 = vrot.slane %v178, 2
      %v727 = vsel %vm714, %v725, %v726
      %v728 = vrot.slane %v179, 2
      %v729 = vsel %vm714, %v726, %v728
      %v730 = vrot.slane %v180, 2
      %v731 = vrot.slane %v181, 2
      %v732 = vsel %vm714, %v730, %v731
      %v733 = vrot.slane %v182, 2
      %v734 = vsel %vm714, %v731, %v733
      %v735 = vrot.slane %v183, 2
      %v736 = vrot.slane %v184, 2
      %v737 = vsel %vm714, %v735, %v736
      %v738 = vrot.slane %v185, 2
      %v739 = vsel %vm714, %v736, %v738
      %v740 = vrot.slane %v186, 2
      %v741 = vrot.slane %v187, 2
      %v742 = vsel %vm714, %v740, %v741
      %v743 = vrot.slane %v188, 2
      %v744 = vsel %vm714, %v741, %v743
      %v745 = vrot.slane %v189, 2
      %v746 = vrot.slane %v190, 2
      %v747 = vsel %vm714, %v745, %v746
      %v748 = vrot.slane %v191, 2
      %v749 = vsel %vm714, %v746, %v748
      %v750 = vrot.slane %v192, 2
      %v751 = vrot.slane %v193, 2
      %v752 = vsel %vm714, %v750, %v751
      %v753 = vrot.slane %v194, 2
      %v754 = vsel %vm714, %v751, %v753
      %v755 = vrot.slane %v195, 2
      %v756 = vrot.slane %v196, 2
      %v757 = vsel %vm714, %v755, %v756
      %v758 = vrot.slane %v197, 2
      %v759 = vsel %vm714, %v756, %v758
      %v760 = vrot.slane %v198, 2
      %v761 = vrot.slane %v199, 2
      %v762 = vsel %vm714, %v760, %v761
      %v763 = vrot.slane %v200, 2
      %v764 = vsel %vm714, %v761, %v763
      %v765 = vrot.slane %v201, 2
      %v766 = vrot.slane %v202, 2
      %v767 = vsel %vm714, %v765, %v766
      %v768 = vrot.slane %v203, 2
      %v769 = vsel %vm714, %v766, %v768
      %v770 = vrot.slane %v204, 2
      %v771 = vrot.slane %v205, 2
      %v772 = vsel %vm714, %v770, %v771
      %v773 = vrot.slane %v206, 2
      %v774 = vsel %vm714, %v771, %v773
      %v775 = vrot.slane %v207, 2
      %v776 = vrot.slane %v208, 2
      %v777 = vsel %vm714, %v775, %v776
      %v778 = vrot.slane %v209, 2
      %v779 = vsel %vm714, %v776, %v778
      %v780 = vrot.slane %v210, 2
      %v781 = vrot.slane %v211, 2
      %v782 = vsel %vm714, %v780, %v781
      %v783 = vrot.slane %v212, 2
      %v784 = vsel %vm714, %v781, %v783
      %v785 = vrot.slane %v213, 2
      %v786 = vrot.slane %v214, 2
      %v787 = vsel %vm714, %v785, %v786
      %v788 = vrot.slane %v215, 2
      %v789 = vsel %vm714, %v786, %v788
      %v790 = vrot.slane %v216, 2
      %v791 = vrot.slane %v217, 2
      %v792 = vsel %vm714, %v790, %v791
      %v793 = vrot.slane %v218, 2
      %v794 = vsel %vm714, %v791, %v793
      %s795 = scalar_lea.vmem %s1, 32
      %v796 = vld [vmem:[%s795] sm:$0xff]
      %v797 = vld [vmem:[%s795 + $0x8] sm:$0xff]
      %v798 = vsel %vm359, %v717, 0
      %v800 = vsel %vm359, %v719, 0
      %v802 = vsel %vm359, %v722, 0
      %v804 = vsel %vm359, %v724, 0
      %v806 = vsel %vm359, %v727, 0
      %v808 = vsel %vm359, %v729, 0
      %v810 = vsel %vm359, %v732, 0
      %v812 = vsel %vm359, %v734, 0
      %v814 = vsel %vm359, %v737, 0
      %v816 = vsel %vm359, %v739, 0
      %v818 = vsel %vm359, %v742, 0
      %v820 = vsel %vm359, %v744, 0
      %v822 = vsel %vm359, %v747, 0
      %v824 = vsel %vm359, %v749, 0
      %v826 = vsel %vm359, %v752, 0
      %v828 = vsel %vm359, %v754, 0
      %v830 = vsel %vm359, %v757, 0
      %v832 = vsel %vm359, %v759, 0
      %v834 = vsel %vm359, %v762, 0
      %v836 = vsel %vm359, %v764, 0
      %v838 = vsel %vm359, %v767, 0
      %v840 = vsel %vm359, %v769, 0
      %v842 = vsel %vm359, %v772, 0
      %v844 = vsel %vm359, %v774, 0
      %v846 = vsel %vm359, %v777, 0
      %v848 = vsel %vm359, %v779, 0
      %v850 = vsel %vm359, %v782, 0
      %v852 = vsel %vm359, %v784, 0
      %v854 = vsel %vm359, %v787, 0
      %v856 = vsel %vm359, %v789, 0
      %v858 = vsel %vm359, %v792, 0
      %v860 = vsel %vm359, %v794, 0
      %862 = vmatpush.msra.mxu0 0.0
      %863 = vmatpush.msra.mxu0 0.0
      %864 = vmatpush.msra.mxu0 0.0
      %865 = vmatpush.msra.mxu0 0.0
      %866 = vmatpush.msra.mxu0 0.0
      %867 = vmatpush.msra.mxu0 0.0
      %868 = vmatpush.msra.mxu0 0.0
      %869 = vmatpush.msra.mxu0 0.0
      %870 = vmatpush.msra.mxu0 0.0
      %871 = vmatpush.msra.mxu0 0.0
      %872 = vmatpush.msra.mxu0 0.0
      %873 = vmatpush.msra.mxu0 0.0
      %874 = vmatpush.msra.mxu0 0.0
      %875 = vmatpush.msra.mxu0 0.0
      %876 = vmatpush.msra.mxu0 %v797
      %877 = vmatpush.msra.mxu0 %v796
      %878 = vmatmul.f32.gmra.mxu0 %v798
      %v879 = vpop.f32.mrf.mxu0
      %v880 = vadd.f32 0.0, %v879
      %881 = vmatmul.f32.gmra.mxu0 %v800
      %v882 = vpop.f32.mrf.mxu0
      %v883 = vadd.f32 0.0, %v882
      %884 = vmatmul.f32.gmra.mxu0 %v802
      %v885 = vpop.f32.mrf.mxu0
      %v886 = vadd.f32 0.0, %v885
      %887 = vmatmul.f32.gmra.mxu0 %v804
      %v888 = vpop.f32.mrf.mxu0
      %v889 = vadd.f32 0.0, %v888
      %890 = vmatmul.f32.gmra.mxu0 %v806
      %v891 = vpop.f32.mrf.mxu0
      %v892 = vadd.f32 0.0, %v891
      %893 = vmatmul.f32.gmra.mxu0 %v808
      %v894 = vpop.f32.mrf.mxu0
      %v895 = vadd.f32 0.0, %v894
      %896 = vmatmul.f32.gmra.mxu0 %v810
      %v897 = vpop.f32.mrf.mxu0
      %v898 = vadd.f32 0.0, %v897
      %899 = vmatmul.f32.gmra.mxu0 %v812
      %v900 = vpop.f32.mrf.mxu0
      %v901 = vadd.f32 0.0, %v900
      %902 = vmatmul.f32.gmra.mxu0 %v814
      %v903 = vpop.f32.mrf.mxu0
      %v904 = vadd.f32 0.0, %v903
      %905 = vmatmul.f32.gmra.mxu0 %v816
      %v906 = vpop.f32.mrf.mxu0
      %v907 = vadd.f32 0.0, %v906
      %908 = vmatmul.f32.gmra.mxu0 %v818
      %v909 = vpop.f32.mrf.mxu0
      %v910 = vadd.f32 0.0, %v909
      %911 = vmatmul.f32.gmra.mxu0 %v820
      %v912 = vpop.f32.mrf.mxu0
      %v913 = vadd.f32 0.0, %v912
      %914 = vmatmul.f32.gmra.mxu0 %v822
      %v915 = vpop.f32.mrf.mxu0
      %v916 = vadd.f32 0.0, %v915
      %917 = vmatmul.f32.gmra.mxu0 %v824
      %v918 = vpop.f32.mrf.mxu0
      %v919 = vadd.f32 0.0, %v918
      %920 = vmatmul.f32.gmra.mxu0 %v826
      %v921 = vpop.f32.mrf.mxu0
      %v922 = vadd.f32 0.0, %v921
      %923 = vmatmul.f32.gmra.mxu0 %v828
      %v924 = vpop.f32.mrf.mxu0
      %v925 = vadd.f32 0.0, %v924
      %926 = vmatmul.f32.gmra.mxu0 %v830
      %v927 = vpop.f32.mrf.mxu0
      %v928 = vadd.f32 0.0, %v927
      %929 = vmatmul.f32.gmra.mxu0 %v832
      %v930 = vpop.f32.mrf.mxu0
      %v931 = vadd.f32 0.0, %v930
      %932 = vmatmul.f32.gmra.mxu0 %v834
      %v933 = vpop.f32.mrf.mxu0
      %v934 = vadd.f32 0.0, %v933
      %935 = vmatmul.f32.gmra.mxu0 %v836
      %v936 = vpop.f32.mrf.mxu0
      %v937 = vadd.f32 0.0, %v936
      %938 = vmatmul.f32.gmra.mxu0 %v838
      %v939 = vpop.f32.mrf.mxu0
      %v940 = vadd.f32 0.0, %v939
      %941 = vmatmul.f32.gmra.mxu0 %v840
      %v942 = vpop.f32.mrf.mxu0
      %v943 = vadd.f32 0.0, %v942
      %944 = vmatmul.f32.gmra.mxu0 %v842
      %v945 = vpop.f32.mrf.mxu0
      %v946 = vadd.f32 0.0, %v945
      %947 = vmatmul.f32.gmra.mxu0 %v844
      %v948 = vpop.f32.mrf.mxu0
      %v949 = vadd.f32 0.0, %v948
      %950 = vmatmul.f32.gmra.mxu0 %v846
      %v951 = vpop.f32.mrf.mxu0
      %v952 = vadd.f32 0.0, %v951
      %953 = vmatmul.f32.gmra.mxu0 %v848
      %v954 = vpop.f32.mrf.mxu0
      %v955 = vadd.f32 0.0, %v954
      %956 = vmatmul.f32.gmra.mxu0 %v850
      %v957 = vpop.f32.mrf.mxu0
      %v958 = vadd.f32 0.0, %v957
      %959 = vmatmul.f32.gmra.mxu0 %v852
      %v960 = vpop.f32.mrf.mxu0
      %v961 = vadd.f32 0.0, %v960
      %962 = vmatmul.f32.gmra.mxu0 %v854
      %v963 = vpop.f32.mrf.mxu0
      %v964 = vadd.f32 0.0, %v963
      %965 = vmatmul.f32.gmra.mxu0 %v856
      %v966 = vpop.f32.mrf.mxu0
      %v967 = vadd.f32 0.0, %v966
      %968 = vmatmul.f32.gmra.mxu0 %v858
      %v969 = vpop.f32.mrf.mxu0
      %v970 = vadd.f32 0.0, %v969
      %971 = vmatmul.f32.gmra.mxu0 %v860
      %v972 = vpop.f32.mrf.mxu0
      %v973 = vadd.f32 0.0, %v972
      %974 = vdwg.mxu0
      %v975 = vadd.f32 %v619, %v880
      %v976 = vadd.f32 %v622, %v883
      %v977 = vadd.f32 %v625, %v886
      %v978 = vadd.f32 %v628, %v889
      %v979 = vadd.f32 %v631, %v892
      %v980 = vadd.f32 %v634, %v895
      %v981 = vadd.f32 %v637, %v898
      %v982 = vadd.f32 %v640, %v901
      %v983 = vadd.f32 %v643, %v904
      %v984 = vadd.f32 %v646, %v907
      %v985 = vadd.f32 %v649, %v910
      %v986 = vadd.f32 %v652, %v913
      %v987 = vadd.f32 %v655, %v916
      %v988 = vadd.f32 %v658, %v919
      %v989 = vadd.f32 %v661, %v922
      %v990 = vadd.f32 %v664, %v925
      %v991 = vadd.f32 %v667, %v928
      %v992 = vadd.f32 %v670, %v931
      %v993 = vadd.f32 %v673, %v934
      %v994 = vadd.f32 %v676, %v937
      %v995 = vadd.f32 %v679, %v940
      %v996 = vadd.f32 %v682, %v943
      %v997 = vadd.f32 %v685, %v946
      %v998 = vadd.f32 %v688, %v949
      %v999 = vadd.f32 %v691, %v952
      %v1000 = vadd.f32 %v694, %v955
      %v1001 = vadd.f32 %v697, %v958
      %v1002 = vadd.f32 %v700, %v961
      %v1003 = vadd.f32 %v703, %v964
      %v1004 = vadd.f32 %v706, %v967
      %v1005 = vadd.f32 %v709, %v970
      %v1006 = vadd.f32 %v712, %v973
      %s1007 = scalar_lea.vmem %s1, 48
      %v1008 = vld [vmem:[%s1007] sm:$0xff]
      %v1009 = vld [vmem:[%s1007 + $0x8] sm:$0xff]
      %v1011 = vsel %vm359, %v219, 0
      %v1014 = vsel %vm359, %v220, 0
      %1016 = vmatpush.msra.mxu0 0.0
      %1017 = vmatpush.msra.mxu0 0.0
      %1018 = vmatpush.msra.mxu0 0.0
      %1019 = vmatpush.msra.mxu0 0.0
      %1020 = vmatpush.msra.mxu0 0.0
      %1021 = vmatpush.msra.mxu0 0.0
      %1022 = vmatpush.msra.mxu0 0.0
      %1023 = vmatpush.msra.mxu0 0.0
      %1024 = vmatpush.msra.mxu0 0.0
      %1025 = vmatpush.msra.mxu0 0.0
      %1026 = vmatpush.msra.mxu0 0.0
      %1027 = vmatpush.msra.mxu0 0.0
      %1028 = vmatpush.msra.mxu0 0.0
      %1029 = vmatpush.msra.mxu0 0.0
      %1030 = vmatpush.msra.mxu0 %v1009
      %1031 = vmatpush.msra.mxu0 %v1008
      %1032 = vmatmul.f32.gmra.mxu0 %v541
      %v1033 = vpop.f32.mrf.mxu0
      %v1034 = vadd.f32 0.0, %v1033
      %1035 = vmatmul.f32.gmra.mxu0 %v543
      %v1036 = vpop.f32.mrf.mxu0
      %v1037 = vadd.f32 0.0, %v1036
      %1038 = vmatmul.f32.gmra.mxu0 %v545
      %v1039 = vpop.f32.mrf.mxu0
      %v1040 = vadd.f32 0.0, %v1039
      %1041 = vmatmul.f32.gmra.mxu0 %v547
      %v1042 = vpop.f32.mrf.mxu0
      %v1043 = vadd.f32 0.0, %v1042
      %1044 = vmatmul.f32.gmra.mxu0 %v549
      %v1045 = vpop.f32.mrf.mxu0
      %v1046 = vadd.f32 0.0, %v1045
      %1047 = vmatmul.f32.gmra.mxu0 %v551
      %v1048 = vpop.f32.mrf.mxu0
      %v1049 = vadd.f32 0.0, %v1048
      %1050 = vmatmul.f32.gmra.mxu0 %v553
      %v1051 = vpop.f32.mrf.mxu0
      %v1052 = vadd.f32 0.0, %v1051
      %1053 = vmatmul.f32.gmra.mxu0 %v555
      %v1054 = vpop.f32.mrf.mxu0
      %v1055 = vadd.f32 0.0, %v1054
      %1056 = vmatmul.f32.gmra.mxu0 %v557
      %v1057 = vpop.f32.mrf.mxu0
      %v1058 = vadd.f32 0.0, %v1057
      %1059 = vmatmul.f32.gmra.mxu0 %v559
      %v1060 = vpop.f32.mrf.mxu0
      %v1061 = vadd.f32 0.0, %v1060
      %1062 = vmatmul.f32.gmra.mxu0 %v561
      %v1063 = vpop.f32.mrf.mxu0
      %v1064 = vadd.f32 0.0, %v1063
      %1065 = vmatmul.f32.gmra.mxu0 %v563
      %v1066 = vpop.f32.mrf.mxu0
      %v1067 = vadd.f32 0.0, %v1066
      %1068 = vmatmul.f32.gmra.mxu0 %v565
      %v1069 = vpop.f32.mrf.mxu0
      %v1070 = vadd.f32 0.0, %v1069
      %1071 = vmatmul.f32.gmra.mxu0 %v567
      %v1072 = vpop.f32.mrf.mxu0
      %v1073 = vadd.f32 0.0, %v1072
      %1074 = vmatmul.f32.gmra.mxu0 %v569
      %v1075 = vpop.f32.mrf.mxu0
      %v1076 = vadd.f32 0.0, %v1075
      %1077 = vmatmul.f32.gmra.mxu0 %v571
      %v1078 = vpop.f32.mrf.mxu0
      %v1079 = vadd.f32 0.0, %v1078
      %1080 = vmatmul.f32.gmra.mxu0 %v573
      %v1081 = vpop.f32.mrf.mxu0
      %v1082 = vadd.f32 0.0, %v1081
      %1083 = vmatmul.f32.gmra.mxu0 %v575
      %v1084 = vpop.f32.mrf.mxu0
      %v1085 = vadd.f32 0.0, %v1084
      %1086 = vmatmul.f32.gmra.mxu0 %v577
      %v1087 = vpop.f32.mrf.mxu0
      %v1088 = vadd.f32 0.0, %v1087
      %1089 = vmatmul.f32.gmra.mxu0 %v579
      %v1090 = vpop.f32.mrf.mxu0
      %v1091 = vadd.f32 0.0, %v1090
      %1092 = vmatmul.f32.gmra.mxu0 %v581
      %v1093 = vpop.f32.mrf.mxu0
      %v1094 = vadd.f32 0.0, %v1093
      %1095 = vmatmul.f32.gmra.mxu0 %v583
      %v1096 = vpop.f32.mrf.mxu0
      %v1097 = vadd.f32 0.0, %v1096
      %1098 = vmatmul.f32.gmra.mxu0 %v585
      %v1099 = vpop.f32.mrf.mxu0
      %v1100 = vadd.f32 0.0, %v1099
      %1101 = vmatmul.f32.gmra.mxu0 %v587
      %v1102 = vpop.f32.mrf.mxu0
      %v1103 = vadd.f32 0.0, %v1102
      %1104 = vmatmul.f32.gmra.mxu0 %v589
      %v1105 = vpop.f32.mrf.mxu0
      %v1106 = vadd.f32 0.0, %v1105
      %1107 = vmatmul.f32.gmra.mxu0 %v591
      %v1108 = vpop.f32.mrf.mxu0
      %v1109 = vadd.f32 0.0, %v1108
      %1110 = vmatmul.f32.gmra.mxu0 %v593
      %v1111 = vpop.f32.mrf.mxu0
      %v1112 = vadd.f32 0.0, %v1111
      %1113 = vmatmul.f32.gmra.mxu0 %v595
      %v1114 = vpop.f32.mrf.mxu0
      %v1115 = vadd.f32 0.0, %v1114
      %1116 = vmatmul.f32.gmra.mxu0 %v597
      %v1117 = vpop.f32.mrf.mxu0
      %v1118 = vadd.f32 0.0, %v1117
      %1119 = vmatmul.f32.gmra.mxu0 %v599
      %v1120 = vpop.f32.mrf.mxu0
      %v1121 = vadd.f32 0.0, %v1120
      %1122 = vmatmul.f32.gmra.mxu0 %v1011
      %v1123 = vpop.f32.mrf.mxu0
      %v1124 = vadd.f32 0.0, %v1123
      %1125 = vmatmul.f32.gmra.mxu0 %v1014
      %v1126 = vpop.f32.mrf.mxu0
      %v1127 = vadd.f32 0.0, %v1126
      %1128 = vdwg.mxu0
      %v1129 = vadd.f32 %v975, %v1034
      %v1130 = vadd.f32 %v976, %v1037
      %v1131 = vadd.f32 %v977, %v1040
      %v1132 = vadd.f32 %v978, %v1043
      %v1133 = vadd.f32 %v979, %v1046
      %v1134 = vadd.f32 %v980, %v1049
      %v1135 = vadd.f32 %v981, %v1052
      %v1136 = vadd.f32 %v982, %v1055
      %v1137 = vadd.f32 %v983, %v1058
      %v1138 = vadd.f32 %v984, %v1061
      %v1139 = vadd.f32 %v985, %v1064
      %v1140 = vadd.f32 %v986, %v1067
      %v1141 = vadd.f32 %v987, %v1070
      %v1142 = vadd.f32 %v988, %v1073
      %v1143 = vadd.f32 %v989, %v1076
      %v1144 = vadd.f32 %v990, %v1079
      %v1145 = vadd.f32 %v991, %v1082
      %v1146 = vadd.f32 %v992, %v1085
      %v1147 = vadd.f32 %v993, %v1088
      %v1148 = vadd.f32 %v994, %v1091
      %v1149 = vadd.f32 %v995, %v1094
      %v1150 = vadd.f32 %v996, %v1097
      %v1151 = vadd.f32 %v997, %v1100
      %v1152 = vadd.f32 %v998, %v1103
      %v1153 = vadd.f32 %v999, %v1106
      %v1154 = vadd.f32 %v1000, %v1109
      %v1155 = vadd.f32 %v1001, %v1112
      %v1156 = vadd.f32 %v1002, %v1115
      %v1157 = vadd.f32 %v1003, %v1118
      %v1158 = vadd.f32 %v1004, %v1121
      %v1159 = vadd.f32 %v1005, %v1124
      %v1160 = vadd.f32 %v1006, %v1127
      %v1162 = vrot.slane %v219, 1
      %v1163 = vrot.slane %v220, 1
      %v1164 = vsel %vm275, %v1162, %v1163
      %v1165 = vrot.slane %v221, 1
      %v1166 = vsel %vm275, %v1163, %v1165
      %s1167 = scalar_lea.vmem %s1, 64
      %v1168 = vld [vmem:[%s1167] sm:$0xff]
      %v1169 = vld [vmem:[%s1167 + $0x8] sm:$0xff]
      %v1170 = vsel %vm359, %v1164, 0
      %v1172 = vsel %vm359, %v1166, 0
      %1174 = vmatpush.msra.mxu0 0.0
      %1175 = vmatpush.msra.mxu0 0.0
      %1176 = vmatpush.msra.mxu0 0.0
      %1177 = vmatpush.msra.mxu0 0.0
      %1178 = vmatpush.msra.mxu0 0.0
      %1179 = vmatpush.msra.mxu0 0.0
      %1180 = vmatpush.msra.mxu0 0.0
      %1181 = vmatpush.msra.mxu0 0.0
      %1182 = vmatpush.msra.mxu0 0.0
      %1183 = vmatpush.msra.mxu0 0.0
      %1184 = vmatpush.msra.mxu0 0.0
      %1185 = vmatpush.msra.mxu0 0.0
      %1186 = vmatpush.msra.mxu0 0.0
      %1187 = vmatpush.msra.mxu0 0.0
      %1188 = vmatpush.msra.mxu0 %v1169
      %1189 = vmatpush.msra.mxu0 %v1168
      %1190 = vmatmul.f32.gmra.mxu0 %v364
      %v1191 = vpop.f32.mrf.mxu0
      %v1192 = vadd.f32 0.0, %v1191
      %1193 = vmatmul.f32.gmra.mxu0 %v366
      %v1194 = vpop.f32.mrf.mxu0
      %v1195 = vadd.f32 0.0, %v1194
      %1196 = vmatmul.f32.gmra.mxu0 %v368
      %v1197 = vpop.f32.mrf.mxu0
      %v1198 = vadd.f32 0.0, %v1197
      %1199 = vmatmul.f32.gmra.mxu0 %v370
      %v1200 = vpop.f32.mrf.mxu0
      %v1201 = vadd.f32 0.0, %v1200
      %1202 = vmatmul.f32.gmra.mxu0 %v372
      %v1203 = vpop.f32.mrf.mxu0
      %v1204 = vadd.f32 0.0, %v1203
      %1205 = vmatmul.f32.gmra.mxu0 %v374
      %v1206 = vpop.f32.mrf.mxu0
      %v1207 = vadd.f32 0.0, %v1206
      %1208 = vmatmul.f32.gmra.mxu0 %v376
      %v1209 = vpop.f32.mrf.mxu0
      %v1210 = vadd.f32 0.0, %v1209
      %1211 = vmatmul.f32.gmra.mxu0 %v378
      %v1212 = vpop.f32.mrf.mxu0
      %v1213 = vadd.f32 0.0, %v1212
      %1214 = vmatmul.f32.gmra.mxu0 %v380
      %v1215 = vpop.f32.mrf.mxu0
      %v1216 = vadd.f32 0.0, %v1215
      %1217 = vmatmul.f32.gmra.mxu0 %v382
      %v1218 = vpop.f32.mrf.mxu0
      %v1219 = vadd.f32 0.0, %v1218
      %1220 = vmatmul.f32.gmra.mxu0 %v384
      %v1221 = vpop.f32.mrf.mxu0
      %v1222 = vadd.f32 0.0, %v1221
      %1223 = vmatmul.f32.gmra.mxu0 %v386
      %v1224 = vpop.f32.mrf.mxu0
      %v1225 = vadd.f32 0.0, %v1224
      %1226 = vmatmul.f32.gmra.mxu0 %v388
      %v1227 = vpop.f32.mrf.mxu0
      %v1228 = vadd.f32 0.0, %v1227
      %1229 = vmatmul.f32.gmra.mxu0 %v390
      %v1230 = vpop.f32.mrf.mxu0
      %v1231 = vadd.f32 0.0, %v1230
      %1232 = vmatmul.f32.gmra.mxu0 %v392
      %v1233 = vpop.f32.mrf.mxu0
      %v1234 = vadd.f32 0.0, %v1233
      %1235 = vmatmul.f32.gmra.mxu0 %v394
      %v1236 = vpop.f32.mrf.mxu0
      %v1237 = vadd.f32 0.0, %v1236
      %1238 = vmatmul.f32.gmra.mxu0 %v396
      %v1239 = vpop.f32.mrf.mxu0
      %v1240 = vadd.f32 0.0, %v1239
      %1241 = vmatmul.f32.gmra.mxu0 %v398
      %v1242 = vpop.f32.mrf.mxu0
      %v1243 = vadd.f32 0.0, %v1242
      %1244 = vmatmul.f32.gmra.mxu0 %v400
      %v1245 = vpop.f32.mrf.mxu0
      %v1246 = vadd.f32 0.0, %v1245
      %1247 = vmatmul.f32.gmra.mxu0 %v402
      %v1248 = vpop.f32.mrf.mxu0
      %v1249 = vadd.f32 0.0, %v1248
      %1250 = vmatmul.f32.gmra.mxu0 %v404
      %v1251 = vpop.f32.mrf.mxu0
      %v1252 = vadd.f32 0.0, %v1251
      %1253 = vmatmul.f32.gmra.mxu0 %v406
      %v1254 = vpop.f32.mrf.mxu0
      %v1255 = vadd.f32 0.0, %v1254
      %1256 = vmatmul.f32.gmra.mxu0 %v408
      %v1257 = vpop.f32.mrf.mxu0
      %v1258 = vadd.f32 0.0, %v1257
      %1259 = vmatmul.f32.gmra.mxu0 %v410
      %v1260 = vpop.f32.mrf.mxu0
      %v1261 = vadd.f32 0.0, %v1260
      %1262 = vmatmul.f32.gmra.mxu0 %v412
      %v1263 = vpop.f32.mrf.mxu0
      %v1264 = vadd.f32 0.0, %v1263
      %1265 = vmatmul.f32.gmra.mxu0 %v414
      %v1266 = vpop.f32.mrf.mxu0
      %v1267 = vadd.f32 0.0, %v1266
      %1268 = vmatmul.f32.gmra.mxu0 %v416
      %v1269 = vpop.f32.mrf.mxu0
      %v1270 = vadd.f32 0.0, %v1269
      %1271 = vmatmul.f32.gmra.mxu0 %v418
      %v1272 = vpop.f32.mrf.mxu0
      %v1273 = vadd.f32 0.0, %v1272
      %1274 = vmatmul.f32.gmra.mxu0 %v420
      %v1275 = vpop.f32.mrf.mxu0
      %v1276 = vadd.f32 0.0, %v1275
      %1277 = vmatmul.f32.gmra.mxu0 %v422
      %v1278 = vpop.f32.mrf.mxu0
      %v1279 = vadd.f32 0.0, %v1278
      %1280 = vmatmul.f32.gmra.mxu0 %v1170
      %v1281 = vpop.f32.mrf.mxu0
      %v1282 = vadd.f32 0.0, %v1281
      %1283 = vmatmul.f32.gmra.mxu0 %v1172
      %v1284 = vpop.f32.mrf.mxu0
      %v1285 = vadd.f32 0.0, %v1284
      %1286 = vdwg.mxu0
      %v1287 = vadd.f32 %v1129, %v1192
      %v1288 = vadd.f32 %v1130, %v1195
      %v1289 = vadd.f32 %v1131, %v1198
      %v1290 = vadd.f32 %v1132, %v1201
      %v1291 = vadd.f32 %v1133, %v1204
      %v1292 = vadd.f32 %v1134, %v1207
      %v1293 = vadd.f32 %v1135, %v1210
      %v1294 = vadd.f32 %v1136, %v1213
      %v1295 = vadd.f32 %v1137, %v1216
      %v1296 = vadd.f32 %v1138, %v1219
      %v1297 = vadd.f32 %v1139, %v1222
      %v1298 = vadd.f32 %v1140, %v1225
      %v1299 = vadd.f32 %v1141, %v1228
      %v1300 = vadd.f32 %v1142, %v1231
      %v1301 = vadd.f32 %v1143, %v1234
      %v1302 = vadd.f32 %v1144, %v1237
      %v1303 = vadd.f32 %v1145, %v1240
      %v1304 = vadd.f32 %v1146, %v1243
      %v1305 = vadd.f32 %v1147, %v1246
      %v1306 = vadd.f32 %v1148, %v1249
      %v1307 = vadd.f32 %v1149, %v1252
      %v1308 = vadd.f32 %v1150, %v1255
      %v1309 = vadd.f32 %v1151, %v1258
      %v1310 = vadd.f32 %v1152, %v1261
      %v1311 = vadd.f32 %v1153, %v1264
      %v1312 = vadd.f32 %v1154, %v1267
      %v1313 = vadd.f32 %v1155, %v1270
      %v1314 = vadd.f32 %v1156, %v1273
      %v1315 = vadd.f32 %v1157, %v1276
      %v1316 = vadd.f32 %v1158, %v1279
      %v1317 = vadd.f32 %v1159, %v1282
      %v1318 = vadd.f32 %v1160, %v1285
      %v1319 = vrot.slane %v219, 2
      %v1320 = vrot.slane %v220, 2
      %v1321 = vsel %vm714, %v1319, %v1320
      %v1322 = vrot.slane %v221, 2
      %v1323 = vsel %vm714, %v1320, %v1322
      %s1324 = scalar_lea.vmem %s1, 80
      %v1325 = vld [vmem:[%s1324] sm:$0xff]
      %v1326 = vld [vmem:[%s1324 + $0x8] sm:$0xff]
      %v1327 = vsel %vm359, %v1321, 0
      %v1329 = vsel %vm359, %v1323, 0
      %1331 = vmatpush.msra.mxu0 0.0
      %1332 = vmatpush.msra.mxu0 0.0
      %1333 = vmatpush.msra.mxu0 0.0
      %1334 = vmatpush.msra.mxu0 0.0
      %1335 = vmatpush.msra.mxu0 0.0
      %1336 = vmatpush.msra.mxu0 0.0
      %1337 = vmatpush.msra.mxu0 0.0
      %1338 = vmatpush.msra.mxu0 0.0
      %1339 = vmatpush.msra.mxu0 0.0
      %1340 = vmatpush.msra.mxu0 0.0
      %1341 = vmatpush.msra.mxu0 0.0
      %1342 = vmatpush.msra.mxu0 0.0
      %1343 = vmatpush.msra.mxu0 0.0
      %1344 = vmatpush.msra.mxu0 0.0
      %1345 = vmatpush.msra.mxu0 %v1326
      %1346 = vmatpush.msra.mxu0 %v1325
      %1347 = vmatmul.f32.gmra.mxu0 %v802
      %v1348 = vpop.f32.mrf.mxu0
      %v1349 = vadd.f32 0.0, %v1348
      %1350 = vmatmul.f32.gmra.mxu0 %v804
      %v1351 = vpop.f32.mrf.mxu0
      %v1352 = vadd.f32 0.0, %v1351
      %1353 = vmatmul.f32.gmra.mxu0 %v806
      %v1354 = vpop.f32.mrf.mxu0
      %v1355 = vadd.f32 0.0, %v1354
      %1356 = vmatmul.f32.gmra.mxu0 %v808
      %v1357 = vpop.f32.mrf.mxu0
      %v1358 = vadd.f32 0.0, %v1357
      %1359 = vmatmul.f32.gmra.mxu0 %v810
      %v1360 = vpop.f32.mrf.mxu0
      %v1361 = vadd.f32 0.0, %v1360
      %1362 = vmatmul.f32.gmra.mxu0 %v812
      %v1363 = vpop.f32.mrf.mxu0
      %v1364 = vadd.f32 0.0, %v1363
      %1365 = vmatmul.f32.gmra.mxu0 %v814
      %v1366 = vpop.f32.mrf.mxu0
      %v1367 = vadd.f32 0.0, %v1366
      %1368 = vmatmul.f32.gmra.mxu0 %v816
      %v1369 = vpop.f32.mrf.mxu0
      %v1370 = vadd.f32 0.0, %v1369
      %1371 = vmatmul.f32.gmra.mxu0 %v818
      %v1372 = vpop.f32.mrf.mxu0
      %v1373 = vadd.f32 0.0, %v1372
      %1374 = vmatmul.f32.gmra.mxu0 %v820
      %v1375 = vpop.f32.mrf.mxu0
      %v1376 = vadd.f32 0.0, %v1375
      %1377 = vmatmul.f32.gmra.mxu0 %v822
      %v1378 = vpop.f32.mrf.mxu0
      %v1379 = vadd.f32 0.0, %v1378
      %1380 = vmatmul.f32.gmra.mxu0 %v824
      %v1381 = vpop.f32.mrf.mxu0
      %v1382 = vadd.f32 0.0, %v1381
      %1383 = vmatmul.f32.gmra.mxu0 %v826
      %v1384 = vpop.f32.mrf.mxu0
      %v1385 = vadd.f32 0.0, %v1384
      %1386 = vmatmul.f32.gmra.mxu0 %v828
      %v1387 = vpop.f32.mrf.mxu0
      %v1388 = vadd.f32 0.0, %v1387
      %1389 = vmatmul.f32.gmra.mxu0 %v830
      %v1390 = vpop.f32.mrf.mxu0
      %v1391 = vadd.f32 0.0, %v1390
      %1392 = vmatmul.f32.gmra.mxu0 %v832
      %v1393 = vpop.f32.mrf.mxu0
      %v1394 = vadd.f32 0.0, %v1393
      %1395 = vmatmul.f32.gmra.mxu0 %v834
      %v1396 = vpop.f32.mrf.mxu0
      %v1397 = vadd.f32 0.0, %v1396
      %1398 = vmatmul.f32.gmra.mxu0 %v836
      %v1399 = vpop.f32.mrf.mxu0
      %v1400 = vadd.f32 0.0, %v1399
      %1401 = vmatmul.f32.gmra.mxu0 %v838
      %v1402 = vpop.f32.mrf.mxu0
      %v1403 = vadd.f32 0.0, %v1402
      %1404 = vmatmul.f32.gmra.mxu0 %v840
      %v1405 = vpop.f32.mrf.mxu0
      %v1406 = vadd.f32 0.0, %v1405
      %1407 = vmatmul.f32.gmra.mxu0 %v842
      %v1408 = vpop.f32.mrf.mxu0
      %v1409 = vadd.f32 0.0, %v1408
      %1410 = vmatmul.f32.gmra.mxu0 %v844
      %v1411 = vpop.f32.mrf.mxu0
      %v1412 = vadd.f32 0.0, %v1411
      %1413 = vmatmul.f32.gmra.mxu0 %v846
      %v1414 = vpop.f32.mrf.mxu0
      %v1415 = vadd.f32 0.0, %v1414
      %1416 = vmatmul.f32.gmra.mxu0 %v848
      %v1417 = vpop.f32.mrf.mxu0
      %v1418 = vadd.f32 0.0, %v1417
      %1419 = vmatmul.f32.gmra.mxu0 %v850
      %v1420 = vpop.f32.mrf.mxu0
      %v1421 = vadd.f32 0.0, %v1420
      %1422 = vmatmul.f32.gmra.mxu0 %v852
      %v1423 = vpop.f32.mrf.mxu0
      %v1424 = vadd.f32 0.0, %v1423
      %1425 = vmatmul.f32.gmra.mxu0 %v854
      %v1426 = vpop.f32.mrf.mxu0
      %v1427 = vadd.f32 0.0, %v1426
      %1428 = vmatmul.f32.gmra.mxu0 %v856
      %v1429 = vpop.f32.mrf.mxu0
      %v1430 = vadd.f32 0.0, %v1429
      %1431 = vmatmul.f32.gmra.mxu0 %v858
      %v1432 = vpop.f32.mrf.mxu0
      %v1433 = vadd.f32 0.0, %v1432
      %1434 = vmatmul.f32.gmra.mxu0 %v860
      %v1435 = vpop.f32.mrf.mxu0
      %v1436 = vadd.f32 0.0, %v1435
      %1437 = vmatmul.f32.gmra.mxu0 %v1327
      %v1438 = vpop.f32.mrf.mxu0
      %v1439 = vadd.f32 0.0, %v1438
      %1440 = vmatmul.f32.gmra.mxu0 %v1329
      %v1441 = vpop.f32.mrf.mxu0
      %v1442 = vadd.f32 0.0, %v1441
      %1443 = vdwg.mxu0
      %v1444 = vadd.f32 %v1287, %v1349
      %v1445 = vadd.f32 %v1288, %v1352
      %v1446 = vadd.f32 %v1289, %v1355
      %v1447 = vadd.f32 %v1290, %v1358
      %v1448 = vadd.f32 %v1291, %v1361
      %v1449 = vadd.f32 %v1292, %v1364
      %v1450 = vadd.f32 %v1293, %v1367
      %v1451 = vadd.f32 %v1294, %v1370
      %v1452 = vadd.f32 %v1295, %v1373
      %v1453 = vadd.f32 %v1296, %v1376
      %v1454 = vadd.f32 %v1297, %v1379
      %v1455 = vadd.f32 %v1298, %v1382
      %v1456 = vadd.f32 %v1299, %v1385
      %v1457 = vadd.f32 %v1300, %v1388
      %v1458 = vadd.f32 %v1301, %v1391
      %v1459 = vadd.f32 %v1302, %v1394
      %v1460 = vadd.f32 %v1303, %v1397
      %v1461 = vadd.f32 %v1304, %v1400
      %v1462 = vadd.f32 %v1305, %v1403
      %v1463 = vadd.f32 %v1306, %v1406
      %v1464 = vadd.f32 %v1307, %v1409
      %v1465 = vadd.f32 %v1308, %v1412
      %v1466 = vadd.f32 %v1309, %v1415
      %v1467 = vadd.f32 %v1310, %v1418
      %v1468 = vadd.f32 %v1311, %v1421
      %v1469 = vadd.f32 %v1312, %v1424
      %v1470 = vadd.f32 %v1313, %v1427
      %v1471 = vadd.f32 %v1314, %v1430
      %v1472 = vadd.f32 %v1315, %v1433
      %v1473 = vadd.f32 %v1316, %v1436
      %v1474 = vadd.f32 %v1317, %v1439
      %v1475 = vadd.f32 %v1318, %v1442
      %s1476 = scalar_lea.vmem %s1, 96
      %v1477 = vld [vmem:[%s1476] sm:$0xff]
      %v1478 = vld [vmem:[%s1476 + $0x8] sm:$0xff]
      %v1480 = vsel %vm359, %v222, 0
      %v1483 = vsel %vm359, %v223, 0
      %1485 = vmatpush.msra.mxu0 0.0
      %1486 = vmatpush.msra.mxu0 0.0
      %1487 = vmatpush.msra.mxu0 0.0
      %1488 = vmatpush.msra.mxu0 0.0
      %1489 = vmatpush.msra.mxu0 0.0
      %1490 = vmatpush.msra.mxu0 0.0
      %1491 = vmatpush.msra.mxu0 0.0
      %1492 = vmatpush.msra.mxu0 0.0
      %1493 = vmatpush.msra.mxu0 0.0
      %1494 = vmatpush.msra.mxu0 0.0
      %1495 = vmatpush.msra.mxu0 0.0
      %1496 = vmatpush.msra.mxu0 0.0
      %1497 = vmatpush.msra.mxu0 0.0
      %1498 = vmatpush.msra.mxu0 0.0
      %1499 = vmatpush.msra.mxu0 %v1478
      %1500 = vmatpush.msra.mxu0 %v1477
      %1501 = vmatmul.f32.gmra.mxu0 %v545
      %v1502 = vpop.f32.mrf.mxu0
      %v1503 = vadd.f32 0.0, %v1502
      %1504 = vmatmul.f32.gmra.mxu0 %v547
      %v1505 = vpop.f32.mrf.mxu0
      %v1506 = vadd.f32 0.0, %v1505
      %1507 = vmatmul.f32.gmra.mxu0 %v549
      %v1508 = vpop.f32.mrf.mxu0
      %v1509 = vadd.f32 0.0, %v1508
      %1510 = vmatmul.f32.gmra.mxu0 %v551
      %v1511 = vpop.f32.mrf.mxu0
      %v1512 = vadd.f32 0.0, %v1511
      %1513 = vmatmul.f32.gmra.mxu0 %v553
      %v1514 = vpop.f32.mrf.mxu0
      %v1515 = vadd.f32 0.0, %v1514
      %1516 = vmatmul.f32.gmra.mxu0 %v555
      %v1517 = vpop.f32.mrf.mxu0
      %v1518 = vadd.f32 0.0, %v1517
      %1519 = vmatmul.f32.gmra.mxu0 %v557
      %v1520 = vpop.f32.mrf.mxu0
      %v1521 = vadd.f32 0.0, %v1520
      %1522 = vmatmul.f32.gmra.mxu0 %v559
      %v1523 = vpop.f32.mrf.mxu0
      %v1524 = vadd.f32 0.0, %v1523
      %1525 = vmatmul.f32.gmra.mxu0 %v561
      %v1526 = vpop.f32.mrf.mxu0
      %v1527 = vadd.f32 0.0, %v1526
      %1528 = vmatmul.f32.gmra.mxu0 %v563
      %v1529 = vpop.f32.mrf.mxu0
      %v1530 = vadd.f32 0.0, %v1529
      %1531 = vmatmul.f32.gmra.mxu0 %v565
      %v1532 = vpop.f32.mrf.mxu0
      %v1533 = vadd.f32 0.0, %v1532
      %1534 = vmatmul.f32.gmra.mxu0 %v567
      %v1535 = vpop.f32.mrf.mxu0
      %v1536 = vadd.f32 0.0, %v1535
      %1537 = vmatmul.f32.gmra.mxu0 %v569
      %v1538 = vpop.f32.mrf.mxu0
      %v1539 = vadd.f32 0.0, %v1538
      %1540 = vmatmul.f32.gmra.mxu0 %v571
      %v1541 = vpop.f32.mrf.mxu0
      %v1542 = vadd.f32 0.0, %v1541
      %1543 = vmatmul.f32.gmra.mxu0 %v573
      %v1544 = vpop.f32.mrf.mxu0
      %v1545 = vadd.f32 0.0, %v1544
      %1546 = vmatmul.f32.gmra.mxu0 %v575
      %v1547 = vpop.f32.mrf.mxu0
      %v1548 = vadd.f32 0.0, %v1547
      %1549 = vmatmul.f32.gmra.mxu0 %v577
      %v1550 = vpop.f32.mrf.mxu0
      %v1551 = vadd.f32 0.0, %v1550
      %1552 = vmatmul.f32.gmra.mxu0 %v579
      %v1553 = vpop.f32.mrf.mxu0
      %v1554 = vadd.f32 0.0, %v1553
      %1555 = vmatmul.f32.gmra.mxu0 %v581
      %v1556 = vpop.f32.mrf.mxu0
      %v1557 = vadd.f32 0.0, %v1556
      %1558 = vmatmul.f32.gmra.mxu0 %v583
      %v1559 = vpop.f32.mrf.mxu0
      %v1560 = vadd.f32 0.0, %v1559
      %1561 = vmatmul.f32.gmra.mxu0 %v585
      %v1562 = vpop.f32.mrf.mxu0
      %v1563 = vadd.f32 0.0, %v1562
      %1564 = vmatmul.f32.gmra.mxu0 %v587
      %v1565 = vpop.f32.mrf.mxu0
      %v1566 = vadd.f32 0.0, %v1565
      %1567 = vmatmul.f32.gmra.mxu0 %v589
      %v1568 = vpop.f32.mrf.mxu0
      %v1569 = vadd.f32 0.0, %v1568
      %1570 = vmatmul.f32.gmra.mxu0 %v591
      %v1571 = vpop.f32.mrf.mxu0
      %v1572 = vadd.f32 0.0, %v1571
      %1573 = vmatmul.f32.gmra.mxu0 %v593
      %v1574 = vpop.f32.mrf.mxu0
      %v1575 = vadd.f32 0.0, %v1574
      %1576 = vmatmul.f32.gmra.mxu0 %v595
      %v1577 = vpop.f32.mrf.mxu0
      %v1578 = vadd.f32 0.0, %v1577
      %1579 = vmatmul.f32.gmra.mxu0 %v597
      %v1580 = vpop.f32.mrf.mxu0
      %v1581 = vadd.f32 0.0, %v1580
      %1582 = vmatmul.f32.gmra.mxu0 %v599
      %v1583 = vpop.f32.mrf.mxu0
      %v1584 = vadd.f32 0.0, %v1583
      %1585 = vmatmul.f32.gmra.mxu0 %v1011
      %v1586 = vpop.f32.mrf.mxu0
      %v1587 = vadd.f32 0.0, %v1586
      %1588 = vmatmul.f32.gmra.mxu0 %v1014
      %v1589 = vpop.f32.mrf.mxu0
      %v1590 = vadd.f32 0.0, %v1589
      %1591 = vmatmul.f32.gmra.mxu0 %v1480
      %v1592 = vpop.f32.mrf.mxu0
      %v1593 = vadd.f32 0.0, %v1592
      %1594 = vmatmul.f32.gmra.mxu0 %v1483
      %v1595 = vpop.f32.mrf.mxu0
      %v1596 = vadd.f32 0.0, %v1595
      %1597 = vdwg.mxu0
      %v1598 = vadd.f32 %v1444, %v1503
      %v1599 = vadd.f32 %v1445, %v1506
      %v1600 = vadd.f32 %v1446, %v1509
      %v1601 = vadd.f32 %v1447, %v1512
      %v1602 = vadd.f32 %v1448, %v1515
      %v1603 = vadd.f32 %v1449, %v1518
      %v1604 = vadd.f32 %v1450, %v1521
      %v1605 = vadd.f32 %v1451, %v1524
      %v1606 = vadd.f32 %v1452, %v1527
      %v1607 = vadd.f32 %v1453, %v1530
      %v1608 = vadd.f32 %v1454, %v1533
      %v1609 = vadd.f32 %v1455, %v1536
      %v1610 = vadd.f32 %v1456, %v1539
      %v1611 = vadd.f32 %v1457, %v1542
      %v1612 = vadd.f32 %v1458, %v1545
      %v1613 = vadd.f32 %v1459, %v1548
      %v1614 = vadd.f32 %v1460, %v1551
      %v1615 = vadd.f32 %v1461, %v1554
      %v1616 = vadd.f32 %v1462, %v1557
      %v1617 = vadd.f32 %v1463, %v1560
      %v1618 = vadd.f32 %v1464, %v1563
      %v1619 = vadd.f32 %v1465, %v1566
      %v1620 = vadd.f32 %v1466, %v1569
      %v1621 = vadd.f32 %v1467, %v1572
      %v1622 = vadd.f32 %v1468, %v1575
      %v1623 = vadd.f32 %v1469, %v1578
      %v1624 = vadd.f32 %v1470, %v1581
      %v1625 = vadd.f32 %v1471, %v1584
      %v1626 = vadd.f32 %v1472, %v1587
      %v1627 = vadd.f32 %v1473, %v1590
      %v1628 = vadd.f32 %v1474, %v1593
      %v1629 = vadd.f32 %v1475, %v1596
      %v1631 = vrot.slane %v222, 1
      %v1632 = vrot.slane %v223, 1
      %v1633 = vsel %vm275, %v1631, %v1632
      %v1634 = vrot.slane %v224, 1
      %v1635 = vsel %vm275, %v1632, %v1634
      %s1636 = scalar_lea.vmem %s1, 112
      %v1637 = vld [vmem:[%s1636] sm:$0xff]
      %v1638 = vld [vmem:[%s1636 + $0x8] sm:$0xff]
      %v1639 = vsel %vm359, %v1633, 0
      %v1641 = vsel %vm359, %v1635, 0
      %1643 = vmatpush.msra.mxu0 0.0
      %1644 = vmatpush.msra.mxu0 0.0
      %1645 = vmatpush.msra.mxu0 0.0
      %1646 = vmatpush.msra.mxu0 0.0
      %1647 = vmatpush.msra.mxu0 0.0
      %1648 = vmatpush.msra.mxu0 0.0
      %1649 = vmatpush.msra.mxu0 0.0
      %1650 = vmatpush.msra.mxu0 0.0
      %1651 = vmatpush.msra.mxu0 0.0
      %1652 = vmatpush.msra.mxu0 0.0
      %1653 = vmatpush.msra.mxu0 0.0
      %1654 = vmatpush.msra.mxu0 0.0
      %1655 = vmatpush.msra.mxu0 0.0
      %1656 = vmatpush.msra.mxu0 0.0
      %1657 = vmatpush.msra.mxu0 %v1638
      %1658 = vmatpush.msra.mxu0 %v1637
      %1659 = vmatmul.f32.gmra.mxu0 %v368
      %v1660 = vpop.f32.mrf.mxu0
      %v1661 = vadd.f32 0.0, %v1660
      %1662 = vmatmul.f32.gmra.mxu0 %v370
      %v1663 = vpop.f32.mrf.mxu0
      %v1664 = vadd.f32 0.0, %v1663
      %1665 = vmatmul.f32.gmra.mxu0 %v372
      %v1666 = vpop.f32.mrf.mxu0
      %v1667 = vadd.f32 0.0, %v1666
      %1668 = vmatmul.f32.gmra.mxu0 %v374
      %v1669 = vpop.f32.mrf.mxu0
      %v1670 = vadd.f32 0.0, %v1669
      %1671 = vmatmul.f32.gmra.mxu0 %v376
      %v1672 = vpop.f32.mrf.mxu0
      %v1673 = vadd.f32 0.0, %v1672
      %1674 = vmatmul.f32.gmra.mxu0 %v378
      %v1675 = vpop.f32.mrf.mxu0
      %v1676 = vadd.f32 0.0, %v1675
      %1677 = vmatmul.f32.gmra.mxu0 %v380
      %v1678 = vpop.f32.mrf.mxu0
      %v1679 = vadd.f32 0.0, %v1678
      %1680 = vmatmul.f32.gmra.mxu0 %v382
      %v1681 = vpop.f32.mrf.mxu0
      %v1682 = vadd.f32 0.0, %v1681
      %1683 = vmatmul.f32.gmra.mxu0 %v384
      %v1684 = vpop.f32.mrf.mxu0
      %v1685 = vadd.f32 0.0, %v1684
      %1686 = vmatmul.f32.gmra.mxu0 %v386
      %v1687 = vpop.f32.mrf.mxu0
      %v1688 = vadd.f32 0.0, %v1687
      %1689 = vmatmul.f32.gmra.mxu0 %v388
      %v1690 = vpop.f32.mrf.mxu0
      %v1691 = vadd.f32 0.0, %v1690
      %1692 = vmatmul.f32.gmra.mxu0 %v390
      %v1693 = vpop.f32.mrf.mxu0
      %v1694 = vadd.f32 0.0, %v1693
      %1695 = vmatmul.f32.gmra.mxu0 %v392
      %v1696 = vpop.f32.mrf.mxu0
      %v1697 = vadd.f32 0.0, %v1696
      %1698 = vmatmul.f32.gmra.mxu0 %v394
      %v1699 = vpop.f32.mrf.mxu0
      %v1700 = vadd.f32 0.0, %v1699
      %1701 = vmatmul.f32.gmra.mxu0 %v396
      %v1702 = vpop.f32.mrf.mxu0
      %v1703 = vadd.f32 0.0, %v1702
      %1704 = vmatmul.f32.gmra.mxu0 %v398
      %v1705 = vpop.f32.mrf.mxu0
      %v1706 = vadd.f32 0.0, %v1705
      %1707 = vmatmul.f32.gmra.mxu0 %v400
      %v1708 = vpop.f32.mrf.mxu0
      %v1709 = vadd.f32 0.0, %v1708
      %1710 = vmatmul.f32.gmra.mxu0 %v402
      %v1711 = vpop.f32.mrf.mxu0
      %v1712 = vadd.f32 0.0, %v1711
      %1713 = vmatmul.f32.gmra.mxu0 %v404
      %v1714 = vpop.f32.mrf.mxu0
      %v1715 = vadd.f32 0.0, %v1714
      %1716 = vmatmul.f32.gmra.mxu0 %v406
      %v1717 = vpop.f32.mrf.mxu0
      %v1718 = vadd.f32 0.0, %v1717
      %1719 = vmatmul.f32.gmra.mxu0 %v408
      %v1720 = vpop.f32.mrf.mxu0
      %v1721 = vadd.f32 0.0, %v1720
      %1722 = vmatmul.f32.gmra.mxu0 %v410
      %v1723 = vpop.f32.mrf.mxu0
      %v1724 = vadd.f32 0.0, %v1723
      %1725 = vmatmul.f32.gmra.mxu0 %v412
      %v1726 = vpop.f32.mrf.mxu0
      %v1727 = vadd.f32 0.0, %v1726
      %1728 = vmatmul.f32.gmra.mxu0 %v414
      %v1729 = vpop.f32.mrf.mxu0
      %v1730 = vadd.f32 0.0, %v1729
      %1731 = vmatmul.f32.gmra.mxu0 %v416
      %v1732 = vpop.f32.mrf.mxu0
      %v1733 = vadd.f32 0.0, %v1732
      %1734 = vmatmul.f32.gmra.mxu0 %v418
      %v1735 = vpop.f32.mrf.mxu0
      %v1736 = vadd.f32 0.0, %v1735
      %1737 = vmatmul.f32.gmra.mxu0 %v420
      %v1738 = vpop.f32.mrf.mxu0
      %v1739 = vadd.f32 0.0, %v1738
      %1740 = vmatmul.f32.gmra.mxu0 %v422
      %v1741 = vpop.f32.mrf.mxu0
      %v1742 = vadd.f32 0.0, %v1741
      %1743 = vmatmul.f32.gmra.mxu0 %v1170
      %v1744 = vpop.f32.mrf.mxu0
      %v1745 = vadd.f32 0.0, %v1744
      %1746 = vmatmul.f32.gmra.mxu0 %v1172
      %v1747 = vpop.f32.mrf.mxu0
      %v1748 = vadd.f32 0.0, %v1747
      %1749 = vmatmul.f32.gmra.mxu0 %v1639
      %v1750 = vpop.f32.mrf.mxu0
      %v1751 = vadd.f32 0.0, %v1750
      %1752 = vmatmul.f32.gmra.mxu0 %v1641
      %v1753 = vpop.f32.mrf.mxu0
      %v1754 = vadd.f32 0.0, %v1753
      %1755 = vdwg.mxu0
      %v1756 = vadd.f32 %v1598, %v1661
      %v1757 = vadd.f32 %v1599, %v1664
      %v1758 = vadd.f32 %v1600, %v1667
      %v1759 = vadd.f32 %v1601, %v1670
      %v1760 = vadd.f32 %v1602, %v1673
      %v1761 = vadd.f32 %v1603, %v1676
      %v1762 = vadd.f32 %v1604, %v1679
      %v1763 = vadd.f32 %v1605, %v1682
      %v1764 = vadd.f32 %v1606, %v1685
      %v1765 = vadd.f32 %v1607, %v1688
      %v1766 = vadd.f32 %v1608, %v1691
      %v1767 = vadd.f32 %v1609, %v1694
      %v1768 = vadd.f32 %v1610, %v1697
      %v1769 = vadd.f32 %v1611, %v1700
      %v1770 = vadd.f32 %v1612, %v1703
      %v1771 = vadd.f32 %v1613, %v1706
      %v1772 = vadd.f32 %v1614, %v1709
      %v1773 = vadd.f32 %v1615, %v1712
      %v1774 = vadd.f32 %v1616, %v1715
      %v1775 = vadd.f32 %v1617, %v1718
      %v1776 = vadd.f32 %v1618, %v1721
      %v1777 = vadd.f32 %v1619, %v1724
      %v1778 = vadd.f32 %v1620, %v1727
      %v1779 = vadd.f32 %v1621, %v1730
      %v1780 = vadd.f32 %v1622, %v1733
      %v1781 = vadd.f32 %v1623, %v1736
      %v1782 = vadd.f32 %v1624, %v1739
      %v1783 = vadd.f32 %v1625, %v1742
      %v1784 = vadd.f32 %v1626, %v1745
      %v1785 = vadd.f32 %v1627, %v1748
      %v1786 = vadd.f32 %v1628, %v1751
      %v1787 = vadd.f32 %v1629, %v1754
      %v1788 = vrot.slane %v222, 2
      %v1789 = vrot.slane %v223, 2
      %v1790 = vsel %vm714, %v1788, %v1789
      %v1791 = vrot.slane %v224, 2
      %v1792 = vsel %vm714, %v1789, %v1791
      %s1793 = scalar_lea.vmem %s1, 128
      %v1794 = vld [vmem:[%s1793] sm:$0xff]
      %v1795 = vld [vmem:[%s1793 + $0x8] sm:$0xff]
      %v1796 = vsel %vm359, %v1790, 0
      %v1798 = vsel %vm359, %v1792, 0
      %1800 = vmatpush.msra.mxu0 0.0
      %1801 = vmatpush.msra.mxu0 0.0
      %1802 = vmatpush.msra.mxu0 0.0
      %1803 = vmatpush.msra.mxu0 0.0
      %1804 = vmatpush.msra.mxu0 0.0
      %1805 = vmatpush.msra.mxu0 0.0
      %1806 = vmatpush.msra.mxu0 0.0
      %1807 = vmatpush.msra.mxu0 0.0
      %1808 = vmatpush.msra.mxu0 0.0
      %1809 = vmatpush.msra.mxu0 0.0
      %1810 = vmatpush.msra.mxu0 0.0
      %1811 = vmatpush.msra.mxu0 0.0
      %1812 = vmatpush.msra.mxu0 0.0
      %1813 = vmatpush.msra.mxu0 0.0
      %1814 = vmatpush.msra.mxu0 %v1795
      %1815 = vmatpush.msra.mxu0 %v1794
      %1816 = vmatmul.f32.gmra.mxu0 %v806
      %v1817 = vpop.f32.mrf.mxu0
      %v1818 = vadd.f32 0.0, %v1817
      %1819 = vmatmul.f32.gmra.mxu0 %v808
      %v1820 = vpop.f32.mrf.mxu0
      %v1821 = vadd.f32 0.0, %v1820
      %1822 = vmatmul.f32.gmra.mxu0 %v810
      %v1823 = vpop.f32.mrf.mxu0
      %v1824 = vadd.f32 0.0, %v1823
      %1825 = vmatmul.f32.gmra.mxu0 %v812
      %v1826 = vpop.f32.mrf.mxu0
      %v1827 = vadd.f32 0.0, %v1826
      %1828 = vmatmul.f32.gmra.mxu0 %v814
      %v1829 = vpop.f32.mrf.mxu0
      %v1830 = vadd.f32 0.0, %v1829
      %1831 = vmatmul.f32.gmra.mxu0 %v816
      %v1832 = vpop.f32.mrf.mxu0
      %v1833 = vadd.f32 0.0, %v1832
      %1834 = vmatmul.f32.gmra.mxu0 %v818
      %v1835 = vpop.f32.mrf.mxu0
      %v1836 = vadd.f32 0.0, %v1835
      %1837 = vmatmul.f32.gmra.mxu0 %v820
      %v1838 = vpop.f32.mrf.mxu0
      %v1839 = vadd.f32 0.0, %v1838
      %1840 = vmatmul.f32.gmra.mxu0 %v822
      %v1841 = vpop.f32.mrf.mxu0
      %v1842 = vadd.f32 0.0, %v1841
      %1843 = vmatmul.f32.gmra.mxu0 %v824
      %v1844 = vpop.f32.mrf.mxu0
      %v1845 = vadd.f32 0.0, %v1844
      %1846 = vmatmul.f32.gmra.mxu0 %v826
      %v1847 = vpop.f32.mrf.mxu0
      %v1848 = vadd.f32 0.0, %v1847
      %1849 = vmatmul.f32.gmra.mxu0 %v828
      %v1850 = vpop.f32.mrf.mxu0
      %v1851 = vadd.f32 0.0, %v1850
      %1852 = vmatmul.f32.gmra.mxu0 %v830
      %v1853 = vpop.f32.mrf.mxu0
      %v1854 = vadd.f32 0.0, %v1853
      %1855 = vmatmul.f32.gmra.mxu0 %v832
      %v1856 = vpop.f32.mrf.mxu0
      %v1857 = vadd.f32 0.0, %v1856
      %1858 = vmatmul.f32.gmra.mxu0 %v834
      %v1859 = vpop.f32.mrf.mxu0
      %v1860 = vadd.f32 0.0, %v1859
      %1861 = vmatmul.f32.gmra.mxu0 %v836
      %v1862 = vpop.f32.mrf.mxu0
      %v1863 = vadd.f32 0.0, %v1862
      %1864 = vmatmul.f32.gmra.mxu0 %v838
      %v1865 = vpop.f32.mrf.mxu0
      %v1866 = vadd.f32 0.0, %v1865
      %1867 = vmatmul.f32.gmra.mxu0 %v840
      %v1868 = vpop.f32.mrf.mxu0
      %v1869 = vadd.f32 0.0, %v1868
      %1870 = vmatmul.f32.gmra.mxu0 %v842
      %v1871 = vpop.f32.mrf.mxu0
      %v1872 = vadd.f32 0.0, %v1871
      %1873 = vmatmul.f32.gmra.mxu0 %v844
      %v1874 = vpop.f32.mrf.mxu0
      %v1875 = vadd.f32 0.0, %v1874
      %1876 = vmatmul.f32.gmra.mxu0 %v846
      %v1877 = vpop.f32.mrf.mxu0
      %v1878 = vadd.f32 0.0, %v1877
      %1879 = vmatmul.f32.gmra.mxu0 %v848
      %v1880 = vpop.f32.mrf.mxu0
      %v1881 = vadd.f32 0.0, %v1880
      %1882 = vmatmul.f32.gmra.mxu0 %v850
      %v1883 = vpop.f32.mrf.mxu0
      %v1884 = vadd.f32 0.0, %v1883
      %1885 = vmatmul.f32.gmra.mxu0 %v852
      %v1886 = vpop.f32.mrf.mxu0
      %v1887 = vadd.f32 0.0, %v1886
      %1888 = vmatmul.f32.gmra.mxu0 %v854
      %v1889 = vpop.f32.mrf.mxu0
      %v1890 = vadd.f32 0.0, %v1889
      %1891 = vmatmul.f32.gmra.mxu0 %v856
      %v1892 = vpop.f32.mrf.mxu0
      %v1893 = vadd.f32 0.0, %v1892
      %1894 = vmatmul.f32.gmra.mxu0 %v858
      %v1895 = vpop.f32.mrf.mxu0
      %v1896 = vadd.f32 0.0, %v1895
      %1897 = vmatmul.f32.gmra.mxu0 %v860
      %v1898 = vpop.f32.mrf.mxu0
      %v1899 = vadd.f32 0.0, %v1898
      %1900 = vmatmul.f32.gmra.mxu0 %v1327
      %v1901 = vpop.f32.mrf.mxu0
      %v1902 = vadd.f32 0.0, %v1901
      %1903 = vmatmul.f32.gmra.mxu0 %v1329
      %v1904 = vpop.f32.mrf.mxu0
      %v1905 = vadd.f32 0.0, %v1904
      %1906 = vmatmul.f32.gmra.mxu0 %v1796
      %v1907 = vpop.f32.mrf.mxu0
      %v1908 = vadd.f32 0.0, %v1907
      %1909 = vmatmul.f32.gmra.mxu0 %v1798
      %v1910 = vpop.f32.mrf.mxu0
      %v1911 = vadd.f32 0.0, %v1910
      %1912 = vdwg.mxu0
      %v1913 = vadd.f32 %v1756, %v1818
      %v1914 = vadd.f32 %v1757, %v1821
      %v1915 = vadd.f32 %v1758, %v1824
      %v1916 = vadd.f32 %v1759, %v1827
      %v1917 = vadd.f32 %v1760, %v1830
      %v1918 = vadd.f32 %v1761, %v1833
      %v1919 = vadd.f32 %v1762, %v1836
      %v1920 = vadd.f32 %v1763, %v1839
      %v1921 = vadd.f32 %v1764, %v1842
      %v1922 = vadd.f32 %v1765, %v1845
      %v1923 = vadd.f32 %v1766, %v1848
      %v1924 = vadd.f32 %v1767, %v1851
      %v1925 = vadd.f32 %v1768, %v1854
      %v1926 = vadd.f32 %v1769, %v1857
      %v1927 = vadd.f32 %v1770, %v1860
      %v1928 = vadd.f32 %v1771, %v1863
      %v1929 = vadd.f32 %v1772, %v1866
      %v1930 = vadd.f32 %v1773, %v1869
      %v1931 = vadd.f32 %v1774, %v1872
      %v1932 = vadd.f32 %v1775, %v1875
      %v1933 = vadd.f32 %v1776, %v1878
      %v1934 = vadd.f32 %v1777, %v1881
      %v1935 = vadd.f32 %v1778, %v1884
      %v1936 = vadd.f32 %v1779, %v1887
      %v1937 = vadd.f32 %v1780, %v1890
      %v1938 = vadd.f32 %v1781, %v1893
      %v1939 = vadd.f32 %v1782, %v1896
      %v1940 = vadd.f32 %v1783, %v1899
      %v1941 = vadd.f32 %v1784, %v1902
      %v1942 = vadd.f32 %v1785, %v1905
      %v1943 = vadd.f32 %v1786, %v1908
      %v1944 = vadd.f32 %v1787, %v1911
      %v1945 = vld [vmem:[%s2] sm:$0x1]
      %v1947 = vperm.slane %v1945, 0
      %v1949 = vadd.f32 %v1913, %v1947
      %v1950 = vadd.f32 %v1914, %v1947
      %v1951 = vadd.f32 %v1915, %v1947
      %v1952 = vadd.f32 %v1916, %v1947
      %v1953 = vadd.f32 %v1917, %v1947
      %v1954 = vadd.f32 %v1918, %v1947
      %v1955 = vadd.f32 %v1919, %v1947
      %v1956 = vadd.f32 %v1920, %v1947
      %v1957 = vadd.f32 %v1921, %v1947
      %v1958 = vadd.f32 %v1922, %v1947
      %v1959 = vadd.f32 %v1923, %v1947
      %v1960 = vadd.f32 %v1924, %v1947
      %v1961 = vadd.f32 %v1925, %v1947
      %v1962 = vadd.f32 %v1926, %v1947
      %v1963 = vadd.f32 %v1927, %v1947
      %v1964 = vadd.f32 %v1928, %v1947
      %v1965 = vadd.f32 %v1929, %v1947
      %v1966 = vadd.f32 %v1930, %v1947
      %v1967 = vadd.f32 %v1931, %v1947
      %v1968 = vadd.f32 %v1932, %v1947
      %v1969 = vadd.f32 %v1933, %v1947
      %v1970 = vadd.f32 %v1934, %v1947
      %v1971 = vadd.f32 %v1935, %v1947
      %v1972 = vadd.f32 %v1936, %v1947
      %v1973 = vadd.f32 %v1937, %v1947
      %v1974 = vadd.f32 %v1938, %v1947
      %v1975 = vadd.f32 %v1939, %v1947
      %v1976 = vadd.f32 %v1940, %v1947
      %v1977 = vadd.f32 %v1941, %v1947
      %v1978 = vadd.f32 %v1942, %v1947
      %v1979 = vadd.f32 %v1943, %v1947
      %v1980 = vadd.f32 %v1944, %v1947
      %1981 = vst.msk [vmem:[%s170] sm:$0xff] %vm359, %v1949
      %1982 = vst.msk [vmem:[%s170 + $0x8] sm:$0xff] %vm359, %v1950
      %1983 = vst.msk [vmem:[%s170 + $0x10] sm:$0xff] %vm359, %v1951
      %1984 = vst.msk [vmem:[%s170 + $0x18] sm:$0xff] %vm359, %v1952
      %1985 = vst.msk [vmem:[%s170 + $0x20] sm:$0xff] %vm359, %v1953
      %1986 = vst.msk [vmem:[%s170 + $0x28] sm:$0xff] %vm359, %v1954
      %1987 = vst.msk [vmem:[%s170 + $0x30] sm:$0xff] %vm359, %v1955
      %1988 = vst.msk [vmem:[%s170 + $0x38] sm:$0xff] %vm359, %v1956
      %1989 = vst.msk [vmem:[%s170 + $0x40] sm:$0xff] %vm359, %v1957
      %1990 = vst.msk [vmem:[%s170 + $0x48] sm:$0xff] %vm359, %v1958
      %1991 = vst.msk [vmem:[%s170 + $0x50] sm:$0xff] %vm359, %v1959
      %1992 = vst.msk [vmem:[%s170 + $0x58] sm:$0xff] %vm359, %v1960
      %1993 = vst.msk [vmem:[%s170 + $0x60] sm:$0xff] %vm359, %v1961
      %1994 = vst.msk [vmem:[%s170 + $0x68] sm:$0xff] %vm359, %v1962
      %1995 = vst.msk [vmem:[%s170 + $0x70] sm:$0xff] %vm359, %v1963
      %1996 = vst.msk [vmem:[%s170 + $0x78] sm:$0xff] %vm359, %v1964
      %1997 = vst.msk [vmem:[%s170 + $0x80] sm:$0xff] %vm359, %v1965
      %1998 = vst.msk [vmem:[%s170 + $0x88] sm:$0xff] %vm359, %v1966
      %1999 = vst.msk [vmem:[%s170 + $0x90] sm:$0xff] %vm359, %v1967
      %2000 = vst.msk [vmem:[%s170 + $0x98] sm:$0xff] %vm359, %v1968
      %2001 = vst.msk [vmem:[%s170 + $0xa0] sm:$0xff] %vm359, %v1969
      %2002 = vst.msk [vmem:[%s170 + $0xa8] sm:$0xff] %vm359, %v1970
      %2003 = vst.msk [vmem:[%s170 + $0xb0] sm:$0xff] %vm359, %v1971
      %2004 = vst.msk [vmem:[%s170 + $0xb8] sm:$0xff] %vm359, %v1972
      %2005 = vst.msk [vmem:[%s170 + $0xc0] sm:$0xff] %vm359, %v1973
      %2006 = vst.msk [vmem:[%s170 + $0xc8] sm:$0xff] %vm359, %v1974
      %2007 = vst.msk [vmem:[%s170 + $0xd0] sm:$0xff] %vm359, %v1975
      %2008 = vst.msk [vmem:[%s170 + $0xd8] sm:$0xff] %vm359, %v1976
      %2009 = vst.msk [vmem:[%s170 + $0xe0] sm:$0xff] %vm359, %v1977
      %2010 = vst.msk [vmem:[%s170 + $0xe8] sm:$0xff] %vm359, %v1978
      %2011 = vst.msk [vmem:[%s170 + $0xf0] sm:$0xff] %vm359, %v1979
      %2012 = vst.msk [vmem:[%s170 + $0xf8] sm:$0xff] %vm359, %v1980
      %p2013 = scmp.lt.s32.totalorder %s14, 1
      %s2014 = scalar_select %p2013, %s14, 1
      %s2015 = smul.addr %s2014, 32
      %s2016 = smul.addr %s2015, 8
      %s2017 = scalar_lea.vmem %s3, %s2016
      // Predicated region
      $region33: #{encoder_forward.5} parent=31 // pred_check
        %p2018 = pneg %p100
      $region34: #{encoder_forward.5} parent=31 // pred_check_branch
        %2020 = sbr.rel (%p2018) target = $region36
      $region35: #{encoder_forward.5} parent=31 // pred_region
        _
      $region36: #{encoder_forward.5} parent=31 // pred_fallthru
        _
    $region32: #{encoder_forward.5} parent=5 // pred_fallthru
      _
    %p2021 = scmp.le.s32.totalorder 2, %s9
    // Predicated region
    $region37: #{encoder_forward.5} parent=5 // pred_check
      %p2022 = pneg %p2021
    $region38: #{encoder_forward.5} parent=5 // pred_check_branch
      %2024 = sbr.rel (%p2022) target = $region40
    $region39: #{encoder_forward.5} parent=5 // pred_region
      %s2025 = ssub.s32 %s9, 2
      // Predicated region
      $region41: #{encoder_forward.5} parent=39 // pred_check
        %p2026 = pneg %p106
      $region42: #{encoder_forward.5} parent=39 // pred_check_branch
        %2028 = sbr.rel (%p2026) target = $region44
      $region43: #{encoder_forward.5} parent=39 // pred_region
        %p2029 = scmp.lt.s32.totalorder %s15, 1
        %s2030 = scalar_select %p2029, %s15, 1
        %s2031 = smul.addr %s2030, 32
        %s2032 = smul.addr %s2031, 8
        %s2033 = scalar_lea.vmem %s3, %s2032
      $region44: #{encoder_forward.5} parent=39 // pred_fallthru
        _
    $region40: #{encoder_forward.5} parent=5 // pred_fallthru
      _
  $region6: #{encoder_forward.5} parent=0 // loop_footer
    %s13 = sadd.s32 1, %s9
  $region7: #{encoder_forward.5} parent=0 // loop_footer_branch
    %8 = sbr.rel target = $region3
  $region8: #{encoder_forward.5} parent=0 // loop_exit
    _

// kernel: encoder_forward.7
$region0: #{encoder_forward.7}
  #allocation0 [shape = 'u32[]', space=smem, size = 0x4, offset = 0x4, fixed_abs, tag = 'smem constant byte address 0x4 - core index']
  #allocation1 [shape = 'u32[72,128]{1,0:T(1,128)}', space=vmem, size = 0x9000, scoped, tag = 'internal scratch']
  %s0 = inlined_call_operand.vmem [shape: f32[2,8,8,64], index: 0, kind: input, shape index: {}]
  %s1 = inlined_call_operand.vmem [shape: f32[64,32], index: 1, kind: input, shape index: {}]
  %s2 = inlined_call_operand.vmem [shape: f32[1,32], index: 2, kind: input, shape index: {}]
  %s3 = inlined_call_operand.vmem [shape: f32[2,8,8,32], index: 3, kind: output, shape index: {}]
  %s4 = sld [smem:[#allocation0]]
  $region45: #{encoder_forward.7} parent=0
    _
  %s6 = ssub.s32 1, %s4
  %s7 = scalar_select 0, %s6, %s4
  loop: start=0, step=1, limit=4
  $region2: #{encoder_forward.7} parent=0 // loop_pre_header
    _
  $region3: #{encoder_forward.7} parent=0 // loop_header
    %s9 = sphi 0, %s13
    %p10 = scmp.ge.s32.totalorder %s9, 4
    %s19 = sphi 0, %s21
    %s22 = sphi 0, %s19
    %s23 = sphi 0, %s22
    %s39 = sphi 0, %s23
    %s43 = sphi 0, %s43
    %s45 = sphi 0, %s43
    %s46 = sphi 0, %s45
    %s60 = sphi 0, %s46
    %s64 = sphi 0, %s64
    %s66 = sphi 0, %s64
    %s67 = sphi 0, %s66
    %s81 = sphi 0, %s67
    %s87 = sphi 0, %s89
    %s90 = sphi 0, %s87
    %s91 = sphi 0, %s90
    %s107 = sphi 0, %s91
  $region4: #{encoder_forward.7} parent=0 // loop_header_branch
    %12 = sbr.rel (%p10) target = $region8
  $region5: #{encoder_forward.7} parent=0 // loop_body
    %s14 = ssub.s32 %s9, 1
    %s15 = ssub.s32 %s9, 2
    %s16 = sadd.s32 %s9, 1
    %s17 = ssub.s32 %s9, %s16
    %p18 = scmp.eq.s32.totalorder %s17, 0
    %s20 = sadd.s32 %s19, 1
    %s21 = scalar_select %p18, %s19, %s20
    %p24 = pneg %p18
    %p25 = scmp.eq.s32.totalorder %s9, 1
    %p26 = por %p24, %p25
    %p27 = scmp.ne.s32.totalorder %s19, %s22
    %p28 = scmp.eq.s32.totalorder %s9, 0
    %p29 = por %p27, %p28
    %p30 = scmp.ne.s32.totalorder %s19, %s22
    %p31 = scmp.eq.s32.totalorder %s14, 1
    %p32 = por %p30, %p31
    %p33 = scmp.ne.s32.totalorder %s22, %s23
    %p34 = scmp.eq.s32.totalorder %s14, 0
    %p35 = por %p33, %p34
    %p36 = scmp.ne.s32.totalorder %s22, %s23
    %p37 = scmp.eq.s32.totalorder %s15, 1
    %p38 = por %p36, %p37
    %p40 = scmp.ne.s32.totalorder %s23, %s39
    %p41 = scmp.eq.s32.totalorder %s15, 0
    %p42 = por %p40, %p41
    %s44 = sadd.s32 %s43, 1
    %p47 = scmp.eq.s32.totalorder %s9, 1
    %p48 = scmp.ne.s32.totalorder %s43, %s45
    %p49 = scmp.eq.s32.totalorder %s9, 0
    %p50 = por %p48, %p49
    %p51 = scmp.ne.s32.totalorder %s43, %s45
    %p52 = scmp.eq.s32.totalorder %s14, 1
    %p53 = por %p51, %p52
    %p54 = scmp.ne.s32.totalorder %s45, %s46
    %p55 = scmp.eq.s32.totalorder %s14, 0
    %p56 = por %p54, %p55
    %p57 = scmp.ne.s32.totalorder %s45, %s46
    %p58 = scmp.eq.s32.totalorder %s15, 1
    %p59 = por %p57, %p58
    %p61 = scmp.ne.s32.totalorder %s46, %s60
    %p62 = scmp.eq.s32.totalorder %s15, 0
    %p63 = por %p61, %p62
    %s65 = sadd.s32 %s64, 1
    %p68 = scmp.eq.s32.totalorder %s9, 1
    %p69 = scmp.ne.s32.totalorder %s64, %s66
    %p70 = scmp.eq.s32.totalorder %s9, 0
    %p71 = por %p69, %p70
    %p72 = scmp.ne.s32.totalorder %s64, %s66
    %p73 = scmp.eq.s32.totalorder %s14, 1
    %p74 = por %p72, %p73
    %p75 = scmp.ne.s32.totalorder %s66, %s67
    %p76 = scmp.eq.s32.totalorder %s14, 0
    %p77 = por %p75, %p76
    %p78 = scmp.ne.s32.totalorder %s66, %s67
    %p79 = scmp.eq.s32.totalorder %s15, 1
    %p80 = por %p78, %p79
    %p82 = scmp.ne.s32.totalorder %s67, %s81
    %p83 = scmp.eq.s32.totalorder %s15, 0
    %p84 = por %p82, %p83
    %s85 = ssub.s32 %s9, %s16
    %p86 = scmp.eq.s32.totalorder %s85, 0
    %s88 = sadd.s32 %s87, 1
    %s89 = scalar_select %p86, %s87, %s88
    %p92 = pneg %p86
    %p93 = scmp.eq.s32.totalorder %s9, 1
    %p94 = por %p92, %p93
    %p95 = scmp.ne.s32.totalorder %s87, %s90
    %p96 = scmp.eq.s32.totalorder %s9, 0
    %p97 = por %p95, %p96
    %p98 = scmp.ne.s32.totalorder %s87, %s90
    %p99 = scmp.eq.s32.totalorder %s14, 1
    %p100 = por %p98, %p99
    %p101 = scmp.ne.s32.totalorder %s90, %s91
    %p102 = scmp.eq.s32.totalorder %s14, 0
    %p103 = por %p101, %p102
    %p104 = scmp.ne.s32.totalorder %s90, %s91
    %p105 = scmp.eq.s32.totalorder %s15, 1
    %p106 = por %p104, %p105
    %p108 = scmp.ne.s32.totalorder %s91, %s107
    %p109 = scmp.eq.s32.totalorder %s15, 0
    %p110 = por %p108, %p109
    %p111 = scmp.le.s32.totalorder 1, %s9
    %p112 = scmp.lt.s32.totalorder %s9, 3
    %p113 = pnand %p111, %p112
    %p114 = pneg %p113
    // Predicated region
    $region9: #{encoder_forward.7} parent=5 // pred_check
      _
    $region10: #{encoder_forward.7} parent=5 // pred_check_branch
      %116 = sbr.rel (%p113) target = $region12
    $region11: #{encoder_forward.7} parent=5 // pred_region
      %s117 = ssub.s32 %s9, 1
      // Predicated region
      $region13: #{encoder_forward.7} parent=11 // pred_check
        %p118 = pneg %p56
      $region14: #{encoder_forward.7} parent=11 // pred_check_branch
        %120 = sbr.rel (%p118) target = $region16
      $region15: #{encoder_forward.7} parent=11 // pred_region
        _
      $region16: #{encoder_forward.7} parent=11 // pred_fallthru
        _
      // Predicated region
      $region17: #{encoder_forward.7} parent=11 // pred_check
        %p121 = pneg %p77
      $region18: #{encoder_forward.7} parent=11 // pred_check_branch
        %123 = sbr.rel (%p121) target = $region20
      $region19: #{encoder_forward.7} parent=11 // pred_region
        _
      $region20: #{encoder_forward.7} parent=11 // pred_fallthru
        _
    $region12: #{encoder_forward.7} parent=5 // pred_fallthru
      _
    %p124 = scmp.lt.s32.totalorder %s9, 2
    // Predicated region
    $region21: #{encoder_forward.7} parent=5 // pred_check
      %p125 = pneg %p124
    $region22: #{encoder_forward.7} parent=5 // pred_check_branch
      %127 = sbr.rel (%p125) target = $region24
    $region23: #{encoder_forward.7} parent=5 // pred_region
      // Predicated region
      $region25: #{encoder_forward.7} parent=23 // pred_check
        %p128 = pneg %p29
      $region26: #{encoder_forward.7} parent=23 // pred_check_branch
        %130 = sbr.rel (%p128) target = $region28
      $region27: #{encoder_forward.7} parent=23 // pred_region
        %p131 = scmp.lt.s32.totalorder %s9, 1
        %s132 = scalar_select %p131, %s9, 1
        %s133 = smul.addr %s132, 8
        %s134 = smul.addr %s133, 8
        %s135 = scalar_lea.vmem %s0, %s134
      $region28: #{encoder_forward.7} parent=23 // pred_fallthru
        _
    $region24: #{encoder_forward.7} parent=5 // pred_fallthru
      _
    %p136 = scmp.le.s32.totalorder 1, %s9
    %p137 = scmp.lt.s32.totalorder %s9, 3
    %p138 = pnand %p136, %p137
    %p139 = pneg %p138
    // Predicated region
    $region29: #{encoder_forward.7} parent=5 // pred_check
      _
    $region30: #{encoder_forward.7} parent=5 // pred_check_branch
      %141 = sbr.rel (%p138) target = $region32
    $region31: #{encoder_forward.7} parent=5 // pred_region
      %s142 = ssub.s32 %s9, 1
      %p143 = scmp.lt.s32.totalorder %s14, 1
      %s144 = scalar_select %p143, %s14, 1
      %s145 = smul.addr %s144, 8
      %s146 = smul.addr %s145, 8
      %s147 = scalar_lea.vmem %s0, %s146
      %p148 = pneg %p35
      %p149 = pneg %p32
      %p150 = pneg %p56
      %p151 = pneg %p53
      %p152 = pneg %p77
      %p153 = pneg %p74
      %p154 = pneg %p103
      %p155 = pneg %p100
      %p156 = scmp.lt.s32.totalorder %s14, 1
      %s157 = scalar_select %p156, %s14, 1
      %s158 = smul.addr %s157, 8
      %s159 = smul.addr %s158, 8
      %s160 = scalar_lea.vmem %s3, %s159
      %p161 = scmp.lt.s32.totalorder %s14, 1
      %s162 = scalar_select %p161, %s14, 1
      %s163 = smul.addr %s162, 8
      %s164 = smul.addr %s163, 8
      %s165 = scalar_lea.vmem %s0, %s164
      %p166 = scmp.lt.s32.totalorder %s14, 1
      %s167 = scalar_select %p166, %s14, 1
      %s168 = smul.addr %s167, 8
      %s169 = smul.addr %s168, 8
      %s170 = scalar_lea.vmem %s3, %s169
      %v171 = vld [vmem:[%s165] sm:$0xff]
      %v172 = vld [vmem:[%s165 + $0x8] sm:$0xff]
      %v173 = vld [vmem:[%s165 + $0x10] sm:$0xff]
      %v174 = vld [vmem:[%s165 + $0x18] sm:$0xff]
      %v175 = vld [vmem:[%s165 + $0x20] sm:$0xff]
      %v176 = vld [vmem:[%s165 + $0x28] sm:$0xff]
      %v177 = vld [vmem:[%s165 + $0x30] sm:$0xff]
      %v178 = vld [vmem:[%s165 + $0x38] sm:$0xff]
      %v179 = vld [vmem:[%s1] sm:$0xff]
      %v180 = vld [vmem:[%s1 + $0x8] sm:$0xff]
      %v181 = vld [vmem:[%s1 + $0x10] sm:$0xff]
      %v182 = vld [vmem:[%s1 + $0x18] sm:$0xff]
      %v183 = vld [vmem:[%s1 + $0x20] sm:$0xff]
      %v184 = vld [vmem:[%s1 + $0x28] sm:$0xff]
      %v185 = vld [vmem:[%s1 + $0x30] sm:$0xff]
      %v186 = vld [vmem:[%s1 + $0x38] sm:$0xff]
      %v187 = vld [vmem:[%s2] sm:$0x1]
      %v189 = vperm.slane %v187, 0
      %vm191 = vcmask 523264
      %v193 = vsel %vm191, %v171, 0
      %v196 = vsel %vm191, %v172, 0
      %v199 = vsel %vm191, %v173, 0
      %v202 = vsel %vm191, %v174, 0
      %v205 = vsel %vm191, %v175, 0
      %v208 = vsel %vm191, %v176, 0
      %v211 = vsel %vm191, %v177, 0
      %v214 = vsel %vm191, %v178, 0
      %216 = vmatpush.msra.mxu0 0.0
      %217 = vmatpush.msra.mxu0 0.0
      %218 = vmatpush.msra.mxu0 0.0
      %219 = vmatpush.msra.mxu0 0.0
      %220 = vmatpush.msra.mxu0 0.0
      %221 = vmatpush.msra.mxu0 0.0
      %222 = vmatpush.msra.mxu0 0.0
      %223 = vmatpush.msra.mxu0 0.0
      %224 = vmatpush.msra.mxu0 %v186
      %225 = vmatpush.msra.mxu0 %v185
      %226 = vmatpush.msra.mxu0 %v184
      %227 = vmatpush.msra.mxu0 %v183
      %228 = vmatpush.msra.mxu0 %v182
      %229 = vmatpush.msra.mxu0 %v181
      %230 = vmatpush.msra.mxu0 %v180
      %231 = vmatpush.msra.mxu0 %v179
      %232 = vmatmul.f32.gmra.mxu0 %v193
      %v233 = vpop.f32.mrf.mxu0
      %v234 = vadd.f32 %v189, %v233
      %235 = vmatmul.f32.gmra.mxu0 %v196
      %v236 = vpop.f32.mrf.mxu0
      %v237 = vadd.f32 %v189, %v236
      %238 = vmatmul.f32.gmra.mxu0 %v199
      %v239 = vpop.f32.mrf.mxu0
      %v240 = vadd.f32 %v189, %v239
      %241 = vmatmul.f32.gmra.mxu0 %v202
      %v242 = vpop.f32.mrf.mxu0
      %v243 = vadd.f32 %v189, %v242
      %244 = vmatmul.f32.gmra.mxu0 %v205
      %v245 = vpop.f32.mrf.mxu0
      %v246 = vadd.f32 %v189, %v245
      %247 = vmatmul.f32.gmra.mxu0 %v208
      %v248 = vpop.f32.mrf.mxu0
      %v249 = vadd.f32 %v189, %v248
      %250 = vmatmul.f32.gmra.mxu0 %v211
      %v251 = vpop.f32.mrf.mxu0
      %v252 = vadd.f32 %v189, %v251
      %253 = vmatmul.f32.gmra.mxu0 %v214
      %v254 = vpop.f32.mrf.mxu0
      %v255 = vadd.f32 %v189, %v254
      %256 = vdwg.mxu0
      %vm257 = vcmask 261120
      %258 = vst.msk [vmem:[%s170] sm:$0xff] %vm257, %v234
      %259 = vst.msk [vmem:[%s170 + $0x8] sm:$0xff] %vm257, %v237
      %260 = vst.msk [vmem:[%s170 + $0x10] sm:$0xff] %vm257, %v240
      %261 = vst.msk [vmem:[%s170 + $0x18] sm:$0xff] %vm257, %v243
      %262 = vst.msk [vmem:[%s170 + $0x20] sm:$0xff] %vm257, %v246
      %263 = vst.msk [vmem:[%s170 + $0x28] sm:$0xff] %vm257, %v249
      %264 = vst.msk [vmem:[%s170 + $0x30] sm:$0xff] %vm257, %v252
      %265 = vst.msk [vmem:[%s170 + $0x38] sm:$0xff] %vm257, %v255
      %p266 = scmp.lt.s32.totalorder %s14, 1
      %s267 = scalar_select %p266, %s14, 1
      %s268 = smul.addr %s267, 8
      %s269 = smul.addr %s268, 8
      %s270 = scalar_lea.vmem %s3, %s269
      // Predicated region
      $region33: #{encoder_forward.7} parent=31 // pred_check
        %p271 = pneg %p100
      $region34: #{encoder_forward.7} parent=31 // pred_check_branch
        %273 = sbr.rel (%p271) target = $region36
      $region35: #{encoder_forward.7} parent=31 // pred_region
        _
      $region36: #{encoder_forward.7} parent=31 // pred_fallthru
        _
    $region32: #{encoder_forward.7} parent=5 // pred_fallthru
      _
    %p274 = scmp.le.s32.totalorder 2, %s9
    // Predicated region
    $region37: #{encoder_forward.7} parent=5 // pred_check
      %p275 = pneg %p274
    $region38: #{encoder_forward.7} parent=5 // pred_check_branch
      %277 = sbr.rel (%p275) target = $region40
    $region39: #{encoder_forward.7} parent=5 // pred_region
      %s278 = ssub.s32 %s9, 2
      // Predicated region
      $region41: #{encoder_forward.7} parent=39 // pred_check
        %p279 = pneg %p106
      $region42: #{encoder_forward.7} parent=39 // pred_check_branch
        %281 = sbr.rel (%p279) target = $region44
      $region43: #{encoder_forward.7} parent=39 // pred_region
        %p282 = scmp.lt.s32.totalorder %s15, 1
        %s283 = scalar_select %p282, %s15, 1
        %s284 = smul.addr %s283, 8
        %s285 = smul.addr %s284, 8
        %s286 = scalar_lea.vmem %s3, %s285
      $region44: #{encoder_forward.7} parent=39 // pred_fallthru
        _
    $region40: #{encoder_forward.7} parent=5 // pred_fallthru
      _
  $region6: #{encoder_forward.7} parent=0 // loop_footer
    %s13 = sadd.s32 1, %s9
  $region7: #{encoder_forward.7} parent=0 // loop_footer_branch
    %8 = sbr.rel target = $region3
  $region8: #{encoder_forward.7} parent=0 // loop_exit
    _

// kernel: encoder_forward.9
$region0: #{encoder_forward.9}
  #allocation0 [shape = 'u32[]', space=smem, size = 0x4, offset = 0x4, fixed_abs, tag = 'smem constant byte address 0x4 - core index']
  #allocation1 [shape = 'u32[72,128]{1,0:T(1,128)}', space=vmem, size = 0x9000, scoped, tag = 'internal scratch']
  %s0 = inlined_call_operand.vmem [shape: f32[2,4,4,128], index: 0, kind: input, shape index: {}]
  %s1 = inlined_call_operand.vmem [shape: f32[128,64], index: 1, kind: input, shape index: {}]
  %s2 = inlined_call_operand.vmem [shape: f32[1,64], index: 2, kind: input, shape index: {}]
  %s3 = inlined_call_operand.hbm [shape: f32[2,4,4,64], index: 3, kind: output, shape index: {}]
  %s4 = sld [smem:[#allocation0]]
  $region45: #{encoder_forward.9} parent=0
    _
  %s6 = ssub.s32 1, %s4
  %s7 = scalar_select 0, %s6, %s4
  $region1: #{encoder_forward.9} parent=0
    #allocation2 [shape = 'u8[16384]{0}', space=vmem, size = 0x4000, scoped, tag = 'output window, operand 0']
    #allocation3 [shape = 's32[2]{0}', space=sflag, size = 0x8, scoped, tag = 'scoped memory for encoder_forward.9']
    %8 = vsyncpa [#allocation3], 0
    %s9 = scalar_lea.sflag [#allocation3], 1
    %10 = vsyncpa %s9, 0
    loop: start=0, step=1, limit=4
    $region2: #{encoder_forward.9} parent=1 // loop_pre_header
      _
    $region3: #{encoder_forward.9} parent=1 // loop_header
      %s12 = sphi 0, %s16
      %p13 = scmp.ge.s32.totalorder %s12, 4
      %s22 = sphi 0, %s24
      %s25 = sphi 0, %s22
      %s26 = sphi 0, %s25
      %s42 = sphi 0, %s26
      %s46 = sphi 0, %s46
      %s48 = sphi 0, %s46
      %s49 = sphi 0, %s48
      %s63 = sphi 0, %s49
      %s67 = sphi 0, %s67
      %s69 = sphi 0, %s67
      %s70 = sphi 0, %s69
      %s84 = sphi 0, %s70
      %s90 = sphi 0, %s92
      %s93 = sphi 0, %s90
      %s94 = sphi 0, %s93
      %s110 = sphi 0, %s94
    $region4: #{encoder_forward.9} parent=1 // loop_header_branch
      %15 = sbr.rel (%p13) target = $region8
    $region5: #{encoder_forward.9} parent=1 // loop_body
      %s17 = ssub.s32 %s12, 1
      %s18 = ssub.s32 %s12, 2
      %s19 = sadd.s32 %s12, 1
      %s20 = ssub.s32 %s12, %s19
      %p21 = scmp.eq.s32.totalorder %s20, 0
      %s23 = sadd.s32 %s22, 1
      %s24 = scalar_select %p21, %s22, %s23
      %p27 = pneg %p21
      %p28 = scmp.eq.s32.totalorder %s12, 1
      %p29 = por %p27, %p28
      %p30 = scmp.ne.s32.totalorder %s22, %s25
      %p31 = scmp.eq.s32.totalorder %s12, 0
      %p32 = por %p30, %p31
      %p33 = scmp.ne.s32.totalorder %s22, %s25
      %p34 = scmp.eq.s32.totalorder %s17, 1
      %p35 = por %p33, %p34
      %p36 = scmp.ne.s32.totalorder %s25, %s26
      %p37 = scmp.eq.s32.totalorder %s17, 0
      %p38 = por %p36, %p37
      %p39 = scmp.ne.s32.totalorder %s25, %s26
      %p40 = scmp.eq.s32.totalorder %s18, 1
      %p41 = por %p39, %p40
      %p43 = scmp.ne.s32.totalorder %s26, %s42
      %p44 = scmp.eq.s32.totalorder %s18, 0
      %p45 = por %p43, %p44
      %s47 = sadd.s32 %s46, 1
      %p50 = scmp.eq.s32.totalorder %s12, 1
      %p51 = scmp.ne.s32.totalorder %s46, %s48
      %p52 = scmp.eq.s32.totalorder %s12, 0
      %p53 = por %p51, %p52
      %p54 = scmp.ne.s32.totalorder %s46, %s48
      %p55 = scmp.eq.s32.totalorder %s17, 1
      %p56 = por %p54, %p55
      %p57 = scmp.ne.s32.totalorder %s48, %s49
      %p58 = scmp.eq.s32.totalorder %s17, 0
      %p59 = por %p57, %p58
      %p60 = scmp.ne.s32.totalorder %s48, %s49
      %p61 = scmp.eq.s32.totalorder %s18, 1
      %p62 = por %p60, %p61
      %p64 = scmp.ne.s32.totalorder %s49, %s63
      %p65 = scmp.eq.s32.totalorder %s18, 0
      %p66 = por %p64, %p65
      %s68 = sadd.s32 %s67, 1
      %p71 = scmp.eq.s32.totalorder %s12, 1
      %p72 = scmp.ne.s32.totalorder %s67, %s69
      %p73 = scmp.eq.s32.totalorder %s12, 0
      %p74 = por %p72, %p73
      %p75 = scmp.ne.s32.totalorder %s67, %s69
      %p76 = scmp.eq.s32.totalorder %s17, 1
      %p77 = por %p75, %p76
      %p78 = scmp.ne.s32.totalorder %s69, %s70
      %p79 = scmp.eq.s32.totalorder %s17, 0
      %p80 = por %p78, %p79
      %p81 = scmp.ne.s32.totalorder %s69, %s70
      %p82 = scmp.eq.s32.totalorder %s18, 1
      %p83 = por %p81, %p82
      %p85 = scmp.ne.s32.totalorder %s70, %s84
      %p86 = scmp.eq.s32.totalorder %s18, 0
      %p87 = por %p85, %p86
      %s88 = ssub.s32 %s12, %s19
      %p89 = scmp.eq.s32.totalorder %s88, 0
      %s91 = sadd.s32 %s90, 1
      %s92 = scalar_select %p89, %s90, %s91
      %p95 = pneg %p89
      %p96 = scmp.eq.s32.totalorder %s12, 1
      %p97 = por %p95, %p96
      %p98 = scmp.ne.s32.totalorder %s90, %s93
      %p99 = scmp.eq.s32.totalorder %s12, 0
      %p100 = por %p98, %p99
      %p101 = scmp.ne.s32.totalorder %s90, %s93
      %p102 = scmp.eq.s32.totalorder %s17, 1
      %p103 = por %p101, %p102
      %p104 = scmp.ne.s32.totalorder %s93, %s94
      %p105 = scmp.eq.s32.totalorder %s17, 0
      %p106 = por %p104, %p105
      %p107 = scmp.ne.s32.totalorder %s93, %s94
      %p108 = scmp.eq.s32.totalorder %s18, 1
      %p109 = por %p107, %p108
      %p111 = scmp.ne.s32.totalorder %s94, %s110
      %p112 = scmp.eq.s32.totalorder %s18, 0
      %p113 = por %p111, %p112
      %p114 = scmp.le.s32.totalorder 1, %s12
      %p115 = scmp.lt.s32.totalorder %s12, 3
      %p116 = pnand %p114, %p115
      %p117 = pneg %p116
      // Predicated region
      $region9: #{encoder_forward.9} parent=5 // pred_check
        _
      $region10: #{encoder_forward.9} parent=5 // pred_check_branch
        %119 = sbr.rel (%p116) target = $region12
      $region11: #{encoder_forward.9} parent=5 // pred_region
        %s120 = ssub.s32 %s12, 1
        // Predicated region
        $region13: #{encoder_forward.9} parent=11 // pred_check
          %p121 = pneg %p59
        $region14: #{encoder_forward.9} parent=11 // pred_check_branch
          %123 = sbr.rel (%p121) target = $region16
        $region15: #{encoder_forward.9} parent=11 // pred_region
          _
        $region16: #{encoder_forward.9} parent=11 // pred_fallthru
          _
        // Predicated region
        $region17: #{encoder_forward.9} parent=11 // pred_check
          %p124 = pneg %p80
        $region18: #{encoder_forward.9} parent=11 // pred_check_branch
          %126 = sbr.rel (%p124) target = $region20
        $region19: #{encoder_forward.9} parent=11 // pred_region
          _
        $region20: #{encoder_forward.9} parent=11 // pred_fallthru
          _
      $region12: #{encoder_forward.9} parent=5 // pred_fallthru
        _
      %p127 = scmp.lt.s32.totalorder %s12, 2
      // Predicated region
      $region21: #{encoder_forward.9} parent=5 // pred_check
        %p128 = pneg %p127
      $region22: #{encoder_forward.9} parent=5 // pred_check_branch
        %130 = sbr.rel (%p128) target = $region24
      $region23: #{encoder_forward.9} parent=5 // pred_region
        // Predicated region
        $region25: #{encoder_forward.9} parent=23 // pred_check
          %p131 = pneg %p32
        $region26: #{encoder_forward.9} parent=23 // pred_check_branch
          %133 = sbr.rel (%p131) target = $region28
        $region27: #{encoder_forward.9} parent=23 // pred_region
          %p134 = scmp.lt.s32.totalorder %s12, 1
          %s135 = scalar_select %p134, %s12, 1
          %s136 = smul.addr %s135, 4
          %s137 = smul.addr %s136, 4
          %s138 = scalar_lea.vmem %s0, %s137
        $region28: #{encoder_forward.9} parent=23 // pred_fallthru
          _
      $region24: #{encoder_forward.9} parent=5 // pred_fallthru
        _
      %p139 = scmp.le.s32.totalorder 1, %s12
      %p140 = scmp.lt.s32.totalorder %s12, 3
      %p141 = pnand %p139, %p140
      %p142 = pneg %p141
      // Predicated region
      $region29: #{encoder_forward.9} parent=5 // pred_check
        _
      $region30: #{encoder_forward.9} parent=5 // pred_check_branch
        %144 = sbr.rel (%p141) target = $region32
      $region31: #{encoder_forward.9} parent=5 // pred_region
        %s145 = ssub.s32 %s12, 1
        %p146 = scmp.lt.s32.totalorder %s17, 1
        %s147 = scalar_select %p146, %s17, 1
        %s148 = smul.addr %s147, 4
        %s149 = smul.addr %s148, 4
        %s150 = scalar_lea.vmem %s0, %s149
        %p151 = pneg %p38
        %p152 = pneg %p35
        %p153 = pneg %p59
        %p154 = pneg %p56
        %p155 = pneg %p80
        %p156 = pneg %p77
        %p157 = pneg %p106
        %p158 = pneg %p103
        %s159 = sand.u32 %s93, 1
        %s160 = scalar_lea.sflag [#allocation3], %s159
        %s161 = sand.u32 %s93, 1
        %s162 = smul.addr %s161, 16
        %s163 = scalar_lea.vmem [#allocation2], %s162
        %p164 = scmp.lt.s32.totalorder %s17, 1
        %s165 = scalar_select %p164, %s17, 1
        %s166 = smul.addr %s165, 4
        %s167 = smul.addr %s166, 4
        %s168 = scalar_lea.vmem %s0, %s167
        %v169 = vld [vmem:[%s168] sm:$0xf]
        %v170 = vld [vmem:[%s168 + $0x4] sm:$0xf]
        %v171 = vld [vmem:[%s168 + $0x8] sm:$0xf]
        %v172 = vld [vmem:[%s168 + $0xc] sm:$0xf]
        %v173 = vld [vmem:[%s1] sm:$0xff]
        %v174 = vld [vmem:[%s1 + $0x8] sm:$0xff]
        %v175 = vld [vmem:[%s1 + $0x10] sm:$0xff]
        %v176 = vld [vmem:[%s1 + $0x18] sm:$0xff]
        %v177 = vld [vmem:[%s1 + $0x20] sm:$0xff]
        %v178 = vld [vmem:[%s1 + $0x28] sm:$0xff]
        %v179 = vld [vmem:[%s1 + $0x30] sm:$0xff]
        %v180 = vld [vmem:[%s1 + $0x38] sm:$0xff]
        %v181 = vld [vmem:[%s1 + $0x40] sm:$0xff]
        %v182 = vld [vmem:[%s1 + $0x48] sm:$0xff]
        %v183 = vld [vmem:[%s1 + $0x50] sm:$0xff]
        %v184 = vld [vmem:[%s1 + $0x58] sm:$0xff]
        %v185 = vld [vmem:[%s1 + $0x60] sm:$0xff]
        %v186 = vld [vmem:[%s1 + $0x68] sm:$0xff]
        %v187 = vld [vmem:[%s1 + $0x70] sm:$0xff]
        %v188 = vld [vmem:[%s1 + $0x78] sm:$0xff]
        %v189 = vld [vmem:[%s2] sm:$0x1]
        %v191 = vperm.slane %v189, 0
        %197 = vst [vmem:[#allocation1] ss:$2 sm:$0xff] %v169
        %s198 = scalar_lea.vmem [#allocation1], 1
        %199 = vst [vmem:[%s198] ss:$2 sm:$0xff] %v170
        %s200 = scalar_lea.vmem [#allocation1], 16
        %201 = vst [vmem:[%s200] ss:$2 sm:$0xff] %v171
        %s202 = scalar_lea.vmem [#allocation1], 17
        %203 = vst [vmem:[%s202] ss:$2 sm:$0xff] %v172
        %v204 = vld.sshfl [vmem:[#allocation1] sm:$0xff pattern:$0x75316420]
        %v205 = vld.sshfl [vmem:[#allocation1 + $0x10] sm:$0xff pattern:$0x75316420]
        %208 = vmatpush.msra.mxu0 %v188
        %209 = vmatpush.msra.mxu0 %v187
        %210 = vmatpush.msra.mxu0 %v186
        %211 = vmatpush.msra.mxu0 %v185
        %212 = vmatpush.msra.mxu0 %v184
        %213 = vmatpush.msra.mxu0 %v183
        %214 = vmatpush.msra.mxu0 %v182
        %215 = vmatpush.msra.mxu0 %v181
        %216 = vmatpush.msra.mxu0 %v180
        %217 = vmatpush.msra.mxu0 %v179
        %218 = vmatpush.msra.mxu0 %v178
        %219 = vmatpush.msra.mxu0 %v177
        %220 = vmatpush.msra.mxu0 %v176
        %221 = vmatpush.msra.mxu0 %v175
        %222 = vmatpush.msra.mxu0 %v174
        %223 = vmatpush.msra.mxu0 %v173
        %224 = vmatmul.f32.gmra.mxu0 %v204
        %v225 = vpop.f32.mrf.mxu0
        %v226 = vadd.f32 %v191, %v225
        %227 = vmatmul.f32.gmra.mxu0 %v205
        %v228 = vpop.f32.mrf.mxu0
        %v229 = vadd.f32 %v191, %v228
        %230 = vdwg.mxu0
        %v233 = vrot.slane %v226, 4
        %v234 = vrot.slane %v229, 4
        %vm237 = vcmask 519168
        %238 = vst.msk [vmem:[%s163] sm:$0xf] %vm237, %v226
        %239 = vst.msk [vmem:[%s163 + $0x4] sm:$0xf] %vm237, %v233
        %240 = vst.msk [vmem:[%s163 + $0x8] sm:$0xf] %vm237, %v229
        %241 = vst.msk [vmem:[%s163 + $0xc] sm:$0xf] %vm237, %v234
        %s242 = sand.u32 %s93, 1
        %s243 = scalar_lea.sflag [#allocation3], %s242
        %s244 = sand.u32 %s93, 1
        %s245 = smul.addr %s244, 16
        %s246 = scalar_lea.vmem [#allocation2], %s245
        // Predicated region
        $region33: #{encoder_forward.9} parent=31 // pred_check
          %p247 = pneg %p103
        $region34: #{encoder_forward.9} parent=31 // pred_check_branch
          %249 = sbr.rel (%p247) target = $region36
        $region35: #{encoder_forward.9} parent=31 // pred_region
          %251 = vsyncadd %s243, 0
          %s252 = smul.addr %s17, 4
          %s253 = smul.addr %s252, 4
          %s254 = scalar_lea.hbm %s3, %s253
          %s255 = sshll.u32 %s246, 4
          %s256 = int_to_ptr.vmem [resolvable:$true] %s255
          %s257 = sshll.u32 %s254, 4
          %s258 = int_to_ptr.hbm [resolvable:$true] %s257
          %263 = dma.vmem_to_hbm [thread:$0]  %s256, 256, %s258, %s243, 64, 64, 4
        $region36: #{encoder_forward.9} parent=31 // pred_fallthru
          _
      $region32: #{encoder_forward.9} parent=5 // pred_fallthru
        _
      %p264 = scmp.le.s32.totalorder 2, %s12
      // Predicated region
      $region37: #{encoder_forward.9} parent=5 // pred_check
        %p265 = pneg %p264
      $region38: #{encoder_forward.9} parent=5 // pred_check_branch
        %267 = sbr.rel (%p265) target = $region40
      $region39: #{encoder_forward.9} parent=5 // pred_region
        %s268 = ssub.s32 %s12, 2
        // Predicated region
        $region41: #{encoder_forward.9} parent=39 // pred_check
          %p269 = pneg %p109
        $region42: #{encoder_forward.9} parent=39 // pred_check_branch
          %271 = sbr.rel (%p269) target = $region44
        $region43: #{encoder_forward.9} parent=39 // pred_region
          %s272 = sand.u32 %s94, 1
          %s273 = scalar_lea.sflag [#allocation3], %s272
          %s274 = sand.u32 %s94, 1
          %s275 = smul.addr %s274, 16
          %s276 = scalar_lea.vmem [#allocation2], %s275
          %278 = dma.done %s273, 256
        $region44: #{encoder_forward.9} parent=39 // pred_fallthru
          _
      $region40: #{encoder_forward.9} parent=5 // pred_fallthru
        _
    $region6: #{encoder_forward.9} parent=1 // loop_footer
      %s16 = sadd.s32 1, %s12
    $region7: #{encoder_forward.9} parent=1 // loop_footer_branch
      %11 = sbr.rel target = $region3
    $region8: #{encoder_forward.9} parent=1 // loop_exit
      _
    %279 = vsyncpa [#allocation3], 1
    %s280 = scalar_lea.sflag [#allocation3], 1
    %281 = vsyncpa %s280, 1

// kernel: encoder_forward.8
$region0: #{encoder_forward.8}
  #allocation0 [shape = 'u32[]', space=smem, size = 0x4, offset = 0x4, fixed_abs, tag = 'smem constant byte address 0x4 - core index']
  #allocation1 [shape = 'u32[72,128]{1,0:T(1,128)}', space=vmem, size = 0x9000, scoped, tag = 'internal scratch']
  #allocation2 [shape = 'f32[10,10,64]{2,1,0:T(8,128)}', space=vmem, size = 0x14000, scoped, tag = 'scratch operand']
  %s0 = inlined_call_operand.vmem [shape: f32[2,8,8,32], index: 0, kind: input, shape index: {}]
  %s1 = inlined_call_operand.vmem [shape: f32[1,32], index: 1, kind: input, shape index: {}]
  %s2 = inlined_call_operand.vmem [shape: f32[1,32], index: 2, kind: input, shape index: {}]
  %s3 = inlined_call_operand.vmem [shape: f32[32,64], index: 3, kind: input, shape index: {}]
  %s4 = inlined_call_operand.vmem [shape: f32[1,64], index: 4, kind: input, shape index: {}]
  %s5 = inlined_call_operand.vmem [shape: f32[9,64], index: 5, kind: input, shape index: {}]
  %s6 = inlined_call_operand.vmem [shape: f32[1,64], index: 6, kind: input, shape index: {}]
  %s7 = inlined_call_operand.vmem [shape: f32[32,32], index: 7, kind: input, shape index: {}]
  %s8 = inlined_call_operand.vmem [shape: f32[1,32], index: 8, kind: input, shape index: {}]
  %s9 = inlined_call_operand.vmem [shape: f32[32,32], index: 9, kind: input, shape index: {}]
  %s10 = inlined_call_operand.vmem [shape: f32[1,32], index: 10, kind: input, shape index: {}]
  %s11 = inlined_call_operand.vmem [shape: f32[1,32], index: 11, kind: input, shape index: {}]
  %s12 = inlined_call_operand.vmem [shape: f32[1,32], index: 12, kind: input, shape index: {}]
  %s13 = inlined_call_operand.vmem [shape: f32[1,32], index: 13, kind: input, shape index: {}]
  %s14 = inlined_call_operand.vmem [shape: f32[32,64], index: 14, kind: input, shape index: {}]
  %s15 = inlined_call_operand.vmem [shape: f32[1,64], index: 15, kind: input, shape index: {}]
  %s16 = inlined_call_operand.vmem [shape: f32[32,32], index: 16, kind: input, shape index: {}]
  %s17 = inlined_call_operand.vmem [shape: f32[1,32], index: 17, kind: input, shape index: {}]
  %s18 = inlined_call_operand.vmem [shape: f32[1,32], index: 18, kind: input, shape index: {}]
  %s19 = inlined_call_operand.vmem [shape: f32[2,8,8,32], index: 19, kind: output, shape index: {}]
  %s20 = sld [smem:[#allocation0]]
  $region109: #{encoder_forward.8} parent=0
    _
  %s22 = ssub.s32 1, %s20
  %s23 = scalar_select 0, %s22, %s20
  loop: start=0, step=1, limit=4
  $region2: #{encoder_forward.8} parent=0 // loop_pre_header
    _
  $region3: #{encoder_forward.8} parent=0 // loop_header
    %s25 = sphi 0, %s29
    %p26 = scmp.ge.s32.totalorder %s25, 4
    %s35 = sphi 0, %s37
    %s38 = sphi 0, %s35
    %s39 = sphi 0, %s38
    %s55 = sphi 0, %s39
    %s59 = sphi 0, %s59
    %s61 = sphi 0, %s59
    %s62 = sphi 0, %s61
    %s76 = sphi 0, %s62
    %s80 = sphi 0, %s80
    %s82 = sphi 0, %s80
    %s83 = sphi 0, %s82
    %s97 = sphi 0, %s83
    %s101 = sphi 0, %s101
    %s103 = sphi 0, %s101
    %s104 = sphi 0, %s103
    %s118 = sphi 0, %s104
    %s122 = sphi 0, %s122
    %s124 = sphi 0, %s122
    %s125 = sphi 0, %s124
    %s139 = sphi 0, %s125
    %s143 = sphi 0, %s143
    %s145 = sphi 0, %s143
    %s146 = sphi 0, %s145
    %s160 = sphi 0, %s146
    %s164 = sphi 0, %s164
    %s166 = sphi 0, %s164
    %s167 = sphi 0, %s166
    %s181 = sphi 0, %s167
    %s185 = sphi 0, %s185
    %s187 = sphi 0, %s185
    %s188 = sphi 0, %s187
    %s202 = sphi 0, %s188
    %s206 = sphi 0, %s206
    %s208 = sphi 0, %s206
    %s209 = sphi 0, %s208
    %s223 = sphi 0, %s209
    %s227 = sphi 0, %s227
    %s229 = sphi 0, %s227
    %s230 = sphi 0, %s229
    %s244 = sphi 0, %s230
    %s248 = sphi 0, %s248
    %s250 = sphi 0, %s248
    %s251 = sphi 0, %s250
    %s265 = sphi 0, %s251
    %s269 = sphi 0, %s269
    %s271 = sphi 0, %s269
    %s272 = sphi 0, %s271
    %s286 = sphi 0, %s272
    %s290 = sphi 0, %s290
    %s292 = sphi 0, %s290
    %s293 = sphi 0, %s292
    %s307 = sphi 0, %s293
    %s311 = sphi 0, %s311
    %s313 = sphi 0, %s311
    %s314 = sphi 0, %s313
    %s328 = sphi 0, %s314
    %s332 = sphi 0, %s332
    %s334 = sphi 0, %s332
    %s335 = sphi 0, %s334
    %s349 = sphi 0, %s335
    %s353 = sphi 0, %s353
    %s355 = sphi 0, %s353
    %s356 = sphi 0, %s355
    %s370 = sphi 0, %s356
    %s374 = sphi 0, %s374
    %s376 = sphi 0, %s374
    %s377 = sphi 0, %s376
    %s391 = sphi 0, %s377
    %s395 = sphi 0, %s395
    %s397 = sphi 0, %s395
    %s398 = sphi 0, %s397
    %s412 = sphi 0, %s398
    %s416 = sphi 0, %s416
    %s418 = sphi 0, %s416
    %s419 = sphi 0, %s418
    %s433 = sphi 0, %s419
    %s439 = sphi 0, %s441
    %s442 = sphi 0, %s439
    %s443 = sphi 0, %s442
    %s459 = sphi 0, %s443
  $region4: #{encoder_forward.8} parent=0 // loop_header_branch
    %28 = sbr.rel (%p26) target = $region8
  $region5: #{encoder_forward.8} parent=0 // loop_body
    %s30 = ssub.s32 %s25, 1
    %s31 = ssub.s32 %s25, 2
    %s32 = sadd.s32 %s25, 1
    %s33 = ssub.s32 %s25, %s32
    %p34 = scmp.eq.s32.totalorder %s33, 0
    %s36 = sadd.s32 %s35, 1
    %s37 = scalar_select %p34, %s35, %s36
    %p40 = pneg %p34
    %p41 = scmp.eq.s32.totalorder %s25, 1
    %p42 = por %p40, %p41
    %p43 = scmp.ne.s32.totalorder %s35, %s38
    %p44 = scmp.eq.s32.totalorder %s25, 0
    %p45 = por %p43, %p44
    %p46 = scmp.ne.s32.totalorder %s35, %s38
    %p47 = scmp.eq.s32.totalorder %s30, 1
    %p48 = por %p46, %p47
    %p49 = scmp.ne.s32.totalorder %s38, %s39
    %p50 = scmp.eq.s32.totalorder %s30, 0
    %p51 = por %p49, %p50
    %p52 = scmp.ne.s32.totalorder %s38, %s39
    %p53 = scmp.eq.s32.totalorder %s31, 1
    %p54 = por %p52, %p53
    %p56 = scmp.ne.s32.totalorder %s39, %s55
    %p57 = scmp.eq.s32.totalorder %s31, 0
    %p58 = por %p56, %p57
    %s60 = sadd.s32 %s59, 1
    %p63 = scmp.eq.s32.totalorder %s25, 1
    %p64 = scmp.ne.s32.totalorder %s59, %s61
    %p65 = scmp.eq.s32.totalorder %s25, 0
    %p66 = por %p64, %p65
    %p67 = scmp.ne.s32.totalorder %s59, %s61
    %p68 = scmp.eq.s32.totalorder %s30, 1
    %p69 = por %p67, %p68
    %p70 = scmp.ne.s32.totalorder %s61, %s62
    %p71 = scmp.eq.s32.totalorder %s30, 0
    %p72 = por %p70, %p71
    %p73 = scmp.ne.s32.totalorder %s61, %s62
    %p74 = scmp.eq.s32.totalorder %s31, 1
    %p75 = por %p73, %p74
    %p77 = scmp.ne.s32.totalorder %s62, %s76
    %p78 = scmp.eq.s32.totalorder %s31, 0
    %p79 = por %p77, %p78
    %s81 = sadd.s32 %s80, 1
    %p84 = scmp.eq.s32.totalorder %s25, 1
    %p85 = scmp.ne.s32.totalorder %s80, %s82
    %p86 = scmp.eq.s32.totalorder %s25, 0
    %p87 = por %p85, %p86
    %p88 = scmp.ne.s32.totalorder %s80, %s82
    %p89 = scmp.eq.s32.totalorder %s30, 1
    %p90 = por %p88, %p89
    %p91 = scmp.ne.s32.totalorder %s82, %s83
    %p92 = scmp.eq.s32.totalorder %s30, 0
    %p93 = por %p91, %p92
    %p94 = scmp.ne.s32.totalorder %s82, %s83
    %p95 = scmp.eq.s32.totalorder %s31, 1
    %p96 = por %p94, %p95
    %p98 = scmp.ne.s32.totalorder %s83, %s97
    %p99 = scmp.eq.s32.totalorder %s31, 0
    %p100 = por %p98, %p99
    %s102 = sadd.s32 %s101, 1
    %p105 = scmp.eq.s32.totalorder %s25, 1
    %p106 = scmp.ne.s32.totalorder %s101, %s103
    %p107 = scmp.eq.s32.totalorder %s25, 0
    %p108 = por %p106, %p107
    %p109 = scmp.ne.s32.totalorder %s101, %s103
    %p110 = scmp.eq.s32.totalorder %s30, 1
    %p111 = por %p109, %p110
    %p112 = scmp.ne.s32.totalorder %s103, %s104
    %p113 = scmp.eq.s32.totalorder %s30, 0
    %p114 = por %p112, %p113
    %p115 = scmp.ne.s32.totalorder %s103, %s104
    %p116 = scmp.eq.s32.totalorder %s31, 1
    %p117 = por %p115, %p116
    %p119 = scmp.ne.s32.totalorder %s104, %s118
    %p120 = scmp.eq.s32.totalorder %s31, 0
    %p121 = por %p119, %p120
    %s123 = sadd.s32 %s122, 1
    %p126 = scmp.eq.s32.totalorder %s25, 1
    %p127 = scmp.ne.s32.totalorder %s122, %s124
    %p128 = scmp.eq.s32.totalorder %s25, 0
    %p129 = por %p127, %p128
    %p130 = scmp.ne.s32.totalorder %s122, %s124
    %p131 = scmp.eq.s32.totalorder %s30, 1
    %p132 = por %p130, %p131
    %p133 = scmp.ne.s32.totalorder %s124, %s125
    %p134 = scmp.eq.s32.totalorder %s30, 0
    %p135 = por %p133, %p134
    %p136 = scmp.ne.s32.totalorder %s124, %s125
    %p137 = scmp.eq.s32.totalorder %s31, 1
    %p138 = por %p136, %p137
    %p140 = scmp.ne.s32.totalorder %s125, %s139
    %p141 = scmp.eq.s32.totalorder %s31, 0
    %p142 = por %p140, %p141
    %s144 = sadd.s32 %s143, 1
    %p147 = scmp.eq.s32.totalorder %s25, 1
    %p148 = scmp.ne.s32.totalorder %s143, %s145
    %p149 = scmp.eq.s32.totalorder %s25, 0
    %p150 = por %p148, %p149
    %p151 = scmp.ne.s32.totalorder %s143, %s145
    %p152 = scmp.eq.s32.totalorder %s30, 1
    %p153 = por %p151, %p152
    %p154 = scmp.ne.s32.totalorder %s145, %s146
    %p155 = scmp.eq.s32.totalorder %s30, 0
    %p156 = por %p154, %p155
    %p157 = scmp.ne.s32.totalorder %s145, %s146
    %p158 = scmp.eq.s32.totalorder %s31, 1
    %p159 = por %p157, %p158
    %p161 = scmp.ne.s32.totalorder %s146, %s160
    %p162 = scmp.eq.s32.totalorder %s31, 0
    %p163 = por %p161, %p162
    %s165 = sadd.s32 %s164, 1
    %p168 = scmp.eq.s32.totalorder %s25, 1
    %p169 = scmp.ne.s32.totalorder %s164, %s166
    %p170 = scmp.eq.s32.totalorder %s25, 0
    %p171 = por %p169, %p170
    %p172 = scmp.ne.s32.totalorder %s164, %s166
    %p173 = scmp.eq.s32.totalorder %s30, 1
    %p174 = por %p172, %p173
    %p175 = scmp.ne.s32.totalorder %s166, %s167
    %p176 = scmp.eq.s32.totalorder %s30, 0
    %p177 = por %p175, %p176
    %p178 = scmp.ne.s32.totalorder %s166, %s167
    %p179 = scmp.eq.s32.totalorder %s31, 1
    %p180 = por %p178, %p179
    %p182 = scmp.ne.s32.totalorder %s167, %s181
    %p183 = scmp.eq.s32.totalorder %s31, 0
    %p184 = por %p182, %p183
    %s186 = sadd.s32 %s185, 1
    %p189 = scmp.eq.s32.totalorder %s25, 1
    %p190 = scmp.ne.s32.totalorder %s185, %s187
    %p191 = scmp.eq.s32.totalorder %s25, 0
    %p192 = por %p190, %p191
    %p193 = scmp.ne.s32.totalorder %s185, %s187
    %p194 = scmp.eq.s32.totalorder %s30, 1
    %p195 = por %p193, %p194
    %p196 = scmp.ne.s32.totalorder %s187, %s188
    %p197 = scmp.eq.s32.totalorder %s30, 0
    %p198 = por %p196, %p197
    %p199 = scmp.ne.s32.totalorder %s187, %s188
    %p200 = scmp.eq.s32.totalorder %s31, 1
    %p201 = por %p199, %p200
    %p203 = scmp.ne.s32.totalorder %s188, %s202
    %p204 = scmp.eq.s32.totalorder %s31, 0
    %p205 = por %p203, %p204
    %s207 = sadd.s32 %s206, 1
    %p210 = scmp.eq.s32.totalorder %s25, 1
    %p211 = scmp.ne.s32.totalorder %s206, %s208
    %p212 = scmp.eq.s32.totalorder %s25, 0
    %p213 = por %p211, %p212
    %p214 = scmp.ne.s32.totalorder %s206, %s208
    %p215 = scmp.eq.s32.totalorder %s30, 1
    %p216 = por %p214, %p215
    %p217 = scmp.ne.s32.totalorder %s208, %s209
    %p218 = scmp.eq.s32.totalorder %s30, 0
    %p219 = por %p217, %p218
    %p220 = scmp.ne.s32.totalorder %s208, %s209
    %p221 = scmp.eq.s32.totalorder %s31, 1
    %p222 = por %p220, %p221
    %p224 = scmp.ne.s32.totalorder %s209, %s223
    %p225 = scmp.eq.s32.totalorder %s31, 0
    %p226 = por %p224, %p225
    %s228 = sadd.s32 %s227, 1
    %p231 = scmp.eq.s32.totalorder %s25, 1
    %p232 = scmp.ne.s32.totalorder %s227, %s229
    %p233 = scmp.eq.s32.totalorder %s25, 0
    %p234 = por %p232, %p233
    %p235 = scmp.ne.s32.totalorder %s227, %s229
    %p236 = scmp.eq.s32.totalorder %s30, 1
    %p237 = por %p235, %p236
    %p238 = scmp.ne.s32.totalorder %s229, %s230
    %p239 = scmp.eq.s32.totalorder %s30, 0
    %p240 = por %p238, %p239
    %p241 = scmp.ne.s32.totalorder %s229, %s230
    %p242 = scmp.eq.s32.totalorder %s31, 1
    %p243 = por %p241, %p242
    %p245 = scmp.ne.s32.totalorder %s230, %s244
    %p246 = scmp.eq.s32.totalorder %s31, 0
    %p247 = por %p245, %p246
    %s249 = sadd.s32 %s248, 1
    %p252 = scmp.eq.s32.totalorder %s25, 1
    %p253 = scmp.ne.s32.totalorder %s248, %s250
    %p254 = scmp.eq.s32.totalorder %s25, 0
    %p255 = por %p253, %p254
    %p256 = scmp.ne.s32.totalorder %s248, %s250
    %p257 = scmp.eq.s32.totalorder %s30, 1
    %p258 = por %p256, %p257
    %p259 = scmp.ne.s32.totalorder %s250, %s251
    %p260 = scmp.eq.s32.totalorder %s30, 0
    %p261 = por %p259, %p260
    %p262 = scmp.ne.s32.totalorder %s250, %s251
    %p263 = scmp.eq.s32.totalorder %s31, 1
    %p264 = por %p262, %p263
    %p266 = scmp.ne.s32.totalorder %s251, %s265
    %p267 = scmp.eq.s32.totalorder %s31, 0
    %p268 = por %p266, %p267
    %s270 = sadd.s32 %s269, 1
    %p273 = scmp.eq.s32.totalorder %s25, 1
    %p274 = scmp.ne.s32.totalorder %s269, %s271
    %p275 = scmp.eq.s32.totalorder %s25, 0
    %p276 = por %p274, %p275
    %p277 = scmp.ne.s32.totalorder %s269, %s271
    %p278 = scmp.eq.s32.totalorder %s30, 1
    %p279 = por %p277, %p278
    %p280 = scmp.ne.s32.totalorder %s271, %s272
    %p281 = scmp.eq.s32.totalorder %s30, 0
    %p282 = por %p280, %p281
    %p283 = scmp.ne.s32.totalorder %s271, %s272
    %p284 = scmp.eq.s32.totalorder %s31, 1
    %p285 = por %p283, %p284
    %p287 = scmp.ne.s32.totalorder %s272, %s286
    %p288 = scmp.eq.s32.totalorder %s31, 0
    %p289 = por %p287, %p288
    %s291 = sadd.s32 %s290, 1
    %p294 = scmp.eq.s32.totalorder %s25, 1
    %p295 = scmp.ne.s32.totalorder %s290, %s292
    %p296 = scmp.eq.s32.totalorder %s25, 0
    %p297 = por %p295, %p296
    %p298 = scmp.ne.s32.totalorder %s290, %s292
    %p299 = scmp.eq.s32.totalorder %s30, 1
    %p300 = por %p298, %p299
    %p301 = scmp.ne.s32.totalorder %s292, %s293
    %p302 = scmp.eq.s32.totalorder %s30, 0
    %p303 = por %p301, %p302
    %p304 = scmp.ne.s32.totalorder %s292, %s293
    %p305 = scmp.eq.s32.totalorder %s31, 1
    %p306 = por %p304, %p305
    %p308 = scmp.ne.s32.totalorder %s293, %s307
    %p309 = scmp.eq.s32.totalorder %s31, 0
    %p310 = por %p308, %p309
    %s312 = sadd.s32 %s311, 1
    %p315 = scmp.eq.s32.totalorder %s25, 1
    %p316 = scmp.ne.s32.totalorder %s311, %s313
    %p317 = scmp.eq.s32.totalorder %s25, 0
    %p318 = por %p316, %p317
    %p319 = scmp.ne.s32.totalorder %s311, %s313
    %p320 = scmp.eq.s32.totalorder %s30, 1
    %p321 = por %p319, %p320
    %p322 = scmp.ne.s32.totalorder %s313, %s314
    %p323 = scmp.eq.s32.totalorder %s30, 0
    %p324 = por %p322, %p323
    %p325 = scmp.ne.s32.totalorder %s313, %s314
    %p326 = scmp.eq.s32.totalorder %s31, 1
    %p327 = por %p325, %p326
    %p329 = scmp.ne.s32.totalorder %s314, %s328
    %p330 = scmp.eq.s32.totalorder %s31, 0
    %p331 = por %p329, %p330
    %s333 = sadd.s32 %s332, 1
    %p336 = scmp.eq.s32.totalorder %s25, 1
    %p337 = scmp.ne.s32.totalorder %s332, %s334
    %p338 = scmp.eq.s32.totalorder %s25, 0
    %p339 = por %p337, %p338
    %p340 = scmp.ne.s32.totalorder %s332, %s334
    %p341 = scmp.eq.s32.totalorder %s30, 1
    %p342 = por %p340, %p341
    %p343 = scmp.ne.s32.totalorder %s334, %s335
    %p344 = scmp.eq.s32.totalorder %s30, 0
    %p345 = por %p343, %p344
    %p346 = scmp.ne.s32.totalorder %s334, %s335
    %p347 = scmp.eq.s32.totalorder %s31, 1
    %p348 = por %p346, %p347
    %p350 = scmp.ne.s32.totalorder %s335, %s349
    %p351 = scmp.eq.s32.totalorder %s31, 0
    %p352 = por %p350, %p351
    %s354 = sadd.s32 %s353, 1
    %p357 = scmp.eq.s32.totalorder %s25, 1
    %p358 = scmp.ne.s32.totalorder %s353, %s355
    %p359 = scmp.eq.s32.totalorder %s25, 0
    %p360 = por %p358, %p359
    %p361 = scmp.ne.s32.totalorder %s353, %s355
    %p362 = scmp.eq.s32.totalorder %s30, 1
    %p363 = por %p361, %p362
    %p364 = scmp.ne.s32.totalorder %s355, %s356
    %p365 = scmp.eq.s32.totalorder %s30, 0
    %p366 = por %p364, %p365
    %p367 = scmp.ne.s32.totalorder %s355, %s356
    %p368 = scmp.eq.s32.totalorder %s31, 1
    %p369 = por %p367, %p368
    %p371 = scmp.ne.s32.totalorder %s356, %s370
    %p372 = scmp.eq.s32.totalorder %s31, 0
    %p373 = por %p371, %p372
    %s375 = sadd.s32 %s374, 1
    %p378 = scmp.eq.s32.totalorder %s25, 1
    %p379 = scmp.ne.s32.totalorder %s374, %s376
    %p380 = scmp.eq.s32.totalorder %s25, 0
    %p381 = por %p379, %p380
    %p382 = scmp.ne.s32.totalorder %s374, %s376
    %p383 = scmp.eq.s32.totalorder %s30, 1
    %p384 = por %p382, %p383
    %p385 = scmp.ne.s32.totalorder %s376, %s377
    %p386 = scmp.eq.s32.totalorder %s30, 0
    %p387 = por %p385, %p386
    %p388 = scmp.ne.s32.totalorder %s376, %s377
    %p389 = scmp.eq.s32.totalorder %s31, 1
    %p390 = por %p388, %p389
    %p392 = scmp.ne.s32.totalorder %s377, %s391
    %p393 = scmp.eq.s32.totalorder %s31, 0
    %p394 = por %p392, %p393
    %s396 = sadd.s32 %s395, 1
    %p399 = scmp.eq.s32.totalorder %s25, 1
    %p400 = scmp.ne.s32.totalorder %s395, %s397
    %p401 = scmp.eq.s32.totalorder %s25, 0
    %p402 = por %p400, %p401
    %p403 = scmp.ne.s32.totalorder %s395, %s397
    %p404 = scmp.eq.s32.totalorder %s30, 1
    %p405 = por %p403, %p404
    %p406 = scmp.ne.s32.totalorder %s397, %s398
    %p407 = scmp.eq.s32.totalorder %s30, 0
    %p408 = por %p406, %p407
    %p409 = scmp.ne.s32.totalorder %s397, %s398
    %p410 = scmp.eq.s32.totalorder %s31, 1
    %p411 = por %p409, %p410
    %p413 = scmp.ne.s32.totalorder %s398, %s412
    %p414 = scmp.eq.s32.totalorder %s31, 0
    %p415 = por %p413, %p414
    %s417 = sadd.s32 %s416, 1
    %p420 = scmp.eq.s32.totalorder %s25, 1
    %p421 = scmp.ne.s32.totalorder %s416, %s418
    %p422 = scmp.eq.s32.totalorder %s25, 0
    %p423 = por %p421, %p422
    %p424 = scmp.ne.s32.totalorder %s416, %s418
    %p425 = scmp.eq.s32.totalorder %s30, 1
    %p426 = por %p424, %p425
    %p427 = scmp.ne.s32.totalorder %s418, %s419
    %p428 = scmp.eq.s32.totalorder %s30, 0
    %p429 = por %p427, %p428
    %p430 = scmp.ne.s32.totalorder %s418, %s419
    %p431 = scmp.eq.s32.totalorder %s31, 1
    %p432 = por %p430, %p431
    %p434 = scmp.ne.s32.totalorder %s419, %s433
    %p435 = scmp.eq.s32.totalorder %s31, 0
    %p436 = por %p434, %p435
    %s437 = ssub.s32 %s25, %s32
    %p438 = scmp.eq.s32.totalorder %s437, 0
    %s440 = sadd.s32 %s439, 1
    %s441 = scalar_select %p438, %s439, %s440
    %p444 = pneg %p438
    %p445 = scmp.eq.s32.totalorder %s25, 1
    %p446 = por %p444, %p445
    %p447 = scmp.ne.s32.totalorder %s439, %s442
    %p448 = scmp.eq.s32.totalorder %s25, 0
    %p449 = por %p447, %p448
    %p450 = scmp.ne.s32.totalorder %s439, %s442
    %p451 = scmp.eq.s32.totalorder %s30, 1
    %p452 = por %p450, %p451
    %p453 = scmp.ne.s32.totalorder %s442, %s443
    %p454 = scmp.eq.s32.totalorder %s30, 0
    %p455 = por %p453, %p454
    %p456 = scmp.ne.s32.totalorder %s442, %s443
    %p457 = scmp.eq.s32.totalorder %s31, 1
    %p458 = por %p456, %p457
    %p460 = scmp.ne.s32.totalorder %s443, %s459
    %p461 = scmp.eq.s32.totalorder %s31, 0
    %p462 = por %p460, %p461
    %p463 = scmp.le.s32.totalorder 1, %s25
    %p464 = scmp.lt.s32.totalorder %s25, 3
    %p465 = pnand %p463, %p464
    %p466 = pneg %p465
    // Predicated region
    $region9: #{encoder_forward.8} parent=5 // pred_check
      _
    $region10: #{encoder_forward.8} parent=5 // pred_check_branch
      %468 = sbr.rel (%p465) target = $region12
    $region11: #{encoder_forward.8} parent=5 // pred_region
      %s469 = ssub.s32 %s25, 1
      // Predicated region
      $region13: #{encoder_forward.8} parent=11 // pred_check
        %p470 = pneg %p72
      $region14: #{encoder_forward.8} parent=11 // pred_check_branch
        %472 = sbr.rel (%p470) target = $region16
      $region15: #{encoder_forward.8} parent=11 // pred_region
        _
      $region16: #{encoder_forward.8} parent=11 // pred_fallthru
        _
      // Predicated region
      $region17: #{encoder_forward.8} parent=11 // pred_check
        %p473 = pneg %p93
      $region18: #{encoder_forward.8} parent=11 // pred_check_branch
        %475 = sbr.rel (%p473) target = $region20
      $region19: #{encoder_forward.8} parent=11 // pred_region
        _
      $region20: #{encoder_forward.8} parent=11 // pred_fallthru
        _
      // Predicated region
      $region21: #{encoder_forward.8} parent=11 // pred_check
        %p476 = pneg %p114
      $region22: #{encoder_forward.8} parent=11 // pred_check_branch
        %478 = sbr.rel (%p476) target = $region24
      $region23: #{encoder_forward.8} parent=11 // pred_region
        _
      $region24: #{encoder_forward.8} parent=11 // pred_fallthru
        _
      // Predicated region
      $region25: #{encoder_forward.8} parent=11 // pred_check
        %p479 = pneg %p135
      $region26: #{encoder_forward.8} parent=11 // pred_check_branch
        %481 = sbr.rel (%p479) target = $region28
      $region27: #{encoder_forward.8} parent=11 // pred_region
        _
      $region28: #{encoder_forward.8} parent=11 // pred_fallthru
        _
      // Predicated region
      $region29: #{encoder_forward.8} parent=11 // pred_check
        %p482 = pneg %p156
      $region30: #{encoder_forward.8} parent=11 // pred_check_branch
        %484 = sbr.rel (%p482) target = $region32
      $region31: #{encoder_forward.8} parent=11 // pred_region
        _
      $region32: #{encoder_forward.8} parent=11 // pred_fallthru
        _
      // Predicated region
      $region33: #{encoder_forward.8} parent=11 // pred_check
        %p485 = pneg %p177
      $region34: #{encoder_forward.8} parent=11 // pred_check_branch
        %487 = sbr.rel (%p485) target = $region36
      $region35: #{encoder_forward.8} parent=11 // pred_region
        _
      $region36: #{encoder_forward.8} parent=11 // pred_fallthru
        _
      // Predicated region
      $region37: #{encoder_forward.8} parent=11 // pred_check
        %p488 = pneg %p198
      $region38: #{encoder_forward.8} parent=11 // pred_check_branch
        %490 = sbr.rel (%p488) target = $region40
      $region39: #{encoder_forward.8} parent=11 // pred_region
        _
      $region40: #{encoder_forward.8} parent=11 // pred_fallthru
        _
      // Predicated region
      $region41: #{encoder_forward.8} parent=11 // pred_check
        %p491 = pneg %p219
      $region42: #{encoder_forward.8} parent=11 // pred_check_branch
        %493 = sbr.rel (%p491) target = $region44
      $region43: #{encoder_forward.8} parent=11 // pred_region
        _
      $region44: #{encoder_forward.8} parent=11 // pred_fallthru
        _
      // Predicated region
      $region45: #{encoder_forward.8} parent=11 // pred_check
        %p494 = pneg %p240
      $region46: #{encoder_forward.8} parent=11 // pred_check_branch
        %496 = sbr.rel (%p494) target = $region48
      $region47: #{encoder_forward.8} parent=11 // pred_region
        _
      $region48: #{encoder_forward.8} parent=11 // pred_fallthru
        _
      // Predicated region
      $region49: #{encoder_forward.8} parent=11 // pred_check
        %p497 = pneg %p261
      $region50: #{encoder_forward.8} parent=11 // pred_check_branch
        %499 = sbr.rel (%p497) target = $region52
      $region51: #{encoder_forward.8} parent=11 // pred_region
        _
      $region52: #{encoder_forward.8} parent=11 // pred_fallthru
        _
      // Predicated region
      $region53: #{encoder_forward.8} parent=11 // pred_check
        %p500 = pneg %p282
      $region54: #{encoder_forward.8} parent=11 // pred_check_branch
        %502 = sbr.rel (%p500) target = $region56
      $region55: #{encoder_forward.8} parent=11 // pred_region
        _
      $region56: #{encoder_forward.8} parent=11 // pred_fallthru
        _
      // Predicated region
      $region57: #{encoder_forward.8} parent=11 // pred_check
        %p503 = pneg %p303
      $region58: #{encoder_forward.8} parent=11 // pred_check_branch
        %505 = sbr.rel (%p503) target = $region60
      $region59: #{encoder_forward.8} parent=11 // pred_region
        _
      $region60: #{encoder_forward.8} parent=11 // pred_fallthru
        _
      // Predicated region
      $region61: #{encoder_forward.8} parent=11 // pred_check
        %p506 = pneg %p324
      $region62: #{encoder_forward.8} parent=11 // pred_check_branch
        %508 = sbr.rel (%p506) target = $region64
      $region63: #{encoder_forward.8} parent=11 // pred_region
        _
      $region64: #{encoder_forward.8} parent=11 // pred_fallthru
        _
      // Predicated region
      $region65: #{encoder_forward.8} parent=11 // pred_check
        %p509 = pneg %p345
      $region66: #{encoder_forward.8} parent=11 // pred_check_branch
        %511 = sbr.rel (%p509) target = $region68
      $region67: #{encoder_forward.8} parent=11 // pred_region
        _
      $region68: #{encoder_forward.8} parent=11 // pred_fallthru
        _
      // Predicated region
      $region69: #{encoder_forward.8} parent=11 // pred_check
        %p512 = pneg %p366
      $region70: #{encoder_forward.8} parent=11 // pred_check_branch
        %514 = sbr.rel (%p512) target = $region72
      $region71: #{encoder_forward.8} parent=11 // pred_region
        _
      $region72: #{encoder_forward.8} parent=11 // pred_fallthru
        _
      // Predicated region
      $region73: #{encoder_forward.8} parent=11 // pred_check
        %p515 = pneg %p387
      $region74: #{encoder_forward.8} parent=11 // pred_check_branch
        %517 = sbr.rel (%p515) target = $region76
      $region75: #{encoder_forward.8} parent=11 // pred_region
        _
      $region76: #{encoder_forward.8} parent=11 // pred_fallthru
        _
      // Predicated region
      $region77: #{encoder_forward.8} parent=11 // pred_check
        %p518 = pneg %p408
      $region78: #{encoder_forward.8} parent=11 // pred_check_branch
        %520 = sbr.rel (%p518) target = $region80
      $region79: #{encoder_forward.8} parent=11 // pred_region
        _
      $region80: #{encoder_forward.8} parent=11 // pred_fallthru
        _
      // Predicated region
      $region81: #{encoder_forward.8} parent=11 // pred_check
        %p521 = pneg %p429
      $region82: #{encoder_forward.8} parent=11 // pred_check_branch
        %523 = sbr.rel (%p521) target = $region84
      $region83: #{encoder_forward.8} parent=11 // pred_region
        _
      $region84: #{encoder_forward.8} parent=11 // pred_fallthru
        _
    $region12: #{encoder_forward.8} parent=5 // pred_fallthru
      _
    %p524 = scmp.lt.s32.totalorder %s25, 2
    // Predicated region
    $region85: #{encoder_forward.8} parent=5 // pred_check
      %p525 = pneg %p524
    $region86: #{encoder_forward.8} parent=5 // pred_check_branch
      %527 = sbr.rel (%p525) target = $region88
    $region87: #{encoder_forward.8} parent=5 // pred_region
      // Predicated region
      $region89: #{encoder_forward.8} parent=87 // pred_check
        %p528 = pneg %p45
      $region90: #{encoder_forward.8} parent=87 // pred_check_branch
        %530 = sbr.rel (%p528) target = $region92
      $region91: #{encoder_forward.8} parent=87 // pred_region
        %p531 = scmp.lt.s32.totalorder %s25, 1
        %s532 = scalar_select %p531, %s25, 1
        %s533 = smul.addr %s532, 8
        %s534 = smul.addr %s533, 8
        %s535 = scalar_lea.vmem %s0, %s534
      $region92: #{encoder_forward.8} parent=87 // pred_fallthru
        _
    $region88: #{encoder_forward.8} parent=5 // pred_fallthru
      _
    %p536 = scmp.le.s32.totalorder 1, %s25
    %p537 = scmp.lt.s32.totalorder %s25, 3
    %p538 = pnand %p536, %p537
    %p539 = pneg %p538
    // Predicated region
    $region93: #{encoder_forward.8} parent=5 // pred_check
      _
    $region94: #{encoder_forward.8} parent=5 // pred_check_branch
      %541 = sbr.rel (%p538) target = $region96
    $region95: #{encoder_forward.8} parent=5 // pred_region
      %s542 = ssub.s32 %s25, 1
      %p543 = scmp.lt.s32.totalorder %s30, 1
      %s544 = scalar_select %p543, %s30, 1
      %s545 = smul.addr %s544, 8
      %s546 = smul.addr %s545, 8
      %s547 = scalar_lea.vmem %s0, %s546
      %p548 = pneg %p51
      %p549 = pneg %p48
      %p550 = pneg %p72
      %p551 = pneg %p69
      %p552 = pneg %p93
      %p553 = pneg %p90
      %p554 = pneg %p114
      %p555 = pneg %p111
      %p556 = pneg %p135
      %p557 = pneg %p132
      %p558 = pneg %p156
      %p559 = pneg %p153
      %p560 = pneg %p177
      %p561 = pneg %p174
      %p562 = pneg %p198
      %p563 = pneg %p195
      %p564 = pneg %p219
      %p565 = pneg %p216
      %p566 = pneg %p240
      %p567 = pneg %p237
      %p568 = pneg %p261
      %p569 = pneg %p258
      %p570 = pneg %p282
      %p571 = pneg %p279
      %p572 = pneg %p303
      %p573 = pneg %p300
      %p574 = pneg %p324
      %p575 = pneg %p321
      %p576 = pneg %p345
      %p577 = pneg %p342
      %p578 = pneg %p366
      %p579 = pneg %p363
      %p580 = pneg %p387
      %p581 = pneg %p384
      %p582 = pneg %p408
      %p583 = pneg %p405
      %p584 = pneg %p429
      %p585 = pneg %p426
      %p586 = pneg %p455
      %p587 = pneg %p452
      %p588 = scmp.lt.s32.totalorder %s30, 1
      %s589 = scalar_select %p588, %s30, 1
      %s590 = smul.addr %s589, 8
      %s591 = smul.addr %s590, 8
      %s592 = scalar_lea.vmem %s19, %s591
      %p593 = scmp.lt.s32.totalorder %s30, 1
      %s594 = scalar_select %p593, %s30, 1
      %s595 = smul.addr %s594, 8
      %s596 = smul.addr %s595, 8
      %s597 = scalar_lea.vmem %s0, %s596
      %p598 = scmp.lt.s32.totalorder %s30, 1
      %s599 = scalar_select %p598, %s30, 1
      %s600 = smul.addr %s599, 8
      %s601 = smul.addr %s600, 8
      %s602 = scalar_lea.vmem %s19, %s601
      %v603 = vld [vmem:[%s597] sm:$0xff]
      %v604 = vld [vmem:[%s597 + $0x8] sm:$0xff]
      %v605 = vld [vmem:[%s597 + $0x10] sm:$0xff]
      %v606 = vld [vmem:[%s597 + $0x18] sm:$0xff]
      %v607 = vld [vmem:[%s597 + $0x20] sm:$0xff]
      %v608 = vld [vmem:[%s597 + $0x28] sm:$0xff]
      %v609 = vld [vmem:[%s597 + $0x30] sm:$0xff]
      %v610 = vld [vmem:[%s597 + $0x38] sm:$0xff]
      %vm611 = vcmask 261120
      %v612 = vsel %vm611, %v603, 0.0
      %613 = vadd.xlane.f32.xlu0 %v612
      %v614 = vpop.xlane.xlu0 %613
      %v615 = vsel %vm611, %v604, 0.0
      %616 = vadd.xlane.f32.xlu0 %v615
      %v617 = vpop.xlane.xlu0 %616
      %v618 = vsel %vm611, %v605, 0.0
      %619 = vadd.xlane.f32.xlu0 %v618
      %v620 = vpop.xlane.xlu0 %619
      %v621 = vsel %vm611, %v606, 0.0
      %622 = vadd.xlane.f32.xlu0 %v621
      %v623 = vpop.xlane.xlu0 %622
      %v624 = vsel %vm611, %v607, 0.0
      %625 = vadd.xlane.f32.xlu0 %v624
      %v626 = vpop.xlane.xlu0 %625
      %v627 = vsel %vm611, %v608, 0.0
      %628 = vadd.xlane.f32.xlu0 %v627
      %v629 = vpop.xlane.xlu0 %628
      %v630 = vsel %vm611, %v609, 0.0
      %631 = vadd.xlane.f32.xlu0 %v630
      %v632 = vpop.xlane.xlu0 %631
      %v633 = vsel %vm611, %v610, 0.0
      %634 = vadd.xlane.f32.xlu0 %v633
      %v635 = vpop.xlane.xlu0 %634
      %v636 = vrcp.pop 32.0
      %v637 = vmul.f32 32.0, %v636
      %v638 = vsub.f32 1.0, %v637
      %v639 = vmul.f32 %v636, %v638
      %v640 = vadd.f32 %v636, %v639
      %vm641 = vweird.f32 %v636
      %v642 = vsel %vm641, %v636, %v640
      %v643 = vmul.f32 %v614, %v642
      %v644 = vmul.f32 %v617, %v642
      %v645 = vmul.f32 %v620, %v642
      %v646 = vmul.f32 %v623, %v642
      %v647 = vmul.f32 %v626, %v642
      %v648 = vmul.f32 %v629, %v642
      %v649 = vmul.f32 %v632, %v642
      %v650 = vmul.f32 %v635, %v642
      %v651 = vsub.f32 %v603, %v643
      %v652 = vsub.f32 %v604, %v644
      %v653 = vsub.f32 %v605, %v645
      %v654 = vsub.f32 %v606, %v646
      %v655 = vsub.f32 %v607, %v647
      %v656 = vsub.f32 %v608, %v648
      %v657 = vsub.f32 %v609, %v649
      %v658 = vsub.f32 %v610, %v650
      %v659 = vmul.f32 %v651, %v651
      %v660 = vmul.f32 %v652, %v652
      %v661 = vmul.f32 %v653, %v653
      %v662 = vmul.f32 %v654, %v654
      %v663 = vmul.f32 %v655, %v655
      %v664 = vmul.f32 %v656, %v656
      %v665 = vmul.f32 %v657, %v657
      %v666 = vmul.f32 %v658, %v658
      %v667 = vsel %vm611, %v659, 0.0
      %668 = vadd.xlane.f32.xlu0 %v667
      %v669 = vpop.xlane.xlu0 %668
      %v670 = vsel %vm611, %v660, 0.0
      %671 = vadd.xlane.f32.xlu0 %v670
      %v672 = vpop.xlane.xlu0 %671
      %v673 = vsel %vm611, %v661, 0.0
      %674 = vadd.xlane.f32.xlu0 %v673
      %v675 = vpop.xlane.xlu0 %674
      %v676 = vsel %vm611, %v662, 0.0
      %677 = vadd.xlane.f32.xlu0 %v676
      %v678 = vpop.xlane.xlu0 %677
      %v679 = vsel %vm611, %v663, 0.0
      %680 = vadd.xlane.f32.xlu0 %v679
      %v681 = vpop.xlane.xlu0 %680
      %v682 = vsel %vm611, %v664, 0.0
      %683 = vadd.xlane.f32.xlu0 %v682
      %v684 = vpop.xlane.xlu0 %683
      %v685 = vsel %vm611, %v665, 0.0
      %686 = vadd.xlane.f32.xlu0 %v685
      %v687 = vpop.xlane.xlu0 %686
      %v688 = vsel %vm611, %v666, 0.0
      %689 = vadd.xlane.f32.xlu0 %v688
      %v690 = vpop.xlane.xlu0 %689
      %v691 = vmul.f32 %v669, %v642
      %v692 = vmul.f32 %v672, %v642
      %v693 = vmul.f32 %v675, %v642
      %v694 = vmul.f32 %v678, %v642
      %v695 = vmul.f32 %v681, %v642
      %v696 = vmul.f32 %v684, %v642
      %v697 = vmul.f32 %v687, %v642
      %v698 = vmul.f32 %v690, %v642
      %v699 = vadd.f32 %v691, 1e-06
      %v700 = vadd.f32 %v692, 1e-06
      %v701 = vadd.f32 %v693, 1e-06
      %v702 = vadd.f32 %v694, 1e-06
      %v703 = vadd.f32 %v695, 1e-06
      %v704 = vadd.f32 %v696, 1e-06
      %v705 = vadd.f32 %v697, 1e-06
      %v706 = vadd.f32 %v698, 1e-06
      %v707 = vrsqrt.pop %v699
      %v708 = vmul.f32 %v707, %v699
      %v709 = vmul.f32 %v708, %v707
      %v710 = vmul.f32 0.5, %v709
      %v711 = vsub.f32 1.5, %v710
      %v712 = vmul.f32 %v707, %v711
      %vm713 = vweird.f32 %v699
      %vm714 = vweird.f32 %v707
      %vm715 = vmor %vm713, %vm714
      %v716 = vsel %vm715, %v707, %v712
      %v717 = vrsqrt.pop %v700
      %v718 = vmul.f32 %v717, %v700
      %v719 = vmul.f32 %v718, %v717
      %v720 = vmul.f32 0.5, %v719
      %v721 = vsub.f32 1.5, %v720
      %v722 = vmul.f32 %v717, %v721
      %vm723 = vweird.f32 %v700
      %vm724 = vweird.f32 %v717
      %vm725 = vmor %vm723, %vm724
      %v726 = vsel %vm725, %v717, %v722
      %v727 = vrsqrt.pop %v701
      %v728 = vmul.f32 %v727, %v701
      %v729 = vmul.f32 %v728, %v727
      %v730 = vmul.f32 0.5, %v729
      %v731 = vsub.f32 1.5, %v730
      %v732 = vmul.f32 %v727, %v731
      %vm733 = vweird.f32 %v701
      %vm734 = vweird.f32 %v727
      %vm735 = vmor %vm733, %vm734
      %v736 = vsel %vm735, %v727, %v732
      %v737 = vrsqrt.pop %v702
      %v738 = vmul.f32 %v737, %v702
      %v739 = vmul.f32 %v738, %v737
      %v740 = vmul.f32 0.5, %v739
      %v741 = vsub.f32 1.5, %v740
      %v742 = vmul.f32 %v737, %v741
      %vm743 = vweird.f32 %v702
      %vm744 = vweird.f32 %v737
      %vm745 = vmor %vm743, %vm744
      %v746 = vsel %vm745, %v737, %v742
      %v747 = vrsqrt.pop %v703
      %v748 = vmul.f32 %v747, %v703
      %v749 = vmul.f32 %v748, %v747
      %v750 = vmul.f32 0.5, %v749
      %v751 = vsub.f32 1.5, %v750
      %v752 = vmul.f32 %v747, %v751
      %vm753 = vweird.f32 %v703
      %vm754 = vweird.f32 %v747
      %vm755 = vmor %vm753, %vm754
      %v756 = vsel %vm755, %v747, %v752
      %v757 = vrsqrt.pop %v704
      %v758 = vmul.f32 %v757, %v704
      %v759 = vmul.f32 %v758, %v757
      %v760 = vmul.f32 0.5, %v759
      %v761 = vsub.f32 1.5, %v760
      %v762 = vmul.f32 %v757, %v761
      %vm763 = vweird.f32 %v704
      %vm764 = vweird.f32 %v757
      %vm765 = vmor %vm763, %vm764
      %v766 = vsel %vm765, %v757, %v762
      %v767 = vrsqrt.pop %v705
      %v768 = vmul.f32 %v767, %v705
      %v769 = vmul.f32 %v768, %v767
      %v770 = vmul.f32 0.5, %v769
      %v771 = vsub.f32 1.5, %v770
      %v772 = vmul.f32 %v767, %v771
      %vm773 = vweird.f32 %v705
      %vm774 = vweird.f32 %v767
      %vm775 = vmor %vm773, %vm774
      %v776 = vsel %vm775, %v767, %v772
      %v777 = vrsqrt.pop %v706
      %v778 = vmul.f32 %v777, %v706
      %v779 = vmul.f32 %v778, %v777
      %v780 = vmul.f32 0.5, %v779
      %v781 = vsub.f32 1.5, %v780
      %v782 = vmul.f32 %v777, %v781
      %vm783 = vweird.f32 %v706
      %vm784 = vweird.f32 %v777
      %vm785 = vmor %vm783, %vm784
      %v786 = vsel %vm785, %v777, %v782
      %v787 = vmul.f32 %v651, %v716
      %v788 = vmul.f32 %v652, %v726
      %v789 = vmul.f32 %v653, %v736
      %v790 = vmul.f32 %v654, %v746
      %v791 = vmul.f32 %v655, %v756
      %v792 = vmul.f32 %v656, %v766
      %v793 = vmul.f32 %v657, %v776
      %v794 = vmul.f32 %v658, %v786
      %v795 = vld [vmem:[%s1] sm:$0x1]
      %v797 = vperm.slane %v795, 0
      %v799 = vmul.f32 %v787, %v797
      %v800 = vmul.f32 %v788, %v797
      %v801 = vmul.f32 %v789, %v797
      %v802 = vmul.f32 %v790, %v797
      %v803 = vmul.f32 %v791, %v797
      %v804 = vmul.f32 %v792, %v797
      %v805 = vmul.f32 %v793, %v797
      %v806 = vmul.f32 %v794, %v797
      %v807 = vld [vmem:[%s2] sm:$0x1]
      %v809 = vperm.slane %v807, 0
      %v811 = vadd.f32 %v799, %v809
      %v812 = vadd.f32 %v800, %v809
      %v813 = vadd.f32 %v801, %v809
      %v814 = vadd.f32 %v802, %v809
      %v815 = vadd.f32 %v803, %v809
      %v816 = vadd.f32 %v804, %v809
      %v817 = vadd.f32 %v805, %v809
      %v818 = vadd.f32 %v806, %v809
      %v819 = vld [vmem:[%s3] sm:$0xff]
      %v820 = vld [vmem:[%s3 + $0x8] sm:$0xff]
      %v821 = vld [vmem:[%s3 + $0x10] sm:$0xff]
      %v822 = vld [vmem:[%s3 + $0x18] sm:$0xff]
      %v823 = vld [vmem:[%s4] sm:$0x1]
      %v825 = vperm.slane %v823, 0
      %v828 = vsel %vm611, %v811, 0
      %v831 = vsel %vm611, %v812, 0
      %v834 = vsel %vm611, %v813, 0
      %v837 = vsel %vm611, %v814, 0
      %v840 = vsel %vm611, %v815, 0
      %v843 = vsel %vm611, %v816, 0
      %v846 = vsel %vm611, %v817, 0
      %v849 = vsel %vm611, %v818, 0
      %851 = vmatpush.msra.mxu0 0.0
      %852 = vmatpush.msra.mxu0 0.0
      %853 = vmatpush.msra.mxu0 0.0
      %854 = vmatpush.msra.mxu0 0.0
      %855 = vmatpush.msra.mxu0 0.0
      %856 = vmatpush.msra.mxu0 0.0
      %857 = vmatpush.msra.mxu0 0.0
      %858 = vmatpush.msra.mxu0 0.0
      %859 = vmatpush.msra.mxu0 0.0
      %860 = vmatpush.msra.mxu0 0.0
      %861 = vmatpush.msra.mxu0 0.0
      %862 = vmatpush.msra.mxu0 0.0
      %863 = vmatpush.msra.mxu0 %v822
      %864 = vmatpush.msra.mxu0 %v821
      %865 = vmatpush.msra.mxu0 %v820
      %866 = vmatpush.msra.mxu0 %v819
      %867 = vmatmul.f32.gmra.mxu0 %v828
      %v868 = vpop.f32.mrf.mxu0
      %v869 = vadd.f32 %v825, %v868
      %870 = vmatmul.f32.gmra.mxu0 %v831
      %v871 = vpop.f32.mrf.mxu0
      %v872 = vadd.f32 %v825, %v871
      %873 = vmatmul.f32.gmra.mxu0 %v834
      %v874 = vpop.f32.mrf.mxu0
      %v875 = vadd.f32 %v825, %v874
      %876 = vmatmul.f32.gmra.mxu0 %v837
      %v877 = vpop.f32.mrf.mxu0
      %v878 = vadd.f32 %v825, %v877
      %879 = vmatmul.f32.gmra.mxu0 %v840
      %v880 = vpop.f32.mrf.mxu0
      %v881 = vadd.f32 %v825, %v880
      %882 = vmatmul.f32.gmra.mxu0 %v843
      %v883 = vpop.f32.mrf.mxu0
      %v884 = vadd.f32 %v825, %v883
      %885 = vmatmul.f32.gmra.mxu0 %v846
      %v886 = vpop.f32.mrf.mxu0
      %v887 = vadd.f32 %v825, %v886
      %888 = vmatmul.f32.gmra.mxu0 %v849
      %v889 = vpop.f32.mrf.mxu0
      %v890 = vadd.f32 %v825, %v889
      %891 = vdwg.mxu0
      %vm892 = vcmask 523264
      %893 = vst.msk [vmem:[#allocation2] sm:$0xff] %vm892, 0.0
      %vm894 = vcmask 517120
      %895 = vst.msk [vmem:[#allocation2 + $0x8] sm:$0x3] %vm894, 0.0
      %896 = vst.msk [vmem:[#allocation2 + $0x10] sm:$0xff] %vm892, 0.0
      %897 = vst.msk [vmem:[#allocation2 + $0x18] sm:$0x3] %vm894, 0.0
      %898 = vst.msk [vmem:[#allocation2 + $0x20] sm:$0xff] %vm892, 0.0
      %899 = vst.msk [vmem:[#allocation2 + $0x28] sm:$0x3] %vm894, 0.0
      %900 = vst.msk [vmem:[#allocation2 + $0x30] sm:$0xff] %vm892, 0.0
      %901 = vst.msk [vmem:[#allocation2 + $0x38] sm:$0x3] %vm894, 0.0
      %902 = vst.msk [vmem:[#allocation2 + $0x40] sm:$0xff] %vm892, 0.0
      %903 = vst.msk [vmem:[#allocation2 + $0x48] sm:$0x3] %vm894, 0.0
      %904 = vst.msk [vmem:[#allocation2 + $0x50] sm:$0xff] %vm892, 0.0
      %905 = vst.msk [vmem:[#allocation2 + $0x58] sm:$0x3] %vm894, 0.0
      %906 = vst.msk [vmem:[#allocation2 + $0x60] sm:$0xff] %vm892, 0.0
      %907 = vst.msk [vmem:[#allocation2 + $0x68] sm:$0x3] %vm894, 0.0
      %908 = vst.msk [vmem:[#allocation2 + $0x70] sm:$0xff] %vm892, 0.0
      %909 = vst.msk [vmem:[#allocation2 + $0x78] sm:$0x3] %vm894, 0.0
      %910 = vst.msk [vmem:[#allocation2 + $0x80] sm:$0xff] %vm892, 0.0
      %911 = vst.msk [vmem:[#allocation2 + $0x88] sm:$0x3] %vm894, 0.0
      %912 = vst.msk [vmem:[#allocation2 + $0x90] sm:$0xff] %vm892, 0.0
      %913 = vst.msk [vmem:[#allocation2 + $0x98] sm:$0x3] %vm894, 0.0
      %s914 = scalar_lea.vmem [#allocation2], 16
      %915 = vst.msk [vmem:[%s914 + $0x1] sm:$0xff] %vm892, %v869
      %916 = vst.msk [vmem:[%s914 + $0x11] sm:$0xff] %vm892, %v872
      %917 = vst.msk [vmem:[%s914 + $0x21] sm:$0xff] %vm892, %v875
      %918 = vst.msk [vmem:[%s914 + $0x31] sm:$0xff] %vm892, %v878
      %919 = vst.msk [vmem:[%s914 + $0x41] sm:$0xff] %vm892, %v881
      %920 = vst.msk [vmem:[%s914 + $0x51] sm:$0xff] %vm892, %v884
      %921 = vst.msk [vmem:[%s914 + $0x61] sm:$0xff] %vm892, %v887
      %922 = vst.msk [vmem:[%s914 + $0x71] sm:$0xff] %vm892, %v890
      %v923 = vld [vmem:[#allocation2] sm:$0xff]
      %v924 = vld [vmem:[#allocation2 + $0x10] sm:$0xff]
      %v925 = vld [vmem:[#allocation2 + $0x20] sm:$0xff]
      %v926 = vld [vmem:[#allocation2 + $0x30] sm:$0xff]
      %v927 = vld [vmem:[#allocation2 + $0x40] sm:$0xff]
      %v928 = vld [vmem:[#allocation2 + $0x50] sm:$0xff]
      %v929 = vld [vmem:[#allocation2 + $0x60] sm:$0xff]
      %v930 = vld [vmem:[#allocation2 + $0x70] sm:$0xff]
      %v931 = vld [vmem:[%s5] sm:$0x1]
      %v932 = vperm.slane %v931, 0
      %v933 = vmul.f32 %v923, %v932
      %v934 = vmul.f32 %v924, %v932
      %v935 = vmul.f32 %v925, %v932
      %v936 = vmul.f32 %v926, %v932
      %v937 = vmul.f32 %v927, %v932
      %v938 = vmul.f32 %v928, %v932
      %v939 = vmul.f32 %v929, %v932
      %v940 = vmul.f32 %v930, %v932
      %v941 = vadd.f32 %v933, 0.0
      %v942 = vadd.f32 %v934, 0.0
      %v943 = vadd.f32 %v935, 0.0
      %v944 = vadd.f32 %v936, 0.0
      %v945 = vadd.f32 %v937, 0.0
      %v946 = vadd.f32 %v938, 0.0
      %v947 = vadd.f32 %v939, 0.0
      %v948 = vadd.f32 %v940, 0.0
      %v949 = vld [vmem:[#allocation2 + $0x1] sm:$0xff]
      %v950 = vld [vmem:[#allocation2 + $0x11] sm:$0xff]
      %v951 = vld [vmem:[#allocation2 + $0x21] sm:$0xff]
      %v952 = vld [vmem:[#allocation2 + $0x31] sm:$0xff]
      %v953 = vld [vmem:[#allocation2 + $0x41] sm:$0xff]
      %v954 = vld [vmem:[#allocation2 + $0x51] sm:$0xff]
      %v955 = vld [vmem:[#allocation2 + $0x61] sm:$0xff]
      %v956 = vld [vmem:[#allocation2 + $0x71] sm:$0xff]
      %v957 = vld [vmem:[%s5 + $0x1] sm:$0x1]
      %v958 = vperm.slane %v957, 0
      %v959 = vmul.f32 %v949, %v958
      %v960 = vmul.f32 %v950, %v958
      %v961 = vmul.f32 %v951, %v958
      %v962 = vmul.f32 %v952, %v958
      %v963 = vmul.f32 %v953, %v958
      %v964 = vmul.f32 %v954, %v958
      %v965 = vmul.f32 %v955, %v958
      %v966 = vmul.f32 %v956, %v958
      %v967 = vadd.f32 %v941, %v959
      %v968 = vadd.f32 %v942, %v960
      %v969 = vadd.f32 %v943, %v961
      %v970 = vadd.f32 %v944, %v962
      %v971 = vadd.f32 %v945, %v963
      %v972 = vadd.f32 %v946, %v964
      %v973 = vadd.f32 %v947, %v965
      %v974 = vadd.f32 %v948, %v966
      %v975 = vld [vmem:[#allocation2 + $0x2] sm:$0xff]
      %v976 = vld [vmem:[#allocation2 + $0x12] sm:$0xff]
      %v977 = vld [vmem:[#allocation2 + $0x22] sm:$0xff]
      %v978 = vld [vmem:[#allocation2 + $0x32] sm:$0xff]
      %v979 = vld [vmem:[#allocation2 + $0x42] sm:$0xff]
      %v980 = vld [vmem:[#allocation2 + $0x52] sm:$0xff]
      %v981 = vld [vmem:[#allocation2 + $0x62] sm:$0xff]
      %v982 = vld [vmem:[#allocation2 + $0x72] sm:$0xff]
      %v983 = vld [vmem:[%s5 + $0x2] sm:$0x1]
      %v984 = vperm.slane %v983, 0
      %v985 = vmul.f32 %v975, %v984
      %v986 = vmul.f32 %v976, %v984
      %v987 = vmul.f32 %v977, %v984
      %v988 = vmul.f32 %v978, %v984
      %v989 = vmul.f32 %v979, %v984
      %v990 = vmul.f32 %v980, %v984
      %v991 = vmul.f32 %v981, %v984
      %v992 = vmul.f32 %v982, %v984
      %v993 = vadd.f32 %v967, %v985
      %v994 = vadd.f32 %v968, %v986
      %v995 = vadd.f32 %v969, %v987
      %v996 = vadd.f32 %v970, %v988
      %v997 = vadd.f32 %v971, %v989
      %v998 = vadd.f32 %v972, %v990
      %v999 = vadd.f32 %v973, %v991
      %v1000 = vadd.f32 %v974, %v992
      %v1001 = vld [vmem:[%s914] sm:$0xff]
      %v1002 = vld [vmem:[%s914 + $0x10] sm:$0xff]
      %v1003 = vld [vmem:[%s914 + $0x20] sm:$0xff]
      %v1004 = vld [vmem:[%s914 + $0x30] sm:$0xff]
      %v1005 = vld [vmem:[%s914 + $0x40] sm:$0xff]
      %v1006 = vld [vmem:[%s914 + $0x50] sm:$0xff]
      %v1007 = vld [vmem:[%s914 + $0x60] sm:$0xff]
      %v1008 = vld [vmem:[%s914 + $0x70] sm:$0xff]
      %v1009 = vld [vmem:[%s5 + $0x3] sm:$0x1]
      %v1010 = vperm.slane %v1009, 0
      %v1011 = vmul.f32 %v1001, %v1010
      %v1012 = vmul.f32 %v1002, %v1010
      %v1013 = vmul.f32 %v1003, %v1010
      %v1014 = vmul.f32 %v1004, %v1010
      %v1015 = vmul.f32 %v1005, %v1010
      %v1016 = vmul.f32 %v1006, %v1010
      %v1017 = vmul.f32 %v1007, %v1010
      %v1018 = vmul.f32 %v1008, %v1010
      %v1019 = vadd.f32 %v993, %v1011
      %v1020 = vadd.f32 %v994, %v1012
      %v1021 = vadd.f32 %v995, %v1013
      %v1022 = vadd.f32 %v996, %v1014
      %v1023 = vadd.f32 %v997, %v1015
      %v1024 = vadd.f32 %v998, %v1016
      %v1025 = vadd.f32 %v999, %v1017
      %v1026 = vadd.f32 %v1000, %v1018
      %v1027 = vld [vmem:[%s914 + $0x1] sm:$0xff]
      %v1028 = vld [vmem:[%s914 + $0x11] sm:$0xff]
      %v1029 = vld [vmem:[%s914 + $0x21] sm:$0xff]
      %v1030 = vld [vmem:[%s914 + $0x31] sm:$0xff]
      %v1031 = vld [vmem:[%s914 + $0x41] sm:$0xff]
      %v1032 = vld [vmem:[%s914 + $0x51] sm:$0xff]
      %v1033 = vld [vmem:[%s914 + $0x61] sm:$0xff]
      %v1034 = vld [vmem:[%s914 + $0x71] sm:$0xff]
      %v1035 = vld [vmem:[%s5 + $0x4] sm:$0x1]
      %v1036 = vperm.slane %v1035, 0
      %v1037 = vmul.f32 %v1027, %v1036
      %v1038 = vmul.f32 %v1028, %v1036
      %v1039 = vmul.f32 %v1029, %v1036
      %v1040 = vmul.f32 %v1030, %v1036
      %v1041 = vmul.f32 %v1031, %v1036
      %v1042 = vmul.f32 %v1032, %v1036
      %v1043 = vmul.f32 %v1033, %v1036
      %v1044 = vmul.f32 %v1034, %v1036
      %v1045 = vadd.f32 %v1019, %v1037
      %v1046 = vadd.f32 %v1020, %v1038
      %v1047 = vadd.f32 %v1021, %v1039
      %v1048 = vadd.f32 %v1022, %v1040
      %v1049 = vadd.f32 %v1023, %v1041
      %v1050 = vadd.f32 %v1024, %v1042
      %v1051 = vadd.f32 %v1025, %v1043
      %v1052 = vadd.f32 %v1026, %v1044
      %v1053 = vld [vmem:[%s914 + $0x2] sm:$0xff]
      %v1054 = vld [vmem:[%s914 + $0x12] sm:$0xff]
      %v1055 = vld [vmem:[%s914 + $0x22] sm:$0xff]
      %v1056 = vld [vmem:[%s914 + $0x32] sm:$0xff]
      %v1057 = vld [vmem:[%s914 + $0x42] sm:$0xff]
      %v1058 = vld [vmem:[%s914 + $0x52] sm:$0xff]
      %v1059 = vld [vmem:[%s914 + $0x62] sm:$0xff]
      %v1060 = vld [vmem:[%s914 + $0x72] sm:$0xff]
      %v1061 = vld [vmem:[%s5 + $0x5] sm:$0x1]
      %v1062 = vperm.slane %v1061, 0
      %v1063 = vmul.f32 %v1053, %v1062
      %v1064 = vmul.f32 %v1054, %v1062
      %v1065 = vmul.f32 %v1055, %v1062
      %v1066 = vmul.f32 %v1056, %v1062
      %v1067 = vmul.f32 %v1057, %v1062
      %v1068 = vmul.f32 %v1058, %v1062
      %v1069 = vmul.f32 %v1059, %v1062
      %v1070 = vmul.f32 %v1060, %v1062
      %v1071 = vadd.f32 %v1045, %v1063
      %v1072 = vadd.f32 %v1046, %v1064
      %v1073 = vadd.f32 %v1047, %v1065
      %v1074 = vadd.f32 %v1048, %v1066
      %v1075 = vadd.f32 %v1049, %v1067
      %v1076 = vadd.f32 %v1050, %v1068
      %v1077 = vadd.f32 %v1051, %v1069
      %v1078 = vadd.f32 %v1052, %v1070
      %s1079 = scalar_lea.vmem [#allocation2], 32
      %v1080 = vld [vmem:[%s1079] sm:$0xff]
      %v1081 = vld [vmem:[%s1079 + $0x10] sm:$0xff]
      %v1082 = vld [vmem:[%s1079 + $0x20] sm:$0xff]
      %v1083 = vld [vmem:[%s1079 + $0x30] sm:$0xff]
      %v1084 = vld [vmem:[%s1079 + $0x40] sm:$0xff]
      %v1085 = vld [vmem:[%s1079 + $0x50] sm:$0xff]
      %v1086 = vld [vmem:[%s1079 + $0x60] sm:$0xff]
      %v1087 = vld [vmem:[%s1079 + $0x70] sm:$0xff]
      %v1088 = vld [vmem:[%s5 + $0x6] sm:$0x1]
      %v1089 = vperm.slane %v1088, 0
      %v1090 = vmul.f32 %v1080, %v1089
      %v1091 = vmul.f32 %v1081, %v1089
      %v1092 = vmul.f32 %v1082, %v1089
      %v1093 = vmul.f32 %v1083, %v1089
      %v1094 = vmul.f32 %v1084, %v1089
      %v1095 = vmul.f32 %v1085, %v1089
      %v1096 = vmul.f32 %v1086, %v1089
      %v1097 = vmul.f32 %v1087, %v1089
      %v1098 = vadd.f32 %v1071, %v1090
      %v1099 = vadd.f32 %v1072, %v1091
      %v1100 = vadd.f32 %v1073, %v1092
      %v1101 = vadd.f32 %v1074, %v1093
      %v1102 = vadd.f32 %v1075, %v1094
      %v1103 = vadd.f32 %v1076, %v1095
      %v1104 = vadd.f32 %v1077, %v1096
      %v1105 = vadd.f32 %v1078, %v1097
      %v1106 = vld [vmem:[%s1079 + $0x1] sm:$0xff]
      %v1107 = vld [vmem:[%s1079 + $0x11] sm:$0xff]
      %v1108 = vld [vmem:[%s1079 + $0x21] sm:$0xff]
      %v1109 = vld [vmem:[%s1079 + $0x31] sm:$0xff]
      %v1110 = vld [vmem:[%s1079 + $0x41] sm:$0xff]
      %v1111 = vld [vmem:[%s1079 + $0x51] sm:$0xff]
      %v1112 = vld [vmem:[%s1079 + $0x61] sm:$0xff]
      %v1113 = vld [vmem:[%s1079 + $0x71] sm:$0xff]
      %v1114 = vld [vmem:[%s5 + $0x7] sm:$0x1]
      %v1115 = vperm.slane %v1114, 0
      %v1116 = vmul.f32 %v1106, %v1115
      %v1117 = vmul.f32 %v1107, %v1115
      %v1118 = vmul.f32 %v1108, %v1115
      %v1119 = vmul.f32 %v1109, %v1115
      %v1120 = vmul.f32 %v1110, %v1115
      %v1121 = vmul.f32 %v1111, %v1115
      %v1122 = vmul.f32 %v1112, %v1115
      %v1123 = vmul.f32 %v1113, %v1115
      %v1124 = vadd.f32 %v1098, %v1116
      %v1125 = vadd.f32 %v1099, %v1117
      %v1126 = vadd.f32 %v1100, %v1118
      %v1127 = vadd.f32 %v1101, %v1119
      %v1128 = vadd.f32 %v1102, %v1120
      %v1129 = vadd.f32 %v1103, %v1121
      %v1130 = vadd.f32 %v1104, %v1122
      %v1131 = vadd.f32 %v1105, %v1123
      %v1132 = vld [vmem:[%s1079 + $0x2] sm:$0xff]
      %v1133 = vld [vmem:[%s1079 + $0x12] sm:$0xff]
      %v1134 = vld [vmem:[%s1079 + $0x22] sm:$0xff]
      %v1135 = vld [vmem:[%s1079 + $0x32] sm:$0xff]
      %v1136 = vld [vmem:[%s1079 + $0x42] sm:$0xff]
      %v1137 = vld [vmem:[%s1079 + $0x52] sm:$0xff]
      %v1138 = vld [vmem:[%s1079 + $0x62] sm:$0xff]
      %v1139 = vld [vmem:[%s1079 + $0x72] sm:$0xff]
      %v1140 = vld [vmem:[%s5 + $0x8] sm:$0x1]
      %v1141 = vperm.slane %v1140, 0
      %v1142 = vmul.f32 %v1132, %v1141
      %v1143 = vmul.f32 %v1133, %v1141
      %v1144 = vmul.f32 %v1134, %v1141
      %v1145 = vmul.f32 %v1135, %v1141
      %v1146 = vmul.f32 %v1136, %v1141
      %v1147 = vmul.f32 %v1137, %v1141
      %v1148 = vmul.f32 %v1138, %v1141
      %v1149 = vmul.f32 %v1139, %v1141
      %v1150 = vadd.f32 %v1124, %v1142
      %v1151 = vadd.f32 %v1125, %v1143
      %v1152 = vadd.f32 %v1126, %v1144
      %v1153 = vadd.f32 %v1127, %v1145
      %v1154 = vadd.f32 %v1128, %v1146
      %v1155 = vadd.f32 %v1129, %v1147
      %v1156 = vadd.f32 %v1130, %v1148
      %v1157 = vadd.f32 %v1131, %v1149
      %v1158 = vld [vmem:[%s6] sm:$0x1]
      %v1160 = vperm.slane %v1158, 0
      %v1162 = vadd.f32 %v1150, %v1160
      %v1163 = vadd.f32 %v1151, %v1160
      %v1164 = vadd.f32 %v1152, %v1160
      %v1165 = vadd.f32 %v1153, %v1160
      %v1166 = vadd.f32 %v1154, %v1160
      %v1167 = vadd.f32 %v1155, %v1160
      %v1168 = vadd.f32 %v1156, %v1160
      %v1169 = vadd.f32 %v1157, %v1160
      %1178 = vrot.lane.b32.xlu0 %v1162, 96
      %v1179 = vpop.permute.xlu0 %1178
      %1180 = vrot.lane.b32.xlu0 %v1163, 96
      %v1181 = vpop.permute.xlu0 %1180
      %1182 = vrot.lane.b32.xlu0 %v1164, 96
      %v1183 = vpop.permute.xlu0 %1182
      %1184 = vrot.lane.b32.xlu0 %v1165, 96
      %v1185 = vpop.permute.xlu0 %1184
      %1186 = vrot.lane.b32.xlu0 %v1166, 96
      %v1187 = vpop.permute.xlu0 %1186
      %1188 = vrot.lane.b32.xlu0 %v1167, 96
      %v1189 = vpop.permute.xlu0 %1188
      %1190 = vrot.lane.b32.xlu0 %v1168, 96
      %v1191 = vpop.permute.xlu0 %1190
      %1192 = vrot.lane.b32.xlu0 %v1169, 96
      %v1193 = vpop.permute.xlu0 %1192
      %v1202 = vmul.f32 %v1162, %v1179
      %v1203 = vmul.f32 %v1163, %v1181
      %v1204 = vmul.f32 %v1164, %v1183
      %v1205 = vmul.f32 %v1165, %v1185
      %v1206 = vmul.f32 %v1166, %v1187
      %v1207 = vmul.f32 %v1167, %v1189
      %v1208 = vmul.f32 %v1168, %v1191
      %v1209 = vmul.f32 %v1169, %v1193
      %v1210 = vsel %vm611, %v1202, 0.0
      %v1211 = vsel %vm611, %v1203, 0.0
      %v1212 = vadd.f32 %v1210, %v1211
      %v1213 = vsel %vm611, %v1204, 0.0
      %v1214 = vadd.f32 %v1212, %v1213
      %v1215 = vsel %vm611, %v1205, 0.0
      %v1216 = vadd.f32 %v1214, %v1215
      %v1217 = vsel %vm611, %v1206, 0.0
      %v1218 = vadd.f32 %v1216, %v1217
      %v1219 = vsel %vm611, %v1207, 0.0
      %v1220 = vadd.f32 %v1218, %v1219
      %v1221 = vsel %vm611, %v1208, 0.0
      %v1222 = vadd.f32 %v1220, %v1221
      %v1223 = vsel %vm611, %v1209, 0.0
      %v1224 = vadd.f32 %v1222, %v1223
      %v1225 = vrot.slane %v1224, 4
      %v1226 = vadd.f32 %v1224, %v1225
      %v1227 = vrot.slane %v1226, 2
      %v1228 = vadd.f32 %v1226, %v1227
      %v1229 = vrot.slane %v1228, 1
      %v1230 = vadd.f32 %v1228, %v1229
      %v1231 = vrcp.pop 64.0
      %v1232 = vmul.f32 64.0, %v1231
      %v1233 = vsub.f32 1.0, %v1232
      %v1234 = vmul.f32 %v1231, %v1233
      %v1235 = vadd.f32 %v1231, %v1234
      %vm1236 = vweird.f32 %v1231
      %v1237 = vsel %vm1236, %v1231, %v1235
      %v1238 = vmul.f32 %v1230, %v1237
      %v1239 = vld [vmem:[%s7] sm:$0xff]
      %v1240 = vld [vmem:[%s7 + $0x8] sm:$0xff]
      %v1241 = vld [vmem:[%s7 + $0x10] sm:$0xff]
      %v1242 = vld [vmem:[%s7 + $0x18] sm:$0xff]
      %v1243 = vld [vmem:[%s8] sm:$0x1]
      %v1245 = vsel %vm611, %v1238, 0
      %1247 = vmatpush.msra.mxu0 0.0
      %1248 = vmatpush.msra.mxu0 0.0
      %1249 = vmatpush.msra.mxu0 0.0
      %1250 = vmatpush.msra.mxu0 0.0
      %1251 = vmatpush.msra.mxu0 0.0
      %1252 = vmatpush.msra.mxu0 0.0
      %1253 = vmatpush.msra.mxu0 0.0
      %1254 = vmatpush.msra.mxu0 0.0
      %1255 = vmatpush.msra.mxu0 0.0
      %1256 = vmatpush.msra.mxu0 0.0
      %1257 = vmatpush.msra.mxu0 0.0
      %1258 = vmatpush.msra.mxu0 0.0
      %1259 = vmatpush.msra.mxu0 %v1242
      %1260 = vmatpush.msra.mxu0 %v1241
      %1261 = vmatpush.msra.mxu0 %v1240
      %1262 = vmatpush.msra.mxu0 %v1239
      %1263 = vmatmul.f32.gmra.mxu0 %v1245
      %v1264 = vpop.f32.mrf.mxu0
      %v1265 = vadd.f32 %v1243, %v1264
      %1266 = vdwg.mxu0
      %v1267 = vperm.slane %v1265, 0
      %v1268 = vmul.f32 %v1202, %v1267
      %v1269 = vmul.f32 %v1203, %v1267
      %v1270 = vmul.f32 %v1204, %v1267
      %v1271 = vmul.f32 %v1205, %v1267
      %v1272 = vmul.f32 %v1206, %v1267
      %v1273 = vmul.f32 %v1207, %v1267
      %v1274 = vmul.f32 %v1208, %v1267
      %v1275 = vmul.f32 %v1209, %v1267
      %v1276 = vld [vmem:[%s9] sm:$0xff]
      %v1277 = vld [vmem:[%s9 + $0x8] sm:$0xff]
      %v1278 = vld [vmem:[%s9 + $0x10] sm:$0xff]
      %v1279 = vld [vmem:[%s9 + $0x18] sm:$0xff]
      %v1280 = vld [vmem:[%s10] sm:$0x1]
      %v1282 = vperm.slane %v1280, 0
      %v1285 = vsel %vm611, %v1268, 0
      %v1288 = vsel %vm611, %v1269, 0
      %v1291 = vsel %vm611, %v1270, 0
      %v1294 = vsel %vm611, %v1271, 0
      %v1297 = vsel %vm611, %v1272, 0
      %v1300 = vsel %vm611, %v1273, 0
      %v1303 = vsel %vm611, %v1274, 0
      %v1306 = vsel %vm611, %v1275, 0
      %1308 = vmatpush.msra.mxu0 0.0
      %1309 = vmatpush.msra.mxu0 0.0
      %1310 = vmatpush.msra.mxu0 0.0
      %1311 = vmatpush.msra.mxu0 0.0
      %1312 = vmatpush.msra.mxu0 0.0
      %1313 = vmatpush.msra.mxu0 0.0
      %1314 = vmatpush.msra.mxu0 0.0
      %1315 = vmatpush.msra.mxu0 0.0
      %1316 = vmatpush.msra.mxu0 0.0
      %1317 = vmatpush.msra.mxu0 0.0
      %1318 = vmatpush.msra.mxu0 0.0
      %1319 = vmatpush.msra.mxu0 0.0
      %1320 = vmatpush.msra.mxu0 %v1279
      %1321 = vmatpush.msra.mxu0 %v1278
      %1322 = vmatpush.msra.mxu0 %v1277
      %1323 = vmatpush.msra.mxu0 %v1276
      %1324 = vmatmul.f32.gmra.mxu0 %v1285
      %v1325 = vpop.f32.mrf.mxu0
      %v1326 = vadd.f32 %v1282, %v1325
      %1327 = vmatmul.f32.gmra.mxu0 %v1288
      %v1328 = vpop.f32.mrf.mxu0
      %v1329 = vadd.f32 %v1282, %v1328
      %1330 = vmatmul.f32.gmra.mxu0 %v1291
      %v1331 = vpop.f32.mrf.mxu0
      %v1332 = vadd.f32 %v1282, %v1331
      %1333 = vmatmul.f32.gmra.mxu0 %v1294
      %v1334 = vpop.f32.mrf.mxu0
      %v1335 = vadd.f32 %v1282, %v1334
      %1336 = vmatmul.f32.gmra.mxu0 %v1297
      %v1337 = vpop.f32.mrf.mxu0
      %v1338 = vadd.f32 %v1282, %v1337
      %1339 = vmatmul.f32.gmra.mxu0 %v1300
      %v1340 = vpop.f32.mrf.mxu0
      %v1341 = vadd.f32 %v1282, %v1340
      %1342 = vmatmul.f32.gmra.mxu0 %v1303
      %v1343 = vpop.f32.mrf.mxu0
      %v1344 = vadd.f32 %v1282, %v1343
      %1345 = vmatmul.f32.gmra.mxu0 %v1306
      %v1346 = vpop.f32.mrf.mxu0
      %v1347 = vadd.f32 %v1282, %v1346
      %1348 = vdwg.mxu0
      %v1349 = vld [vmem:[%s11] sm:$0x1]
      %v1351 = vperm.slane %v1349, 0
      %v1353 = vmul.f32 %v1326, %v1351
      %v1354 = vmul.f32 %v1329, %v1351
      %v1355 = vmul.f32 %v1332, %v1351
      %v1356 = vmul.f32 %v1335, %v1351
      %v1357 = vmul.f32 %v1338, %v1351
      %v1358 = vmul.f32 %v1341, %v1351
      %v1359 = vmul.f32 %v1344, %v1351
      %v1360 = vmul.f32 %v1347, %v1351
      %v1361 = vadd.f32 %v603, %v1353
      %v1362 = vadd.f32 %v604, %v1354
      %v1363 = vadd.f32 %v605, %v1355
      %v1364 = vadd.f32 %v606, %v1356
      %v1365 = vadd.f32 %v607, %v1357
      %v1366 = vadd.f32 %v608, %v1358
      %v1367 = vadd.f32 %v609, %v1359
      %v1368 = vadd.f32 %v610, %v1360
      %v1369 = vsel %vm611, %v1361, 0.0
      %1370 = vadd.xlane.f32.xlu0 %v1369
      %v1371 = vpop.xlane.xlu0 %1370
      %v1372 = vsel %vm611, %v1362, 0.0
      %1373 = vadd.xlane.f32.xlu0 %v1372
      %v1374 = vpop.xlane.xlu0 %1373
      %v1375 = vsel %vm611, %v1363, 0.0
      %1376 = vadd.xlane.f32.xlu0 %v1375
      %v1377 = vpop.xlane.xlu0 %1376
      %v1378 = vsel %vm611, %v1364, 0.0
      %1379 = vadd.xlane.f32.xlu0 %v1378
      %v1380 = vpop.xlane.xlu0 %1379
      %v1381 = vsel %vm611, %v1365, 0.0
      %1382 = vadd.xlane.f32.xlu0 %v1381
      %v1383 = vpop.xlane.xlu0 %1382
      %v1384 = vsel %vm611, %v1366, 0.0
      %1385 = vadd.xlane.f32.xlu0 %v1384
      %v1386 = vpop.xlane.xlu0 %1385
      %v1387 = vsel %vm611, %v1367, 0.0
      %1388 = vadd.xlane.f32.xlu0 %v1387
      %v1389 = vpop.xlane.xlu0 %1388
      %v1390 = vsel %vm611, %v1368, 0.0
      %1391 = vadd.xlane.f32.xlu0 %v1390
      %v1392 = vpop.xlane.xlu0 %1391
      %v1393 = vmul.f32 %v1371, %v642
      %v1394 = vmul.f32 %v1374, %v642
      %v1395 = vmul.f32 %v1377, %v642
      %v1396 = vmul.f32 %v1380, %v642
      %v1397 = vmul.f32 %v1383, %v642
      %v1398 = vmul.f32 %v1386, %v642
      %v1399 = vmul.f32 %v1389, %v642
      %v1400 = vmul.f32 %v1392, %v642
      %v1401 = vsub.f32 %v1361, %v1393
      %v1402 = vsub.f32 %v1362, %v1394
      %v1403 = vsub.f32 %v1363, %v1395
      %v1404 = vsub.f32 %v1364, %v1396
      %v1405 = vsub.f32 %v1365, %v1397
      %v1406 = vsub.f32 %v1366, %v1398
      %v1407 = vsub.f32 %v1367, %v1399
      %v1408 = vsub.f32 %v1368, %v1400
      %v1409 = vmul.f32 %v1401, %v1401
      %v1410 = vmul.f32 %v1402, %v1402
      %v1411 = vmul.f32 %v1403, %v1403
      %v1412 = vmul.f32 %v1404, %v1404
      %v1413 = vmul.f32 %v1405, %v1405
      %v1414 = vmul.f32 %v1406, %v1406
      %v1415 = vmul.f32 %v1407, %v1407
      %v1416 = vmul.f32 %v1408, %v1408
      %v1417 = vsel %vm611, %v1409, 0.0
      %1418 = vadd.xlane.f32.xlu0 %v1417
      %v1419 = vpop.xlane.xlu0 %1418
      %v1420 = vsel %vm611, %v1410, 0.0
      %1421 = vadd.xlane.f32.xlu0 %v1420
      %v1422 = vpop.xlane.xlu0 %1421
      %v1423 = vsel %vm611, %v1411, 0.0
      %1424 = vadd.xlane.f32.xlu0 %v1423
      %v1425 = vpop.xlane.xlu0 %1424
      %v1426 = vsel %vm611, %v1412, 0.0
      %1427 = vadd.xlane.f32.xlu0 %v1426
      %v1428 = vpop.xlane.xlu0 %1427
      %v1429 = vsel %vm611, %v1413, 0.0
      %1430 = vadd.xlane.f32.xlu0 %v1429
      %v1431 = vpop.xlane.xlu0 %1430
      %v1432 = vsel %vm611, %v1414, 0.0
      %1433 = vadd.xlane.f32.xlu0 %v1432
      %v1434 = vpop.xlane.xlu0 %1433
      %v1435 = vsel %vm611, %v1415, 0.0
      %1436 = vadd.xlane.f32.xlu0 %v1435
      %v1437 = vpop.xlane.xlu0 %1436
      %v1438 = vsel %vm611, %v1416, 0.0
      %1439 = vadd.xlane.f32.xlu0 %v1438
      %v1440 = vpop.xlane.xlu0 %1439
      %v1441 = vmul.f32 %v1419, %v642
      %v1442 = vmul.f32 %v1422, %v642
      %v1443 = vmul.f32 %v1425, %v642
      %v1444 = vmul.f32 %v1428, %v642
      %v1445 = vmul.f32 %v1431, %v642
      %v1446 = vmul.f32 %v1434, %v642
      %v1447 = vmul.f32 %v1437, %v642
      %v1448 = vmul.f32 %v1440, %v642
      %v1449 = vadd.f32 %v1441, 1e-06
      %v1450 = vadd.f32 %v1442, 1e-06
      %v1451 = vadd.f32 %v1443, 1e-06
      %v1452 = vadd.f32 %v1444, 1e-06
      %v1453 = vadd.f32 %v1445, 1e-06
      %v1454 = vadd.f32 %v1446, 1e-06
      %v1455 = vadd.f32 %v1447, 1e-06
      %v1456 = vadd.f32 %v1448, 1e-06
      %v1457 = vrsqrt.pop %v1449
      %v1458 = vmul.f32 %v1457, %v1449
      %v1459 = vmul.f32 %v1458, %v1457
      %v1460 = vmul.f32 0.5, %v1459
      %v1461 = vsub.f32 1.5, %v1460
      %v1462 = vmul.f32 %v1457, %v1461
      %vm1463 = vweird.f32 %v1449
      %vm1464 = vweird.f32 %v1457
      %vm1465 = vmor %vm1463, %vm1464
      %v1466 = vsel %vm1465, %v1457, %v1462
      %v1467 = vrsqrt.pop %v1450
      %v1468 = vmul.f32 %v1467, %v1450
      %v1469 = vmul.f32 %v1468, %v1467
      %v1470 = vmul.f32 0.5, %v1469
      %v1471 = vsub.f32 1.5, %v1470
      %v1472 = vmul.f32 %v1467, %v1471
      %vm1473 = vweird.f32 %v1450
      %vm1474 = vweird.f32 %v1467
      %vm1475 = vmor %vm1473, %vm1474
      %v1476 = vsel %vm1475, %v1467, %v1472
      %v1477 = vrsqrt.pop %v1451
      %v1478 = vmul.f32 %v1477, %v1451
      %v1479 = vmul.f32 %v1478, %v1477
      %v1480 = vmul.f32 0.5, %v1479
      %v1481 = vsub.f32 1.5, %v1480
      %v1482 = vmul.f32 %v1477, %v1481
      %vm1483 = vweird.f32 %v1451
      %vm1484 = vweird.f32 %v1477
      %vm1485 = vmor %vm1483, %vm1484
      %v1486 = vsel %vm1485, %v1477, %v1482
      %v1487 = vrsqrt.pop %v1452
      %v1488 = vmul.f32 %v1487, %v1452
      %v1489 = vmul.f32 %v1488, %v1487
      %v1490 = vmul.f32 0.5, %v1489
      %v1491 = vsub.f32 1.5, %v1490
      %v1492 = vmul.f32 %v1487, %v1491
      %vm1493 = vweird.f32 %v1452
      %vm1494 = vweird.f32 %v1487
      %vm1495 = vmor %vm1493, %vm1494
      %v1496 = vsel %vm1495, %v1487, %v1492
      %v1497 = vrsqrt.pop %v1453
      %v1498 = vmul.f32 %v1497, %v1453
      %v1499 = vmul.f32 %v1498, %v1497
      %v1500 = vmul.f32 0.5, %v1499
      %v1501 = vsub.f32 1.5, %v1500
      %v1502 = vmul.f32 %v1497, %v1501
      %vm1503 = vweird.f32 %v1453
      %vm1504 = vweird.f32 %v1497
      %vm1505 = vmor %vm1503, %vm1504
      %v1506 = vsel %vm1505, %v1497, %v1502
      %v1507 = vrsqrt.pop %v1454
      %v1508 = vmul.f32 %v1507, %v1454
      %v1509 = vmul.f32 %v1508, %v1507
      %v1510 = vmul.f32 0.5, %v1509
      %v1511 = vsub.f32 1.5, %v1510
      %v1512 = vmul.f32 %v1507, %v1511
      %vm1513 = vweird.f32 %v1454
      %vm1514 = vweird.f32 %v1507
      %vm1515 = vmor %vm1513, %vm1514
      %v1516 = vsel %vm1515, %v1507, %v1512
      %v1517 = vrsqrt.pop %v1455
      %v1518 = vmul.f32 %v1517, %v1455
      %v1519 = vmul.f32 %v1518, %v1517
      %v1520 = vmul.f32 0.5, %v1519
      %v1521 = vsub.f32 1.5, %v1520
      %v1522 = vmul.f32 %v1517, %v1521
      %vm1523 = vweird.f32 %v1455
      %vm1524 = vweird.f32 %v1517
      %vm1525 = vmor %vm1523, %vm1524
      %v1526 = vsel %vm1525, %v1517, %v1522
      %v1527 = vrsqrt.pop %v1456
      %v1528 = vmul.f32 %v1527, %v1456
      %v1529 = vmul.f32 %v1528, %v1527
      %v1530 = vmul.f32 0.5, %v1529
      %v1531 = vsub.f32 1.5, %v1530
      %v1532 = vmul.f32 %v1527, %v1531
      %vm1533 = vweird.f32 %v1456
      %vm1534 = vweird.f32 %v1527
      %vm1535 = vmor %vm1533, %vm1534
      %v1536 = vsel %vm1535, %v1527, %v1532
      %v1537 = vmul.f32 %v1401, %v1466
      %v1538 = vmul.f32 %v1402, %v1476
      %v1539 = vmul.f32 %v1403, %v1486
      %v1540 = vmul.f32 %v1404, %v1496
      %v1541 = vmul.f32 %v1405, %v1506
      %v1542 = vmul.f32 %v1406, %v1516
      %v1543 = vmul.f32 %v1407, %v1526
      %v1544 = vmul.f32 %v1408, %v1536
      %v1545 = vld [vmem:[%s12] sm:$0x1]
      %v1547 = vperm.slane %v1545, 0
      %v1549 = vmul.f32 %v1537, %v1547
      %v1550 = vmul.f32 %v1538, %v1547
      %v1551 = vmul.f32 %v1539, %v1547
      %v1552 = vmul.f32 %v1540, %v1547
      %v1553 = vmul.f32 %v1541, %v1547
      %v1554 = vmul.f32 %v1542, %v1547
      %v1555 = vmul.f32 %v1543, %v1547
      %v1556 = vmul.f32 %v1544, %v1547
      %v1557 = vld [vmem:[%s13] sm:$0x1]
      %v1559 = vperm.slane %v1557, 0
      %v1561 = vadd.f32 %v1549, %v1559
      %v1562 = vadd.f32 %v1550, %v1559
      %v1563 = vadd.f32 %v1551, %v1559
      %v1564 = vadd.f32 %v1552, %v1559
      %v1565 = vadd.f32 %v1553, %v1559
      %v1566 = vadd.f32 %v1554, %v1559
      %v1567 = vadd.f32 %v1555, %v1559
      %v1568 = vadd.f32 %v1556, %v1559
      %v1569 = vld [vmem:[%s14] sm:$0xff]
      %v1570 = vld [vmem:[%s14 + $0x8] sm:$0xff]
      %v1571 = vld [vmem:[%s14 + $0x10] sm:$0xff]
      %v1572 = vld [vmem:[%s14 + $0x18] sm:$0xff]
      %v1573 = vld [vmem:[%s15] sm:$0x1]
      %v1575 = vperm.slane %v1573, 0
      %v1578 = vsel %vm611, %v1561, 0
      %v1581 = vsel %vm611, %v1562, 0
      %v1584 = vsel %vm611, %v1563, 0
      %v1587 = vsel %vm611, %v1564, 0
      %v1590 = vsel %vm611, %v1565, 0
      %v1593 = vsel %vm611, %v1566, 0
      %v1596 = vsel %vm611, %v1567, 0
      %v1599 = vsel %vm611, %v1568, 0
      %1601 = vmatpush.msra.mxu0 0.0
      %1602 = vmatpush.msra.mxu0 0.0
      %1603 = vmatpush.msra.mxu0 0.0
      %1604 = vmatpush.msra.mxu0 0.0
      %1605 = vmatpush.msra.mxu0 0.0
      %1606 = vmatpush.msra.mxu0 0.0
      %1607 = vmatpush.msra.mxu0 0.0
      %1608 = vmatpush.msra.mxu0 0.0
      %1609 = vmatpush.msra.mxu0 0.0
      %1610 = vmatpush.msra.mxu0 0.0
      %1611 = vmatpush.msra.mxu0 0.0
      %1612 = vmatpush.msra.mxu0 0.0
      %1613 = vmatpush.msra.mxu0 %v1572
      %1614 = vmatpush.msra.mxu0 %v1571
      %1615 = vmatpush.msra.mxu0 %v1570
      %1616 = vmatpush.msra.mxu0 %v1569
      %1617 = vmatmul.f32.gmra.mxu0 %v1578
      %v1618 = vpop.f32.mrf.mxu0
      %v1619 = vadd.f32 %v1575, %v1618
      %1620 = vmatmul.f32.gmra.mxu0 %v1581
      %v1621 = vpop.f32.mrf.mxu0
      %v1622 = vadd.f32 %v1575, %v1621
      %1623 = vmatmul.f32.gmra.mxu0 %v1584
      %v1624 = vpop.f32.mrf.mxu0
      %v1625 = vadd.f32 %v1575, %v1624
      %1626 = vmatmul.f32.gmra.mxu0 %v1587
      %v1627 = vpop.f32.mrf.mxu0
      %v1628 = vadd.f32 %v1575, %v1627
      %1629 = vmatmul.f32.gmra.mxu0 %v1590
      %v1630 = vpop.f32.mrf.mxu0
      %v1631 = vadd.f32 %v1575, %v1630
      %1632 = vmatmul.f32.gmra.mxu0 %v1593
      %v1633 = vpop.f32.mrf.mxu0
      %v1634 = vadd.f32 %v1575, %v1633
      %1635 = vmatmul.f32.gmra.mxu0 %v1596
      %v1636 = vpop.f32.mrf.mxu0
      %v1637 = vadd.f32 %v1575, %v1636
      %1638 = vmatmul.f32.gmra.mxu0 %v1599
      %v1639 = vpop.f32.mrf.mxu0
      %v1640 = vadd.f32 %v1575, %v1639
      %1641 = vdwg.mxu0
      %1650 = vrot.lane.b32.xlu0 %v1619, 96
      %v1651 = vpop.permute.xlu0 %1650
      %1652 = vrot.lane.b32.xlu0 %v1622, 96
      %v1653 = vpop.permute.xlu0 %1652
      %1654 = vrot.lane.b32.xlu0 %v1625, 96
      %v1655 = vpop.permute.xlu0 %1654
      %1656 = vrot.lane.b32.xlu0 %v1628, 96
      %v1657 = vpop.permute.xlu0 %1656
      %1658 = vrot.lane.b32.xlu0 %v1631, 96
      %v1659 = vpop.permute.xlu0 %1658
      %1660 = vrot.lane.b32.xlu0 %v1634, 96
      %v1661 = vpop.permute.xlu0 %1660
      %1662 = vrot.lane.b32.xlu0 %v1637, 96
      %v1663 = vpop.permute.xlu0 %1662
      %1664 = vrot.lane.b32.xlu0 %v1640, 96
      %v1665 = vpop.permute.xlu0 %1664
      %v1674 = vmul.f32 %v1619, %v1651
      %v1675 = vmul.f32 %v1622, %v1653
      %v1676 = vmul.f32 %v1625, %v1655
      %v1677 = vmul.f32 %v1628, %v1657
      %v1678 = vmul.f32 %v1631, %v1659
      %v1679 = vmul.f32 %v1634, %v1661
      %v1680 = vmul.f32 %v1637, %v1663
      %v1681 = vmul.f32 %v1640, %v1665
      %v1682 = vld [vmem:[%s16] sm:$0xff]
      %v1683 = vld [vmem:[%s16 + $0x8] sm:$0xff]
      %v1684 = vld [vmem:[%s16 + $0x10] sm:$0xff]
      %v1685 = vld [vmem:[%s16 + $0x18] sm:$0xff]
      %v1686 = vld [vmem:[%s17] sm:$0x1]
      %v1688 = vperm.slane %v1686, 0
      %v1691 = vsel %vm611, %v1674, 0
      %v1694 = vsel %vm611, %v1675, 0
      %v1697 = vsel %vm611, %v1676, 0
      %v1700 = vsel %vm611, %v1677, 0
      %v1703 = vsel %vm611, %v1678, 0
      %v1706 = vsel %vm611, %v1679, 0
      %v1709 = vsel %vm611, %v1680, 0
      %v1712 = vsel %vm611, %v1681, 0
      %1714 = vmatpush.msra.mxu0 0.0
      %1715 = vmatpush.msra.mxu0 0.0
      %1716 = vmatpush.msra.mxu0 0.0
      %1717 = vmatpush.msra.mxu0 0.0
      %1718 = vmatpush.msra.mxu0 0.0
      %1719 = vmatpush.msra.mxu0 0.0
      %1720 = vmatpush.msra.mxu0 0.0
      %1721 = vmatpush.msra.mxu0 0.0
      %1722 = vmatpush.msra.mxu0 0.0
      %1723 = vmatpush.msra.mxu0 0.0
      %1724 = vmatpush.msra.mxu0 0.0
      %1725 = vmatpush.msra.mxu0 0.0
      %1726 = vmatpush.msra.mxu0 %v1685
      %1727 = vmatpush.msra.mxu0 %v1684
      %1728 = vmatpush.msra.mxu0 %v1683
      %1729 = vmatpush.msra.mxu0 %v1682
      %1730 = vmatmul.f32.gmra.mxu0 %v1691
      %v1731 = vpop.f32.mrf.mxu0
      %v1732 = vadd.f32 %v1688, %v1731
      %1733 = vmatmul.f32.gmra.mxu0 %v1694
      %v1734 = vpop.f32.mrf.mxu0
      %v1735 = vadd.f32 %v1688, %v1734
      %1736 = vmatmul.f32.gmra.mxu0 %v1697
      %v1737 = vpop.f32.mrf.mxu0
      %v1738 = vadd.f32 %v1688, %v1737
      %1739 = vmatmul.f32.gmra.mxu0 %v1700
      %v1740 = vpop.f32.mrf.mxu0
      %v1741 = vadd.f32 %v1688, %v1740
      %1742 = vmatmul.f32.gmra.mxu0 %v1703
      %v1743 = vpop.f32.mrf.mxu0
      %v1744 = vadd.f32 %v1688, %v1743
      %1745 = vmatmul.f32.gmra.mxu0 %v1706
      %v1746 = vpop.f32.mrf.mxu0
      %v1747 = vadd.f32 %v1688, %v1746
      %1748 = vmatmul.f32.gmra.mxu0 %v1709
      %v1749 = vpop.f32.mrf.mxu0
      %v1750 = vadd.f32 %v1688, %v1749
      %1751 = vmatmul.f32.gmra.mxu0 %v1712
      %v1752 = vpop.f32.mrf.mxu0
      %v1753 = vadd.f32 %v1688, %v1752
      %1754 = vdwg.mxu0
      %v1755 = vld [vmem:[%s18] sm:$0x1]
      %v1757 = vperm.slane %v1755, 0
      %v1759 = vmul.f32 %v1732, %v1757
      %v1760 = vmul.f32 %v1735, %v1757
      %v1761 = vmul.f32 %v1738, %v1757
      %v1762 = vmul.f32 %v1741, %v1757
      %v1763 = vmul.f32 %v1744, %v1757
      %v1764 = vmul.f32 %v1747, %v1757
      %v1765 = vmul.f32 %v1750, %v1757
      %v1766 = vmul.f32 %v1753, %v1757
      %v1767 = vadd.f32 %v1361, %v1759
      %v1768 = vadd.f32 %v1362, %v1760
      %v1769 = vadd.f32 %v1363, %v1761
      %v1770 = vadd.f32 %v1364, %v1762
      %v1771 = vadd.f32 %v1365, %v1763
      %v1772 = vadd.f32 %v1366, %v1764
      %v1773 = vadd.f32 %v1367, %v1765
      %v1774 = vadd.f32 %v1368, %v1766
      %1775 = vst.msk [vmem:[%s602] sm:$0xff] %vm611, %v1767
      %1776 = vst.msk [vmem:[%s602 + $0x8] sm:$0xff] %vm611, %v1768
      %1777 = vst.msk [vmem:[%s602 + $0x10] sm:$0xff] %vm611, %v1769
      %1778 = vst.msk [vmem:[%s602 + $0x18] sm:$0xff] %vm611, %v1770
      %1779 = vst.msk [vmem:[%s602 + $0x20] sm:$0xff] %vm611, %v1771
      %1780 = vst.msk [vmem:[%s602 + $0x28] sm:$0xff] %vm611, %v1772
      %1781 = vst.msk [vmem:[%s602 + $0x30] sm:$0xff] %vm611, %v1773
      %1782 = vst.msk [vmem:[%s602 + $0x38] sm:$0xff] %vm611, %v1774
      %p1783 = scmp.lt.s32.totalorder %s30, 1
      %s1784 = scalar_select %p1783, %s30, 1
      %s1785 = smul.addr %s1784, 8
      %s1786 = smul.addr %s1785, 8
      %s1787 = scalar_lea.vmem %s19, %s1786
      // Predicated region
      $region97: #{encoder_forward.8} parent=95 // pred_check
        %p1788 = pneg %p452
      $region98: #{encoder_forward.8} parent=95 // pred_check_branch
        %1790 = sbr.rel (%p1788) target = $region100
      $region99: #{encoder_forward.8} parent=95 // pred_region
        _
      $region100: #{encoder_forward.8} parent=95 // pred_fallthru
        _
    $region96: #{encoder_forward.8} parent=5 // pred_fallthru
      _
    %p1791 = scmp.le.s32.totalorder 2, %s25
    // Predicated region
    $region101: #{encoder_forward.8} parent=5 // pred_check
      %p1792 = pneg %p1791
    $region102: #{encoder_forward.8} parent=5 // pred_check_branch
      %1794 = sbr.rel (%p1792) target = $region104
    $region103: #{encoder_forward.8} parent=5 // pred_region
      %s1795 = ssub.s32 %s25, 2
      // Predicated region
      $region105: #{encoder_forward.8} parent=103 // pred_check
        %p1796 = pneg %p458
      $region106: #{encoder_forward.8} parent=103 // pred_check_branch
        %1798 = sbr.rel (%p1796) target = $region108
      $region107: #{encoder_forward.8} parent=103 // pred_region
        %p1799 = scmp.lt.s32.totalorder %s31, 1
        %s1800 = scalar_select %p1799, %s31, 1
        %s1801 = smul.addr %s1800, 8
        %s1802 = smul.addr %s1801, 8
        %s1803 = scalar_lea.vmem %s19, %s1802
      $region108: #{encoder_forward.8} parent=103 // pred_fallthru
        _
    $region104: #{encoder_forward.8} parent=5 // pred_fallthru
      _
  $region6: #{encoder_forward.8} parent=0 // loop_footer
    %s29 = sadd.s32 1, %s25
  $region7: #{encoder_forward.8} parent=0 // loop_footer_branch
    %24 = sbr.rel target = $region3
  $region8: #{encoder_forward.8} parent=0 // loop_exit
    _

// kernel: encoder_forward.6
$region0: #{encoder_forward.6}
  #allocation0 [shape = 'u32[]', space=smem, size = 0x4, offset = 0x4, fixed_abs, tag = 'smem constant byte address 0x4 - core index']
  #allocation1 [shape = 'u32[72,128]{1,0:T(1,128)}', space=vmem, size = 0x9000, scoped, tag = 'internal scratch']
  #allocation2 [shape = 'f32[18,18,32]{2,1,0:T(8,128)}', space=vmem, size = 0x36000, scoped, tag = 'scratch operand']
  %s0 = inlined_call_operand.vmem [shape: f32[2,16,16,16], index: 0, kind: input, shape index: {}]
  %s1 = inlined_call_operand.vmem [shape: f32[1,16], index: 1, kind: input, shape index: {}]
  %s2 = inlined_call_operand.vmem [shape: f32[1,16], index: 2, kind: input, shape index: {}]
  %s3 = inlined_call_operand.vmem [shape: f32[16,32], index: 3, kind: input, shape index: {}]
  %s4 = inlined_call_operand.vmem [shape: f32[1,32], index: 4, kind: input, shape index: {}]
  %s5 = inlined_call_operand.vmem [shape: f32[9,32], index: 5, kind: input, shape index: {}]
  %s6 = inlined_call_operand.vmem [shape: f32[1,32], index: 6, kind: input, shape index: {}]
  %s7 = inlined_call_operand.vmem [shape: f32[16,16], index: 7, kind: input, shape index: {}]
  %s8 = inlined_call_operand.vmem [shape: f32[1,16], index: 8, kind: input, shape index: {}]
  %s9 = inlined_call_operand.vmem [shape: f32[16,16], index: 9, kind: input, shape index: {}]
  %s10 = inlined_call_operand.vmem [shape: f32[1,16], index: 10, kind: input, shape index: {}]
  %s11 = inlined_call_operand.vmem [shape: f32[1,16], index: 11, kind: input, shape index: {}]
  %s12 = inlined_call_operand.vmem [shape: f32[1,16], index: 12, kind: input, shape index: {}]
  %s13 = inlined_call_operand.vmem [shape: f32[1,16], index: 13, kind: input, shape index: {}]
  %s14 = inlined_call_operand.vmem [shape: f32[16,32], index: 14, kind: input, shape index: {}]
  %s15 = inlined_call_operand.vmem [shape: f32[1,32], index: 15, kind: input, shape index: {}]
  %s16 = inlined_call_operand.vmem [shape: f32[16,16], index: 16, kind: input, shape index: {}]
  %s17 = inlined_call_operand.vmem [shape: f32[1,16], index: 17, kind: input, shape index: {}]
  %s18 = inlined_call_operand.vmem [shape: f32[1,16], index: 18, kind: input, shape index: {}]
  %s19 = inlined_call_operand.vmem [shape: f32[2,16,16,16], index: 19, kind: output, shape index: {}]
  %s20 = sld [smem:[#allocation0]]
  $region109: #{encoder_forward.6} parent=0
    _
  %s22 = ssub.s32 1, %s20
  %s23 = scalar_select 0, %s22, %s20
  loop: start=0, step=1, limit=4
  $region2: #{encoder_forward.6} parent=0 // loop_pre_header
    _
  $region3: #{encoder_forward.6} parent=0 // loop_header
    %s25 = sphi 0, %s29
    %p26 = scmp.ge.s32.totalorder %s25, 4
    %s35 = sphi 0, %s37
    %s38 = sphi 0, %s35
    %s39 = sphi 0, %s38
    %s55 = sphi 0, %s39
    %s59 = sphi 0, %s59
    %s61 = sphi 0, %s59
    %s62 = sphi 0, %s61
    %s76 = sphi 0, %s62
    %s80 = sphi 0, %s80
    %s82 = sphi 0, %s80
    %s83 = sphi 0, %s82
    %s97 = sphi 0, %s83
    %s101 = sphi 0, %s101
    %s103 = sphi 0, %s101
    %s104 = sphi 0, %s103
    %s118 = sphi 0, %s104
    %s122 = sphi 0, %s122
    %s124 = sphi 0, %s122
    %s125 = sphi 0, %s124
    %s139 = sphi 0, %s125
    %s143 = sphi 0, %s143
    %s145 = sphi 0, %s143
    %s146 = sphi 0, %s145
    %s160 = sphi 0, %s146
    %s164 = sphi 0, %s164
    %s166 = sphi 0, %s164
    %s167 = sphi 0, %s166
    %s181 = sphi 0, %s167
    %s185 = sphi 0, %s185
    %s187 = sphi 0, %s185
    %s188 = sphi 0, %s187
    %s202 = sphi 0, %s188
    %s206 = sphi 0, %s206
    %s208 = sphi 0, %s206
    %s209 = sphi 0, %s208
    %s223 = sphi 0, %s209
    %s227 = sphi 0, %s227
    %s229 = sphi 0, %s227
    %s230 = sphi 0, %s229
    %s244 = sphi 0, %s230
    %s248 = sphi 0, %s248
    %s250 = sphi 0, %s248
    %s251 = sphi 0, %s250
    %s265 = sphi 0, %s251
    %s269 = sphi 0, %s269
    %s271 = sphi 0, %s269
    %s272 = sphi 0, %s271
    %s286 = sphi 0, %s272
    %s290 = sphi 0, %s290
    %s292 = sphi 0, %s290
    %s293 = sphi 0, %s292
    %s307 = sphi 0, %s293
    %s311 = sphi 0, %s311
    %s313 = sphi 0, %s311
    %s314 = sphi 0, %s313
    %s328 = sphi 0, %s314
    %s332 = sphi 0, %s332
    %s334 = sphi 0, %s332
    %s335 = sphi 0, %s334
    %s349 = sphi 0, %s335
    %s353 = sphi 0, %s353
    %s355 = sphi 0, %s353
    %s356 = sphi 0, %s355
    %s370 = sphi 0, %s356
    %s374 = sphi 0, %s374
    %s376 = sphi 0, %s374
    %s377 = sphi 0, %s376
    %s391 = sphi 0, %s377
    %s395 = sphi 0, %s395
    %s397 = sphi 0, %s395
    %s398 = sphi 0, %s397
    %s412 = sphi 0, %s398
    %s416 = sphi 0, %s416
    %s418 = sphi 0, %s416
    %s419 = sphi 0, %s418
    %s433 = sphi 0, %s419
    %s439 = sphi 0, %s441
    %s442 = sphi 0, %s439
    %s443 = sphi 0, %s442
    %s459 = sphi 0, %s443
  $region4: #{encoder_forward.6} parent=0 // loop_header_branch
    %28 = sbr.rel (%p26) target = $region8
  $region5: #{encoder_forward.6} parent=0 // loop_body
    %s30 = ssub.s32 %s25, 1
    %s31 = ssub.s32 %s25, 2
    %s32 = sadd.s32 %s25, 1
    %s33 = ssub.s32 %s25, %s32
    %p34 = scmp.eq.s32.totalorder %s33, 0
    %s36 = sadd.s32 %s35, 1
    %s37 = scalar_select %p34, %s35, %s36
    %p40 = pneg %p34
    %p41 = scmp.eq.s32.totalorder %s25, 1
    %p42 = por %p40, %p41
    %p43 = scmp.ne.s32.totalorder %s35, %s38
    %p44 = scmp.eq.s32.totalorder %s25, 0
    %p45 = por %p43, %p44
    %p46 = scmp.ne.s32.totalorder %s35, %s38
    %p47 = scmp.eq.s32.totalorder %s30, 1
    %p48 = por %p46, %p47
    %p49 = scmp.ne.s32.totalorder %s38, %s39
    %p50 = scmp.eq.s32.totalorder %s30, 0
    %p51 = por %p49, %p50
    %p52 = scmp.ne.s32.totalorder %s38, %s39
    %p53 = scmp.eq.s32.totalorder %s31, 1
    %p54 = por %p52, %p53
    %p56 = scmp.ne.s32.totalorder %s39, %s55
    %p57 = scmp.eq.s32.totalorder %s31, 0
    %p58 = por %p56, %p57
    %s60 = sadd.s32 %s59, 1
    %p63 = scmp.eq.s32.totalorder %s25, 1
    %p64 = scmp.ne.s32.totalorder %s59, %s61
    %p65 = scmp.eq.s32.totalorder %s25, 0
    %p66 = por %p64, %p65
    %p67 = scmp.ne.s32.totalorder %s59, %s61
    %p68 = scmp.eq.s32.totalorder %s30, 1
    %p69 = por %p67, %p68
    %p70 = scmp.ne.s32.totalorder %s61, %s62
    %p71 = scmp.eq.s32.totalorder %s30, 0
    %p72 = por %p70, %p71
    %p73 = scmp.ne.s32.totalorder %s61, %s62
    %p74 = scmp.eq.s32.totalorder %s31, 1
    %p75 = por %p73, %p74
    %p77 = scmp.ne.s32.totalorder %s62, %s76
    %p78 = scmp.eq.s32.totalorder %s31, 0
    %p79 = por %p77, %p78
    %s81 = sadd.s32 %s80, 1
    %p84 = scmp.eq.s32.totalorder %s25, 1
    %p85 = scmp.ne.s32.totalorder %s80, %s82
    %p86 = scmp.eq.s32.totalorder %s25, 0
    %p87 = por %p85, %p86
    %p88 = scmp.ne.s32.totalorder %s80, %s82
    %p89 = scmp.eq.s32.totalorder %s30, 1
    %p90 = por %p88, %p89
    %p91 = scmp.ne.s32.totalorder %s82, %s83
    %p92 = scmp.eq.s32.totalorder %s30, 0
    %p93 = por %p91, %p92
    %p94 = scmp.ne.s32.totalorder %s82, %s83
    %p95 = scmp.eq.s32.totalorder %s31, 1
    %p96 = por %p94, %p95
    %p98 = scmp.ne.s32.totalorder %s83, %s97
    %p99 = scmp.eq.s32.totalorder %s31, 0
    %p100 = por %p98, %p99
    %s102 = sadd.s32 %s101, 1
    %p105 = scmp.eq.s32.totalorder %s25, 1
    %p106 = scmp.ne.s32.totalorder %s101, %s103
    %p107 = scmp.eq.s32.totalorder %s25, 0
    %p108 = por %p106, %p107
    %p109 = scmp.ne.s32.totalorder %s101, %s103
    %p110 = scmp.eq.s32.totalorder %s30, 1
    %p111 = por %p109, %p110
    %p112 = scmp.ne.s32.totalorder %s103, %s104
    %p113 = scmp.eq.s32.totalorder %s30, 0
    %p114 = por %p112, %p113
    %p115 = scmp.ne.s32.totalorder %s103, %s104
    %p116 = scmp.eq.s32.totalorder %s31, 1
    %p117 = por %p115, %p116
    %p119 = scmp.ne.s32.totalorder %s104, %s118
    %p120 = scmp.eq.s32.totalorder %s31, 0
    %p121 = por %p119, %p120
    %s123 = sadd.s32 %s122, 1
    %p126 = scmp.eq.s32.totalorder %s25, 1
    %p127 = scmp.ne.s32.totalorder %s122, %s124
    %p128 = scmp.eq.s32.totalorder %s25, 0
    %p129 = por %p127, %p128
    %p130 = scmp.ne.s32.totalorder %s122, %s124
    %p131 = scmp.eq.s32.totalorder %s30, 1
    %p132 = por %p130, %p131
    %p133 = scmp.ne.s32.totalorder %s124, %s125
    %p134 = scmp.eq.s32.totalorder %s30, 0
    %p135 = por %p133, %p134
    %p136 = scmp.ne.s32.totalorder %s124, %s125
    %p137 = scmp.eq.s32.totalorder %s31, 1
    %p138 = por %p136, %p137
    %p140 = scmp.ne.s32.totalorder %s125, %s139
    %p141 = scmp.eq.s32.totalorder %s31, 0
    %p142 = por %p140, %p141
    %s144 = sadd.s32 %s143, 1
    %p147 = scmp.eq.s32.totalorder %s25, 1
    %p148 = scmp.ne.s32.totalorder %s143, %s145
    %p149 = scmp.eq.s32.totalorder %s25, 0
    %p150 = por %p148, %p149
    %p151 = scmp.ne.s32.totalorder %s143, %s145
    %p152 = scmp.eq.s32.totalorder %s30, 1
    %p153 = por %p151, %p152
    %p154 = scmp.ne.s32.totalorder %s145, %s146
    %p155 = scmp.eq.s32.totalorder %s30, 0
    %p156 = por %p154, %p155
    %p157 = scmp.ne.s32.totalorder %s145, %s146
    %p158 = scmp.eq.s32.totalorder %s31, 1
    %p159 = por %p157, %p158
    %p161 = scmp.ne.s32.totalorder %s146, %s160
    %p162 = scmp.eq.s32.totalorder %s31, 0
    %p163 = por %p161, %p162
    %s165 = sadd.s32 %s164, 1
    %p168 = scmp.eq.s32.totalorder %s25, 1
    %p169 = scmp.ne.s32.totalorder %s164, %s166
    %p170 = scmp.eq.s32.totalorder %s25, 0
    %p171 = por %p169, %p170
    %p172 = scmp.ne.s32.totalorder %s164, %s166
    %p173 = scmp.eq.s32.totalorder %s30, 1
    %p174 = por %p172, %p173
    %p175 = scmp.ne.s32.totalorder %s166, %s167
    %p176 = scmp.eq.s32.totalorder %s30, 0
    %p177 = por %p175, %p176
    %p178 = scmp.ne.s32.totalorder %s166, %s167
    %p179 = scmp.eq.s32.totalorder %s31, 1
    %p180 = por %p178, %p179
    %p182 = scmp.ne.s32.totalorder %s167, %s181
    %p183 = scmp.eq.s32.totalorder %s31, 0
    %p184 = por %p182, %p183
    %s186 = sadd.s32 %s185, 1
    %p189 = scmp.eq.s32.totalorder %s25, 1
    %p190 = scmp.ne.s32.totalorder %s185, %s187
    %p191 = scmp.eq.s32.totalorder %s25, 0
    %p192 = por %p190, %p191
    %p193 = scmp.ne.s32.totalorder %s185, %s187
    %p194 = scmp.eq.s32.totalorder %s30, 1
    %p195 = por %p193, %p194
    %p196 = scmp.ne.s32.totalorder %s187, %s188
    %p197 = scmp.eq.s32.totalorder %s30, 0
    %p198 = por %p196, %p197
    %p199 = scmp.ne.s32.totalorder %s187, %s188
    %p200 = scmp.eq.s32.totalorder %s31, 1
    %p201 = por %p199, %p200
    %p203 = scmp.ne.s32.totalorder %s188, %s202
    %p204 = scmp.eq.s32.totalorder %s31, 0
    %p205 = por %p203, %p204
    %s207 = sadd.s32 %s206, 1
    %p210 = scmp.eq.s32.totalorder %s25, 1
    %p211 = scmp.ne.s32.totalorder %s206, %s208
    %p212 = scmp.eq.s32.totalorder %s25, 0
    %p213 = por %p211, %p212
    %p214 = scmp.ne.s32.totalorder %s206, %s208
    %p215 = scmp.eq.s32.totalorder %s30, 1
    %p216 = por %p214, %p215
    %p217 = scmp.ne.s32.totalorder %s208, %s209
    %p218 = scmp.eq.s32.totalorder %s30, 0
    %p219 = por %p217, %p218
    %p220 = scmp.ne.s32.totalorder %s208, %s209
    %p221 = scmp.eq.s32.totalorder %s31, 1
    %p222 = por %p220, %p221
    %p224 = scmp.ne.s32.totalorder %s209, %s223
    %p225 = scmp.eq.s32.totalorder %s31, 0
    %p226 = por %p224, %p225
    %s228 = sadd.s32 %s227, 1
    %p231 = scmp.eq.s32.totalorder %s25, 1
    %p232 = scmp.ne.s32.totalorder %s227, %s229
    %p233 = scmp.eq.s32.totalorder %s25, 0
    %p234 = por %p232, %p233
    %p235 = scmp.ne.s32.totalorder %s227, %s229
    %p236 = scmp.eq.s32.totalorder %s30, 1
    %p237 = por %p235, %p236
    %p238 = scmp.ne.s32.totalorder %s229, %s230
    %p239 = scmp.eq.s32.totalorder %s30, 0
    %p240 = por %p238, %p239
    %p241 = scmp.ne.s32.totalorder %s229, %s230
    %p242 = scmp.eq.s32.totalorder %s31, 1
    %p243 = por %p241, %p242
    %p245 = scmp.ne.s32.totalorder %s230, %s244
    %p246 = scmp.eq.s32.totalorder %s31, 0
    %p247 = por %p245, %p246
    %s249 = sadd.s32 %s248, 1
    %p252 = scmp.eq.s32.totalorder %s25, 1
    %p253 = scmp.ne.s32.totalorder %s248, %s250
    %p254 = scmp.eq.s32.totalorder %s25, 0
    %p255 = por %p253, %p254
    %p256 = scmp.ne.s32.totalorder %s248, %s250
    %p257 = scmp.eq.s32.totalorder %s30, 1
    %p258 = por %p256, %p257
    %p259 = scmp.ne.s32.totalorder %s250, %s251
    %p260 = scmp.eq.s32.totalorder %s30, 0
    %p261 = por %p259, %p260
    %p262 = scmp.ne.s32.totalorder %s250, %s251
    %p263 = scmp.eq.s32.totalorder %s31, 1
    %p264 = por %p262, %p263
    %p266 = scmp.ne.s32.totalorder %s251, %s265
    %p267 = scmp.eq.s32.totalorder %s31, 0
    %p268 = por %p266, %p267
    %s270 = sadd.s32 %s269, 1
    %p273 = scmp.eq.s32.totalorder %s25, 1
    %p274 = scmp.ne.s32.totalorder %s269, %s271
    %p275 = scmp.eq.s32.totalorder %s25, 0
    %p276 = por %p274, %p275
    %p277 = scmp.ne.s32.totalorder %s269, %s271
    %p278 = scmp.eq.s32.totalorder %s30, 1
    %p279 = por %p277, %p278
    %p280 = scmp.ne.s32.totalorder %s271, %s272
    %p281 = scmp.eq.s32.totalorder %s30, 0
    %p282 = por %p280, %p281
    %p283 = scmp.ne.s32.totalorder %s271, %s272
    %p284 = scmp.eq.s32.totalorder %s31, 1
    %p285 = por %p283, %p284
    %p287 = scmp.ne.s32.totalorder %s272, %s286
    %p288 = scmp.eq.s32.totalorder %s31, 0
    %p289 = por %p287, %p288
    %s291 = sadd.s32 %s290, 1
    %p294 = scmp.eq.s32.totalorder %s25, 1
    %p295 = scmp.ne.s32.totalorder %s290, %s292
    %p296 = scmp.eq.s32.totalorder %s25, 0
    %p297 = por %p295, %p296
    %p298 = scmp.ne.s32.totalorder %s290, %s292
    %p299 = scmp.eq.s32.totalorder %s30, 1
    %p300 = por %p298, %p299
    %p301 = scmp.ne.s32.totalorder %s292, %s293
    %p302 = scmp.eq.s32.totalorder %s30, 0
    %p303 = por %p301, %p302
    %p304 = scmp.ne.s32.totalorder %s292, %s293
    %p305 = scmp.eq.s32.totalorder %s31, 1
    %p306 = por %p304, %p305
    %p308 = scmp.ne.s32.totalorder %s293, %s307
    %p309 = scmp.eq.s32.totalorder %s31, 0
    %p310 = por %p308, %p309
    %s312 = sadd.s32 %s311, 1
    %p315 = scmp.eq.s32.totalorder %s25, 1
    %p316 = scmp.ne.s32.totalorder %s311, %s313
    %p317 = scmp.eq.s32.totalorder %s25, 0
    %p318 = por %p316, %p317
    %p319 = scmp.ne.s32.totalorder %s311, %s313
    %p320 = scmp.eq.s32.totalorder %s30, 1
    %p321 = por %p319, %p320
    %p322 = scmp.ne.s32.totalorder %s313, %s314
    %p323 = scmp.eq.s32.totalorder %s30, 0
    %p324 = por %p322, %p323
    %p325 = scmp.ne.s32.totalorder %s313, %s314
    %p326 = scmp.eq.s32.totalorder %s31, 1
    %p327 = por %p325, %p326
    %p329 = scmp.ne.s32.totalorder %s314, %s328
    %p330 = scmp.eq.s32.totalorder %s31, 0
    %p331 = por %p329, %p330
    %s333 = sadd.s32 %s332, 1
    %p336 = scmp.eq.s32.totalorder %s25, 1
    %p337 = scmp.ne.s32.totalorder %s332, %s334
    %p338 = scmp.eq.s32.totalorder %s25, 0
    %p339 = por %p337, %p338
    %p340 = scmp.ne.s32.totalorder %s332, %s334
    %p341 = scmp.eq.s32.totalorder %s30, 1
    %p342 = por %p340, %p341
    %p343 = scmp.ne.s32.totalorder %s334, %s335
    %p344 = scmp.eq.s32.totalorder %s30, 0
    %p345 = por %p343, %p344
    %p346 = scmp.ne.s32.totalorder %s334, %s335
    %p347 = scmp.eq.s32.totalorder %s31, 1
    %p348 = por %p346, %p347
    %p350 = scmp.ne.s32.totalorder %s335, %s349
    %p351 = scmp.eq.s32.totalorder %s31, 0
    %p352 = por %p350, %p351
    %s354 = sadd.s32 %s353, 1
    %p357 = scmp.eq.s32.totalorder %s25, 1
    %p358 = scmp.ne.s32.totalorder %s353, %s355
    %p359 = scmp.eq.s32.totalorder %s25, 0
    %p360 = por %p358, %p359
    %p361 = scmp.ne.s32.totalorder %s353, %s355
    %p362 = scmp.eq.s32.totalorder %s30, 1
    %p363 = por %p361, %p362
    %p364 = scmp.ne.s32.totalorder %s355, %s356
    %p365 = scmp.eq.s32.totalorder %s30, 0
    %p366 = por %p364, %p365
    %p367 = scmp.ne.s32.totalorder %s355, %s356
    %p368 = scmp.eq.s32.totalorder %s31, 1
    %p369 = por %p367, %p368
    %p371 = scmp.ne.s32.totalorder %s356, %s370
    %p372 = scmp.eq.s32.totalorder %s31, 0
    %p373 = por %p371, %p372
    %s375 = sadd.s32 %s374, 1
    %p378 = scmp.eq.s32.totalorder %s25, 1
    %p379 = scmp.ne.s32.totalorder %s374, %s376
    %p380 = scmp.eq.s32.totalorder %s25, 0
    %p381 = por %p379, %p380
    %p382 = scmp.ne.s32.totalorder %s374, %s376
    %p383 = scmp.eq.s32.totalorder %s30, 1
    %p384 = por %p382, %p383
    %p385 = scmp.ne.s32.totalorder %s376, %s377
    %p386 = scmp.eq.s32.totalorder %s30, 0
    %p387 = por %p385, %p386
    %p388 = scmp.ne.s32.totalorder %s376, %s377
    %p389 = scmp.eq.s32.totalorder %s31, 1
    %p390 = por %p388, %p389
    %p392 = scmp.ne.s32.totalorder %s377, %s391
    %p393 = scmp.eq.s32.totalorder %s31, 0
    %p394 = por %p392, %p393
    %s396 = sadd.s32 %s395, 1
    %p399 = scmp.eq.s32.totalorder %s25, 1
    %p400 = scmp.ne.s32.totalorder %s395, %s397
    %p401 = scmp.eq.s32.totalorder %s25, 0
    %p402 = por %p400, %p401
    %p403 = scmp.ne.s32.totalorder %s395, %s397
    %p404 = scmp.eq.s32.totalorder %s30, 1
    %p405 = por %p403, %p404
    %p406 = scmp.ne.s32.totalorder %s397, %s398
    %p407 = scmp.eq.s32.totalorder %s30, 0
    %p408 = por %p406, %p407
    %p409 = scmp.ne.s32.totalorder %s397, %s398
    %p410 = scmp.eq.s32.totalorder %s31, 1
    %p411 = por %p409, %p410
    %p413 = scmp.ne.s32.totalorder %s398, %s412
    %p414 = scmp.eq.s32.totalorder %s31, 0
    %p415 = por %p413, %p414
    %s417 = sadd.s32 %s416, 1
    %p420 = scmp.eq.s32.totalorder %s25, 1
    %p421 = scmp.ne.s32.totalorder %s416, %s418
    %p422 = scmp.eq.s32.totalorder %s25, 0
    %p423 = por %p421, %p422
    %p424 = scmp.ne.s32.totalorder %s416, %s418
    %p425 = scmp.eq.s32.totalorder %s30, 1
    %p426 = por %p424, %p425
    %p427 = scmp.ne.s32.totalorder %s418, %s419
    %p428 = scmp.eq.s32.totalorder %s30, 0
    %p429 = por %p427, %p428
    %p430 = scmp.ne.s32.totalorder %s418, %s419
    %p431 = scmp.eq.s32.totalorder %s31, 1
    %p432 = por %p430, %p431
    %p434 = scmp.ne.s32.totalorder %s419, %s433
    %p435 = scmp.eq.s32.totalorder %s31, 0
    %p436 = por %p434, %p435
    %s437 = ssub.s32 %s25, %s32
    %p438 = scmp.eq.s32.totalorder %s437, 0
    %s440 = sadd.s32 %s439, 1
    %s441 = scalar_select %p438, %s439, %s440
    %p444 = pneg %p438
    %p445 = scmp.eq.s32.totalorder %s25, 1
    %p446 = por %p444, %p445
    %p447 = scmp.ne.s32.totalorder %s439, %s442
    %p448 = scmp.eq.s32.totalorder %s25, 0
    %p449 = por %p447, %p448
    %p450 = scmp.ne.s32.totalorder %s439, %s442
    %p451 = scmp.eq.s32.totalorder %s30, 1
    %p452 = por %p450, %p451
    %p453 = scmp.ne.s32.totalorder %s442, %s443
    %p454 = scmp.eq.s32.totalorder %s30, 0
    %p455 = por %p453, %p454
    %p456 = scmp.ne.s32.totalorder %s442, %s443
    %p457 = scmp.eq.s32.totalorder %s31, 1
    %p458 = por %p456, %p457
    %p460 = scmp.ne.s32.totalorder %s443, %s459
    %p461 = scmp.eq.s32.totalorder %s31, 0
    %p462 = por %p460, %p461
    %p463 = scmp.le.s32.totalorder 1, %s25
    %p464 = scmp.lt.s32.totalorder %s25, 3
    %p465 = pnand %p463, %p464
    %p466 = pneg %p465
    // Predicated region
    $region9: #{encoder_forward.6} parent=5 // pred_check
      _
    $region10: #{encoder_forward.6} parent=5 // pred_check_branch
      %468 = sbr.rel (%p465) target = $region12
    $region11: #{encoder_forward.6} parent=5 // pred_region
      %s469 = ssub.s32 %s25, 1
      // Predicated region
      $region13: #{encoder_forward.6} parent=11 // pred_check
        %p470 = pneg %p72
      $region14: #{encoder_forward.6} parent=11 // pred_check_branch
        %472 = sbr.rel (%p470) target = $region16
      $region15: #{encoder_forward.6} parent=11 // pred_region
        _
      $region16: #{encoder_forward.6} parent=11 // pred_fallthru
        _
      // Predicated region
      $region17: #{encoder_forward.6} parent=11 // pred_check
        %p473 = pneg %p93
      $region18: #{encoder_forward.6} parent=11 // pred_check_branch
        %475 = sbr.rel (%p473) target = $region20
      $region19: #{encoder_forward.6} parent=11 // pred_region
        _
      $region20: #{encoder_forward.6} parent=11 // pred_fallthru
        _
      // Predicated region
      $region21: #{encoder_forward.6} parent=11 // pred_check
        %p476 = pneg %p114
      $region22: #{encoder_forward.6} parent=11 // pred_check_branch
        %478 = sbr.rel (%p476) target = $region24
      $region23: #{encoder_forward.6} parent=11 // pred_region
        _
      $region24: #{encoder_forward.6} parent=11 // pred_fallthru
        _
      // Predicated region
      $region25: #{encoder_forward.6} parent=11 // pred_check
        %p479 = pneg %p135
      $region26: #{encoder_forward.6} parent=11 // pred_check_branch
        %481 = sbr.rel (%p479) target = $region28
      $region27: #{encoder_forward.6} parent=11 // pred_region
        _
      $region28: #{encoder_forward.6} parent=11 // pred_fallthru
        _
      // Predicated region
      $region29: #{encoder_forward.6} parent=11 // pred_check
        %p482 = pneg %p156
      $region30: #{encoder_forward.6} parent=11 // pred_check_branch
        %484 = sbr.rel (%p482) target = $region32
      $region31: #{encoder_forward.6} parent=11 // pred_region
        _
      $region32: #{encoder_forward.6} parent=11 // pred_fallthru
        _
      // Predicated region
      $region33: #{encoder_forward.6} parent=11 // pred_check
        %p485 = pneg %p177
      $region34: #{encoder_forward.6} parent=11 // pred_check_branch
        %487 = sbr.rel (%p485) target = $region36
      $region35: #{encoder_forward.6} parent=11 // pred_region
        _
      $region36: #{encoder_forward.6} parent=11 // pred_fallthru
        _
      // Predicated region
      $region37: #{encoder_forward.6} parent=11 // pred_check
        %p488 = pneg %p198
      $region38: #{encoder_forward.6} parent=11 // pred_check_branch
        %490 = sbr.rel (%p488) target = $region40
      $region39: #{encoder_forward.6} parent=11 // pred_region
        _
      $region40: #{encoder_forward.6} parent=11 // pred_fallthru
        _
      // Predicated region
      $region41: #{encoder_forward.6} parent=11 // pred_check
        %p491 = pneg %p219
      $region42: #{encoder_forward.6} parent=11 // pred_check_branch
        %493 = sbr.rel (%p491) target = $region44
      $region43: #{encoder_forward.6} parent=11 // pred_region
        _
      $region44: #{encoder_forward.6} parent=11 // pred_fallthru
        _
      // Predicated region
      $region45: #{encoder_forward.6} parent=11 // pred_check
        %p494 = pneg %p240
      $region46: #{encoder_forward.6} parent=11 // pred_check_branch
        %496 = sbr.rel (%p494) target = $region48
      $region47: #{encoder_forward.6} parent=11 // pred_region
        _
      $region48: #{encoder_forward.6} parent=11 // pred_fallthru
        _
      // Predicated region
      $region49: #{encoder_forward.6} parent=11 // pred_check
        %p497 = pneg %p261
      $region50: #{encoder_forward.6} parent=11 // pred_check_branch
        %499 = sbr.rel (%p497) target = $region52
      $region51: #{encoder_forward.6} parent=11 // pred_region
        _
      $region52: #{encoder_forward.6} parent=11 // pred_fallthru
        _
      // Predicated region
      $region53: #{encoder_forward.6} parent=11 // pred_check
        %p500 = pneg %p282
      $region54: #{encoder_forward.6} parent=11 // pred_check_branch
        %502 = sbr.rel (%p500) target = $region56
      $region55: #{encoder_forward.6} parent=11 // pred_region
        _
      $region56: #{encoder_forward.6} parent=11 // pred_fallthru
        _
      // Predicated region
      $region57: #{encoder_forward.6} parent=11 // pred_check
        %p503 = pneg %p303
      $region58: #{encoder_forward.6} parent=11 // pred_check_branch
        %505 = sbr.rel (%p503) target = $region60
      $region59: #{encoder_forward.6} parent=11 // pred_region
        _
      $region60: #{encoder_forward.6} parent=11 // pred_fallthru
        _
      // Predicated region
      $region61: #{encoder_forward.6} parent=11 // pred_check
        %p506 = pneg %p324
      $region62: #{encoder_forward.6} parent=11 // pred_check_branch
        %508 = sbr.rel (%p506) target = $region64
      $region63: #{encoder_forward.6} parent=11 // pred_region
        _
      $region64: #{encoder_forward.6} parent=11 // pred_fallthru
        _
      // Predicated region
      $region65: #{encoder_forward.6} parent=11 // pred_check
        %p509 = pneg %p345
      $region66: #{encoder_forward.6} parent=11 // pred_check_branch
        %511 = sbr.rel (%p509) target = $region68
      $region67: #{encoder_forward.6} parent=11 // pred_region
        _
      $region68: #{encoder_forward.6} parent=11 // pred_fallthru
        _
      // Predicated region
      $region69: #{encoder_forward.6} parent=11 // pred_check
        %p512 = pneg %p366
      $region70: #{encoder_forward.6} parent=11 // pred_check_branch
        %514 = sbr.rel (%p512) target = $region72
      $region71: #{encoder_forward.6} parent=11 // pred_region
        _
      $region72: #{encoder_forward.6} parent=11 // pred_fallthru
        _
      // Predicated region
      $region73: #{encoder_forward.6} parent=11 // pred_check
        %p515 = pneg %p387
      $region74: #{encoder_forward.6} parent=11 // pred_check_branch
        %517 = sbr.rel (%p515) target = $region76
      $region75: #{encoder_forward.6} parent=11 // pred_region
        _
      $region76: #{encoder_forward.6} parent=11 // pred_fallthru
        _
      // Predicated region
      $region77: #{encoder_forward.6} parent=11 // pred_check
        %p518 = pneg %p408
      $region78: #{encoder_forward.6} parent=11 // pred_check_branch
        %520 = sbr.rel (%p518) target = $region80
      $region79: #{encoder_forward.6} parent=11 // pred_region
        _
      $region80: #{encoder_forward.6} parent=11 // pred_fallthru
        _
      // Predicated region
      $region81: #{encoder_forward.6} parent=11 // pred_check
        %p521 = pneg %p429
      $region82: #{encoder_forward.6} parent=11 // pred_check_branch
        %523 = sbr.rel (%p521) target = $region84
      $region83: #{encoder_forward.6} parent=11 // pred_region
        _
      $region84: #{encoder_forward.6} parent=11 // pred_fallthru
        _
    $region12: #{encoder_forward.6} parent=5 // pred_fallthru
      _
    %p524 = scmp.lt.s32.totalorder %s25, 2
    // Predicated region
    $region85: #{encoder_forward.6} parent=5 // pred_check
      %p525 = pneg %p524
    $region86: #{encoder_forward.6} parent=5 // pred_check_branch
      %527 = sbr.rel (%p525) target = $region88
    $region87: #{encoder_forward.6} parent=5 // pred_region
      // Predicated region
      $region89: #{encoder_forward.6} parent=87 // pred_check
        %p528 = pneg %p45
      $region90: #{encoder_forward.6} parent=87 // pred_check_branch
        %530 = sbr.rel (%p528) target = $region92
      $region91: #{encoder_forward.6} parent=87 // pred_region
        %p531 = scmp.lt.s32.totalorder %s25, 1
        %s532 = scalar_select %p531, %s25, 1
        %s533 = smul.addr %s532, 32
        %s534 = smul.addr %s533, 8
        %s535 = scalar_lea.vmem %s0, %s534
      $region92: #{encoder_forward.6} parent=87 // pred_fallthru
        _
    $region88: #{encoder_forward.6} parent=5 // pred_fallthru
      _
    %p536 = scmp.le.s32.totalorder 1, %s25
    %p537 = scmp.lt.s32.totalorder %s25, 3
    %p538 = pnand %p536, %p537
    %p539 = pneg %p538
    // Predicated region
    $region93: #{encoder_forward.6} parent=5 // pred_check
      _
    $region94: #{encoder_forward.6} parent=5 // pred_check_branch
      %541 = sbr.rel (%p538) target = $region96
    $region95: #{encoder_forward.6} parent=5 // pred_region
      %s542 = ssub.s32 %s25, 1
      %p543 = scmp.lt.s32.totalorder %s30, 1
      %s544 = scalar_select %p543, %s30, 1
      %s545 = smul.addr %s544, 32
      %s546 = smul.addr %s545, 8
      %s547 = scalar_lea.vmem %s0, %s546
      %p548 = pneg %p51
      %p549 = pneg %p48
      %p550 = pneg %p72
      %p551 = pneg %p69
      %p552 = pneg %p93
      %p553 = pneg %p90
      %p554 = pneg %p114
      %p555 = pneg %p111
      %p556 = pneg %p135
      %p557 = pneg %p132
      %p558 = pneg %p156
      %p559 = pneg %p153
      %p560 = pneg %p177
      %p561 = pneg %p174
      %p562 = pneg %p198
      %p563 = pneg %p195
      %p564 = pneg %p219
      %p565 = pneg %p216
      %p566 = pneg %p240
      %p567 = pneg %p237
      %p568 = pneg %p261
      %p569 = pneg %p258
      %p570 = pneg %p282
      %p571 = pneg %p279
      %p572 = pneg %p303
      %p573 = pneg %p300
      %p574 = pneg %p324
      %p575 = pneg %p321
      %p576 = pneg %p345
      %p577 = pneg %p342
      %p578 = pneg %p366
      %p579 = pneg %p363
      %p580 = pneg %p387
      %p581 = pneg %p384
      %p582 = pneg %p408
      %p583 = pneg %p405
      %p584 = pneg %p429
      %p585 = pneg %p426
      %p586 = pneg %p455
      %p587 = pneg %p452
      %p588 = scmp.lt.s32.totalorder %s30, 1
      %s589 = scalar_select %p588, %s30, 1
      %s590 = smul.addr %s589, 32
      %s591 = smul.addr %s590, 8
      %s592 = scalar_lea.vmem %s19, %s591
      %p593 = scmp.lt.s32.totalorder %s30, 1
      %s594 = scalar_select %p593, %s30, 1
      %s595 = smul.addr %s594, 32
      %s596 = smul.addr %s595, 8
      %s597 = scalar_lea.vmem %s0, %s596
      %p598 = scmp.lt.s32.totalorder %s30, 1
      %s599 = scalar_select %p598, %s30, 1
      %s600 = smul.addr %s599, 32
      %s601 = smul.addr %s600, 8
      %s602 = scalar_lea.vmem %s19, %s601
      %v603 = vld [vmem:[%s597] sm:$0xff]
      %v604 = vld [vmem:[%s597 + $0x8] sm:$0xff]
      %v605 = vld [vmem:[%s597 + $0x10] sm:$0xff]
      %v606 = vld [vmem:[%s597 + $0x18] sm:$0xff]
      %v607 = vld [vmem:[%s597 + $0x20] sm:$0xff]
      %v608 = vld [vmem:[%s597 + $0x28] sm:$0xff]
      %v609 = vld [vmem:[%s597 + $0x30] sm:$0xff]
      %v610 = vld [vmem:[%s597 + $0x38] sm:$0xff]
      %v611 = vld [vmem:[%s597 + $0x40] sm:$0xff]
      %v612 = vld [vmem:[%s597 + $0x48] sm:$0xff]
      %v613 = vld [vmem:[%s597 + $0x50] sm:$0xff]
      %v614 = vld [vmem:[%s597 + $0x58] sm:$0xff]
      %v615 = vld [vmem:[%s597 + $0x60] sm:$0xff]
      %v616 = vld [vmem:[%s597 + $0x68] sm:$0xff]
      %v617 = vld [vmem:[%s597 + $0x70] sm:$0xff]
      %v618 = vld [vmem:[%s597 + $0x78] sm:$0xff]
      %v619 = vld [vmem:[%s597 + $0x80] sm:$0xff]
      %v620 = vld [vmem:[%s597 + $0x88] sm:$0xff]
      %v621 = vld [vmem:[%s597 + $0x90] sm:$0xff]
      %v622 = vld [vmem:[%s597 + $0x98] sm:$0xff]
      %v623 = vld [vmem:[%s597 + $0xa0] sm:$0xff]
      %v624 = vld [vmem:[%s597 + $0xa8] sm:$0xff]
      %v625 = vld [vmem:[%s597 + $0xb0] sm:$0xff]
      %v626 = vld [vmem:[%s597 + $0xb8] sm:$0xff]
      %v627 = vld [vmem:[%s597 + $0xc0] sm:$0xff]
      %v628 = vld [vmem:[%s597 + $0xc8] sm:$0xff]
      %v629 = vld [vmem:[%s597 + $0xd0] sm:$0xff]
      %v630 = vld [vmem:[%s597 + $0xd8] sm:$0xff]
      %v631 = vld [vmem:[%s597 + $0xe0] sm:$0xff]
      %v632 = vld [vmem:[%s597 + $0xe8] sm:$0xff]
      %v633 = vld [vmem:[%s597 + $0xf0] sm:$0xff]
      %v634 = vld [vmem:[%s597 + $0xf8] sm:$0xff]
      %vm635 = vcmask 130048
      %v636 = vsel %vm635, %v603, 0.0
      %637 = vadd.xlane.f32.xlu0 %v636
      %v638 = vpop.xlane.xlu0 %637
      %v639 = vsel %vm635, %v604, 0.0
      %640 = vadd.xlane.f32.xlu0 %v639
      %v641 = vpop.xlane.xlu0 %640
      %v642 = vsel %vm635, %v605, 0.0
      %643 = vadd.xlane.f32.xlu0 %v642
      %v644 = vpop.xlane.xlu0 %643
      %v645 = vsel %vm635, %v606, 0.0
      %646 = vadd.xlane.f32.xlu0 %v645
      %v647 = vpop.xlane.xlu0 %646
      %v648 = vsel %vm635, %v607, 0.0
      %649 = vadd.xlane.f32.xlu0 %v648
      %v650 = vpop.xlane.xlu0 %649
      %v651 = vsel %vm635, %v608, 0.0
      %652 = vadd.xlane.f32.xlu0 %v651
      %v653 = vpop.xlane.xlu0 %652
      %v654 = vsel %vm635, %v609, 0.0
      %655 = vadd.xlane.f32.xlu0 %v654
      %v656 = vpop.xlane.xlu0 %655
      %v657 = vsel %vm635, %v610, 0.0
      %658 = vadd.xlane.f32.xlu0 %v657
      %v659 = vpop.xlane.xlu0 %658
      %v660 = vsel %vm635, %v611, 0.0
      %661 = vadd.xlane.f32.xlu0 %v660
      %v662 = vpop.xlane.xlu0 %661
      %v663 = vsel %vm635, %v612, 0.0
      %664 = vadd.xlane.f32.xlu0 %v663
      %v665 = vpop.xlane.xlu0 %664
      %v666 = vsel %vm635, %v613, 0.0
      %667 = vadd.xlane.f32.xlu0 %v666
      %v668 = vpop.xlane.xlu0 %667
      %v669 = vsel %vm635, %v614, 0.0
      %670 = vadd.xlane.f32.xlu0 %v669
      %v671 = vpop.xlane.xlu0 %670
      %v672 = vsel %vm635, %v615, 0.0
      %673 = vadd.xlane.f32.xlu0 %v672
      %v674 = vpop.xlane.xlu0 %673
      %v675 = vsel %vm635, %v616, 0.0
      %676 = vadd.xlane.f32.xlu0 %v675
      %v677 = vpop.xlane.xlu0 %676
      %v678 = vsel %vm635, %v617, 0.0
      %679 = vadd.xlane.f32.xlu0 %v678
      %v680 = vpop.xlane.xlu0 %679
      %v681 = vsel %vm635, %v618, 0.0
      %682 = vadd.xlane.f32.xlu0 %v681
      %v683 = vpop.xlane.xlu0 %682
      %v684 = vsel %vm635, %v619, 0.0
      %685 = vadd.xlane.f32.xlu0 %v684
      %v686 = vpop.xlane.xlu0 %685
      %v687 = vsel %vm635, %v620, 0.0
      %688 = vadd.xlane.f32.xlu0 %v687
      %v689 = vpop.xlane.xlu0 %688
      %v690 = vsel %vm635, %v621, 0.0
      %691 = vadd.xlane.f32.xlu0 %v690
      %v692 = vpop.xlane.xlu0 %691
      %v693 = vsel %vm635, %v622, 0.0
      %694 = vadd.xlane.f32.xlu0 %v693
      %v695 = vpop.xlane.xlu0 %694
      %v696 = vsel %vm635, %v623, 0.0
      %697 = vadd.xlane.f32.xlu0 %v696
      %v698 = vpop.xlane.xlu0 %697
      %v699 = vsel %vm635, %v624, 0.0
      %700 = vadd.xlane.f32.xlu0 %v699
      %v701 = vpop.xlane.xlu0 %700
      %v702 = vsel %vm635, %v625, 0.0
      %703 = vadd.xlane.f32.xlu0 %v702
      %v704 = vpop.xlane.xlu0 %703
      %v705 = vsel %vm635, %v626, 0.0
      %706 = vadd.xlane.f32.xlu0 %v705
      %v707 = vpop.xlane.xlu0 %706
      %v708 = vsel %vm635, %v627, 0.0
      %709 = vadd.xlane.f32.xlu0 %v708
      %v710 = vpop.xlane.xlu0 %709
      %v711 = vsel %vm635, %v628, 0.0
      %712 = vadd.xlane.f32.xlu0 %v711
      %v713 = vpop.xlane.xlu0 %712
      %v714 = vsel %vm635, %v629, 0.0
      %715 = vadd.xlane.f32.xlu0 %v714
      %v716 = vpop.xlane.xlu0 %715
      %v717 = vsel %vm635, %v630, 0.0
      %718 = vadd.xlane.f32.xlu0 %v717
      %v719 = vpop.xlane.xlu0 %718
      %v720 = vsel %vm635, %v631, 0.0
      %721 = vadd.xlane.f32.xlu0 %v720
      %v722 = vpop.xlane.xlu0 %721
      %v723 = vsel %vm635, %v632, 0.0
      %724 = vadd.xlane.f32.xlu0 %v723
      %v725 = vpop.xlane.xlu0 %724
      %v726 = vsel %vm635, %v633, 0.0
      %727 = vadd.xlane.f32.xlu0 %v726
      %v728 = vpop.xlane.xlu0 %727
      %v729 = vsel %vm635, %v634, 0.0
      %730 = vadd.xlane.f32.xlu0 %v729
      %v731 = vpop.xlane.xlu0 %730
      %v732 = vrcp.pop 16.0
      %v733 = vmul.f32 16.0, %v732
      %v734 = vsub.f32 1.0, %v733
      %v735 = vmul.f32 %v732, %v734
      %v736 = vadd.f32 %v732, %v735
      %vm737 = vweird.f32 %v732
      %v738 = vsel %vm737, %v732, %v736
      %v739 = vmul.f32 %v638, %v738
      %v740 = vmul.f32 %v641, %v738
      %v741 = vmul.f32 %v644, %v738
      %v742 = vmul.f32 %v647, %v738
      %v743 = vmul.f32 %v650, %v738
      %v744 = vmul.f32 %v653, %v738
      %v745 = vmul.f32 %v656, %v738
      %v746 = vmul.f32 %v659, %v738
      %v747 = vmul.f32 %v662, %v738
      %v748 = vmul.f32 %v665, %v738
      %v749 = vmul.f32 %v668, %v738
      %v750 = vmul.f32 %v671, %v738
      %v751 = vmul.f32 %v674, %v738
      %v752 = vmul.f32 %v677, %v738
      %v753 = vmul.f32 %v680, %v738
      %v754 = vmul.f32 %v683, %v738
      %v755 = vmul.f32 %v686, %v738
      %v756 = vmul.f32 %v689, %v738
      %v757 = vmul.f32 %v692, %v738
      %v758 = vmul.f32 %v695, %v738
      %v759 = vmul.f32 %v698, %v738
      %v760 = vmul.f32 %v701, %v738
      %v761 = vmul.f32 %v704, %v738
      %v762 = vmul.f32 %v707, %v738
      %v763 = vmul.f32 %v710, %v738
      %v764 = vmul.f32 %v713, %v738
      %v765 = vmul.f32 %v716, %v738
      %v766 = vmul.f32 %v719, %v738
      %v767 = vmul.f32 %v722, %v738
      %v768 = vmul.f32 %v725, %v738
      %v769 = vmul.f32 %v728, %v738
      %v770 = vmul.f32 %v731, %v738
      %v771 = vsub.f32 %v603, %v739
      %v772 = vsub.f32 %v604, %v740
      %v773 = vsub.f32 %v605, %v741
      %v774 = vsub.f32 %v606, %v742
      %v775 = vsub.f32 %v607, %v743
      %v776 = vsub.f32 %v608, %v744
      %v777 = vsub.f32 %v609, %v745
      %v778 = vsub.f32 %v610, %v746
      %v779 = vsub.f32 %v611, %v747
      %v780 = vsub.f32 %v612, %v748
      %v781 = vsub.f32 %v613, %v749
      %v782 = vsub.f32 %v614, %v750
      %v783 = vsub.f32 %v615, %v751
      %v784 = vsub.f32 %v616, %v752
      %v785 = vsub.f32 %v617, %v753
      %v786 = vsub.f32 %v618, %v754
      %v787 = vsub.f32 %v619, %v755
      %v788 = vsub.f32 %v620, %v756
      %v789 = vsub.f32 %v621, %v757
      %v790 = vsub.f32 %v622, %v758
      %v791 = vsub.f32 %v623, %v759
      %v792 = vsub.f32 %v624, %v760
      %v793 = vsub.f32 %v625, %v761
      %v794 = vsub.f32 %v626, %v762
      %v795 = vsub.f32 %v627, %v763
      %v796 = vsub.f32 %v628, %v764
      %v797 = vsub.f32 %v629, %v765
      %v798 = vsub.f32 %v630, %v766
      %v799 = vsub.f32 %v631, %v767
      %v800 = vsub.f32 %v632, %v768
      %v801 = vsub.f32 %v633, %v769
      %v802 = vsub.f32 %v634, %v770
      %v803 = vmul.f32 %v771, %v771
      %v804 = vmul.f32 %v772, %v772
      %v805 = vmul.f32 %v773, %v773
      %v806 = vmul.f32 %v774, %v774
      %v807 = vmul.f32 %v775, %v775
      %v808 = vmul.f32 %v776, %v776
      %v809 = vmul.f32 %v777, %v777
      %v810 = vmul.f32 %v778, %v778
      %v811 = vmul.f32 %v779, %v779
      %v812 = vmul.f32 %v780, %v780
      %v813 = vmul.f32 %v781, %v781
      %v814 = vmul.f32 %v782, %v782
      %v815 = vmul.f32 %v783, %v783
      %v816 = vmul.f32 %v784, %v784
      %v817 = vmul.f32 %v785, %v785
      %v818 = vmul.f32 %v786, %v786
      %v819 = vmul.f32 %v787, %v787
      %v820 = vmul.f32 %v788, %v788
      %v821 = vmul.f32 %v789, %v789
      %v822 = vmul.f32 %v790, %v790
      %v823 = vmul.f32 %v791, %v791
      %v824 = vmul.f32 %v792, %v792
      %v825 = vmul.f32 %v793, %v793
      %v826 = vmul.f32 %v794, %v794
      %v827 = vmul.f32 %v795, %v795
      %v828 = vmul.f32 %v796, %v796
      %v829 = vmul.f32 %v797, %v797
      %v830 = vmul.f32 %v798, %v798
      %v831 = vmul.f32 %v799, %v799
      %v832 = vmul.f32 %v800, %v800
      %v833 = vmul.f32 %v801, %v801
      %v834 = vmul.f32 %v802, %v802
      %v835 = vsel %vm635, %v803, 0.0
      %836 = vadd.xlane.f32.xlu0 %v835
      %v837 = vpop.xlane.xlu0 %836
      %v838 = vsel %vm635, %v804, 0.0
      %839 = vadd.xlane.f32.xlu0 %v838
      %v840 = vpop.xlane.xlu0 %839
      %v841 = vsel %vm635, %v805, 0.0
      %842 = vadd.xlane.f32.xlu0 %v841
      %v843 = vpop.xlane.xlu0 %842
      %v844 = vsel %vm635, %v806, 0.0
      %845 = vadd.xlane.f32.xlu0 %v844
      %v846 = vpop.xlane.xlu0 %845
      %v847 = vsel %vm635, %v807, 0.0
      %848 = vadd.xlane.f32.xlu0 %v847
      %v849 = vpop.xlane.xlu0 %848
      %v850 = vsel %vm635, %v808, 0.0
      %851 = vadd.xlane.f32.xlu0 %v850
      %v852 = vpop.xlane.xlu0 %851
      %v853 = vsel %vm635, %v809, 0.0
      %854 = vadd.xlane.f32.xlu0 %v853
      %v855 = vpop.xlane.xlu0 %854
      %v856 = vsel %vm635, %v810, 0.0
      %857 = vadd.xlane.f32.xlu0 %v856
      %v858 = vpop.xlane.xlu0 %857
      %v859 = vsel %vm635, %v811, 0.0
      %860 = vadd.xlane.f32.xlu0 %v859
      %v861 = vpop.xlane.xlu0 %860
      %v862 = vsel %vm635, %v812, 0.0
      %863 = vadd.xlane.f32.xlu0 %v862
      %v864 = vpop.xlane.xlu0 %863
      %v865 = vsel %vm635, %v813, 0.0
      %866 = vadd.xlane.f32.xlu0 %v865
      %v867 = vpop.xlane.xlu0 %866
      %v868 = vsel %vm635, %v814, 0.0
      %869 = vadd.xlane.f32.xlu0 %v868
      %v870 = vpop.xlane.xlu0 %869
      %v871 = vsel %vm635, %v815, 0.0
      %872 = vadd.xlane.f32.xlu0 %v871
      %v873 = vpop.xlane.xlu0 %872
      %v874 = vsel %vm635, %v816, 0.0
      %875 = vadd.xlane.f32.xlu0 %v874
      %v876 = vpop.xlane.xlu0 %875
      %v877 = vsel %vm635, %v817, 0.0
      %878 = vadd.xlane.f32.xlu0 %v877
      %v879 = vpop.xlane.xlu0 %878
      %v880 = vsel %vm635, %v818, 0.0
      %881 = vadd.xlane.f32.xlu0 %v880
      %v882 = vpop.xlane.xlu0 %881
      %v883 = vsel %vm635, %v819, 0.0
      %884 = vadd.xlane.f32.xlu0 %v883
      %v885 = vpop.xlane.xlu0 %884
      %v886 = vsel %vm635, %v820, 0.0
      %887 = vadd.xlane.f32.xlu0 %v886
      %v888 = vpop.xlane.xlu0 %887
      %v889 = vsel %vm635, %v821, 0.0
      %890 = vadd.xlane.f32.xlu0 %v889
      %v891 = vpop.xlane.xlu0 %890
      %v892 = vsel %vm635, %v822, 0.0
      %893 = vadd.xlane.f32.xlu0 %v892
      %v894 = vpop.xlane.xlu0 %893
      %v895 = vsel %vm635, %v823, 0.0
      %896 = vadd.xlane.f32.xlu0 %v895
      %v897 = vpop.xlane.xlu0 %896
      %v898 = vsel %vm635, %v824, 0.0
      %899 = vadd.xlane.f32.xlu0 %v898
      %v900 = vpop.xlane.xlu0 %899
      %v901 = vsel %vm635, %v825, 0.0
      %902 = vadd.xlane.f32.xlu0 %v901
      %v903 = vpop.xlane.xlu0 %902
      %v904 = vsel %vm635, %v826, 0.0
      %905 = vadd.xlane.f32.xlu0 %v904
      %v906 = vpop.xlane.xlu0 %905
      %v907 = vsel %vm635, %v827, 0.0
      %908 = vadd.xlane.f32.xlu0 %v907
      %v909 = vpop.xlane.xlu0 %908
      %v910 = vsel %vm635, %v828, 0.0
      %911 = vadd.xlane.f32.xlu0 %v910
      %v912 = vpop.xlane.xlu0 %911
      %v913 = vsel %vm635, %v829, 0.0
      %914 = vadd.xlane.f32.xlu0 %v913
      %v915 = vpop.xlane.xlu0 %914
      %v916 = vsel %vm635, %v830, 0.0
      %917 = vadd.xlane.f32.xlu0 %v916
      %v918 = vpop.xlane.xlu0 %917
      %v919 = vsel %vm635, %v831, 0.0
      %920 = vadd.xlane.f32.xlu0 %v919
      %v921 = vpop.xlane.xlu0 %920
      %v922 = vsel %vm635, %v832, 0.0
      %923 = vadd.xlane.f32.xlu0 %v922
      %v924 = vpop.xlane.xlu0 %923
      %v925 = vsel %vm635, %v833, 0.0
      %926 = vadd.xlane.f32.xlu0 %v925
      %v927 = vpop.xlane.xlu0 %926
      %v928 = vsel %vm635, %v834, 0.0
      %929 = vadd.xlane.f32.xlu0 %v928
      %v930 = vpop.xlane.xlu0 %929
      %v931 = vmul.f32 %v837, %v738
      %v932 = vmul.f32 %v840, %v738
      %v933 = vmul.f32 %v843, %v738
      %v934 = vmul.f32 %v846, %v738
      %v935 = vmul.f32 %v849, %v738
      %v936 = vmul.f32 %v852, %v738
      %v937 = vmul.f32 %v855, %v738
      %v938 = vmul.f32 %v858, %v738
      %v939 = vmul.f32 %v861, %v738
      %v940 = vmul.f32 %v864, %v738
      %v941 = vmul.f32 %v867, %v738
      %v942 = vmul.f32 %v870, %v738
      %v943 = vmul.f32 %v873, %v738
      %v944 = vmul.f32 %v876, %v738
      %v945 = vmul.f32 %v879, %v738
      %v946 = vmul.f32 %v882, %v738
      %v947 = vmul.f32 %v885, %v738
      %v948 = vmul.f32 %v888, %v738
      %v949 = vmul.f32 %v891, %v738
      %v950 = vmul.f32 %v894, %v738
      %v951 = vmul.f32 %v897, %v738
      %v952 = vmul.f32 %v900, %v738
      %v953 = vmul.f32 %v903, %v738
      %v954 = vmul.f32 %v906, %v738
      %v955 = vmul.f32 %v909, %v738
      %v956 = vmul.f32 %v912, %v738
      %v957 = vmul.f32 %v915, %v738
      %v958 = vmul.f32 %v918, %v738
      %v959 = vmul.f32 %v921, %v738
      %v960 = vmul.f32 %v924, %v738
      %v961 = vmul.f32 %v927, %v738
      %v962 = vmul.f32 %v930, %v738
      %v963 = vadd.f32 %v931, 1e-06
      %v964 = vadd.f32 %v932, 1e-06
      %v965 = vadd.f32 %v933, 1e-06
      %v966 = vadd.f32 %v934, 1e-06
      %v967 = vadd.f32 %v935, 1e-06
      %v968 = vadd.f32 %v936, 1e-06
      %v969 = vadd.f32 %v937, 1e-06
      %v970 = vadd.f32 %v938, 1e-06
      %v971 = vadd.f32 %v939, 1e-06
      %v972 = vadd.f32 %v940, 1e-06
      %v973 = vadd.f32 %v941, 1e-06
      %v974 = vadd.f32 %v942, 1e-06
      %v975 = vadd.f32 %v943, 1e-06
      %v976 = vadd.f32 %v944, 1e-06
      %v977 = vadd.f32 %v945, 1e-06
      %v978 = vadd.f32 %v946, 1e-06
      %v979 = vadd.f32 %v947, 1e-06
      %v980 = vadd.f32 %v948, 1e-06
      %v981 = vadd.f32 %v949, 1e-06
      %v982 = vadd.f32 %v950, 1e-06
      %v983 = vadd.f32 %v951, 1e-06
      %v984 = vadd.f32 %v952, 1e-06
      %v985 = vadd.f32 %v953, 1e-06
      %v986 = vadd.f32 %v954, 1e-06
      %v987 = vadd.f32 %v955, 1e-06
      %v988 = vadd.f32 %v956, 1e-06
      %v989 = vadd.f32 %v957, 1e-06
      %v990 = vadd.f32 %v958, 1e-06
      %v991 = vadd.f32 %v959, 1e-06
      %v992 = vadd.f32 %v960, 1e-06
      %v993 = vadd.f32 %v961, 1e-06
      %v994 = vadd.f32 %v962, 1e-06
      %v995 = vrsqrt.pop %v963
      %v996 = vmul.f32 %v995, %v963
      %v997 = vmul.f32 %v996, %v995
      %v998 = vmul.f32 0.5, %v997
      %v999 = vsub.f32 1.5, %v998
      %v1000 = vmul.f32 %v995, %v999
      %vm1001 = vweird.f32 %v963
      %vm1002 = vweird.f32 %v995
      %vm1003 = vmor %vm1001, %vm1002
      %v1004 = vsel %vm1003, %v995, %v1000
      %v1005 = vrsqrt.pop %v964
      %v1006 = vmul.f32 %v1005, %v964
      %v1007 = vmul.f32 %v1006, %v1005
      %v1008 = vmul.f32 0.5, %v1007
      %v1009 = vsub.f32 1.5, %v1008
      %v1010 = vmul.f32 %v1005, %v1009
      %vm1011 = vweird.f32 %v964
      %vm1012 = vweird.f32 %v1005
      %vm1013 = vmor %vm1011, %vm1012
      %v1014 = vsel %vm1013, %v1005, %v1010
      %v1015 = vrsqrt.pop %v965
      %v1016 = vmul.f32 %v1015, %v965
      %v1017 = vmul.f32 %v1016, %v1015
      %v1018 = vmul.f32 0.5, %v1017
      %v1019 = vsub.f32 1.5, %v1018
      %v1020 = vmul.f32 %v1015, %v1019
      %vm1021 = vweird.f32 %v965
      %vm1022 = vweird.f32 %v1015
      %vm1023 = vmor %vm1021, %vm1022
      %v1024 = vsel %vm1023, %v1015, %v1020
      %v1025 = vrsqrt.pop %v966
      %v1026 = vmul.f32 %v1025, %v966
      %v1027 = vmul.f32 %v1026, %v1025
      %v1028 = vmul.f32 0.5, %v1027
      %v1029 = vsub.f32 1.5, %v1028
      %v1030 = vmul.f32 %v1025, %v1029
      %vm1031 = vweird.f32 %v966
      %vm1032 = vweird.f32 %v1025
      %vm1033 = vmor %vm1031, %vm1032
      %v1034 = vsel %vm1033, %v1025, %v1030
      %v1035 = vrsqrt.pop %v967
      %v1036 = vmul.f32 %v1035, %v967
      %v1037 = vmul.f32 %v1036, %v1035
      %v1038 = vmul.f32 0.5, %v1037
      %v1039 = vsub.f32 1.5, %v1038
      %v1040 = vmul.f32 %v1035, %v1039
      %vm1041 = vweird.f32 %v967
      %vm1042 = vweird.f32 %v1035
      %vm1043 = vmor %vm1041, %vm1042
      %v1044 = vsel %vm1043, %v1035, %v1040
      %v1045 = vrsqrt.pop %v968
      %v1046 = vmul.f32 %v1045, %v968
      %v1047 = vmul.f32 %v1046, %v1045
      %v1048 = vmul.f32 0.5, %v1047
      %v1049 = vsub.f32 1.5, %v1048
      %v1050 = vmul.f32 %v1045, %v1049
      %vm1051 = vweird.f32 %v968
      %vm1052 = vweird.f32 %v1045
      %vm1053 = vmor %vm1051, %vm1052
      %v1054 = vsel %vm1053, %v1045, %v1050
      %v1055 = vrsqrt.pop %v969
      %v1056 = vmul.f32 %v1055, %v969
      %v1057 = vmul.f32 %v1056, %v1055
      %v1058 = vmul.f32 0.5, %v1057
      %v1059 = vsub.f32 1.5, %v1058
      %v1060 = vmul.f32 %v1055, %v1059
      %vm1061 = vweird.f32 %v969
      %vm1062 = vweird.f32 %v1055
      %vm1063 = vmor %vm1061, %vm1062
      %v1064 = vsel %vm1063, %v1055, %v1060
      %v1065 = vrsqrt.pop %v970
      %v1066 = vmul.f32 %v1065, %v970
      %v1067 = vmul.f32 %v1066, %v1065
      %v1068 = vmul.f32 0.5, %v1067
      %v1069 = vsub.f32 1.5, %v1068
      %v1070 = vmul.f32 %v1065, %v1069
      %vm1071 = vweird.f32 %v970
      %vm1072 = vweird.f32 %v1065
      %vm1073 = vmor %vm1071, %vm1072
      %v1074 = vsel %vm1073, %v1065, %v1070
      %v1075 = vrsqrt.pop %v971
      %v1076 = vmul.f32 %v1075, %v971
      %v1077 = vmul.f32 %v1076, %v1075
      %v1078 = vmul.f32 0.5, %v1077
      %v1079 = vsub.f32 1.5, %v1078
      %v1080 = vmul.f32 %v1075, %v1079
      %vm1081 = vweird.f32 %v971
      %vm1082 = vweird.f32 %v1075
      %vm1083 = vmor %vm1081, %vm1082
      %v1084 = vsel %vm1083, %v1075, %v1080
      %v1085 = vrsqrt.pop %v972
      %v1086 = vmul.f32 %v1085, %v972
      %v1087 = vmul.f32 %v1086, %v1085
      %v1088 = vmul.f32 0.5, %v1087
      %v1089 = vsub.f32 1.5, %v1088
      %v1090 = vmul.f32 %v1085, %v1089
      %vm1091 = vweird.f32 %v972
      %vm1092 = vweird.f32 %v1085
      %vm1093 = vmor %vm1091, %vm1092
      %v1094 = vsel %vm1093, %v1085, %v1090
      %v1095 = vrsqrt.pop %v973
      %v1096 = vmul.f32 %v1095, %v973
      %v1097 = vmul.f32 %v1096, %v1095
      %v1098 = vmul.f32 0.5, %v1097
      %v1099 = vsub.f32 1.5, %v1098
      %v1100 = vmul.f32 %v1095, %v1099
      %vm1101 = vweird.f32 %v973
      %vm1102 = vweird.f32 %v1095
      %vm1103 = vmor %vm1101, %vm1102
      %v1104 = vsel %vm1103, %v1095, %v1100
      %v1105 = vrsqrt.pop %v974
      %v1106 = vmul.f32 %v1105, %v974
      %v1107 = vmul.f32 %v1106, %v1105
      %v1108 = vmul.f32 0.5, %v1107
      %v1109 = vsub.f32 1.5, %v1108
      %v1110 = vmul.f32 %v1105, %v1109
      %vm1111 = vweird.f32 %v974
      %vm1112 = vweird.f32 %v1105
      %vm1113 = vmor %vm1111, %vm1112
      %v1114 = vsel %vm1113, %v1105, %v1110
      %v1115 = vrsqrt.pop %v975
      %v1116 = vmul.f32 %v1115, %v975
      %v1117 = vmul.f32 %v1116, %v1115
      %v1118 = vmul.f32 0.5, %v1117
      %v1119 = vsub.f32 1.5, %v1118
      %v1120 = vmul.f32 %v1115, %v1119
      %vm1121 = vweird.f32 %v975
      %vm1122 = vweird.f32 %v1115
      %vm1123 = vmor %vm1121, %vm1122
      %v1124 = vsel %vm1123, %v1115, %v1120
      %v1125 = vrsqrt.pop %v976
      %v1126 = vmul.f32 %v1125, %v976
      %v1127 = vmul.f32 %v1126, %v1125
      %v1128 = vmul.f32 0.5, %v1127
      %v1129 = vsub.f32 1.5, %v1128
      %v1130 = vmul.f32 %v1125, %v1129
      %vm1131 = vweird.f32 %v976
      %vm1132 = vweird.f32 %v1125
      %vm1133 = vmor %vm1131, %vm1132
      %v1134 = vsel %vm1133, %v1125, %v1130
      %v1135 = vrsqrt.pop %v977
      %v1136 = vmul.f32 %v1135, %v977
      %v1137 = vmul.f32 %v1136, %v1135
      %v1138 = vmul.f32 0.5, %v1137
      %v1139 = vsub.f32 1.5, %v1138
      %v1140 = vmul.f32 %v1135, %v1139
      %vm1141 = vweird.f32 %v977
      %vm1142 = vweird.f32 %v1135
      %vm1143 = vmor %vm1141, %vm1142
      %v1144 = vsel %vm1143, %v1135, %v1140
      %v1145 = vrsqrt.pop %v978
      %v1146 = vmul.f32 %v1145, %v978
      %v1147 = vmul.f32 %v1146, %v1145
      %v1148 = vmul.f32 0.5, %v1147
      %v1149 = vsub.f32 1.5, %v1148
      %v1150 = vmul.f32 %v1145, %v1149
      %vm1151 = vweird.f32 %v978
      %vm1152 = vweird.f32 %v1145
      %vm1153 = vmor %vm1151, %vm1152
      %v1154 = vsel %vm1153, %v1145, %v1150
      %v1155 = vrsqrt.pop %v979
      %v1156 = vmul.f32 %v1155, %v979
      %v1157 = vmul.f32 %v1156, %v1155
      %v1158 = vmul.f32 0.5, %v1157
      %v1159 = vsub.f32 1.5, %v1158
      %v1160 = vmul.f32 %v1155, %v1159
      %vm1161 = vweird.f32 %v979
      %vm1162 = vweird.f32 %v1155
      %vm1163 = vmor %vm1161, %vm1162
      %v1164 = vsel %vm1163, %v1155, %v1160
      %v1165 = vrsqrt.pop %v980
      %v1166 = vmul.f32 %v1165, %v980
      %v1167 = vmul.f32 %v1166, %v1165
      %v1168 = vmul.f32 0.5, %v1167
      %v1169 = vsub.f32 1.5, %v1168
      %v1170 = vmul.f32 %v1165, %v1169
      %vm1171 = vweird.f32 %v980
      %vm1172 = vweird.f32 %v1165
      %vm1173 = vmor %vm1171, %vm1172
      %v1174 = vsel %vm1173, %v1165, %v1170
      %v1175 = vrsqrt.pop %v981
      %v1176 = vmul.f32 %v1175, %v981
      %v1177 = vmul.f32 %v1176, %v1175
      %v1178 = vmul.f32 0.5, %v1177
      %v1179 = vsub.f32 1.5, %v1178
      %v1180 = vmul.f32 %v1175, %v1179
      %vm1181 = vweird.f32 %v981
      %vm1182 = vweird.f32 %v1175
      %vm1183 = vmor %vm1181, %vm1182
      %v1184 = vsel %vm1183, %v1175, %v1180
      %v1185 = vrsqrt.pop %v982
      %v1186 = vmul.f32 %v1185, %v982
      %v1187 = vmul.f32 %v1186, %v1185
      %v1188 = vmul.f32 0.5, %v1187
      %v1189 = vsub.f32 1.5, %v1188
      %v1190 = vmul.f32 %v1185, %v1189
      %vm1191 = vweird.f32 %v982
      %vm1192 = vweird.f32 %v1185
      %vm1193 = vmor %vm1191, %vm1192
      %v1194 = vsel %vm1193, %v1185, %v1190
      %v1195 = vrsqrt.pop %v983
      %v1196 = vmul.f32 %v1195, %v983
      %v1197 = vmul.f32 %v1196, %v1195
      %v1198 = vmul.f32 0.5, %v1197
      %v1199 = vsub.f32 1.5, %v1198
      %v1200 = vmul.f32 %v1195, %v1199
      %vm1201 = vweird.f32 %v983
      %vm1202 = vweird.f32 %v1195
      %vm1203 = vmor %vm1201, %vm1202
      %v1204 = vsel %vm1203, %v1195, %v1200
      %v1205 = vrsqrt.pop %v984
      %v1206 = vmul.f32 %v1205, %v984
      %v1207 = vmul.f32 %v1206, %v1205
      %v1208 = vmul.f32 0.5, %v1207
      %v1209 = vsub.f32 1.5, %v1208
      %v1210 = vmul.f32 %v1205, %v1209
      %vm1211 = vweird.f32 %v984
      %vm1212 = vweird.f32 %v1205
      %vm1213 = vmor %vm1211, %vm1212
      %v1214 = vsel %vm1213, %v1205, %v1210
      %v1215 = vrsqrt.pop %v985
      %v1216 = vmul.f32 %v1215, %v985
      %v1217 = vmul.f32 %v1216, %v1215
      %v1218 = vmul.f32 0.5, %v1217
      %v1219 = vsub.f32 1.5, %v1218
      %v1220 = vmul.f32 %v1215, %v1219
      %vm1221 = vweird.f32 %v985
      %vm1222 = vweird.f32 %v1215
      %vm1223 = vmor %vm1221, %vm1222
      %v1224 = vsel %vm1223, %v1215, %v1220
      %v1225 = vrsqrt.pop %v986
      %v1226 = vmul.f32 %v1225, %v986
      %v1227 = vmul.f32 %v1226, %v1225
      %v1228 = vmul.f32 0.5, %v1227
      %v1229 = vsub.f32 1.5, %v1228
      %v1230 = vmul.f32 %v1225, %v1229
      %vm1231 = vweird.f32 %v986
      %vm1232 = vweird.f32 %v1225
      %vm1233 = vmor %vm1231, %vm1232
      %v1234 = vsel %vm1233, %v1225, %v1230
      %v1235 = vrsqrt.pop %v987
      %v1236 = vmul.f32 %v1235, %v987
      %v1237 = vmul.f32 %v1236, %v1235
      %v1238 = vmul.f32 0.5, %v1237
      %v1239 = vsub.f32 1.5, %v1238
      %v1240 = vmul.f32 %v1235, %v1239
      %vm1241 = vweird.f32 %v987
      %vm1242 = vweird.f32 %v1235
      %vm1243 = vmor %vm1241, %vm1242
      %v1244 = vsel %vm1243, %v1235, %v1240
      %v1245 = vrsqrt.pop %v988
      %v1246 = vmul.f32 %v1245, %v988
      %v1247 = vmul.f32 %v1246, %v1245
      %v1248 = vmul.f32 0.5, %v1247
      %v1249 = vsub.f32 1.5, %v1248
      %v1250 = vmul.f32 %v1245, %v1249
      %vm1251 = vweird.f32 %v988
      %vm1252 = vweird.f32 %v1245
      %vm1253 = vmor %vm1251, %vm1252
      %v1254 = vsel %vm1253, %v1245, %v1250
      %v1255 = vrsqrt.pop %v989
      %v1256 = vmul.f32 %v1255, %v989
      %v1257 = vmul.f32 %v1256, %v1255
      %v1258 = vmul.f32 0.5, %v1257
      %v1259 = vsub.f32 1.5, %v1258
      %v1260 = vmul.f32 %v1255, %v1259
      %vm1261 = vweird.f32 %v989
      %vm1262 = vweird.f32 %v1255
      %vm1263 = vmor %vm1261, %vm1262
      %v1264 = vsel %vm1263, %v1255, %v1260
      %v1265 = vrsqrt.pop %v990
      %v1266 = vmul.f32 %v1265, %v990
      %v1267 = vmul.f32 %v1266, %v1265
      %v1268 = vmul.f32 0.5, %v1267
      %v1269 = vsub.f32 1.5, %v1268
      %v1270 = vmul.f32 %v1265, %v1269
      %vm1271 = vweird.f32 %v990
      %vm1272 = vweird.f32 %v1265
      %vm1273 = vmor %vm1271, %vm1272
      %v1274 = vsel %vm1273, %v1265, %v1270
      %v1275 = vrsqrt.pop %v991
      %v1276 = vmul.f32 %v1275, %v991
      %v1277 = vmul.f32 %v1276, %v1275
      %v1278 = vmul.f32 0.5, %v1277
      %v1279 = vsub.f32 1.5, %v1278
      %v1280 = vmul.f32 %v1275, %v1279
      %vm1281 = vweird.f32 %v991
      %vm1282 = vweird.f32 %v1275
      %vm1283 = vmor %vm1281, %vm1282
      %v1284 = vsel %vm1283, %v1275, %v1280
      %v1285 = vrsqrt.pop %v992
      %v1286 = vmul.f32 %v1285, %v992
      %v1287 = vmul.f32 %v1286, %v1285
      %v1288 = vmul.f32 0.5, %v1287
      %v1289 = vsub.f32 1.5, %v1288
      %v1290 = vmul.f32 %v1285, %v1289
      %vm1291 = vweird.f32 %v992
      %vm1292 = vweird.f32 %v1285
      %vm1293 = vmor %vm1291, %vm1292
      %v1294 = vsel %vm1293, %v1285, %v1290
      %v1295 = vrsqrt.pop %v993
      %v1296 = vmul.f32 %v1295, %v993
      %v1297 = vmul.f32 %v1296, %v1295
      %v1298 = vmul.f32 0.5, %v1297
      %v1299 = vsub.f32 1.5, %v1298
      %v1300 = vmul.f32 %v1295, %v1299
      %vm1301 = vweird.f32 %v993
      %vm1302 = vweird.f32 %v1295
      %vm1303 = vmor %vm1301, %vm1302
      %v1304 = vsel %vm1303, %v1295, %v1300
      %v1305 = vrsqrt.pop %v994
      %v1306 = vmul.f32 %v1305, %v994
      %v1307 = vmul.f32 %v1306, %v1305
      %v1308 = vmul.f32 0.5, %v1307
      %v1309 = vsub.f32 1.5, %v1308
      %v1310 = vmul.f32 %v1305, %v1309
      %vm1311 = vweird.f32 %v994
      %vm1312 = vweird.f32 %v1305
      %vm1313 = vmor %vm1311, %vm1312
      %v1314 = vsel %vm1313, %v1305, %v1310
      %v1315 = vmul.f32 %v771, %v1004
      %v1316 = vmul.f32 %v772, %v1014
      %v1317 = vmul.f32 %v773, %v1024
      %v1318 = vmul.f32 %v774, %v1034
      %v1319 = vmul.f32 %v775, %v1044
      %v1320 = vmul.f32 %v776, %v1054
      %v1321 = vmul.f32 %v777, %v1064
      %v1322 = vmul.f32 %v778, %v1074
      %v1323 = vmul.f32 %v779, %v1084
      %v1324 = vmul.f32 %v780, %v1094
      %v1325 = vmul.f32 %v781, %v1104
      %v1326 = vmul.f32 %v782, %v1114
      %v1327 = vmul.f32 %v783, %v1124
      %v1328 = vmul.f32 %v784, %v1134
      %v1329 = vmul.f32 %v785, %v1144
      %v1330 = vmul.f32 %v786, %v1154
      %v1331 = vmul.f32 %v787, %v1164
      %v1332 = vmul.f32 %v788, %v1174
      %v1333 = vmul.f32 %v789, %v1184
      %v1334 = vmul.f32 %v790, %v1194
      %v1335 = vmul.f32 %v791, %v1204
      %v1336 = vmul.f32 %v792, %v1214
      %v1337 = vmul.f32 %v793, %v1224
      %v1338 = vmul.f32 %v794, %v1234
      %v1339 = vmul.f32 %v795, %v1244
      %v1340 = vmul.f32 %v796, %v1254
      %v1341 = vmul.f32 %v797, %v1264
      %v1342 = vmul.f32 %v798, %v1274
      %v1343 = vmul.f32 %v799, %v1284
      %v1344 = vmul.f32 %v800, %v1294
      %v1345 = vmul.f32 %v801, %v1304
      %v1346 = vmul.f32 %v802, %v1314
      %v1347 = vld [vmem:[%s1] sm:$0x1]
      %v1349 = vperm.slane %v1347, 0
      %v1351 = vmul.f32 %v1315, %v1349
      %v1352 = vmul.f32 %v1316, %v1349
      %v1353 = vmul.f32 %v1317, %v1349
      %v1354 = vmul.f32 %v1318, %v1349
      %v1355 = vmul.f32 %v1319, %v1349
      %v1356 = vmul.f32 %v1320, %v1349
      %v1357 = vmul.f32 %v1321, %v1349
      %v1358 = vmul.f32 %v1322, %v1349
      %v1359 = vmul.f32 %v1323, %v1349
      %v1360 = vmul.f32 %v1324, %v1349
      %v1361 = vmul.f32 %v1325, %v1349
      %v1362 = vmul.f32 %v1326, %v1349
      %v1363 = vmul.f32 %v1327, %v1349
      %v1364 = vmul.f32 %v1328, %v1349
      %v1365 = vmul.f32 %v1329, %v1349
      %v1366 = vmul.f32 %v1330, %v1349
      %v1367 = vmul.f32 %v1331, %v1349
      %v1368 = vmul.f32 %v1332, %v1349
      %v1369 = vmul.f32 %v1333, %v1349
      %v1370 = vmul.f32 %v1334, %v1349
      %v1371 = vmul.f32 %v1335, %v1349
      %v1372 = vmul.f32 %v1336, %v1349
      %v1373 = vmul.f32 %v1337, %v1349
      %v1374 = vmul.f32 %v1338, %v1349
      %v1375 = vmul.f32 %v1339, %v1349
      %v1376 = vmul.f32 %v1340, %v1349
      %v1377 = vmul.f32 %v1341, %v1349
      %v1378 = vmul.f32 %v1342, %v1349
      %v1379 = vmul.f32 %v1343, %v1349
      %v1380 = vmul.f32 %v1344, %v1349
      %v1381 = vmul.f32 %v1345, %v1349
      %v1382 = vmul.f32 %v1346, %v1349
      %v1383 = vld [vmem:[%s2] sm:$0x1]
      %v1385 = vperm.slane %v1383, 0
      %v1387 = vadd.f32 %v1351, %v1385
      %v1388 = vadd.f32 %v1352, %v1385
      %v1389 = vadd.f32 %v1353, %v1385
      %v1390 = vadd.f32 %v1354, %v1385
      %v1391 = vadd.f32 %v1355, %v1385
      %v1392 = vadd.f32 %v1356, %v1385
      %v1393 = vadd.f32 %v1357, %v1385
      %v1394 = vadd.f32 %v1358, %v1385
      %v1395 = vadd.f32 %v1359, %v1385
      %v1396 = vadd.f32 %v1360, %v1385
      %v1397 = vadd.f32 %v1361, %v1385
      %v1398 = vadd.f32 %v1362, %v1385
      %v1399 = vadd.f32 %v1363, %v1385
      %v1400 = vadd.f32 %v1364, %v1385
      %v1401 = vadd.f32 %v1365, %v1385
      %v1402 = vadd.f32 %v1366, %v1385
      %v1403 = vadd.f32 %v1367, %v1385
      %v1404 = vadd.f32 %v1368, %v1385
      %v1405 = vadd.f32 %v1369, %v1385
      %v1406 = vadd.f32 %v1370, %v1385
      %v1407 = vadd.f32 %v1371, %v1385
      %v1408 = vadd.f32 %v1372, %v1385
      %v1409 = vadd.f32 %v1373, %v1385
      %v1410 = vadd.f32 %v1374, %v1385
      %v1411 = vadd.f32 %v1375, %v1385
      %v1412 = vadd.f32 %v1376, %v1385
      %v1413 = vadd.f32 %v1377, %v1385
      %v1414 = vadd.f32 %v1378, %v1385
      %v1415 = vadd.f32 %v1379, %v1385
      %v1416 = vadd.f32 %v1380, %v1385
      %v1417 = vadd.f32 %v1381, %v1385
      %v1418 = vadd.f32 %v1382, %v1385
      %v1419 = vld [vmem:[%s3] sm:$0xff]
      %v1420 = vld [vmem:[%s3 + $0x8] sm:$0xff]
      %v1421 = vld [vmem:[%s4] sm:$0x1]
      %v1423 = vperm.slane %v1421, 0
      %v1426 = vsel %vm635, %v1387, 0
      %v1429 = vsel %vm635, %v1388, 0
      %v1432 = vsel %vm635, %v1389, 0
      %v1435 = vsel %vm635, %v1390, 0
      %v1438 = vsel %vm635, %v1391, 0
      %v1441 = vsel %vm635, %v1392, 0
      %v1444 = vsel %vm635, %v1393, 0
      %v1447 = vsel %vm635, %v1394, 0
      %v1450 = vsel %vm635, %v1395, 0
      %v1453 = vsel %vm635, %v1396, 0
      %v1456 = vsel %vm635, %v1397, 0
      %v1459 = vsel %vm635, %v1398, 0
      %v1462 = vsel %vm635, %v1399, 0
      %v1465 = vsel %vm635, %v1400, 0
      %v1468 = vsel %vm635, %v1401, 0
      %v1471 = vsel %vm635, %v1402, 0
      %v1474 = vsel %vm635, %v1403, 0
      %v1477 = vsel %vm635, %v1404, 0
      %v1480 = vsel %vm635, %v1405, 0
      %v1483 = vsel %vm635, %v1406, 0
      %v1486 = vsel %vm635, %v1407, 0
      %v1489 = vsel %vm635, %v1408, 0
      %v1492 = vsel %vm635, %v1409, 0
      %v1495 = vsel %vm635, %v1410, 0
      %v1498 = vsel %vm635, %v1411, 0
      %v1501 = vsel %vm635, %v1412, 0
      %v1504 = vsel %vm635, %v1413, 0
      %v1507 = vsel %vm635, %v1414, 0
      %v1510 = vsel %vm635, %v1415, 0
      %v1513 = vsel %vm635, %v1416, 0
      %v1516 = vsel %vm635, %v1417, 0
      %v1519 = vsel %vm635, %v1418, 0
      %1521 = vmatpush.msra.mxu0 0.0
      %1522 = vmatpush.msra.mxu0 0.0
      %1523 = vmatpush.msra.mxu0 0.0
      %1524 = vmatpush.msra.mxu0 0.0
      %1525 = vmatpush.msra.mxu0 0.0
      %1526 = vmatpush.msra.mxu0 0.0
      %1527 = vmatpush.msra.mxu0 0.0
      %1528 = vmatpush.msra.mxu0 0.0
      %1529 = vmatpush.msra.mxu0 0.0
      %1530 = vmatpush.msra.mxu0 0.0
      %1531 = vmatpush.msra.mxu0 0.0
      %1532 = vmatpush.msra.mxu0 0.0
      %1533 = vmatpush.msra.mxu0 0.0
      %1534 = vmatpush.msra.mxu0 0.0
      %1535 = vmatpush.msra.mxu0 %v1420
      %1536 = vmatpush.msra.mxu0 %v1419
      %1537 = vmatmul.f32.gmra.mxu0 %v1426
      %v1538 = vpop.f32.mrf.mxu0
      %v1539 = vadd.f32 %v1423, %v1538
      %1540 = vmatmul.f32.gmra.mxu0 %v1429
      %v1541 = vpop.f32.mrf.mxu0
      %v1542 = vadd.f32 %v1423, %v1541
      %1543 = vmatmul.f32.gmra.mxu0 %v1432
      %v1544 = vpop.f32.mrf.mxu0
      %v1545 = vadd.f32 %v1423, %v1544
      %1546 = vmatmul.f32.gmra.mxu0 %v1435
      %v1547 = vpop.f32.mrf.mxu0
      %v1548 = vadd.f32 %v1423, %v1547
      %1549 = vmatmul.f32.gmra.mxu0 %v1438
      %v1550 = vpop.f32.mrf.mxu0
      %v1551 = vadd.f32 %v1423, %v1550
      %1552 = vmatmul.f32.gmra.mxu0 %v1441
      %v1553 = vpop.f32.mrf.mxu0
      %v1554 = vadd.f32 %v1423, %v1553
      %1555 = vmatmul.f32.gmra.mxu0 %v1444
      %v1556 = vpop.f32.mrf.mxu0
      %v1557 = vadd.f32 %v1423, %v1556
      %1558 = vmatmul.f32.gmra.mxu0 %v1447
      %v1559 = vpop.f32.mrf.mxu0
      %v1560 = vadd.f32 %v1423, %v1559
      %1561 = vmatmul.f32.gmra.mxu0 %v1450
      %v1562 = vpop.f32.mrf.mxu0
      %v1563 = vadd.f32 %v1423, %v1562
      %1564 = vmatmul.f32.gmra.mxu0 %v1453
      %v1565 = vpop.f32.mrf.mxu0
      %v1566 = vadd.f32 %v1423, %v1565
      %1567 = vmatmul.f32.gmra.mxu0 %v1456
      %v1568 = vpop.f32.mrf.mxu0
      %v1569 = vadd.f32 %v1423, %v1568
      %1570 = vmatmul.f32.gmra.mxu0 %v1459
      %v1571 = vpop.f32.mrf.mxu0
      %v1572 = vadd.f32 %v1423, %v1571
      %1573 = vmatmul.f32.gmra.mxu0 %v1462
      %v1574 = vpop.f32.mrf.mxu0
      %v1575 = vadd.f32 %v1423, %v1574
      %1576 = vmatmul.f32.gmra.mxu0 %v1465
      %v1577 = vpop.f32.mrf.mxu0
      %v1578 = vadd.f32 %v1423, %v1577
      %1579 = vmatmul.f32.gmra.mxu0 %v1468
      %v1580 = vpop.f32.mrf.mxu0
      %v1581 = vadd.f32 %v1423, %v1580
      %1582 = vmatmul.f32.gmra.mxu0 %v1471
      %v1583 = vpop.f32.mrf.mxu0
      %v1584 = vadd.f32 %v1423, %v1583
      %1585 = vmatmul.f32.gmra.mxu0 %v1474
      %v1586 = vpop.f32.mrf.mxu0
      %v1587 = vadd.f32 %v1423, %v1586
      %1588 = vmatmul.f32.gmra.mxu0 %v1477
      %v1589 = vpop.f32.mrf.mxu0
      %v1590 = vadd.f32 %v1423, %v1589
      %1591 = vmatmul.f32.gmra.mxu0 %v1480
      %v1592 = vpop.f32.mrf.mxu0
      %v1593 = vadd.f32 %v1423, %v1592
      %1594 = vmatmul.f32.gmra.mxu0 %v1483
      %v1595 = vpop.f32.mrf.mxu0
      %v1596 = vadd.f32 %v1423, %v1595
      %1597 = vmatmul.f32.gmra.mxu0 %v1486
      %v1598 = vpop.f32.mrf.mxu0
      %v1599 = vadd.f32 %v1423, %v1598
      %1600 = vmatmul.f32.gmra.mxu0 %v1489
      %v1601 = vpop.f32.mrf.mxu0
      %v1602 = vadd.f32 %v1423, %v1601
      %1603 = vmatmul.f32.gmra.mxu0 %v1492
      %v1604 = vpop.f32.mrf.mxu0
      %v1605 = vadd.f32 %v1423, %v1604
      %1606 = vmatmul.f32.gmra.mxu0 %v1495
      %v1607 = vpop.f32.mrf.mxu0
      %v1608 = vadd.f32 %v1423, %v1607
      %1609 = vmatmul.f32.gmra.mxu0 %v1498
      %v1610 = vpop.f32.mrf.mxu0
      %v1611 = vadd.f32 %v1423, %v1610
      %1612 = vmatmul.f32.gmra.mxu0 %v1501
      %v1613 = vpop.f32.mrf.mxu0
      %v1614 = vadd.f32 %v1423, %v1613
      %1615 = vmatmul.f32.gmra.mxu0 %v1504
      %v1616 = vpop.f32.mrf.mxu0
      %v1617 = vadd.f32 %v1423, %v1616
      %1618 = vmatmul.f32.gmra.mxu0 %v1507
      %v1619 = vpop.f32.mrf.mxu0
      %v1620 = vadd.f32 %v1423, %v1619
      %1621 = vmatmul.f32.gmra.mxu0 %v1510
      %v1622 = vpop.f32.mrf.mxu0
      %v1623 = vadd.f32 %v1423, %v1622
      %1624 = vmatmul.f32.gmra.mxu0 %v1513
      %v1625 = vpop.f32.mrf.mxu0
      %v1626 = vadd.f32 %v1423, %v1625
      %1627 = vmatmul.f32.gmra.mxu0 %v1516
      %v1628 = vpop.f32.mrf.mxu0
      %v1629 = vadd.f32 %v1423, %v1628
      %1630 = vmatmul.f32.gmra.mxu0 %v1519
      %v1631 = vpop.f32.mrf.mxu0
      %v1632 = vadd.f32 %v1423, %v1631
      %1633 = vdwg.mxu0
      %vm1634 = vcmask 261120
      %1635 = vst.msk [vmem:[#allocation2] sm:$0xff] %vm1634, 0.0
      %1636 = vst.msk [vmem:[#allocation2 + $0x8] sm:$0xff] %vm1634, 0.0
      %vm1637 = vcmask 254976
      %1638 = vst.msk [vmem:[#allocation2 + $0x10] sm:$0x3] %vm1637, 0.0
      %1639 = vst.msk [vmem:[#allocation2 + $0x18] sm:$0xff] %vm1634, 0.0
      %1640 = vst.msk [vmem:[#allocation2 + $0x20] sm:$0xff] %vm1634, 0.0
      %1641 = vst.msk [vmem:[#allocation2 + $0x28] sm:$0x3] %vm1637, 0.0
      %1642 = vst.msk [vmem:[#allocation2 + $0x30] sm:$0xff] %vm1634, 0.0
      %1643 = vst.msk [vmem:[#allocation2 + $0x38] sm:$0xff] %vm1634, 0.0
      %1644 = vst.msk [vmem:[#allocation2 + $0x40] sm:$0x3] %vm1637, 0.0
      %1645 = vst.msk [vmem:[#allocation2 + $0x48] sm:$0xff] %vm1634, 0.0
      %1646 = vst.msk [vmem:[#allocation2 + $0x50] sm:$0xff] %vm1634, 0.0
      %1647 = vst.msk [vmem:[#allocation2 + $0x58] sm:$0x3] %vm1637, 0.0
      %1648 = vst.msk [vmem:[#allocation2 + $0x60] sm:$0xff] %vm1634, 0.0
      %1649 = vst.msk [vmem:[#allocation2 + $0x68] sm:$0xff] %vm1634, 0.0
      %1650 = vst.msk [vmem:[#allocation2 + $0x70] sm:$0x3] %vm1637, 0.0
      %1651 = vst.msk [vmem:[#allocation2 + $0x78] sm:$0xff] %vm1634, 0.0
      %1652 = vst.msk [vmem:[#allocation2 + $0x80] sm:$0xff] %vm1634, 0.0
      %1653 = vst.msk [vmem:[#allocation2 + $0x88] sm:$0x3] %vm1637, 0.0
      %1654 = vst.msk [vmem:[#allocation2 + $0x90] sm:$0xff] %vm1634, 0.0
      %1655 = vst.msk [vmem:[#allocation2 + $0x98] sm:$0xff] %vm1634, 0.0
      %1656 = vst.msk [vmem:[#allocation2 + $0xa0] sm:$0x3] %vm1637, 0.0
      %1657 = vst.msk [vmem:[#allocation2 + $0xa8] sm:$0xff] %vm1634, 0.0
      %1658 = vst.msk [vmem:[#allocation2 + $0xb0] sm:$0xff] %vm1634, 0.0
      %1659 = vst.msk [vmem:[#allocation2 + $0xb8] sm:$0x3] %vm1637, 0.0
      %1660 = vst.msk [vmem:[#allocation2 + $0xc0] sm:$0xff] %vm1634, 0.0
      %1661 = vst.msk [vmem:[#allocation2 + $0xc8] sm:$0xff] %vm1634, 0.0
      %1662 = vst.msk [vmem:[#allocation2 + $0xd0] sm:$0x3] %vm1637, 0.0
      %1663 = vst.msk [vmem:[#allocation2 + $0xd8] sm:$0xff] %vm1634, 0.0
      %1664 = vst.msk [vmem:[#allocation2 + $0xe0] sm:$0xff] %vm1634, 0.0
      %1665 = vst.msk [vmem:[#allocation2 + $0xe8] sm:$0x3] %vm1637, 0.0
      %1666 = vst.msk [vmem:[#allocation2 + $0xf0] sm:$0xff] %vm1634, 0.0
      %1667 = vst.msk [vmem:[#allocation2 + $0xf8] sm:$0xff] %vm1634, 0.0
      %1668 = vst.msk [vmem:[#allocation2 + $0x100] sm:$0x3] %vm1637, 0.0
      %1669 = vst.msk [vmem:[#allocation2 + $0x108] sm:$0xff] %vm1634, 0.0
      %1670 = vst.msk [vmem:[#allocation2 + $0x110] sm:$0xff] %vm1634, 0.0
      %1671 = vst.msk [vmem:[#allocation2 + $0x118] sm:$0x3] %vm1637, 0.0
      %1672 = vst.msk [vmem:[#allocation2 + $0x120] sm:$0xff] %vm1634, 0.0
      %1673 = vst.msk [vmem:[#allocation2 + $0x128] sm:$0xff] %vm1634, 0.0
      %1674 = vst.msk [vmem:[#allocation2 + $0x130] sm:$0x3] %vm1637, 0.0
      %1675 = vst.msk [vmem:[#allocation2 + $0x138] sm:$0xff] %vm1634, 0.0
      %1676 = vst.msk [vmem:[#allocation2 + $0x140] sm:$0xff] %vm1634, 0.0
      %1677 = vst.msk [vmem:[#allocation2 + $0x148] sm:$0x3] %vm1637, 0.0
      %1678 = vst.msk [vmem:[#allocation2 + $0x150] sm:$0xff] %vm1634, 0.0
      %1679 = vst.msk [vmem:[#allocation2 + $0x158] sm:$0xff] %vm1634, 0.0
      %1680 = vst.msk [vmem:[#allocation2 + $0x160] sm:$0x3] %vm1637, 0.0
      %1681 = vst.msk [vmem:[#allocation2 + $0x168] sm:$0xff] %vm1634, 0.0
      %1682 = vst.msk [vmem:[#allocation2 + $0x170] sm:$0xff] %vm1634, 0.0
      %1683 = vst.msk [vmem:[#allocation2 + $0x178] sm:$0x3] %vm1637, 0.0
      %1684 = vst.msk [vmem:[#allocation2 + $0x180] sm:$0xff] %vm1634, 0.0
      %1685 = vst.msk [vmem:[#allocation2 + $0x188] sm:$0xff] %vm1634, 0.0
      %1686 = vst.msk [vmem:[#allocation2 + $0x190] sm:$0x3] %vm1637, 0.0
      %1687 = vst.msk [vmem:[#allocation2 + $0x198] sm:$0xff] %vm1634, 0.0
      %1688 = vst.msk [vmem:[#allocation2 + $0x1a0] sm:$0xff] %vm1634, 0.0
      %1689 = vst.msk [vmem:[#allocation2 + $0x1a8] sm:$0x3] %vm1637, 0.0
      %s1690 = scalar_lea.vmem [#allocation2], 24
      %1691 = vst.msk [vmem:[%s1690 + $0x1] sm:$0xff] %vm1634, %v1539
      %1692 = vst.msk [vmem:[%s1690 + $0x9] sm:$0xff] %vm1634, %v1542
      %1693 = vst.msk [vmem:[%s1690 + $0x19] sm:$0xff] %vm1634, %v1545
      %1694 = vst.msk [vmem:[%s1690 + $0x21] sm:$0xff] %vm1634, %v1548
      %1695 = vst.msk [vmem:[%s1690 + $0x31] sm:$0xff] %vm1634, %v1551
      %1696 = vst.msk [vmem:[%s1690 + $0x39] sm:$0xff] %vm1634, %v1554
      %1697 = vst.msk [vmem:[%s1690 + $0x49] sm:$0xff] %vm1634, %v1557
      %1698 = vst.msk [vmem:[%s1690 + $0x51] sm:$0xff] %vm1634, %v1560
      %1699 = vst.msk [vmem:[%s1690 + $0x61] sm:$0xff] %vm1634, %v1563
      %1700 = vst.msk [vmem:[%s1690 + $0x69] sm:$0xff] %vm1634, %v1566
      %1701 = vst.msk [vmem:[%s1690 + $0x79] sm:$0xff] %vm1634, %v1569
      %1702 = vst.msk [vmem:[%s1690 + $0x81] sm:$0xff] %vm1634, %v1572
      %1703 = vst.msk [vmem:[%s1690 + $0x91] sm:$0xff] %vm1634, %v1575
      %1704 = vst.msk [vmem:[%s1690 + $0x99] sm:$0xff] %vm1634, %v1578
      %1705 = vst.msk [vmem:[%s1690 + $0xa9] sm:$0xff] %vm1634, %v1581
      %1706 = vst.msk [vmem:[%s1690 + $0xb1] sm:$0xff] %vm1634, %v1584
      %1707 = vst.msk [vmem:[%s1690 + $0xc1] sm:$0xff] %vm1634, %v1587
      %1708 = vst.msk [vmem:[%s1690 + $0xc9] sm:$0xff] %vm1634, %v1590
      %1709 = vst.msk [vmem:[%s1690 + $0xd9] sm:$0xff] %vm1634, %v1593
      %1710 = vst.msk [vmem:[%s1690 + $0xe1] sm:$0xff] %vm1634, %v1596
      %1711 = vst.msk [vmem:[%s1690 + $0xf1] sm:$0xff] %vm1634, %v1599
      %1712 = vst.msk [vmem:[%s1690 + $0xf9] sm:$0xff] %vm1634, %v1602
      %1713 = vst.msk [vmem:[%s1690 + $0x109] sm:$0xff] %vm1634, %v1605
      %1714 = vst.msk [vmem:[%s1690 + $0x111] sm:$0xff] %vm1634, %v1608
      %1715 = vst.msk [vmem:[%s1690 + $0x121] sm:$0xff] %vm1634, %v1611
      %1716 = vst.msk [vmem:[%s1690 + $0x129] sm:$0xff] %vm1634, %v1614
      %1717 = vst.msk [vmem:[%s1690 + $0x139] sm:$0xff] %vm1634, %v1617
      %1718 = vst.msk [vmem:[%s1690 + $0x141] sm:$0xff] %vm1634, %v1620
      %1719 = vst.msk [vmem:[%s1690 + $0x151] sm:$0xff] %vm1634, %v1623
      %1720 = vst.msk [vmem:[%s1690 + $0x159] sm:$0xff] %vm1634, %v1626
      %1721 = vst.msk [vmem:[%s1690 + $0x169] sm:$0xff] %vm1634, %v1629
      %1722 = vst.msk [vmem:[%s1690 + $0x171] sm:$0xff] %vm1634, %v1632
      %v1723 = vld [vmem:[#allocation2] sm:$0xff]
      %v1724 = vld [vmem:[#allocation2 + $0x8] sm:$0xff]
      %v1725 = vld [vmem:[#allocation2 + $0x18] sm:$0xff]
      %v1726 = vld [vmem:[#allocation2 + $0x20] sm:$0xff]
      %v1727 = vld [vmem:[#allocation2 + $0x30] sm:$0xff]
      %v1728 = vld [vmem:[#allocation2 + $0x38] sm:$0xff]
      %v1729 = vld [vmem:[#allocation2 + $0x48] sm:$0xff]
      %v1730 = vld [vmem:[#allocation2 + $0x50] sm:$0xff]
      %v1731 = vld [vmem:[#allocation2 + $0x60] sm:$0xff]
      %v1732 = vld [vmem:[#allocation2 + $0x68] sm:$0xff]
      %v1733 = vld [vmem:[#allocation2 + $0x78] sm:$0xff]
      %v1734 = vld [vmem:[#allocation2 + $0x80] sm:$0xff]
      %v1735 = vld [vmem:[#allocation2 + $0x90] sm:$0xff]
      %v1736 = vld [vmem:[#allocation2 + $0x98] sm:$0xff]
      %v1737 = vld [vmem:[#allocation2 + $0xa8] sm:$0xff]
      %v1738 = vld [vmem:[#allocation2 + $0xb0] sm:$0xff]
      %v1739 = vld [vmem:[#allocation2 + $0xc0] sm:$0xff]
      %v1740 = vld [vmem:[#allocation2 + $0xc8] sm:$0xff]
      %v1741 = vld [vmem:[#allocation2 + $0xd8] sm:$0xff]
      %v1742 = vld [vmem:[#allocation2 + $0xe0] sm:$0xff]
      %v1743 = vld [vmem:[#allocation2 + $0xf0] sm:$0xff]
      %v1744 = vld [vmem:[#allocation2 + $0xf8] sm:$0xff]
      %v1745 = vld [vmem:[#allocation2 + $0x108] sm:$0xff]
      %v1746 = vld [vmem:[#allocation2 + $0x110] sm:$0xff]
      %v1747 = vld [vmem:[#allocation2 + $0x120] sm:$0xff]
      %v1748 = vld [vmem:[#allocation2 + $0x128] sm:$0xff]
      %v1749 = vld [vmem:[#allocation2 + $0x138] sm:$0xff]
      %v1750 = vld [vmem:[#allocation2 + $0x140] sm:$0xff]
      %v1751 = vld [vmem:[#allocation2 + $0x150] sm:$0xff]
      %v1752 = vld [vmem:[#allocation2 + $0x158] sm:$0xff]
      %v1753 = vld [vmem:[#allocation2 + $0x168] sm:$0xff]
      %v1754 = vld [vmem:[#allocation2 + $0x170] sm:$0xff]
      %v1755 = vld [vmem:[%s5] sm:$0x1]
      %v1756 = vperm.slane %v1755, 0
      %v1757 = vmul.f32 %v1723, %v1756
      %v1758 = vmul.f32 %v1724, %v1756
      %v1759 = vmul.f32 %v1725, %v1756
      %v1760 = vmul.f32 %v1726, %v1756
      %v1761 = vmul.f32 %v1727, %v1756
      %v1762 = vmul.f32 %v1728, %v1756
      %v1763 = vmul.f32 %v1729, %v1756
      %v1764 = vmul.f32 %v1730, %v1756
      %v1765 = vmul.f32 %v1731, %v1756
      %v1766 = vmul.f32 %v1732, %v1756
      %v1767 = vmul.f32 %v1733, %v1756
      %v1768 = vmul.f32 %v1734, %v1756
      %v1769 = vmul.f32 %v1735, %v1756
      %v1770 = vmul.f32 %v1736, %v1756
      %v1771 = vmul.f32 %v1737, %v1756
      %v1772 = vmul.f32 %v1738, %v1756
      %v1773 = vmul.f32 %v1739, %v1756
      %v1774 = vmul.f32 %v1740, %v1756
      %v1775 = vmul.f32 %v1741, %v1756
      %v1776 = vmul.f32 %v1742, %v1756
      %v1777 = vmul.f32 %v1743, %v1756
      %v1778 = vmul.f32 %v1744, %v1756
      %v1779 = vmul.f32 %v1745, %v1756
      %v1780 = vmul.f32 %v1746, %v1756
      %v1781 = vmul.f32 %v1747, %v1756
      %v1782 = vmul.f32 %v1748, %v1756
      %v1783 = vmul.f32 %v1749, %v1756
      %v1784 = vmul.f32 %v1750, %v1756
      %v1785 = vmul.f32 %v1751, %v1756
      %v1786 = vmul.f32 %v1752, %v1756
      %v1787 = vmul.f32 %v1753, %v1756
      %v1788 = vmul.f32 %v1754, %v1756
      %v1789 = vadd.f32 %v1757, 0.0
      %v1790 = vadd.f32 %v1758, 0.0
      %v1791 = vadd.f32 %v1759, 0.0
      %v1792 = vadd.f32 %v1760, 0.0
      %v1793 = vadd.f32 %v1761, 0.0
      %v1794 = vadd.f32 %v1762, 0.0
      %v1795 = vadd.f32 %v1763, 0.0
      %v1796 = vadd.f32 %v1764, 0.0
      %v1797 = vadd.f32 %v1765, 0.0
      %v1798 = vadd.f32 %v1766, 0.0
      %v1799 = vadd.f32 %v1767, 0.0
      %v1800 = vadd.f32 %v1768, 0.0
      %v1801 = vadd.f32 %v1769, 0.0
      %v1802 = vadd.f32 %v1770, 0.0
      %v1803 = vadd.f32 %v1771, 0.0
      %v1804 = vadd.f32 %v1772, 0.0
      %v1805 = vadd.f32 %v1773, 0.0
      %v1806 = vadd.f32 %v1774, 0.0
      %v1807 = vadd.f32 %v1775, 0.0
      %v1808 = vadd.f32 %v1776, 0.0
      %v1809 = vadd.f32 %v1777, 0.0
      %v1810 = vadd.f32 %v1778, 0.0
      %v1811 = vadd.f32 %v1779, 0.0
      %v1812 = vadd.f32 %v1780, 0.0
      %v1813 = vadd.f32 %v1781, 0.0
      %v1814 = vadd.f32 %v1782, 0.0
      %v1815 = vadd.f32 %v1783, 0.0
      %v1816 = vadd.f32 %v1784, 0.0
      %v1817 = vadd.f32 %v1785, 0.0
      %v1818 = vadd.f32 %v1786, 0.0
      %v1819 = vadd.f32 %v1787, 0.0
      %v1820 = vadd.f32 %v1788, 0.0
      %v1821 = vld [vmem:[#allocation2 + $0x1] sm:$0xff]
      %v1822 = vld [vmem:[#allocation2 + $0x9] sm:$0xff]
      %v1823 = vld [vmem:[#allocation2 + $0x19] sm:$0xff]
      %v1824 = vld [vmem:[#allocation2 + $0x21] sm:$0xff]
      %v1825 = vld [vmem:[#allocation2 + $0x31] sm:$0xff]
      %v1826 = vld [vmem:[#allocation2 + $0x39] sm:$0xff]
      %v1827 = vld [vmem:[#allocation2 + $0x49] sm:$0xff]
      %v1828 = vld [vmem:[#allocation2 + $0x51] sm:$0xff]
      %v1829 = vld [vmem:[#allocation2 + $0x61] sm:$0xff]
      %v1830 = vld [vmem:[#allocation2 + $0x69] sm:$0xff]
      %v1831 = vld [vmem:[#allocation2 + $0x79] sm:$0xff]
      %v1832 = vld [vmem:[#allocation2 + $0x81] sm:$0xff]
      %v1833 = vld [vmem:[#allocation2 + $0x91] sm:$0xff]
      %v1834 = vld [vmem:[#allocation2 + $0x99] sm:$0xff]
      %v1835 = vld [vmem:[#allocation2 + $0xa9] sm:$0xff]
      %v1836 = vld [vmem:[#allocation2 + $0xb1] sm:$0xff]
      %v1837 = vld [vmem:[#allocation2 + $0xc1] sm:$0xff]
      %v1838 = vld [vmem:[#allocation2 + $0xc9] sm:$0xff]
      %v1839 = vld [vmem:[#allocation2 + $0xd9] sm:$0xff]
      %v1840 = vld [vmem:[#allocation2 + $0xe1] sm:$0xff]
      %v1841 = vld [vmem:[#allocation2 + $0xf1] sm:$0xff]
      %v1842 = vld [vmem:[#allocation2 + $0xf9] sm:$0xff]
      %v1843 = vld [vmem:[#allocation2 + $0x109] sm:$0xff]
      %v1844 = vld [vmem:[#allocation2 + $0x111] sm:$0xff]
      %v1845 = vld [vmem:[#allocation2 + $0x121] sm:$0xff]
      %v1846 = vld [vmem:[#allocation2 + $0x129] sm:$0xff]
      %v1847 = vld [vmem:[#allocation2 + $0x139] sm:$0xff]
      %v1848 = vld [vmem:[#allocation2 + $0x141] sm:$0xff]
      %v1849 = vld [vmem:[#allocation2 + $0x151] sm:$0xff]
      %v1850 = vld [vmem:[#allocation2 + $0x159] sm:$0xff]
      %v1851 = vld [vmem:[#allocation2 + $0x169] sm:$0xff]
      %v1852 = vld [vmem:[#allocation2 + $0x171] sm:$0xff]
      %v1853 = vld [vmem:[%s5 + $0x1] sm:$0x1]
      %v1854 = vperm.slane %v1853, 0
      %v1855 = vmul.f32 %v1821, %v1854
      %v1856 = vmul.f32 %v1822, %v1854
      %v1857 = vmul.f32 %v1823, %v1854
      %v1858 = vmul.f32 %v1824, %v1854
      %v1859 = vmul.f32 %v1825, %v1854
      %v1860 = vmul.f32 %v1826, %v1854
      %v1861 = vmul.f32 %v1827, %v1854
      %v1862 = vmul.f32 %v1828, %v1854
      %v1863 = vmul.f32 %v1829, %v1854
      %v1864 = vmul.f32 %v1830, %v1854
      %v1865 = vmul.f32 %v1831, %v1854
      %v1866 = vmul.f32 %v1832, %v1854
      %v1867 = vmul.f32 %v1833, %v1854
      %v1868 = vmul.f32 %v1834, %v1854
      %v1869 = vmul.f32 %v1835, %v1854
      %v1870 = vmul.f32 %v1836, %v1854
      %v1871 = vmul.f32 %v1837, %v1854
      %v1872 = vmul.f32 %v1838, %v1854
      %v1873 = vmul.f32 %v1839, %v1854
      %v1874 = vmul.f32 %v1840, %v1854
      %v1875 = vmul.f32 %v1841, %v1854
      %v1876 = vmul.f32 %v1842, %v1854
      %v1877 = vmul.f32 %v1843, %v1854
      %v1878 = vmul.f32 %v1844, %v1854
      %v1879 = vmul.f32 %v1845, %v1854
      %v1880 = vmul.f32 %v1846, %v1854
      %v1881 = vmul.f32 %v1847, %v1854
      %v1882 = vmul.f32 %v1848, %v1854
      %v1883 = vmul.f32 %v1849, %v1854
      %v1884 = vmul.f32 %v1850, %v1854
      %v1885 = vmul.f32 %v1851, %v1854
      %v1886 = vmul.f32 %v1852, %v1854
      %v1887 = vadd.f32 %v1789, %v1855
      %v1888 = vadd.f32 %v1790, %v1856
      %v1889 = vadd.f32 %v1791, %v1857
      %v1890 = vadd.f32 %v1792, %v1858
      %v1891 = vadd.f32 %v1793, %v1859
      %v1892 = vadd.f32 %v1794, %v1860
      %v1893 = vadd.f32 %v1795, %v1861
      %v1894 = vadd.f32 %v1796, %v1862
      %v1895 = vadd.f32 %v1797, %v1863
      %v1896 = vadd.f32 %v1798, %v1864
      %v1897 = vadd.f32 %v1799, %v1865
      %v1898 = vadd.f32 %v1800, %v1866
      %v1899 = vadd.f32 %v1801, %v1867
      %v1900 = vadd.f32 %v1802, %v1868
      %v1901 = vadd.f32 %v1803, %v1869
      %v1902 = vadd.f32 %v1804, %v1870
      %v1903 = vadd.f32 %v1805, %v1871
      %v1904 = vadd.f32 %v1806, %v1872
      %v1905 = vadd.f32 %v1807, %v1873
      %v1906 = vadd.f32 %v1808, %v1874
      %v1907 = vadd.f32 %v1809, %v1875
      %v1908 = vadd.f32 %v1810, %v1876
      %v1909 = vadd.f32 %v1811, %v1877
      %v1910 = vadd.f32 %v1812, %v1878
      %v1911 = vadd.f32 %v1813, %v1879
      %v1912 = vadd.f32 %v1814, %v1880
      %v1913 = vadd.f32 %v1815, %v1881
      %v1914 = vadd.f32 %v1816, %v1882
      %v1915 = vadd.f32 %v1817, %v1883
      %v1916 = vadd.f32 %v1818, %v1884
      %v1917 = vadd.f32 %v1819, %v1885
      %v1918 = vadd.f32 %v1820, %v1886
      %v1919 = vld [vmem:[#allocation2 + $0x2] sm:$0xff]
      %v1920 = vld [vmem:[#allocation2 + $0xa] sm:$0xff]
      %v1921 = vld [vmem:[#allocation2 + $0x1a] sm:$0xff]
      %v1922 = vld [vmem:[#allocation2 + $0x22] sm:$0xff]
      %v1923 = vld [vmem:[#allocation2 + $0x32] sm:$0xff]
      %v1924 = vld [vmem:[#allocation2 + $0x3a] sm:$0xff]
      %v1925 = vld [vmem:[#allocation2 + $0x4a] sm:$0xff]
      %v1926 = vld [vmem:[#allocation2 + $0x52] sm:$0xff]
      %v1927 = vld [vmem:[#allocation2 + $0x62] sm:$0xff]
      %v1928 = vld [vmem:[#allocation2 + $0x6a] sm:$0xff]
      %v1929 = vld [vmem:[#allocation2 + $0x7a] sm:$0xff]
      %v1930 = vld [vmem:[#allocation2 + $0x82] sm:$0xff]
      %v1931 = vld [vmem:[#allocation2 + $0x92] sm:$0xff]
      %v1932 = vld [vmem:[#allocation2 + $0x9a] sm:$0xff]
      %v1933 = vld [vmem:[#allocation2 + $0xaa] sm:$0xff]
      %v1934 = vld [vmem:[#allocation2 + $0xb2] sm:$0xff]
      %v1935 = vld [vmem:[#allocation2 + $0xc2] sm:$0xff]
      %v1936 = vld [vmem:[#allocation2 + $0xca] sm:$0xff]
      %v1937 = vld [vmem:[#allocation2 + $0xda] sm:$0xff]
      %v1938 = vld [vmem:[#allocation2 + $0xe2] sm:$0xff]
      %v1939 = vld [vmem:[#allocation2 + $0xf2] sm:$0xff]
      %v1940 = vld [vmem:[#allocation2 + $0xfa] sm:$0xff]
      %v1941 = vld [vmem:[#allocation2 + $0x10a] sm:$0xff]
      %v1942 = vld [vmem:[#allocation2 + $0x112] sm:$0xff]
      %v1943 = vld [vmem:[#allocation2 + $0x122] sm:$0xff]
      %v1944 = vld [vmem:[#allocation2 + $0x12a] sm:$0xff]
      %v1945 = vld [vmem:[#allocation2 + $0x13a] sm:$0xff]
      %v1946 = vld [vmem:[#allocation2 + $0x142] sm:$0xff]
      %v1947 = vld [vmem:[#allocation2 + $0x152] sm:$0xff]
      %v1948 = vld [vmem:[#allocation2 + $0x15a] sm:$0xff]
      %v1949 = vld [vmem:[#allocation2 + $0x16a] sm:$0xff]
      %v1950 = vld [vmem:[#allocation2 + $0x172] sm:$0xff]
      %v1951 = vld [vmem:[%s5 + $0x2] sm:$0x1]
      %v1952 = vperm.slane %v1951, 0
      %v1953 = vmul.f32 %v1919, %v1952
      %v1954 = vmul.f32 %v1920, %v1952
      %v1955 = vmul.f32 %v1921, %v1952
      %v1956 = vmul.f32 %v1922, %v1952
      %v1957 = vmul.f32 %v1923, %v1952
      %v1958 = vmul.f32 %v1924, %v1952
      %v1959 = vmul.f32 %v1925, %v1952
      %v1960 = vmul.f32 %v1926, %v1952
      %v1961 = vmul.f32 %v1927, %v1952
      %v1962 = vmul.f32 %v1928, %v1952
      %v1963 = vmul.f32 %v1929, %v1952
      %v1964 = vmul.f32 %v1930, %v1952
      %v1965 = vmul.f32 %v1931, %v1952
      %v1966 = vmul.f32 %v1932, %v1952
      %v1967 = vmul.f32 %v1933, %v1952
      %v1968 = vmul.f32 %v1934, %v1952
      %v1969 = vmul.f32 %v1935, %v1952
      %v1970 = vmul.f32 %v1936, %v1952
      %v1971 = vmul.f32 %v1937, %v1952
      %v1972 = vmul.f32 %v1938, %v1952
      %v1973 = vmul.f32 %v1939, %v1952
      %v1974 = vmul.f32 %v1940, %v1952
      %v1975 = vmul.f32 %v1941, %v1952
      %v1976 = vmul.f32 %v1942, %v1952
      %v1977 = vmul.f32 %v1943, %v1952
      %v1978 = vmul.f32 %v1944, %v1952
      %v1979 = vmul.f32 %v1945, %v1952
      %v1980 = vmul.f32 %v1946, %v1952
      %v1981 = vmul.f32 %v1947, %v1952
      %v1982 = vmul.f32 %v1948, %v1952
      %v1983 = vmul.f32 %v1949, %v1952
      %v1984 = vmul.f32 %v1950, %v1952
      %v1985 = vadd.f32 %v1887, %v1953
      %v1986 = vadd.f32 %v1888, %v1954
      %v1987 = vadd.f32 %v1889, %v1955
      %v1988 = vadd.f32 %v1890, %v1956
      %v1989 = vadd.f32 %v1891, %v1957
      %v1990 = vadd.f32 %v1892, %v1958
      %v1991 = vadd.f32 %v1893, %v1959
      %v1992 = vadd.f32 %v1894, %v1960
      %v1993 = vadd.f32 %v1895, %v1961
      %v1994 = vadd.f32 %v1896, %v1962
      %v1995 = vadd.f32 %v1897, %v1963
      %v1996 = vadd.f32 %v1898, %v1964
      %v1997 = vadd.f32 %v1899, %v1965
      %v1998 = vadd.f32 %v1900, %v1966
      %v1999 = vadd.f32 %v1901, %v1967
      %v2000 = vadd.f32 %v1902, %v1968
      %v2001 = vadd.f32 %v1903, %v1969
      %v2002 = vadd.f32 %v1904, %v1970
      %v2003 = vadd.f32 %v1905, %v1971
      %v2004 = vadd.f32 %v1906, %v1972
      %v2005 = vadd.f32 %v1907, %v1973
      %v2006 = vadd.f32 %v1908, %v1974
      %v2007 = vadd.f32 %v1909, %v1975
      %v2008 = vadd.f32 %v1910, %v1976
      %v2009 = vadd.f32 %v1911, %v1977
      %v2010 = vadd.f32 %v1912, %v1978
      %v2011 = vadd.f32 %v1913, %v1979
      %v2012 = vadd.f32 %v1914, %v1980
      %v2013 = vadd.f32 %v1915, %v1981
      %v2014 = vadd.f32 %v1916, %v1982
      %v2015 = vadd.f32 %v1917, %v1983
      %v2016 = vadd.f32 %v1918, %v1984
      %v2017 = vld [vmem:[%s1690] sm:$0xff]
      %v2018 = vld [vmem:[%s1690 + $0x8] sm:$0xff]
      %v2019 = vld [vmem:[%s1690 + $0x18] sm:$0xff]
      %v2020 = vld [vmem:[%s1690 + $0x20] sm:$0xff]
      %v2021 = vld [vmem:[%s1690 + $0x30] sm:$0xff]
      %v2022 = vld [vmem:[%s1690 + $0x38] sm:$0xff]
      %v2023 = vld [vmem:[%s1690 + $0x48] sm:$0xff]
      %v2024 = vld [vmem:[%s1690 + $0x50] sm:$0xff]
      %v2025 = vld [vmem:[%s1690 + $0x60] sm:$0xff]
      %v2026 = vld [vmem:[%s1690 + $0x68] sm:$0xff]
      %v2027 = vld [vmem:[%s1690 + $0x78] sm:$0xff]
      %v2028 = vld [vmem:[%s1690 + $0x80] sm:$0xff]
      %v2029 = vld [vmem:[%s1690 + $0x90] sm:$0xff]
      %v2030 = vld [vmem:[%s1690 + $0x98] sm:$0xff]
      %v2031 = vld [vmem:[%s1690 + $0xa8] sm:$0xff]
      %v2032 = vld [vmem:[%s1690 + $0xb0] sm:$0xff]
      %v2033 = vld [vmem:[%s1690 + $0xc0] sm:$0xff]
      %v2034 = vld [vmem:[%s1690 + $0xc8] sm:$0xff]
      %v2035 = vld [vmem:[%s1690 + $0xd8] sm:$0xff]
      %v2036 = vld [vmem:[%s1690 + $0xe0] sm:$0xff]
      %v2037 = vld [vmem:[%s1690 + $0xf0] sm:$0xff]
      %v2038 = vld [vmem:[%s1690 + $0xf8] sm:$0xff]
      %v2039 = vld [vmem:[%s1690 + $0x108] sm:$0xff]
      %v2040 = vld [vmem:[%s1690 + $0x110] sm:$0xff]
      %v2041 = vld [vmem:[%s1690 + $0x120] sm:$0xff]
      %v2042 = vld [vmem:[%s1690 + $0x128] sm:$0xff]
      %v2043 = vld [vmem:[%s1690 + $0x138] sm:$0xff]
      %v2044 = vld [vmem:[%s1690 + $0x140] sm:$0xff]
      %v2045 = vld [vmem:[%s1690 + $0x150] sm:$0xff]
      %v2046 = vld [vmem:[%s1690 + $0x158] sm:$0xff]
      %v2047 = vld [vmem:[%s1690 + $0x168] sm:$0xff]
      %v2048 = vld [vmem:[%s1690 + $0x170] sm:$0xff]
      %v2049 = vld [vmem:[%s5 + $0x3] sm:$0x1]
      %v2050 = vperm.slane %v2049, 0
      %v2051 = vmul.f32 %v2017, %v2050
      %v2052 = vmul.f32 %v2018, %v2050
      %v2053 = vmul.f32 %v2019, %v2050
      %v2054 = vmul.f32 %v2020, %v2050
      %v2055 = vmul.f32 %v2021, %v2050
      %v2056 = vmul.f32 %v2022, %v2050
      %v2057 = vmul.f32 %v2023, %v2050
      %v2058 = vmul.f32 %v2024, %v2050
      %v2059 = vmul.f32 %v2025, %v2050
      %v2060 = vmul.f32 %v2026, %v2050
      %v2061 = vmul.f32 %v2027, %v2050
      %v2062 = vmul.f32 %v2028, %v2050
      %v2063 = vmul.f32 %v2029, %v2050
      %v2064 = vmul.f32 %v2030, %v2050
      %v2065 = vmul.f32 %v2031, %v2050
      %v2066 = vmul.f32 %v2032, %v2050
      %v2067 = vmul.f32 %v2033, %v2050
      %v2068 = vmul.f32 %v2034, %v2050
      %v2069 = vmul.f32 %v2035, %v2050
      %v2070 = vmul.f32 %v2036, %v2050
      %v2071 = vmul.f32 %v2037, %v2050
      %v2072 = vmul.f32 %v2038, %v2050
      %v2073 = vmul.f32 %v2039, %v2050
      %v2074 = vmul.f32 %v2040, %v2050
      %v2075 = vmul.f32 %v2041, %v2050
      %v2076 = vmul.f32 %v2042, %v2050
      %v2077 = vmul.f32 %v2043, %v2050
      %v2078 = vmul.f32 %v2044, %v2050
      %v2079 = vmul.f32 %v2045, %v2050
      %v2080 = vmul.f32 %v2046, %v2050
      %v2081 = vmul.f32 %v2047, %v2050
      %v2082 = vmul.f32 %v2048, %v2050
      %v2083 = vadd.f32 %v1985, %v2051
      %v2084 = vadd.f32 %v1986, %v2052
      %v2085 = vadd.f32 %v1987, %v2053
      %v2086 = vadd.f32 %v1988, %v2054
      %v2087 = vadd.f32 %v1989, %v2055
      %v2088 = vadd.f32 %v1990, %v2056
      %v2089 = vadd.f32 %v1991, %v2057
      %v2090 = vadd.f32 %v1992, %v2058
      %v2091 = vadd.f32 %v1993, %v2059
      %v2092 = vadd.f32 %v1994, %v2060
      %v2093 = vadd.f32 %v1995, %v2061
      %v2094 = vadd.f32 %v1996, %v2062
      %v2095 = vadd.f32 %v1997, %v2063
      %v2096 = vadd.f32 %v1998, %v2064
      %v2097 = vadd.f32 %v1999, %v2065
      %v2098 = vadd.f32 %v2000, %v2066
      %v2099 = vadd.f32 %v2001, %v2067
      %v2100 = vadd.f32 %v2002, %v2068
      %v2101 = vadd.f32 %v2003, %v2069
      %v2102 = vadd.f32 %v2004, %v2070
      %v2103 = vadd.f32 %v2005, %v2071
      %v2104 = vadd.f32 %v2006, %v2072
      %v2105 = vadd.f32 %v2007, %v2073
      %v2106 = vadd.f32 %v2008, %v2074
      %v2107 = vadd.f32 %v2009, %v2075
      %v2108 = vadd.f32 %v2010, %v2076
      %v2109 = vadd.f32 %v2011, %v2077
      %v2110 = vadd.f32 %v2012, %v2078
      %v2111 = vadd.f32 %v2013, %v2079
      %v2112 = vadd.f32 %v2014, %v2080
      %v2113 = vadd.f32 %v2015, %v2081
      %v2114 = vadd.f32 %v2016, %v2082
      %v2115 = vld [vmem:[%s1690 + $0x1] sm:$0xff]
      %v2116 = vld [vmem:[%s1690 + $0x9] sm:$0xff]
      %v2117 = vld [vmem:[%s1690 + $0x19] sm:$0xff]
      %v2118 = vld [vmem:[%s1690 + $0x21] sm:$0xff]
      %v2119 = vld [vmem:[%s1690 + $0x31] sm:$0xff]
      %v2120 = vld [vmem:[%s1690 + $0x39] sm:$0xff]
      %v2121 = vld [vmem:[%s1690 + $0x49] sm:$0xff]
      %v2122 = vld [vmem:[%s1690 + $0x51] sm:$0xff]
      %v2123 = vld [vmem:[%s1690 + $0x61] sm:$0xff]
      %v2124 = vld [vmem:[%s1690 + $0x69] sm:$0xff]
      %v2125 = vld [vmem:[%s1690 + $0x79] sm:$0xff]
      %v2126 = vld [vmem:[%s1690 + $0x81] sm:$0xff]
      %v2127 = vld [vmem:[%s1690 + $0x91] sm:$0xff]
      %v2128 = vld [vmem:[%s1690 + $0x99] sm:$0xff]
      %v2129 = vld [vmem:[%s1690 + $0xa9] sm:$0xff]
      %v2130 = vld [vmem:[%s1690 + $0xb1] sm:$0xff]
      %v2131 = vld [vmem:[%s1690 + $0xc1] sm:$0xff]
      %v2132 = vld [vmem:[%s1690 + $0xc9] sm:$0xff]
      %v2133 = vld [vmem:[%s1690 + $0xd9] sm:$0xff]
      %v2134 = vld [vmem:[%s1690 + $0xe1] sm:$0xff]
      %v2135 = vld [vmem:[%s1690 + $0xf1] sm:$0xff]
      %v2136 = vld [vmem:[%s1690 + $0xf9] sm:$0xff]
      %v2137 = vld [vmem:[%s1690 + $0x109] sm:$0xff]
      %v2138 = vld [vmem:[%s1690 + $0x111] sm:$0xff]
      %v2139 = vld [vmem:[%s1690 + $0x121] sm:$0xff]
      %v2140 = vld [vmem:[%s1690 + $0x129] sm:$0xff]
      %v2141 = vld [vmem:[%s1690 + $0x139] sm:$0xff]
      %v2142 = vld [vmem:[%s1690 + $0x141] sm:$0xff]
      %v2143 = vld [vmem:[%s1690 + $0x151] sm:$0xff]
      %v2144 = vld [vmem:[%s1690 + $0x159] sm:$0xff]
      %v2145 = vld [vmem:[%s1690 + $0x169] sm:$0xff]
      %v2146 = vld [vmem:[%s1690 + $0x171] sm:$0xff]
      %v2147 = vld [vmem:[%s5 + $0x4] sm:$0x1]
      %v2148 = vperm.slane %v2147, 0
      %v2149 = vmul.f32 %v2115, %v2148
      %v2150 = vmul.f32 %v2116, %v2148
      %v2151 = vmul.f32 %v2117, %v2148
      %v2152 = vmul.f32 %v2118, %v2148
      %v2153 = vmul.f32 %v2119, %v2148
      %v2154 = vmul.f32 %v2120, %v2148
      %v2155 = vmul.f32 %v2121, %v2148
      %v2156 = vmul.f32 %v2122, %v2148
      %v2157 = vmul.f32 %v2123, %v2148
      %v2158 = vmul.f32 %v2124, %v2148
      %v2159 = vmul.f32 %v2125, %v2148
      %v2160 = vmul.f32 %v2126, %v2148
      %v2161 = vmul.f32 %v2127, %v2148
      %v2162 = vmul.f32 %v2128, %v2148
      %v2163 = vmul.f32 %v2129, %v2148
      %v2164 = vmul.f32 %v2130, %v2148
      %v2165 = vmul.f32 %v2131, %v2148
      %v2166 = vmul.f32 %v2132, %v2148
      %v2167 = vmul.f32 %v2133, %v2148
      %v2168 = vmul.f32 %v2134, %v2148
      %v2169 = vmul.f32 %v2135, %v2148
      %v2170 = vmul.f32 %v2136, %v2148
      %v2171 = vmul.f32 %v2137, %v2148
      %v2172 = vmul.f32 %v2138, %v2148
      %v2173 = vmul.f32 %v2139, %v2148
      %v2174 = vmul.f32 %v2140, %v2148
      %v2175 = vmul.f32 %v2141, %v2148
      %v2176 = vmul.f32 %v2142, %v2148
      %v2177 = vmul.f32 %v2143, %v2148
      %v2178 = vmul.f32 %v2144, %v2148
      %v2179 = vmul.f32 %v2145, %v2148
      %v2180 = vmul.f32 %v2146, %v2148
      %v2181 = vadd.f32 %v2083, %v2149
      %v2182 = vadd.f32 %v2084, %v2150
      %v2183 = vadd.f32 %v2085, %v2151
      %v2184 = vadd.f32 %v2086, %v2152
      %v2185 = vadd.f32 %v2087, %v2153
      %v2186 = vadd.f32 %v2088, %v2154
      %v2187 = vadd.f32 %v2089, %v2155
      %v2188 = vadd.f32 %v2090, %v2156
      %v2189 = vadd.f32 %v2091, %v2157
      %v2190 = vadd.f32 %v2092, %v2158
      %v2191 = vadd.f32 %v2093, %v2159
      %v2192 = vadd.f32 %v2094, %v2160
      %v2193 = vadd.f32 %v2095, %v2161
      %v2194 = vadd.f32 %v2096, %v2162
      %v2195 = vadd.f32 %v2097, %v2163
      %v2196 = vadd.f32 %v2098, %v2164
      %v2197 = vadd.f32 %v2099, %v2165
      %v2198 = vadd.f32 %v2100, %v2166
      %v2199 = vadd.f32 %v2101, %v2167
      %v2200 = vadd.f32 %v2102, %v2168
      %v2201 = vadd.f32 %v2103, %v2169
      %v2202 = vadd.f32 %v2104, %v2170
      %v2203 = vadd.f32 %v2105, %v2171
      %v2204 = vadd.f32 %v2106, %v2172
      %v2205 = vadd.f32 %v2107, %v2173
      %v2206 = vadd.f32 %v2108, %v2174
      %v2207 = vadd.f32 %v2109, %v2175
      %v2208 = vadd.f32 %v2110, %v2176
      %v2209 = vadd.f32 %v2111, %v2177
      %v2210 = vadd.f32 %v2112, %v2178
      %v2211 = vadd.f32 %v2113, %v2179
      %v2212 = vadd.f32 %v2114, %v2180
      %v2213 = vld [vmem:[%s1690 + $0x2] sm:$0xff]
      %v2214 = vld [vmem:[%s1690 + $0xa] sm:$0xff]
      %v2215 = vld [vmem:[%s1690 + $0x1a] sm:$0xff]
      %v2216 = vld [vmem:[%s1690 + $0x22] sm:$0xff]
      %v2217 = vld [vmem:[%s1690 + $0x32] sm:$0xff]
      %v2218 = vld [vmem:[%s1690 + $0x3a] sm:$0xff]
      %v2219 = vld [vmem:[%s1690 + $0x4a] sm:$0xff]
      %v2220 = vld [vmem:[%s1690 + $0x52] sm:$0xff]
      %v2221 = vld [vmem:[%s1690 + $0x62] sm:$0xff]
      %v2222 = vld [vmem:[%s1690 + $0x6a] sm:$0xff]
      %v2223 = vld [vmem:[%s1690 + $0x7a] sm:$0xff]
      %v2224 = vld [vmem:[%s1690 + $0x82] sm:$0xff]
      %v2225 = vld [vmem:[%s1690 + $0x92] sm:$0xff]
      %v2226 = vld [vmem:[%s1690 + $0x9a] sm:$0xff]
      %v2227 = vld [vmem:[%s1690 + $0xaa] sm:$0xff]
      %v2228 = vld [vmem:[%s1690 + $0xb2] sm:$0xff]
      %v2229 = vld [vmem:[%s1690 + $0xc2] sm:$0xff]
      %v2230 = vld [vmem:[%s1690 + $0xca] sm:$0xff]
      %v2231 = vld [vmem:[%s1690 + $0xda] sm:$0xff]
      %v2232 = vld [vmem:[%s1690 + $0xe2] sm:$0xff]
      %v2233 = vld [vmem:[%s1690 + $0xf2] sm:$0xff]
      %v2234 = vld [vmem:[%s1690 + $0xfa] sm:$0xff]
      %v2235 = vld [vmem:[%s1690 + $0x10a] sm:$0xff]
      %v2236 = vld [vmem:[%s1690 + $0x112] sm:$0xff]
      %v2237 = vld [vmem:[%s1690 + $0x122] sm:$0xff]
      %v2238 = vld [vmem:[%s1690 + $0x12a] sm:$0xff]
      %v2239 = vld [vmem:[%s1690 + $0x13a] sm:$0xff]
      %v2240 = vld [vmem:[%s1690 + $0x142] sm:$0xff]
      %v2241 = vld [vmem:[%s1690 + $0x152] sm:$0xff]
      %v2242 = vld [vmem:[%s1690 + $0x15a] sm:$0xff]
      %v2243 = vld [vmem:[%s1690 + $0x16a] sm:$0xff]
      %v2244 = vld [vmem:[%s1690 + $0x172] sm:$0xff]
      %v2245 = vld [vmem:[%s5 + $0x5] sm:$0x1]
      %v2246 = vperm.slane %v2245, 0
      %v2247 = vmul.f32 %v2213, %v2246
      %v2248 = vmul.f32 %v2214, %v2246
      %v2249 = vmul.f32 %v2215, %v2246
      %v2250 = vmul.f32 %v2216, %v2246
      %v2251 = vmul.f32 %v2217, %v2246
      %v2252 = vmul.f32 %v2218, %v2246
      %v2253 = vmul.f32 %v2219, %v2246
      %v2254 = vmul.f32 %v2220, %v2246
      %v2255 = vmul.f32 %v2221, %v2246
      %v2256 = vmul.f32 %v2222, %v2246
      %v2257 = vmul.f32 %v2223, %v2246
      %v2258 = vmul.f32 %v2224, %v2246
      %v2259 = vmul.f32 %v2225, %v2246
      %v2260 = vmul.f32 %v2226, %v2246
      %v2261 = vmul.f32 %v2227, %v2246
      %v2262 = vmul.f32 %v2228, %v2246
      %v2263 = vmul.f32 %v2229, %v2246
      %v2264 = vmul.f32 %v2230, %v2246
      %v2265 = vmul.f32 %v2231, %v2246
      %v2266 = vmul.f32 %v2232, %v2246
      %v2267 = vmul.f32 %v2233, %v2246
      %v2268 = vmul.f32 %v2234, %v2246
      %v2269 = vmul.f32 %v2235, %v2246
      %v2270 = vmul.f32 %v2236, %v2246
      %v2271 = vmul.f32 %v2237, %v2246
      %v2272 = vmul.f32 %v2238, %v2246
      %v2273 = vmul.f32 %v2239, %v2246
      %v2274 = vmul.f32 %v2240, %v2246
      %v2275 = vmul.f32 %v2241, %v2246
      %v2276 = vmul.f32 %v2242, %v2246
      %v2277 = vmul.f32 %v2243, %v2246
      %v2278 = vmul.f32 %v2244, %v2246
      %v2279 = vadd.f32 %v2181, %v2247
      %v2280 = vadd.f32 %v2182, %v2248
      %v2281 = vadd.f32 %v2183, %v2249
      %v2282 = vadd.f32 %v2184, %v2250
      %v2283 = vadd.f32 %v2185, %v2251
      %v2284 = vadd.f32 %v2186, %v2252
      %v2285 = vadd.f32 %v2187, %v2253
      %v2286 = vadd.f32 %v2188, %v2254
      %v2287 = vadd.f32 %v2189, %v2255
      %v2288 = vadd.f32 %v2190, %v2256
      %v2289 = vadd.f32 %v2191, %v2257
      %v2290 = vadd.f32 %v2192, %v2258
      %v2291 = vadd.f32 %v2193, %v2259
      %v2292 = vadd.f32 %v2194, %v2260
      %v2293 = vadd.f32 %v2195, %v2261
      %v2294 = vadd.f32 %v2196, %v2262
      %v2295 = vadd.f32 %v2197, %v2263
      %v2296 = vadd.f32 %v2198, %v2264
      %v2297 = vadd.f32 %v2199, %v2265
      %v2298 = vadd.f32 %v2200, %v2266
      %v2299 = vadd.f32 %v2201, %v2267
      %v2300 = vadd.f32 %v2202, %v2268
      %v2301 = vadd.f32 %v2203, %v2269
      %v2302 = vadd.f32 %v2204, %v2270
      %v2303 = vadd.f32 %v2205, %v2271
      %v2304 = vadd.f32 %v2206, %v2272
      %v2305 = vadd.f32 %v2207, %v2273
      %v2306 = vadd.f32 %v2208, %v2274
      %v2307 = vadd.f32 %v2209, %v2275
      %v2308 = vadd.f32 %v2210, %v2276
      %v2309 = vadd.f32 %v2211, %v2277
      %v2310 = vadd.f32 %v2212, %v2278
      %s2311 = scalar_lea.vmem [#allocation2], 48
      %v2312 = vld [vmem:[%s2311] sm:$0xff]
      %v2313 = vld [vmem:[%s2311 + $0x8] sm:$0xff]
      %v2314 = vld [vmem:[%s2311 + $0x18] sm:$0xff]
      %v2315 = vld [vmem:[%s2311 + $0x20] sm:$0xff]
      %v2316 = vld [vmem:[%s2311 + $0x30] sm:$0xff]
      %v2317 = vld [vmem:[%s2311 + $0x38] sm:$0xff]
      %v2318 = vld [vmem:[%s2311 + $0x48] sm:$0xff]
      %v2319 = vld [vmem:[%s2311 + $0x50] sm:$0xff]
      %v2320 = vld [vmem:[%s2311 + $0x60] sm:$0xff]
      %v2321 = vld [vmem:[%s2311 + $0x68] sm:$0xff]
      %v2322 = vld [vmem:[%s2311 + $0x78] sm:$0xff]
      %v2323 = vld [vmem:[%s2311 + $0x80] sm:$0xff]
      %v2324 = vld [vmem:[%s2311 + $0x90] sm:$0xff]
      %v2325 = vld [vmem:[%s2311 + $0x98] sm:$0xff]
      %v2326 = vld [vmem:[%s2311 + $0xa8] sm:$0xff]
      %v2327 = vld [vmem:[%s2311 + $0xb0] sm:$0xff]
      %v2328 = vld [vmem:[%s2311 + $0xc0] sm:$0xff]
      %v2329 = vld [vmem:[%s2311 + $0xc8] sm:$0xff]
      %v2330 = vld [vmem:[%s2311 + $0xd8] sm:$0xff]
      %v2331 = vld [vmem:[%s2311 + $0xe0] sm:$0xff]
      %v2332 = vld [vmem:[%s2311 + $0xf0] sm:$0xff]
      %v2333 = vld [vmem:[%s2311 + $0xf8] sm:$0xff]
      %v2334 = vld [vmem:[%s2311 + $0x108] sm:$0xff]
      %v2335 = vld [vmem:[%s2311 + $0x110] sm:$0xff]
      %v2336 = vld [vmem:[%s2311 + $0x120] sm:$0xff]
      %v2337 = vld [vmem:[%s2311 + $0x128] sm:$0xff]
      %v2338 = vld [vmem:[%s2311 + $0x138] sm:$0xff]
      %v2339 = vld [vmem:[%s2311 + $0x140] sm:$0xff]
      %v2340 = vld [vmem:[%s2311 + $0x150] sm:$0xff]
      %v2341 = vld [vmem:[%s2311 + $0x158] sm:$0xff]
      %v2342 = vld [vmem:[%s2311 + $0x168] sm:$0xff]
      %v2343 = vld [vmem:[%s2311 + $0x170] sm:$0xff]
      %v2344 = vld [vmem:[%s5 + $0x6] sm:$0x1]
      %v2345 = vperm.slane %v2344, 0
      %v2346 = vmul.f32 %v2312, %v2345
      %v2347 = vmul.f32 %v2313, %v2345
      %v2348 = vmul.f32 %v2314, %v2345
      %v2349 = vmul.f32 %v2315, %v2345
      %v2350 = vmul.f32 %v2316, %v2345
      %v2351 = vmul.f32 %v2317, %v2345
      %v2352 = vmul.f32 %v2318, %v2345
      %v2353 = vmul.f32 %v2319, %v2345
      %v2354 = vmul.f32 %v2320, %v2345
      %v2355 = vmul.f32 %v2321, %v2345
      %v2356 = vmul.f32 %v2322, %v2345
      %v2357 = vmul.f32 %v2323, %v2345
      %v2358 = vmul.f32 %v2324, %v2345
      %v2359 = vmul.f32 %v2325, %v2345
      %v2360 = vmul.f32 %v2326, %v2345
      %v2361 = vmul.f32 %v2327, %v2345
      %v2362 = vmul.f32 %v2328, %v2345
      %v2363 = vmul.f32 %v2329, %v2345
      %v2364 = vmul.f32 %v2330, %v2345
      %v2365 = vmul.f32 %v2331, %v2345
      %v2366 = vmul.f32 %v2332, %v2345
      %v2367 = vmul.f32 %v2333, %v2345
      %v2368 = vmul.f32 %v2334, %v2345
      %v2369 = vmul.f32 %v2335, %v2345
      %v2370 = vmul.f32 %v2336, %v2345
      %v2371 = vmul.f32 %v2337, %v2345
      %v2372 = vmul.f32 %v2338, %v2345
      %v2373 = vmul.f32 %v2339, %v2345
      %v2374 = vmul.f32 %v2340, %v2345
      %v2375 = vmul.f32 %v2341, %v2345
      %v2376 = vmul.f32 %v2342, %v2345
      %v2377 = vmul.f32 %v2343, %v2345
      %v2378 = vadd.f32 %v2279, %v2346
      %v2379 = vadd.f32 %v2280, %v2347
      %v2380 = vadd.f32 %v2281, %v2348
      %v2381 = vadd.f32 %v2282, %v2349
      %v2382 = vadd.f32 %v2283, %v2350
      %v2383 = vadd.f32 %v2284, %v2351
      %v2384 = vadd.f32 %v2285, %v2352
      %v2385 = vadd.f32 %v2286, %v2353
      %v2386 = vadd.f32 %v2287, %v2354
      %v2387 = vadd.f32 %v2288, %v2355
      %v2388 = vadd.f32 %v2289, %v2356
      %v2389 = vadd.f32 %v2290, %v2357
      %v2390 = vadd.f32 %v2291, %v2358
      %v2391 = vadd.f32 %v2292, %v2359
      %v2392 = vadd.f32 %v2293, %v2360
      %v2393 = vadd.f32 %v2294, %v2361
      %v2394 = vadd.f32 %v2295, %v2362
      %v2395 = vadd.f32 %v2296, %v2363
      %v2396 = vadd.f32 %v2297, %v2364
      %v2397 = vadd.f32 %v2298, %v2365
      %v2398 = vadd.f32 %v2299, %v2366
      %v2399 = vadd.f32 %v2300, %v2367
      %v2400 = vadd.f32 %v2301, %v2368
      %v2401 = vadd.f32 %v2302, %v2369
      %v2402 = vadd.f32 %v2303, %v2370
      %v2403 = vadd.f32 %v2304, %v2371
      %v2404 = vadd.f32 %v2305, %v2372
      %v2405 = vadd.f32 %v2306, %v2373
      %v2406 = vadd.f32 %v2307, %v2374
      %v2407 = vadd.f32 %v2308, %v2375
      %v2408 = vadd.f32 %v2309, %v2376
      %v2409 = vadd.f32 %v2310, %v2377
      %v2410 = vld [vmem:[%s2311 + $0x1] sm:$0xff]
      %v2411 = vld [vmem:[%s2311 + $0x9] sm:$0xff]
      %v2412 = vld [vmem:[%s2311 + $0x19] sm:$0xff]
      %v2413 = vld [vmem:[%s2311 + $0x21] sm:$0xff]
      %v2414 = vld [vmem:[%s2311 + $0x31] sm:$0xff]
      %v2415 = vld [vmem:[%s2311 + $0x39] sm:$0xff]
      %v2416 = vld [vmem:[%s2311 + $0x49] sm:$0xff]
      %v2417 = vld [vmem:[%s2311 + $0x51] sm:$0xff]
      %v2418 = vld [vmem:[%s2311 + $0x61] sm:$0xff]
      %v2419 = vld [vmem:[%s2311 + $0x69] sm:$0xff]
      %v2420 = vld [vmem:[%s2311 + $0x79] sm:$0xff]
      %v2421 = vld [vmem:[%s2311 + $0x81] sm:$0xff]
      %v2422 = vld [vmem:[%s2311 + $0x91] sm:$0xff]
      %v2423 = vld [vmem:[%s2311 + $0x99] sm:$0xff]
      %v2424 = vld [vmem:[%s2311 + $0xa9] sm:$0xff]
      %v2425 = vld [vmem:[%s2311 + $0xb1] sm:$0xff]
      %v2426 = vld [vmem:[%s2311 + $0xc1] sm:$0xff]
      %v2427 = vld [vmem:[%s2311 + $0xc9] sm:$0xff]
      %v2428 = vld [vmem:[%s2311 + $0xd9] sm:$0xff]
      %v2429 = vld [vmem:[%s2311 + $0xe1] sm:$0xff]
      %v2430 = vld [vmem:[%s2311 + $0xf1] sm:$0xff]
      %v2431 = vld [vmem:[%s2311 + $0xf9] sm:$0xff]
      %v2432 = vld [vmem:[%s2311 + $0x109] sm:$0xff]
      %v2433 = vld [vmem:[%s2311 + $0x111] sm:$0xff]
      %v2434 = vld [vmem:[%s2311 + $0x121] sm:$0xff]
      %v2435 = vld [vmem:[%s2311 + $0x129] sm:$0xff]
      %v2436 = vld [vmem:[%s2311 + $0x139] sm:$0xff]
      %v2437 = vld [vmem:[%s2311 + $0x141] sm:$0xff]
      %v2438 = vld [vmem:[%s2311 + $0x151] sm:$0xff]
      %v2439 = vld [vmem:[%s2311 + $0x159] sm:$0xff]
      %v2440 = vld [vmem:[%s2311 + $0x169] sm:$0xff]
      %v2441 = vld [vmem:[%s2311 + $0x171] sm:$0xff]
      %v2442 = vld [vmem:[%s5 + $0x7] sm:$0x1]
      %v2443 = vperm.slane %v2442, 0
      %v2444 = vmul.f32 %v2410, %v2443
      %v2445 = vmul.f32 %v2411, %v2443
      %v2446 = vmul.f32 %v2412, %v2443
      %v2447 = vmul.f32 %v2413, %v2443
      %v2448 = vmul.f32 %v2414, %v2443
      %v2449 = vmul.f32 %v2415, %v2443
      %v2450 = vmul.f32 %v2416, %v2443
      %v2451 = vmul.f32 %v2417, %v2443
      %v2452 = vmul.f32 %v2418, %v2443
      %v2453 = vmul.f32 %v2419, %v2443
      %v2454 = vmul.f32 %v2420, %v2443
      %v2455 = vmul.f32 %v2421, %v2443
      %v2456 = vmul.f32 %v2422, %v2443
      %v2457 = vmul.f32 %v2423, %v2443
      %v2458 = vmul.f32 %v2424, %v2443
      %v2459 = vmul.f32 %v2425, %v2443
      %v2460 = vmul.f32 %v2426, %v2443
      %v2461 = vmul.f32 %v2427, %v2443
      %v2462 = vmul.f32 %v2428, %v2443
      %v2463 = vmul.f32 %v2429, %v2443
      %v2464 = vmul.f32 %v2430, %v2443
      %v2465 = vmul.f32 %v2431, %v2443
      %v2466 = vmul.f32 %v2432, %v2443
      %v2467 = vmul.f32 %v2433, %v2443
      %v2468 = vmul.f32 %v2434, %v2443
      %v2469 = vmul.f32 %v2435, %v2443
      %v2470 = vmul.f32 %v2436, %v2443
      %v2471 = vmul.f32 %v2437, %v2443
      %v2472 = vmul.f32 %v2438, %v2443
      %v2473 = vmul.f32 %v2439, %v2443
      %v2474 = vmul.f32 %v2440, %v2443
      %v2475 = vmul.f32 %v2441, %v2443
      %v2476 = vadd.f32 %v2378, %v2444
      %v2477 = vadd.f32 %v2379, %v2445
      %v2478 = vadd.f32 %v2380, %v2446
      %v2479 = vadd.f32 %v2381, %v2447
      %v2480 = vadd.f32 %v2382, %v2448
      %v2481 = vadd.f32 %v2383, %v2449
      %v2482 = vadd.f32 %v2384, %v2450
      %v2483 = vadd.f32 %v2385, %v2451
      %v2484 = vadd.f32 %v2386, %v2452
      %v2485 = vadd.f32 %v2387, %v2453
      %v2486 = vadd.f32 %v2388, %v2454
      %v2487 = vadd.f32 %v2389, %v2455
      %v2488 = vadd.f32 %v2390, %v2456
      %v2489 = vadd.f32 %v2391, %v2457
      %v2490 = vadd.f32 %v2392, %v2458
      %v2491 = vadd.f32 %v2393, %v2459
      %v2492 = vadd.f32 %v2394, %v2460
      %v2493 = vadd.f32 %v2395, %v2461
      %v2494 = vadd.f32 %v2396, %v2462
      %v2495 = vadd.f32 %v2397, %v2463
      %v2496 = vadd.f32 %v2398, %v2464
      %v2497 = vadd.f32 %v2399, %v2465
      %v2498 = vadd.f32 %v2400, %v2466
      %v2499 = vadd.f32 %v2401, %v2467
      %v2500 = vadd.f32 %v2402, %v2468
      %v2501 = vadd.f32 %v2403, %v2469
      %v2502 = vadd.f32 %v2404, %v2470
      %v2503 = vadd.f32 %v2405, %v2471
      %v2504 = vadd.f32 %v2406, %v2472
      %v2505 = vadd.f32 %v2407, %v2473
      %v2506 = vadd.f32 %v2408, %v2474
      %v2507 = vadd.f32 %v2409, %v2475
      %v2508 = vld [vmem:[%s2311 + $0x2] sm:$0xff]
      %v2509 = vld [vmem:[%s2311 + $0xa] sm:$0xff]
      %v2510 = vld [vmem:[%s2311 + $0x1a] sm:$0xff]
      %v2511 = vld [vmem:[%s2311 + $0x22] sm:$0xff]
      %v2512 = vld [vmem:[%s2311 + $0x32] sm:$0xff]
      %v2513 = vld [vmem:[%s2311 + $0x3a] sm:$0xff]
      %v2514 = vld [vmem:[%s2311 + $0x4a] sm:$0xff]
      %v2515 = vld [vmem:[%s2311 + $0x52] sm:$0xff]
      %v2516 = vld [vmem:[%s2311 + $0x62] sm:$0xff]
      %v2517 = vld [vmem:[%s2311 + $0x6a] sm:$0xff]
      %v2518 = vld [vmem:[%s2311 + $0x7a] sm:$0xff]
      %v2519 = vld [vmem:[%s2311 + $0x82] sm:$0xff]
      %v2520 = vld [vmem:[%s2311 + $0x92] sm:$0xff]
      %v2521 = vld [vmem:[%s2311 + $0x9a] sm:$0xff]
      %v2522 = vld [vmem:[%s2311 + $0xaa] sm:$0xff]
      %v2523 = vld [vmem:[%s2311 + $0xb2] sm:$0xff]
      %v2524 = vld [vmem:[%s2311 + $0xc2] sm:$0xff]
      %v2525 = vld [vmem:[%s2311 + $0xca] sm:$0xff]
      %v2526 = vld [vmem:[%s2311 + $0xda] sm:$0xff]
      %v2527 = vld [vmem:[%s2311 + $0xe2] sm:$0xff]
      %v2528 = vld [vmem:[%s2311 + $0xf2] sm:$0xff]
      %v2529 = vld [vmem:[%s2311 + $0xfa] sm:$0xff]
      %v2530 = vld [vmem:[%s2311 + $0x10a] sm:$0xff]
      %v2531 = vld [vmem:[%s2311 + $0x112] sm:$0xff]
      %v2532 = vld [vmem:[%s2311 + $0x122] sm:$0xff]
      %v2533 = vld [vmem:[%s2311 + $0x12a] sm:$0xff]
      %v2534 = vld [vmem:[%s2311 + $0x13a] sm:$0xff]
      %v2535 = vld [vmem:[%s2311 + $0x142] sm:$0xff]
      %v2536 = vld [vmem:[%s2311 + $0x152] sm:$0xff]
      %v2537 = vld [vmem:[%s2311 + $0x15a] sm:$0xff]
      %v2538 = vld [vmem:[%s2311 + $0x16a] sm:$0xff]
      %v2539 = vld [vmem:[%s2311 + $0x172] sm:$0xff]
      %v2540 = vld [vmem:[%s5 + $0x8] sm:$0x1]
      %v2541 = vperm.slane %v2540, 0
      %v2542 = vmul.f32 %v2508, %v2541
      %v2543 = vmul.f32 %v2509, %v2541
      %v2544 = vmul.f32 %v2510, %v2541
      %v2545 = vmul.f32 %v2511, %v2541
      %v2546 = vmul.f32 %v2512, %v2541
      %v2547 = vmul.f32 %v2513, %v2541
      %v2548 = vmul.f32 %v2514, %v2541
      %v2549 = vmul.f32 %v2515, %v2541
      %v2550 = vmul.f32 %v2516, %v2541
      %v2551 = vmul.f32 %v2517, %v2541
      %v2552 = vmul.f32 %v2518, %v2541
      %v2553 = vmul.f32 %v2519, %v2541
      %v2554 = vmul.f32 %v2520, %v2541
      %v2555 = vmul.f32 %v2521, %v2541
      %v2556 = vmul.f32 %v2522, %v2541
      %v2557 = vmul.f32 %v2523, %v2541
      %v2558 = vmul.f32 %v2524, %v2541
      %v2559 = vmul.f32 %v2525, %v2541
      %v2560 = vmul.f32 %v2526, %v2541
      %v2561 = vmul.f32 %v2527, %v2541
      %v2562 = vmul.f32 %v2528, %v2541
      %v2563 = vmul.f32 %v2529, %v2541
      %v2564 = vmul.f32 %v2530, %v2541
      %v2565 = vmul.f32 %v2531, %v2541
      %v2566 = vmul.f32 %v2532, %v2541
      %v2567 = vmul.f32 %v2533, %v2541
      %v2568 = vmul.f32 %v2534, %v2541
      %v2569 = vmul.f32 %v2535, %v2541
      %v2570 = vmul.f32 %v2536, %v2541
      %v2571 = vmul.f32 %v2537, %v2541
      %v2572 = vmul.f32 %v2538, %v2541
      %v2573 = vmul.f32 %v2539, %v2541
      %v2574 = vadd.f32 %v2476, %v2542
      %v2575 = vadd.f32 %v2477, %v2543
      %v2576 = vadd.f32 %v2478, %v2544
      %v2577 = vadd.f32 %v2479, %v2545
      %v2578 = vadd.f32 %v2480, %v2546
      %v2579 = vadd.f32 %v2481, %v2547
      %v2580 = vadd.f32 %v2482, %v2548
      %v2581 = vadd.f32 %v2483, %v2549
      %v2582 = vadd.f32 %v2484, %v2550
      %v2583 = vadd.f32 %v2485, %v2551
      %v2584 = vadd.f32 %v2486, %v2552
      %v2585 = vadd.f32 %v2487, %v2553
      %v2586 = vadd.f32 %v2488, %v2554
      %v2587 = vadd.f32 %v2489, %v2555
      %v2588 = vadd.f32 %v2490, %v2556
      %v2589 = vadd.f32 %v2491, %v2557
      %v2590 = vadd.f32 %v2492, %v2558
      %v2591 = vadd.f32 %v2493, %v2559
      %v2592 = vadd.f32 %v2494, %v2560
      %v2593 = vadd.f32 %v2495, %v2561
      %v2594 = vadd.f32 %v2496, %v2562
      %v2595 = vadd.f32 %v2497, %v2563
      %v2596 = vadd.f32 %v2498, %v2564
      %v2597 = vadd.f32 %v2499, %v2565
      %v2598 = vadd.f32 %v2500, %v2566
      %v2599 = vadd.f32 %v2501, %v2567
      %v2600 = vadd.f32 %v2502, %v2568
      %v2601 = vadd.f32 %v2503, %v2569
      %v2602 = vadd.f32 %v2504, %v2570
      %v2603 = vadd.f32 %v2505, %v2571
      %v2604 = vadd.f32 %v2506, %v2572
      %v2605 = vadd.f32 %v2507, %v2573
      %v2606 = vld [vmem:[%s6] sm:$0x1]
      %v2608 = vperm.slane %v2606, 0
      %v2610 = vadd.f32 %v2574, %v2608
      %v2611 = vadd.f32 %v2575, %v2608
      %v2612 = vadd.f32 %v2576, %v2608
      %v2613 = vadd.f32 %v2577, %v2608
      %v2614 = vadd.f32 %v2578, %v2608
      %v2615 = vadd.f32 %v2579, %v2608
      %v2616 = vadd.f32 %v2580, %v2608
      %v2617 = vadd.f32 %v2581, %v2608
      %v2618 = vadd.f32 %v2582, %v2608
      %v2619 = vadd.f32 %v2583, %v2608
      %v2620 = vadd.f32 %v2584, %v2608
      %v2621 = vadd.f32 %v2585, %v2608
      %v2622 = vadd.f32 %v2586, %v2608
      %v2623 = vadd.f32 %v2587, %v2608
      %v2624 = vadd.f32 %v2588, %v2608
      %v2625 = vadd.f32 %v2589, %v2608
      %v2626 = vadd.f32 %v2590, %v2608
      %v2627 = vadd.f32 %v2591, %v2608
      %v2628 = vadd.f32 %v2592, %v2608
      %v2629 = vadd.f32 %v2593, %v2608
      %v2630 = vadd.f32 %v2594, %v2608
      %v2631 = vadd.f32 %v2595, %v2608
      %v2632 = vadd.f32 %v2596, %v2608
      %v2633 = vadd.f32 %v2597, %v2608
      %v2634 = vadd.f32 %v2598, %v2608
      %v2635 = vadd.f32 %v2599, %v2608
      %v2636 = vadd.f32 %v2600, %v2608
      %v2637 = vadd.f32 %v2601, %v2608
      %v2638 = vadd.f32 %v2602, %v2608
      %v2639 = vadd.f32 %v2603, %v2608
      %v2640 = vadd.f32 %v2604, %v2608
      %v2641 = vadd.f32 %v2605, %v2608
      %2674 = vrot.lane.b32.xlu0 %v2610, 112
      %v2675 = vpop.permute.xlu0 %2674
      %2676 = vrot.lane.b32.xlu0 %v2611, 112
      %v2677 = vpop.permute.xlu0 %2676
      %2678 = vrot.lane.b32.xlu0 %v2612, 112
      %v2679 = vpop.permute.xlu0 %2678
      %2680 = vrot.lane.b32.xlu0 %v2613, 112
      %v2681 = vpop.permute.xlu0 %2680
      %2682 = vrot.lane.b32.xlu0 %v2614, 112
      %v2683 = vpop.permute.xlu0 %2682
      %2684 = vrot.lane.b32.xlu0 %v2615, 112
      %v2685 = vpop.permute.xlu0 %2684
      %2686 = vrot.lane.b32.xlu0 %v2616, 112
      %v2687 = vpop.permute.xlu0 %2686
      %2688 = vrot.lane.b32.xlu0 %v2617, 112
      %v2689 = vpop.permute.xlu0 %2688
      %2690 = vrot.lane.b32.xlu0 %v2618, 112
      %v2691 = vpop.permute.xlu0 %2690
      %2692 = vrot.lane.b32.xlu0 %v2619, 112
      %v2693 = vpop.permute.xlu0 %2692
      %2694 = vrot.lane.b32.xlu0 %v2620, 112
      %v2695 = vpop.permute.xlu0 %2694
      %2696 = vrot.lane.b32.xlu0 %v2621, 112
      %v2697 = vpop.permute.xlu0 %2696
      %2698 = vrot.lane.b32.xlu0 %v2622, 112
      %v2699 = vpop.permute.xlu0 %2698
      %2700 = vrot.lane.b32.xlu0 %v2623, 112
      %v2701 = vpop.permute.xlu0 %2700
      %2702 = vrot.lane.b32.xlu0 %v2624, 112
      %v2703 = vpop.permute.xlu0 %2702
      %2704 = vrot.lane.b32.xlu0 %v2625, 112
      %v2705 = vpop.permute.xlu0 %2704
      %2706 = vrot.lane.b32.xlu0 %v2626, 112
      %v2707 = vpop.permute.xlu0 %2706
      %2708 = vrot.lane.b32.xlu0 %v2627, 112
      %v2709 = vpop.permute.xlu0 %2708
      %2710 = vrot.lane.b32.xlu0 %v2628, 112
      %v2711 = vpop.permute.xlu0 %2710
      %2712 = vrot.lane.b32.xlu0 %v2629, 112
      %v2713 = vpop.permute.xlu0 %2712
      %2714 = vrot.lane.b32.xlu0 %v2630, 112
      %v2715 = vpop.permute.xlu0 %2714
      %2716 = vrot.lane.b32.xlu0 %v2631, 112
      %v2717 = vpop.permute.xlu0 %2716
      %2718 = vrot.lane.b32.xlu0 %v2632, 112
      %v2719 = vpop.permute.xlu0 %2718
      %2720 = vrot.lane.b32.xlu0 %v2633, 112
      %v2721 = vpop.permute.xlu0 %2720
      %2722 = vrot.lane.b32.xlu0 %v2634, 112
      %v2723 = vpop.permute.xlu0 %2722
      %2724 = vrot.lane.b32.xlu0 %v2635, 112
      %v2725 = vpop.permute.xlu0 %2724
      %2726 = vrot.lane.b32.xlu0 %v2636, 112
      %v2727 = vpop.permute.xlu0 %2726
      %2728 = vrot.lane.b32.xlu0 %v2637, 112
      %v2729 = vpop.permute.xlu0 %2728
      %2730 = vrot.lane.b32.xlu0 %v2638, 112
      %v2731 = vpop.permute.xlu0 %2730
      %2732 = vrot.lane.b32.xlu0 %v2639, 112
      %v2733 = vpop.permute.xlu0 %2732
      %2734 = vrot.lane.b32.xlu0 %v2640, 112
      %v2735 = vpop.permute.xlu0 %2734
      %2736 = vrot.lane.b32.xlu0 %v2641, 112
      %v2737 = vpop.permute.xlu0 %2736
      %v2770 = vmul.f32 %v2610, %v2675
      %v2771 = vmul.f32 %v2611, %v2677
      %v2772 = vmul.f32 %v2612, %v2679
      %v2773 = vmul.f32 %v2613, %v2681
      %v2774 = vmul.f32 %v2614, %v2683
      %v2775 = vmul.f32 %v2615, %v2685
      %v2776 = vmul.f32 %v2616, %v2687
      %v2777 = vmul.f32 %v2617, %v2689
      %v2778 = vmul.f32 %v2618, %v2691
      %v2779 = vmul.f32 %v2619, %v2693
      %v2780 = vmul.f32 %v2620, %v2695
      %v2781 = vmul.f32 %v2621, %v2697
      %v2782 = vmul.f32 %v2622, %v2699
      %v2783 = vmul.f32 %v2623, %v2701
      %v2784 = vmul.f32 %v2624, %v2703
      %v2785 = vmul.f32 %v2625, %v2705
      %v2786 = vmul.f32 %v2626, %v2707
      %v2787 = vmul.f32 %v2627, %v2709
      %v2788 = vmul.f32 %v2628, %v2711
      %v2789 = vmul.f32 %v2629, %v2713
      %v2790 = vmul.f32 %v2630, %v2715
      %v2791 = vmul.f32 %v2631, %v2717
      %v2792 = vmul.f32 %v2632, %v2719
      %v2793 = vmul.f32 %v2633, %v2721
      %v2794 = vmul.f32 %v2634, %v2723
      %v2795 = vmul.f32 %v2635, %v2725
      %v2796 = vmul.f32 %v2636, %v2727
      %v2797 = vmul.f32 %v2637, %v2729
      %v2798 = vmul.f32 %v2638, %v2731
      %v2799 = vmul.f32 %v2639, %v2733
      %v2800 = vmul.f32 %v2640, %v2735
      %v2801 = vmul.f32 %v2641, %v2737
      %v2802 = vsel %vm635, %v2770, 0.0
      %v2803 = vsel %vm635, %v2771, 0.0
      %v2804 = vadd.f32 %v2802, %v2803
      %v2805 = vsel %vm635, %v2772, 0.0
      %v2806 = vadd.f32 %v2804, %v2805
      %v2807 = vsel %vm635, %v2773, 0.0
      %v2808 = vadd.f32 %v2806, %v2807
      %v2809 = vsel %vm635, %v2774, 0.0
      %v2810 = vadd.f32 %v2808, %v2809
      %v2811 = vsel %vm635, %v2775, 0.0
      %v2812 = vadd.f32 %v2810, %v2811
      %v2813 = vsel %vm635, %v2776, 0.0
      %v2814 = vadd.f32 %v2812, %v2813
      %v2815 = vsel %vm635, %v2777, 0.0
      %v2816 = vadd.f32 %v2814, %v2815
      %v2817 = vsel %vm635, %v2778, 0.0
      %v2818 = vadd.f32 %v2816, %v2817
      %v2819 = vsel %vm635, %v2779, 0.0
      %v2820 = vadd.f32 %v2818, %v2819
      %v2821 = vsel %vm635, %v2780, 0.0
      %v2822 = vadd.f32 %v2820, %v2821
      %v2823 = vsel %vm635, %v2781, 0.0
      %v2824 = vadd.f32 %v2822, %v2823
      %v2825 = vsel %vm635, %v2782, 0.0
      %v2826 = vadd.f32 %v2824, %v2825
      %v2827 = vsel %vm635, %v2783, 0.0
      %v2828 = vadd.f32 %v2826, %v2827
      %v2829 = vsel %vm635, %v2784, 0.0
      %v2830 = vadd.f32 %v2828, %v2829
      %v2831 = vsel %vm635, %v2785, 0.0
      %v2832 = vadd.f32 %v2830, %v2831
      %v2833 = vsel %vm635, %v2786, 0.0
      %v2834 = vadd.f32 %v2832, %v2833
      %v2835 = vsel %vm635, %v2787, 0.0
      %v2836 = vadd.f32 %v2834, %v2835
      %v2837 = vsel %vm635, %v2788, 0.0
      %v2838 = vadd.f32 %v2836, %v2837
      %v2839 = vsel %vm635, %v2789, 0.0
      %v2840 = vadd.f32 %v2838, %v2839
      %v2841 = vsel %vm635, %v2790, 0.0
      %v2842 = vadd.f32 %v2840, %v2841
      %v2843 = vsel %vm635, %v2791, 0.0
      %v2844 = vadd.f32 %v2842, %v2843
      %v2845 = vsel %vm635, %v2792, 0.0
      %v2846 = vadd.f32 %v2844, %v2845
      %v2847 = vsel %vm635, %v2793, 0.0
      %v2848 = vadd.f32 %v2846, %v2847
      %v2849 = vsel %vm635, %v2794, 0.0
      %v2850 = vadd.f32 %v2848, %v2849
      %v2851 = vsel %vm635, %v2795, 0.0
      %v2852 = vadd.f32 %v2850, %v2851
      %v2853 = vsel %vm635, %v2796, 0.0
      %v2854 = vadd.f32 %v2852, %v2853
      %v2855 = vsel %vm635, %v2797, 0.0
      %v2856 = vadd.f32 %v2854, %v2855
      %v2857 = vsel %vm635, %v2798, 0.0
      %v2858 = vadd.f32 %v2856, %v2857
      %v2859 = vsel %vm635, %v2799, 0.0
      %v2860 = vadd.f32 %v2858, %v2859
      %v2861 = vsel %vm635, %v2800, 0.0
      %v2862 = vadd.f32 %v2860, %v2861
      %v2863 = vsel %vm635, %v2801, 0.0
      %v2864 = vadd.f32 %v2862, %v2863
      %v2865 = vrot.slane %v2864, 4
      %v2866 = vadd.f32 %v2864, %v2865
      %v2867 = vrot.slane %v2866, 2
      %v2868 = vadd.f32 %v2866, %v2867
      %v2869 = vrot.slane %v2868, 1
      %v2870 = vadd.f32 %v2868, %v2869
      %v2871 = vrcp.pop 256.0
      %v2872 = vmul.f32 256.0, %v2871
      %v2873 = vsub.f32 1.0, %v2872
      %v2874 = vmul.f32 %v2871, %v2873
      %v2875 = vadd.f32 %v2871, %v2874
      %vm2876 = vweird.f32 %v2871
      %v2877 = vsel %vm2876, %v2871, %v2875
      %v2878 = vmul.f32 %v2870, %v2877
      %v2879 = vld [vmem:[%s7] sm:$0xff]
      %v2880 = vld [vmem:[%s7 + $0x8] sm:$0xff]
      %v2881 = vld [vmem:[%s8] sm:$0x1]
      %v2883 = vsel %vm635, %v2878, 0
      %2885 = vmatpush.msra.mxu0 0.0
      %2886 = vmatpush.msra.mxu0 0.0
      %2887 = vmatpush.msra.mxu0 0.0
      %2888 = vmatpush.msra.mxu0 0.0
      %2889 = vmatpush.msra.mxu0 0.0
      %2890 = vmatpush.msra.mxu0 0.0
      %2891 = vmatpush.msra.mxu0 0.0
      %2892 = vmatpush.msra.mxu0 0.0
      %2893 = vmatpush.msra.mxu0 0.0
      %2894 = vmatpush.msra.mxu0 0.0
      %2895 = vmatpush.msra.mxu0 0.0
      %2896 = vmatpush.msra.mxu0 0.0
      %2897 = vmatpush.msra.mxu0 0.0
      %2898 = vmatpush.msra.mxu0 0.0
      %2899 = vmatpush.msra.mxu0 %v2880
      %2900 = vmatpush.msra.mxu0 %v2879
      %2901 = vmatmul.f32.gmra.mxu0 %v2883
      %v2902 = vpop.f32.mrf.mxu0
      %v2903 = vadd.f32 %v2881, %v2902
      %2904 = vdwg.mxu0
      %v2905 = vperm.slane %v2903, 0
      %v2906 = vmul.f32 %v2770, %v2905
      %v2907 = vmul.f32 %v2771, %v2905
      %v2908 = vmul.f32 %v2772, %v2905
      %v2909 = vmul.f32 %v2773, %v2905
      %v2910 = vmul.f32 %v2774, %v2905
      %v2911 = vmul.f32 %v2775, %v2905
      %v2912 = vmul.f32 %v2776, %v2905
      %v2913 = vmul.f32 %v2777, %v2905
      %v2914 = vmul.f32 %v2778, %v2905
      %v2915 = vmul.f32 %v2779, %v2905
      %v2916 = vmul.f32 %v2780, %v2905
      %v2917 = vmul.f32 %v2781, %v2905
      %v2918 = vmul.f32 %v2782, %v2905
      %v2919 = vmul.f32 %v2783, %v2905
      %v2920 = vmul.f32 %v2784, %v2905
      %v2921 = vmul.f32 %v2785, %v2905
      %v2922 = vmul.f32 %v2786, %v2905
      %v2923 = vmul.f32 %v2787, %v2905
      %v2924 = vmul.f32 %v2788, %v2905
      %v2925 = vmul.f32 %v2789, %v2905
      %v2926 = vmul.f32 %v2790, %v2905
      %v2927 = vmul.f32 %v2791, %v2905
      %v2928 = vmul.f32 %v2792, %v2905
      %v2929 = vmul.f32 %v2793, %v2905
      %v2930 = vmul.f32 %v2794, %v2905
      %v2931 = vmul.f32 %v2795, %v2905
      %v2932 = vmul.f32 %v2796, %v2905
      %v2933 = vmul.f32 %v2797, %v2905
      %v2934 = vmul.f32 %v2798, %v2905
      %v2935 = vmul.f32 %v2799, %v2905
      %v2936 = vmul.f32 %v2800, %v2905
      %v2937 = vmul.f32 %v2801, %v2905
      %v2938 = vld [vmem:[%s9] sm:$0xff]
      %v2939 = vld [vmem:[%s9 + $0x8] sm:$0xff]
      %v2940 = vld [vmem:[%s10] sm:$0x1]
      %v2942 = vperm.slane %v2940, 0
      %v2945 = vsel %vm635, %v2906, 0
      %v2948 = vsel %vm635, %v2907, 0
      %v2951 = vsel %vm635, %v2908, 0
      %v2954 = vsel %vm635, %v2909, 0
      %v2957 = vsel %vm635, %v2910, 0
      %v2960 = vsel %vm635, %v2911, 0
      %v2963 = vsel %vm635, %v2912, 0
      %v2966 = vsel %vm635, %v2913, 0
      %v2969 = vsel %vm635, %v2914, 0
      %v2972 = vsel %vm635, %v2915, 0
      %v2975 = vsel %vm635, %v2916, 0
      %v2978 = vsel %vm635, %v2917, 0
      %v2981 = vsel %vm635, %v2918, 0
      %v2984 = vsel %vm635, %v2919, 0
      %v2987 = vsel %vm635, %v2920, 0
      %v2990 = vsel %vm635, %v2921, 0
      %v2993 = vsel %vm635, %v2922, 0
      %v2996 = vsel %vm635, %v2923, 0
      %v2999 = vsel %vm635, %v2924, 0
      %v3002 = vsel %vm635, %v2925, 0
      %v3005 = vsel %vm635, %v2926, 0
      %v3008 = vsel %vm635, %v2927, 0
      %v3011 = vsel %vm635, %v2928, 0
      %v3014 = vsel %vm635, %v2929, 0
      %v3017 = vsel %vm635, %v2930, 0
      %v3020 = vsel %vm635, %v2931, 0
      %v3023 = vsel %vm635, %v2932, 0
      %v3026 = vsel %vm635, %v2933, 0
      %v3029 = vsel %vm635, %v2934, 0
      %v3032 = vsel %vm635, %v2935, 0
      %v3035 = vsel %vm635, %v2936, 0
      %v3038 = vsel %vm635, %v2937, 0
      %3040 = vmatpush.msra.mxu0 0.0
      %3041 = vmatpush.msra.mxu0 0.0
      %3042 = vmatpush.msra.mxu0 0.0
      %3043 = vmatpush.msra.mxu0 0.0
      %3044 = vmatpush.msra.mxu0 0.0
      %3045 = vmatpush.msra.mxu0 0.0
      %3046 = vmatpush.msra.mxu0 0.0
      %3047 = vmatpush.msra.mxu0 0.0
      %3048 = vmatpush.msra.mxu0 0.0
      %3049 = vmatpush.msra.mxu0 0.0
      %3050 = vmatpush.msra.mxu0 0.0
      %3051 = vmatpush.msra.mxu0 0.0
      %3052 = vmatpush.msra.mxu0 0.0
      %3053 = vmatpush.msra.mxu0 0.0
      %3054 = vmatpush.msra.mxu0 %v2939
      %3055 = vmatpush.msra.mxu0 %v2938
      %3056 = vmatmul.f32.gmra.mxu0 %v2945
      %v3057 = vpop.f32.mrf.mxu0
      %v3058 = vadd.f32 %v2942, %v3057
      %3059 = vmatmul.f32.gmra.mxu0 %v2948
      %v3060 = vpop.f32.mrf.mxu0
      %v3061 = vadd.f32 %v2942, %v3060
      %3062 = vmatmul.f32.gmra.mxu0 %v2951
      %v3063 = vpop.f32.mrf.mxu0
      %v3064 = vadd.f32 %v2942, %v3063
      %3065 = vmatmul.f32.gmra.mxu0 %v2954
      %v3066 = vpop.f32.mrf.mxu0
      %v3067 = vadd.f32 %v2942, %v3066
      %3068 = vmatmul.f32.gmra.mxu0 %v2957
      %v3069 = vpop.f32.mrf.mxu0
      %v3070 = vadd.f32 %v2942, %v3069
      %3071 = vmatmul.f32.gmra.mxu0 %v2960
      %v3072 = vpop.f32.mrf.mxu0
      %v3073 = vadd.f32 %v2942, %v3072
      %3074 = vmatmul.f32.gmra.mxu0 %v2963
      %v3075 = vpop.f32.mrf.mxu0
      %v3076 = vadd.f32 %v2942, %v3075
      %3077 = vmatmul.f32.gmra.mxu0 %v2966
      %v3078 = vpop.f32.mrf.mxu0
      %v3079 = vadd.f32 %v2942, %v3078
      %3080 = vmatmul.f32.gmra.mxu0 %v2969
      %v3081 = vpop.f32.mrf.mxu0
      %v3082 = vadd.f32 %v2942, %v3081
      %3083 = vmatmul.f32.gmra.mxu0 %v2972
      %v3084 = vpop.f32.mrf.mxu0
      %v3085 = vadd.f32 %v2942, %v3084
      %3086 = vmatmul.f32.gmra.mxu0 %v2975
      %v3087 = vpop.f32.mrf.mxu0
      %v3088 = vadd.f32 %v2942, %v3087
      %3089 = vmatmul.f32.gmra.mxu0 %v2978
      %v3090 = vpop.f32.mrf.mxu0
      %v3091 = vadd.f32 %v2942, %v3090
      %3092 = vmatmul.f32.gmra.mxu0 %v2981
      %v3093 = vpop.f32.mrf.mxu0
      %v3094 = vadd.f32 %v2942, %v3093
      %3095 = vmatmul.f32.gmra.mxu0 %v2984
      %v3096 = vpop.f32.mrf.mxu0
      %v3097 = vadd.f32 %v2942, %v3096
      %3098 = vmatmul.f32.gmra.mxu0 %v2987
      %v3099 = vpop.f32.mrf.mxu0
      %v3100 = vadd.f32 %v2942, %v3099
      %3101 = vmatmul.f32.gmra.mxu0 %v2990
      %v3102 = vpop.f32.mrf.mxu0
      %v3103 = vadd.f32 %v2942, %v3102
      %3104 = vmatmul.f32.gmra.mxu0 %v2993
      %v3105 = vpop.f32.mrf.mxu0
      %v3106 = vadd.f32 %v2942, %v3105
      %3107 = vmatmul.f32.gmra.mxu0 %v2996
      %v3108 = vpop.f32.mrf.mxu0
      %v3109 = vadd.f32 %v2942, %v3108
      %3110 = vmatmul.f32.gmra.mxu0 %v2999
      %v3111 = vpop.f32.mrf.mxu0
      %v3112 = vadd.f32 %v2942, %v3111
      %3113 = vmatmul.f32.gmra.mxu0 %v3002
      %v3114 = vpop.f32.mrf.mxu0
      %v3115 = vadd.f32 %v2942, %v3114
      %3116 = vmatmul.f32.gmra.mxu0 %v3005
      %v3117 = vpop.f32.mrf.mxu0
      %v3118 = vadd.f32 %v2942, %v3117
      %3119 = vmatmul.f32.gmra.mxu0 %v3008
      %v3120 = vpop.f32.mrf.mxu0
      %v3121 = vadd.f32 %v2942, %v3120
      %3122 = vmatmul.f32.gmra.mxu0 %v3011
      %v3123 = vpop.f32.mrf.mxu0
      %v3124 = vadd.f32 %v2942, %v3123
      %3125 = vmatmul.f32.gmra.mxu0 %v3014
      %v3126 = vpop.f32.mrf.mxu0
      %v3127 = vadd.f32 %v2942, %v3126
      %3128 = vmatmul.f32.gmra.mxu0 %v3017
      %v3129 = vpop.f32.mrf.mxu0
      %v3130 = vadd.f32 %v2942, %v3129
      %3131 = vmatmul.f32.gmra.mxu0 %v3020
      %v3132 = vpop.f32.mrf.mxu0
      %v3133 = vadd.f32 %v2942, %v3132
      %3134 = vmatmul.f32.gmra.mxu0 %v3023
      %v3135 = vpop.f32.mrf.mxu0
      %v3136 = vadd.f32 %v2942, %v3135
      %3137 = vmatmul.f32.gmra.mxu0 %v3026
      %v3138 = vpop.f32.mrf.mxu0
      %v3139 = vadd.f32 %v2942, %v3138
      %3140 = vmatmul.f32.gmra.mxu0 %v3029
      %v3141 = vpop.f32.mrf.mxu0
      %v3142 = vadd.f32 %v2942, %v3141
      %3143 = vmatmul.f32.gmra.mxu0 %v3032
      %v3144 = vpop.f32.mrf.mxu0
      %v3145 = vadd.f32 %v2942, %v3144
      %3146 = vmatmul.f32.gmra.mxu0 %v3035
      %v3147 = vpop.f32.mrf.mxu0
      %v3148 = vadd.f32 %v2942, %v3147
      %3149 = vmatmul.f32.gmra.mxu0 %v3038
      %v3150 = vpop.f32.mrf.mxu0
      %v3151 = vadd.f32 %v2942, %v3150
      %3152 = vdwg.mxu0
      %v3153 = vld [vmem:[%s11] sm:$0x1]
      %v3155 = vperm.slane %v3153, 0
      %v3157 = vmul.f32 %v3058, %v3155
      %v3158 = vmul.f32 %v3061, %v3155
      %v3159 = vmul.f32 %v3064, %v3155
      %v3160 = vmul.f32 %v3067, %v3155
      %v3161 = vmul.f32 %v3070, %v3155
      %v3162 = vmul.f32 %v3073, %v3155
      %v3163 = vmul.f32 %v3076, %v3155
      %v3164 = vmul.f32 %v3079, %v3155
      %v3165 = vmul.f32 %v3082, %v3155
      %v3166 = vmul.f32 %v3085, %v3155
      %v3167 = vmul.f32 %v3088, %v3155
      %v3168 = vmul.f32 %v3091, %v3155
      %v3169 = vmul.f32 %v3094, %v3155
      %v3170 = vmul.f32 %v3097, %v3155
      %v3171 = vmul.f32 %v3100, %v3155
      %v3172 = vmul.f32 %v3103, %v3155
      %v3173 = vmul.f32 %v3106, %v3155
      %v3174 = vmul.f32 %v3109, %v3155
      %v3175 = vmul.f32 %v3112, %v3155
      %v3176 = vmul.f32 %v3115, %v3155
      %v3177 = vmul.f32 %v3118, %v3155
      %v3178 = vmul.f32 %v3121, %v3155
      %v3179 = vmul.f32 %v3124, %v3155
      %v3180 = vmul.f32 %v3127, %v3155
      %v3181 = vmul.f32 %v3130, %v3155
      %v3182 = vmul.f32 %v3133, %v3155
      %v3183 = vmul.f32 %v3136, %v3155
      %v3184 = vmul.f32 %v3139, %v3155
      %v3185 = vmul.f32 %v3142, %v3155
      %v3186 = vmul.f32 %v3145, %v3155
      %v3187 = vmul.f32 %v3148, %v3155
      %v3188 = vmul.f32 %v3151, %v3155
      %v3189 = vadd.f32 %v603, %v3157
      %v3190 = vadd.f32 %v604, %v3158
      %v3191 = vadd.f32 %v605, %v3159
      %v3192 = vadd.f32 %v606, %v3160
      %v3193 = vadd.f32 %v607, %v3161
      %v3194 = vadd.f32 %v608, %v3162
      %v3195 = vadd.f32 %v609, %v3163
      %v3196 = vadd.f32 %v610, %v3164
      %v3197 = vadd.f32 %v611, %v3165
      %v3198 = vadd.f32 %v612, %v3166
      %v3199 = vadd.f32 %v613, %v3167
      %v3200 = vadd.f32 %v614, %v3168
      %v3201 = vadd.f32 %v615, %v3169
      %v3202 = vadd.f32 %v616, %v3170
      %v3203 = vadd.f32 %v617, %v3171
      %v3204 = vadd.f32 %v618, %v3172
      %v3205 = vadd.f32 %v619, %v3173
      %v3206 = vadd.f32 %v620, %v3174
      %v3207 = vadd.f32 %v621, %v3175
      %v3208 = vadd.f32 %v622, %v3176
      %v3209 = vadd.f32 %v623, %v3177
      %v3210 = vadd.f32 %v624, %v3178
      %v3211 = vadd.f32 %v625, %v3179
      %v3212 = vadd.f32 %v626, %v3180
      %v3213 = vadd.f32 %v627, %v3181
      %v3214 = vadd.f32 %v628, %v3182
      %v3215 = vadd.f32 %v629, %v3183
      %v3216 = vadd.f32 %v630, %v3184
      %v3217 = vadd.f32 %v631, %v3185
      %v3218 = vadd.f32 %v632, %v3186
      %v3219 = vadd.f32 %v633, %v3187
      %v3220 = vadd.f32 %v634, %v3188
      %v3221 = vsel %vm635, %v3189, 0.0
      %3222 = vadd.xlane.f32.xlu0 %v3221
      %v3223 = vpop.xlane.xlu0 %3222
      %v3224 = vsel %vm635, %v3190, 0.0
      %3225 = vadd.xlane.f32.xlu0 %v3224
      %v3226 = vpop.xlane.xlu0 %3225
      %v3227 = vsel %vm635, %v3191, 0.0
      %3228 = vadd.xlane.f32.xlu0 %v3227
      %v3229 = vpop.xlane.xlu0 %3228
      %v3230 = vsel %vm635, %v3192, 0.0
      %3231 = vadd.xlane.f32.xlu0 %v3230
      %v3232 = vpop.xlane.xlu0 %3231
      %v3233 = vsel %vm635, %v3193, 0.0
      %3234 = vadd.xlane.f32.xlu0 %v3233
      %v3235 = vpop.xlane.xlu0 %3234
      %v3236 = vsel %vm635, %v3194, 0.0
      %3237 = vadd.xlane.f32.xlu0 %v3236
      %v3238 = vpop.xlane.xlu0 %3237
      %v3239 = vsel %vm635, %v3195, 0.0
      %3240 = vadd.xlane.f32.xlu0 %v3239
      %v3241 = vpop.xlane.xlu0 %3240
      %v3242 = vsel %vm635, %v3196, 0.0
      %3243 = vadd.xlane.f32.xlu0 %v3242
      %v3244 = vpop.xlane.xlu0 %3243
      %v3245 = vsel %vm635, %v3197, 0.0
      %3246 = vadd.xlane.f32.xlu0 %v3245
      %v3247 = vpop.xlane.xlu0 %3246
      %v3248 = vsel %vm635, %v3198, 0.0
      %3249 = vadd.xlane.f32.xlu0 %v3248
      %v3250 = vpop.xlane.xlu0 %3249
      %v3251 = vsel %vm635, %v3199, 0.0
      %3252 = vadd.xlane.f32.xlu0 %v3251
      %v3253 = vpop.xlane.xlu0 %3252
      %v3254 = vsel %vm635, %v3200, 0.0
      %3255 = vadd.xlane.f32.xlu0 %v3254
      %v3256 = vpop.xlane.xlu0 %3255
      %v3257 = vsel %vm635, %v3201, 0.0
      %3258 = vadd.xlane.f32.xlu0 %v3257
      %v3259 = vpop.xlane.xlu0 %3258
      %v3260 = vsel %vm635, %v3202, 0.0
      %3261 = vadd.xlane.f32.xlu0 %v3260
      %v3262 = vpop.xlane.xlu0 %3261
      %v3263 = vsel %vm635, %v3203, 0.0
      %3264 = vadd.xlane.f32.xlu0 %v3263
      %v3265 = vpop.xlane.xlu0 %3264
      %v3266 = vsel %vm635, %v3204, 0.0
      %3267 = vadd.xlane.f32.xlu0 %v3266
      %v3268 = vpop.xlane.xlu0 %3267
      %v3269 = vsel %vm635, %v3205, 0.0
      %3270 = vadd.xlane.f32.xlu0 %v3269
      %v3271 = vpop.xlane.xlu0 %3270
      %v3272 = vsel %vm635, %v3206, 0.0
      %3273 = vadd.xlane.f32.xlu0 %v3272
      %v3274 = vpop.xlane.xlu0 %3273
      %v3275 = vsel %vm635, %v3207, 0.0
      %3276 = vadd.xlane.f32.xlu0 %v3275
      %v3277 = vpop.xlane.xlu0 %3276
      %v3278 = vsel %vm635, %v3208, 0.0
      %3279 = vadd.xlane.f32.xlu0 %v3278
      %v3280 = vpop.xlane.xlu0 %3279
      %v3281 = vsel %vm635, %v3209, 0.0
      %3282 = vadd.xlane.f32.xlu0 %v3281
      %v3283 = vpop.xlane.xlu0 %3282
      %v3284 = vsel %vm635, %v3210, 0.0
      %3285 = vadd.xlane.f32.xlu0 %v3284
      %v3286 = vpop.xlane.xlu0 %3285
      %v3287 = vsel %vm635, %v3211, 0.0
      %3288 = vadd.xlane.f32.xlu0 %v3287
      %v3289 = vpop.xlane.xlu0 %3288
      %v3290 = vsel %vm635, %v3212, 0.0
      %3291 = vadd.xlane.f32.xlu0 %v3290
      %v3292 = vpop.xlane.xlu0 %3291
      %v3293 = vsel %vm635, %v3213, 0.0
      %3294 = vadd.xlane.f32.xlu0 %v3293
      %v3295 = vpop.xlane.xlu0 %3294
      %v3296 = vsel %vm635, %v3214, 0.0
      %3297 = vadd.xlane.f32.xlu0 %v3296
      %v3298 = vpop.xlane.xlu0 %3297
      %v3299 = vsel %vm635, %v3215, 0.0
      %3300 = vadd.xlane.f32.xlu0 %v3299
      %v3301 = vpop.xlane.xlu0 %3300
      %v3302 = vsel %vm635, %v3216, 0.0
      %3303 = vadd.xlane.f32.xlu0 %v3302
      %v3304 = vpop.xlane.xlu0 %3303
      %v3305 = vsel %vm635, %v3217, 0.0
      %3306 = vadd.xlane.f32.xlu0 %v3305
      %v3307 = vpop.xlane.xlu0 %3306
      %v3308 = vsel %vm635, %v3218, 0.0
      %3309 = vadd.xlane.f32.xlu0 %v3308
      %v3310 = vpop.xlane.xlu0 %3309
      %v3311 = vsel %vm635, %v3219, 0.0
      %3312 = vadd.xlane.f32.xlu0 %v3311
      %v3313 = vpop.xlane.xlu0 %3312
      %v3314 = vsel %vm635, %v3220, 0.0
      %3315 = vadd.xlane.f32.xlu0 %v3314
      %v3316 = vpop.xlane.xlu0 %3315
      %v3317 = vmul.f32 %v3223, %v738
      %v3318 = vmul.f32 %v3226, %v738
      %v3319 = vmul.f32 %v3229, %v738
      %v3320 = vmul.f32 %v3232, %v738
      %v3321 = vmul.f32 %v3235, %v738
      %v3322 = vmul.f32 %v3238, %v738
      %v3323 = vmul.f32 %v3241, %v738
      %v3324 = vmul.f32 %v3244, %v738
      %v3325 = vmul.f32 %v3247, %v738
      %v3326 = vmul.f32 %v3250, %v738
      %v3327 = vmul.f32 %v3253, %v738
      %v3328 = vmul.f32 %v3256, %v738
      %v3329 = vmul.f32 %v3259, %v738
      %v3330 = vmul.f32 %v3262, %v738
      %v3331 = vmul.f32 %v3265, %v738
      %v3332 = vmul.f32 %v3268, %v738
      %v3333 = vmul.f32 %v3271, %v738
      %v3334 = vmul.f32 %v3274, %v738
      %v3335 = vmul.f32 %v3277, %v738
      %v3336 = vmul.f32 %v3280, %v738
      %v3337 = vmul.f32 %v3283, %v738
      %v3338 = vmul.f32 %v3286, %v738
      %v3339 = vmul.f32 %v3289, %v738
      %v3340 = vmul.f32 %v3292, %v738
      %v3341 = vmul.f32 %v3295, %v738
      %v3342 = vmul.f32 %v3298, %v738
      %v3343 = vmul.f32 %v3301, %v738
      %v3344 = vmul.f32 %v3304, %v738
      %v3345 = vmul.f32 %v3307, %v738
      %v3346 = vmul.f32 %v3310, %v738
      %v3347 = vmul.f32 %v3313, %v738
      %v3348 = vmul.f32 %v3316, %v738
      %v3349 = vsub.f32 %v3189, %v3317
      %v3350 = vsub.f32 %v3190, %v3318
      %v3351 = vsub.f32 %v3191, %v3319
      %v3352 = vsub.f32 %v3192, %v3320
      %v3353 = vsub.f32 %v3193, %v3321
      %v3354 = vsub.f32 %v3194, %v3322
      %v3355 = vsub.f32 %v3195, %v3323
      %v3356 = vsub.f32 %v3196, %v3324
      %v3357 = vsub.f32 %v3197, %v3325
      %v3358 = vsub.f32 %v3198, %v3326
      %v3359 = vsub.f32 %v3199, %v3327
      %v3360 = vsub.f32 %v3200, %v3328
      %v3361 = vsub.f32 %v3201, %v3329
      %v3362 = vsub.f32 %v3202, %v3330
      %v3363 = vsub.f32 %v3203, %v3331
      %v3364 = vsub.f32 %v3204, %v3332
      %v3365 = vsub.f32 %v3205, %v3333
      %v3366 = vsub.f32 %v3206, %v3334
      %v3367 = vsub.f32 %v3207, %v3335
      %v3368 = vsub.f32 %v3208, %v3336
      %v3369 = vsub.f32 %v3209, %v3337
      %v3370 = vsub.f32 %v3210, %v3338
      %v3371 = vsub.f32 %v3211, %v3339
      %v3372 = vsub.f32 %v3212, %v3340
      %v3373 = vsub.f32 %v3213, %v3341
      %v3374 = vsub.f32 %v3214, %v3342
      %v3375 = vsub.f32 %v3215, %v3343
      %v3376 = vsub.f32 %v3216, %v3344
      %v3377 = vsub.f32 %v3217, %v3345
      %v3378 = vsub.f32 %v3218, %v3346
      %v3379 = vsub.f32 %v3219, %v3347
      %v3380 = vsub.f32 %v3220, %v3348
      %v3381 = vmul.f32 %v3349, %v3349
      %v3382 = vmul.f32 %v3350, %v3350
      %v3383 = vmul.f32 %v3351, %v3351
      %v3384 = vmul.f32 %v3352, %v3352
      %v3385 = vmul.f32 %v3353, %v3353
      %v3386 = vmul.f32 %v3354, %v3354
      %v3387 = vmul.f32 %v3355, %v3355
      %v3388 = vmul.f32 %v3356, %v3356
      %v3389 = vmul.f32 %v3357, %v3357
      %v3390 = vmul.f32 %v3358, %v3358
      %v3391 = vmul.f32 %v3359, %v3359
      %v3392 = vmul.f32 %v3360, %v3360
      %v3393 = vmul.f32 %v3361, %v3361
      %v3394 = vmul.f32 %v3362, %v3362
      %v3395 = vmul.f32 %v3363, %v3363
      %v3396 = vmul.f32 %v3364, %v3364
      %v3397 = vmul.f32 %v3365, %v3365
      %v3398 = vmul.f32 %v3366, %v3366
      %v3399 = vmul.f32 %v3367, %v3367
      %v3400 = vmul.f32 %v3368, %v3368
      %v3401 = vmul.f32 %v3369, %v3369
      %v3402 = vmul.f32 %v3370, %v3370
      %v3403 = vmul.f32 %v3371, %v3371
      %v3404 = vmul.f32 %v3372, %v3372
      %v3405 = vmul.f32 %v3373, %v3373
      %v3406 = vmul.f32 %v3374, %v3374
      %v3407 = vmul.f32 %v3375, %v3375
      %v3408 = vmul.f32 %v3376, %v3376
      %v3409 = vmul.f32 %v3377, %v3377
      %v3410 = vmul.f32 %v3378, %v3378
      %v3411 = vmul.f32 %v3379, %v3379
      %v3412 = vmul.f32 %v3380, %v3380
      %v3413 = vsel %vm635, %v3381, 0.0
      %3414 = vadd.xlane.f32.xlu0 %v3413
      %v3415 = vpop.xlane.xlu0 %3414
      %v3416 = vsel %vm635, %v3382, 0.0
      %3417 = vadd.xlane.f32.xlu0 %v3416
      %v3418 = vpop.xlane.xlu0 %3417
      %v3419 = vsel %vm635, %v3383, 0.0
      %3420 = vadd.xlane.f32.xlu0 %v3419
      %v3421 = vpop.xlane.xlu0 %3420
      %v3422 = vsel %vm635, %v3384, 0.0
      %3423 = vadd.xlane.f32.xlu0 %v3422
      %v3424 = vpop.xlane.xlu0 %3423
      %v3425 = vsel %vm635, %v3385, 0.0
      %3426 = vadd.xlane.f32.xlu0 %v3425
      %v3427 = vpop.xlane.xlu0 %3426
      %v3428 = vsel %vm635, %v3386, 0.0
      %3429 = vadd.xlane.f32.xlu0 %v3428
      %v3430 = vpop.xlane.xlu0 %3429
      %v3431 = vsel %vm635, %v3387, 0.0
      %3432 = vadd.xlane.f32.xlu0 %v3431
      %v3433 = vpop.xlane.xlu0 %3432
      %v3434 = vsel %vm635, %v3388, 0.0
      %3435 = vadd.xlane.f32.xlu0 %v3434
      %v3436 = vpop.xlane.xlu0 %3435
      %v3437 = vsel %vm635, %v3389, 0.0
      %3438 = vadd.xlane.f32.xlu0 %v3437
      %v3439 = vpop.xlane.xlu0 %3438
      %v3440 = vsel %vm635, %v3390, 0.0
      %3441 = vadd.xlane.f32.xlu0 %v3440
      %v3442 = vpop.xlane.xlu0 %3441
      %v3443 = vsel %vm635, %v3391, 0.0
      %3444 = vadd.xlane.f32.xlu0 %v3443
      %v3445 = vpop.xlane.xlu0 %3444
      %v3446 = vsel %vm635, %v3392, 0.0
      %3447 = vadd.xlane.f32.xlu0 %v3446
      %v3448 = vpop.xlane.xlu0 %3447
      %v3449 = vsel %vm635, %v3393, 0.0
      %3450 = vadd.xlane.f32.xlu0 %v3449
      %v3451 = vpop.xlane.xlu0 %3450
      %v3452 = vsel %vm635, %v3394, 0.0
      %3453 = vadd.xlane.f32.xlu0 %v3452
      %v3454 = vpop.xlane.xlu0 %3453
      %v3455 = vsel %vm635, %v3395, 0.0
      %3456 = vadd.xlane.f32.xlu0 %v3455
      %v3457 = vpop.xlane.xlu0 %3456
      %v3458 = vsel %vm635, %v3396, 0.0
      %3459 = vadd.xlane.f32.xlu0 %v3458
      %v3460 = vpop.xlane.xlu0 %3459
      %v3461 = vsel %vm635, %v3397, 0.0
      %3462 = vadd.xlane.f32.xlu0 %v3461
      %v3463 = vpop.xlane.xlu0 %3462
      %v3464 = vsel %vm635, %v3398, 0.0
      %3465 = vadd.xlane.f32.xlu0 %v3464
      %v3466 = vpop.xlane.xlu0 %3465
      %v3467 = vsel %vm635, %v3399, 0.0
      %3468 = vadd.xlane.f32.xlu0 %v3467
      %v3469 = vpop.xlane.xlu0 %3468
      %v3470 = vsel %vm635, %v3400, 0.0
      %3471 = vadd.xlane.f32.xlu0 %v3470
      %v3472 = vpop.xlane.xlu0 %3471
      %v3473 = vsel %vm635, %v3401, 0.0
      %3474 = vadd.xlane.f32.xlu0 %v3473
      %v3475 = vpop.xlane.xlu0 %3474
      %v3476 = vsel %vm635, %v3402, 0.0
      %3477 = vadd.xlane.f32.xlu0 %v3476
      %v3478 = vpop.xlane.xlu0 %3477
      %v3479 = vsel %vm635, %v3403, 0.0
      %3480 = vadd.xlane.f32.xlu0 %v3479
      %v3481 = vpop.xlane.xlu0 %3480
      %v3482 = vsel %vm635, %v3404, 0.0
      %3483 = vadd.xlane.f32.xlu0 %v3482
      %v3484 = vpop.xlane.xlu0 %3483
      %v3485 = vsel %vm635, %v3405, 0.0
      %3486 = vadd.xlane.f32.xlu0 %v3485
      %v3487 = vpop.xlane.xlu0 %3486
      %v3488 = vsel %vm635, %v3406, 0.0
      %3489 = vadd.xlane.f32.xlu0 %v3488
      %v3490 = vpop.xlane.xlu0 %3489
      %v3491 = vsel %vm635, %v3407, 0.0
      %3492 = vadd.xlane.f32.xlu0 %v3491
      %v3493 = vpop.xlane.xlu0 %3492
      %v3494 = vsel %vm635, %v3408, 0.0
      %3495 = vadd.xlane.f32.xlu0 %v3494
      %v3496 = vpop.xlane.xlu0 %3495
      %v3497 = vsel %vm635, %v3409, 0.0
      %3498 = vadd.xlane.f32.xlu0 %v3497
      %v3499 = vpop.xlane.xlu0 %3498
      %v3500 = vsel %vm635, %v3410, 0.0
      %3501 = vadd.xlane.f32.xlu0 %v3500
      %v3502 = vpop.xlane.xlu0 %3501
      %v3503 = vsel %vm635, %v3411, 0.0
      %3504 = vadd.xlane.f32.xlu0 %v3503
      %v3505 = vpop.xlane.xlu0 %3504
      %v3506 = vsel %vm635, %v3412, 0.0
      %3507 = vadd.xlane.f32.xlu0 %v3506
      %v3508 = vpop.xlane.xlu0 %3507
      %v3509 = vmul.f32 %v3415, %v738
      %v3510 = vmul.f32 %v3418, %v738
      %v3511 = vmul.f32 %v3421, %v738
      %v3512 = vmul.f32 %v3424, %v738
      %v3513 = vmul.f32 %v3427, %v738
      %v3514 = vmul.f32 %v3430, %v738
      %v3515 = vmul.f32 %v3433, %v738
      %v3516 = vmul.f32 %v3436, %v738
      %v3517 = vmul.f32 %v3439, %v738
      %v3518 = vmul.f32 %v3442, %v738
      %v3519 = vmul.f32 %v3445, %v738
      %v3520 = vmul.f32 %v3448, %v738
      %v3521 = vmul.f32 %v3451, %v738
      %v3522 = vmul.f32 %v3454, %v738
      %v3523 = vmul.f32 %v3457, %v738
      %v3524 = vmul.f32 %v3460, %v738
      %v3525 = vmul.f32 %v3463, %v738
      %v3526 = vmul.f32 %v3466, %v738
      %v3527 = vmul.f32 %v3469, %v738
      %v3528 = vmul.f32 %v3472, %v738
      %v3529 = vmul.f32 %v3475, %v738
      %v3530 = vmul.f32 %v3478, %v738
      %v3531 = vmul.f32 %v3481, %v738
      %v3532 = vmul.f32 %v3484, %v738
      %v3533 = vmul.f32 %v3487, %v738
      %v3534 = vmul.f32 %v3490, %v738
      %v3535 = vmul.f32 %v3493, %v738
      %v3536 = vmul.f32 %v3496, %v738
      %v3537 = vmul.f32 %v3499, %v738
      %v3538 = vmul.f32 %v3502, %v738
      %v3539 = vmul.f32 %v3505, %v738
      %v3540 = vmul.f32 %v3508, %v738
      %v3541 = vadd.f32 %v3509, 1e-06
      %v3542 = vadd.f32 %v3510, 1e-06
      %v3543 = vadd.f32 %v3511, 1e-06
      %v3544 = vadd.f32 %v3512, 1e-06
      %v3545 = vadd.f32 %v3513, 1e-06
      %v3546 = vadd.f32 %v3514, 1e-06
      %v3547 = vadd.f32 %v3515, 1e-06
      %v3548 = vadd.f32 %v3516, 1e-06
      %v3549 = vadd.f32 %v3517, 1e-06
      %v3550 = vadd.f32 %v3518, 1e-06
      %v3551 = vadd.f32 %v3519, 1e-06
      %v3552 = vadd.f32 %v3520, 1e-06
      %v3553 = vadd.f32 %v3521, 1e-06
      %v3554 = vadd.f32 %v3522, 1e-06
      %v3555 = vadd.f32 %v3523, 1e-06
      %v3556 = vadd.f32 %v3524, 1e-06
      %v3557 = vadd.f32 %v3525, 1e-06
      %v3558 = vadd.f32 %v3526, 1e-06
      %v3559 = vadd.f32 %v3527, 1e-06
      %v3560 = vadd.f32 %v3528, 1e-06
      %v3561 = vadd.f32 %v3529, 1e-06
      %v3562 = vadd.f32 %v3530, 1e-06
      %v3563 = vadd.f32 %v3531, 1e-06
      %v3564 = vadd.f32 %v3532, 1e-06
      %v3565 = vadd.f32 %v3533, 1e-06
      %v3566 = vadd.f32 %v3534, 1e-06
      %v3567 = vadd.f32 %v3535, 1e-06
      %v3568 = vadd.f32 %v3536, 1e-06
      %v3569 = vadd.f32 %v3537, 1e-06
      %v3570 = vadd.f32 %v3538, 1e-06
      %v3571 = vadd.f32 %v3539, 1e-06
      %v3572 = vadd.f32 %v3540, 1e-06
      %v3573 = vrsqrt.pop %v3541
      %v3574 = vmul.f32 %v3573, %v3541
      %v3575 = vmul.f32 %v3574, %v3573
      %v3576 = vmul.f32 0.5, %v3575
      %v3577 = vsub.f32 1.5, %v3576
      %v3578 = vmul.f32 %v3573, %v3577
      %vm3579 = vweird.f32 %v3541
      %vm3580 = vweird.f32 %v3573
      %vm3581 = vmor %vm3579, %vm3580
      %v3582 = vsel %vm3581, %v3573, %v3578
      %v3583 = vrsqrt.pop %v3542
      %v3584 = vmul.f32 %v3583, %v3542
      %v3585 = vmul.f32 %v3584, %v3583
      %v3586 = vmul.f32 0.5, %v3585
      %v3587 = vsub.f32 1.5, %v3586
      %v3588 = vmul.f32 %v3583, %v3587
      %vm3589 = vweird.f32 %v3542
      %vm3590 = vweird.f32 %v3583
      %vm3591 = vmor %vm3589, %vm3590
      %v3592 = vsel %vm3591, %v3583, %v3588
      %v3593 = vrsqrt.pop %v3543
      %v3594 = vmul.f32 %v3593, %v3543
      %v3595 = vmul.f32 %v3594, %v3593
      %v3596 = vmul.f32 0.5, %v3595
      %v3597 = vsub.f32 1.5, %v3596
      %v3598 = vmul.f32 %v3593, %v3597
      %vm3599 = vweird.f32 %v3543
      %vm3600 = vweird.f32 %v3593
      %vm3601 = vmor %vm3599, %vm3600
      %v3602 = vsel %vm3601, %v3593, %v3598
      %v3603 = vrsqrt.pop %v3544
      %v3604 = vmul.f32 %v3603, %v3544
      %v3605 = vmul.f32 %v3604, %v3603
      %v3606 = vmul.f32 0.5, %v3605
      %v3607 = vsub.f32 1.5, %v3606
      %v3608 = vmul.f32 %v3603, %v3607
      %vm3609 = vweird.f32 %v3544
      %vm3610 = vweird.f32 %v3603
      %vm3611 = vmor %vm3609, %vm3610
      %v3612 = vsel %vm3611, %v3603, %v3608
      %v3613 = vrsqrt.pop %v3545
      %v3614 = vmul.f32 %v3613, %v3545
      %v3615 = vmul.f32 %v3614, %v3613
      %v3616 = vmul.f32 0.5, %v3615
      %v3617 = vsub.f32 1.5, %v3616
      %v3618 = vmul.f32 %v3613, %v3617
      %vm3619 = vweird.f32 %v3545
      %vm3620 = vweird.f32 %v3613
      %vm3621 = vmor %vm3619, %vm3620
      %v3622 = vsel %vm3621, %v3613, %v3618
      %v3623 = vrsqrt.pop %v3546
      %v3624 = vmul.f32 %v3623, %v3546
      %v3625 = vmul.f32 %v3624, %v3623
      %v3626 = vmul.f32 0.5, %v3625
      %v3627 = vsub.f32 1.5, %v3626
      %v3628 = vmul.f32 %v3623, %v3627
      %vm3629 = vweird.f32 %v3546
      %vm3630 = vweird.f32 %v3623
      %vm3631 = vmor %vm3629, %vm3630
      %v3632 = vsel %vm3631, %v3623, %v3628
      %v3633 = vrsqrt.pop %v3547
      %v3634 = vmul.f32 %v3633, %v3547
      %v3635 = vmul.f32 %v3634, %v3633
      %v3636 = vmul.f32 0.5, %v3635
      %v3637 = vsub.f32 1.5, %v3636
      %v3638 = vmul.f32 %v3633, %v3637
      %vm3639 = vweird.f32 %v3547
      %vm3640 = vweird.f32 %v3633
      %vm3641 = vmor %vm3639, %vm3640
      %v3642 = vsel %vm3641, %v3633, %v3638
      %v3643 = vrsqrt.pop %v3548
      %v3644 = vmul.f32 %v3643, %v3548
      %v3645 = vmul.f32 %v3644, %v3643
      %v3646 = vmul.f32 0.5, %v3645
      %v3647 = vsub.f32 1.5, %v3646
      %v3648 = vmul.f32 %v3643, %v3647
      %vm3649 = vweird.f32 %v3548
      %vm3650 = vweird.f32 %v3643
      %vm3651 = vmor %vm3649, %vm3650
      %v3652 = vsel %vm3651, %v3643, %v3648
      %v3653 = vrsqrt.pop %v3549
      %v3654 = vmul.f32 %v3653, %v3549
      %v3655 = vmul.f32 %v3654, %v3653
      %v3656 = vmul.f32 0.5, %v3655
      %v3657 = vsub.f32 1.5, %v3656
      %v3658 = vmul.f32 %v3653, %v3657
      %vm3659 = vweird.f32 %v3549
      %vm3660 = vweird.f32 %v3653
      %vm3661 = vmor %vm3659, %vm3660
      %v3662 = vsel %vm3661, %v3653, %v3658
      %v3663 = vrsqrt.pop %v3550
      %v3664 = vmul.f32 %v3663, %v3550
      %v3665 = vmul.f32 %v3664, %v3663
      %v3666 = vmul.f32 0.5, %v3665
      %v3667 = vsub.f32 1.5, %v3666
      %v3668 = vmul.f32 %v3663, %v3667
      %vm3669 = vweird.f32 %v3550
      %vm3670 = vweird.f32 %v3663
      %vm3671 = vmor %vm3669, %vm3670
      %v3672 = vsel %vm3671, %v3663, %v3668
      %v3673 = vrsqrt.pop %v3551
      %v3674 = vmul.f32 %v3673, %v3551
      %v3675 = vmul.f32 %v3674, %v3673
      %v3676 = vmul.f32 0.5, %v3675
      %v3677 = vsub.f32 1.5, %v3676
      %v3678 = vmul.f32 %v3673, %v3677
      %vm3679 = vweird.f32 %v3551
      %vm3680 = vweird.f32 %v3673
      %vm3681 = vmor %vm3679, %vm3680
      %v3682 = vsel %vm3681, %v3673, %v3678
      %v3683 = vrsqrt.pop %v3552
      %v3684 = vmul.f32 %v3683, %v3552
      %v3685 = vmul.f32 %v3684, %v3683
      %v3686 = vmul.f32 0.5, %v3685
      %v3687 = vsub.f32 1.5, %v3686
      %v3688 = vmul.f32 %v3683, %v3687
      %vm3689 = vweird.f32 %v3552
      %vm3690 = vweird.f32 %v3683
      %vm3691 = vmor %vm3689, %vm3690
      %v3692 = vsel %vm3691, %v3683, %v3688
      %v3693 = vrsqrt.pop %v3553
      %v3694 = vmul.f32 %v3693, %v3553
      %v3695 = vmul.f32 %v3694, %v3693
      %v3696 = vmul.f32 0.5, %v3695
      %v3697 = vsub.f32 1.5, %v3696
      %v3698 = vmul.f32 %v3693, %v3697
      %vm3699 = vweird.f32 %v3553
      %vm3700 = vweird.f32 %v3693
      %vm3701 = vmor %vm3699, %vm3700
      %v3702 = vsel %vm3701, %v3693, %v3698
      %v3703 = vrsqrt.pop %v3554
      %v3704 = vmul.f32 %v3703, %v3554
      %v3705 = vmul.f32 %v3704, %v3703
      %v3706 = vmul.f32 0.5, %v3705
      %v3707 = vsub.f32 1.5, %v3706
      %v3708 = vmul.f32 %v3703, %v3707
      %vm3709 = vweird.f32 %v3554
      %vm3710 = vweird.f32 %v3703
      %vm3711 = vmor %vm3709, %vm3710
      %v3712 = vsel %vm3711, %v3703, %v3708
      %v3713 = vrsqrt.pop %v3555
      %v3714 = vmul.f32 %v3713, %v3555
      %v3715 = vmul.f32 %v3714, %v3713
      %v3716 = vmul.f32 0.5, %v3715
      %v3717 = vsub.f32 1.5, %v3716
      %v3718 = vmul.f32 %v3713, %v3717
      %vm3719 = vweird.f32 %v3555
      %vm3720 = vweird.f32 %v3713
      %vm3721 = vmor %vm3719, %vm3720
      %v3722 = vsel %vm3721, %v3713, %v3718
      %v3723 = vrsqrt.pop %v3556
      %v3724 = vmul.f32 %v3723, %v3556
      %v3725 = vmul.f32 %v3724, %v3723
      %v3726 = vmul.f32 0.5, %v3725
      %v3727 = vsub.f32 1.5, %v3726
      %v3728 = vmul.f32 %v3723, %v3727
      %vm3729 = vweird.f32 %v3556
      %vm3730 = vweird.f32 %v3723
      %vm3731 = vmor %vm3729, %vm3730
      %v3732 = vsel %vm3731, %v3723, %v3728
      %v3733 = vrsqrt.pop %v3557
      %v3734 = vmul.f32 %v3733, %v3557
      %v3735 = vmul.f32 %v3734, %v3733
      %v3736 = vmul.f32 0.5, %v3735
      %v3737 = vsub.f32 1.5, %v3736
      %v3738 = vmul.f32 %v3733, %v3737
      %vm3739 = vweird.f32 %v3557
      %vm3740 = vweird.f32 %v3733
      %vm3741 = vmor %vm3739, %vm3740
      %v3742 = vsel %vm3741, %v3733, %v3738
      %v3743 = vrsqrt.pop %v3558
      %v3744 = vmul.f32 %v3743, %v3558
      %v3745 = vmul.f32 %v3744, %v3743
      %v3746 = vmul.f32 0.5, %v3745
      %v3747 = vsub.f32 1.5, %v3746
      %v3748 = vmul.f32 %v3743, %v3747
      %vm3749 = vweird.f32 %v3558
      %vm3750 = vweird.f32 %v3743
      %vm3751 = vmor %vm3749, %vm3750
      %v3752 = vsel %vm3751, %v3743, %v3748
      %v3753 = vrsqrt.pop %v3559
      %v3754 = vmul.f32 %v3753, %v3559
      %v3755 = vmul.f32 %v3754, %v3753
      %v3756 = vmul.f32 0.5, %v3755
      %v3757 = vsub.f32 1.5, %v3756
      %v3758 = vmul.f32 %v3753, %v3757
      %vm3759 = vweird.f32 %v3559
      %vm3760 = vweird.f32 %v3753
      %vm3761 = vmor %vm3759, %vm3760
      %v3762 = vsel %vm3761, %v3753, %v3758
      %v3763 = vrsqrt.pop %v3560
      %v3764 = vmul.f32 %v3763, %v3560
      %v3765 = vmul.f32 %v3764, %v3763
      %v3766 = vmul.f32 0.5, %v3765
      %v3767 = vsub.f32 1.5, %v3766
      %v3768 = vmul.f32 %v3763, %v3767
      %vm3769 = vweird.f32 %v3560
      %vm3770 = vweird.f32 %v3763
      %vm3771 = vmor %vm3769, %vm3770
      %v3772 = vsel %vm3771, %v3763, %v3768
      %v3773 = vrsqrt.pop %v3561
      %v3774 = vmul.f32 %v3773, %v3561
      %v3775 = vmul.f32 %v3774, %v3773
      %v3776 = vmul.f32 0.5, %v3775
      %v3777 = vsub.f32 1.5, %v3776
      %v3778 = vmul.f32 %v3773, %v3777
      %vm3779 = vweird.f32 %v3561
      %vm3780 = vweird.f32 %v3773
      %vm3781 = vmor %vm3779, %vm3780
      %v3782 = vsel %vm3781, %v3773, %v3778
      %v3783 = vrsqrt.pop %v3562
      %v3784 = vmul.f32 %v3783, %v3562
      %v3785 = vmul.f32 %v3784, %v3783
      %v3786 = vmul.f32 0.5, %v3785
      %v3787 = vsub.f32 1.5, %v3786
      %v3788 = vmul.f32 %v3783, %v3787
      %vm3789 = vweird.f32 %v3562
      %vm3790 = vweird.f32 %v3783
      %vm3791 = vmor %vm3789, %vm3790
      %v3792 = vsel %vm3791, %v3783, %v3788
      %v3793 = vrsqrt.pop %v3563
      %v3794 = vmul.f32 %v3793, %v3563
      %v3795 = vmul.f32 %v3794, %v3793
      %v3796 = vmul.f32 0.5, %v3795
      %v3797 = vsub.f32 1.5, %v3796
      %v3798 = vmul.f32 %v3793, %v3797
      %vm3799 = vweird.f32 %v3563
      %vm3800 = vweird.f32 %v3793
      %vm3801 = vmor %vm3799, %vm3800
      %v3802 = vsel %vm3801, %v3793, %v3798
      %v3803 = vrsqrt.pop %v3564
      %v3804 = vmul.f32 %v3803, %v3564
      %v3805 = vmul.f32 %v3804, %v3803
      %v3806 = vmul.f32 0.5, %v3805
      %v3807 = vsub.f32 1.5, %v3806
      %v3808 = vmul.f32 %v3803, %v3807
      %vm3809 = vweird.f32 %v3564
      %vm3810 = vweird.f32 %v3803
      %vm3811 = vmor %vm3809, %vm3810
      %v3812 = vsel %vm3811, %v3803, %v3808
      %v3813 = vrsqrt.pop %v3565
      %v3814 = vmul.f32 %v3813, %v3565
      %v3815 = vmul.f32 %v3814, %v3813
      %v3816 = vmul.f32 0.5, %v3815
      %v3817 = vsub.f32 1.5, %v3816
      %v3818 = vmul.f32 %v3813, %v3817
      %vm3819 = vweird.f32 %v3565
      %vm3820 = vweird.f32 %v3813
      %vm3821 = vmor %vm3819, %vm3820
      %v3822 = vsel %vm3821, %v3813, %v3818
      %v3823 = vrsqrt.pop %v3566
      %v3824 = vmul.f32 %v3823, %v3566
      %v3825 = vmul.f32 %v3824, %v3823
      %v3826 = vmul.f32 0.5, %v3825
      %v3827 = vsub.f32 1.5, %v3826
      %v3828 = vmul.f32 %v3823, %v3827
      %vm3829 = vweird.f32 %v3566
      %vm3830 = vweird.f32 %v3823
      %vm3831 = vmor %vm3829, %vm3830
      %v3832 = vsel %vm3831, %v3823, %v3828
      %v3833 = vrsqrt.pop %v3567
      %v3834 = vmul.f32 %v3833, %v3567
      %v3835 = vmul.f32 %v3834, %v3833
      %v3836 = vmul.f32 0.5, %v3835
      %v3837 = vsub.f32 1.5, %v3836
      %v3838 = vmul.f32 %v3833, %v3837
      %vm3839 = vweird.f32 %v3567
      %vm3840 = vweird.f32 %v3833
      %vm3841 = vmor %vm3839, %vm3840
      %v3842 = vsel %vm3841, %v3833, %v3838
      %v3843 = vrsqrt.pop %v3568
      %v3844 = vmul.f32 %v3843, %v3568
      %v3845 = vmul.f32 %v3844, %v3843
      %v3846 = vmul.f32 0.5, %v3845
      %v3847 = vsub.f32 1.5, %v3846
      %v3848 = vmul.f32 %v3843, %v3847
      %vm3849 = vweird.f32 %v3568
      %vm3850 = vweird.f32 %v3843
      %vm3851 = vmor %vm3849, %vm3850
      %v3852 = vsel %vm3851, %v3843, %v3848
      %v3853 = vrsqrt.pop %v3569
      %v3854 = vmul.f32 %v3853, %v3569
      %v3855 = vmul.f32 %v3854, %v3853
      %v3856 = vmul.f32 0.5, %v3855
      %v3857 = vsub.f32 1.5, %v3856
      %v3858 = vmul.f32 %v3853, %v3857
      %vm3859 = vweird.f32 %v3569
      %vm3860 = vweird.f32 %v3853
      %vm3861 = vmor %vm3859, %vm3860
      %v3862 = vsel %vm3861, %v3853, %v3858
      %v3863 = vrsqrt.pop %v3570
      %v3864 = vmul.f32 %v3863, %v3570
      %v3865 = vmul.f32 %v3864, %v3863
      %v3866 = vmul.f32 0.5, %v3865
      %v3867 = vsub.f32 1.5, %v3866
      %v3868 = vmul.f32 %v3863, %v3867
      %vm3869 = vweird.f32 %v3570
      %vm3870 = vweird.f32 %v3863
      %vm3871 = vmor %vm3869, %vm3870
      %v3872 = vsel %vm3871, %v3863, %v3868
      %v3873 = vrsqrt.pop %v3571
      %v3874 = vmul.f32 %v3873, %v3571
      %v3875 = vmul.f32 %v3874, %v3873
      %v3876 = vmul.f32 0.5, %v3875
      %v3877 = vsub.f32 1.5, %v3876
      %v3878 = vmul.f32 %v3873, %v3877
      %vm3879 = vweird.f32 %v3571
      %vm3880 = vweird.f32 %v3873
      %vm3881 = vmor %vm3879, %vm3880
      %v3882 = vsel %vm3881, %v3873, %v3878
      %v3883 = vrsqrt.pop %v3572
      %v3884 = vmul.f32 %v3883, %v3572
      %v3885 = vmul.f32 %v3884, %v3883
      %v3886 = vmul.f32 0.5, %v3885
      %v3887 = vsub.f32 1.5, %v3886
      %v3888 = vmul.f32 %v3883, %v3887
      %vm3889 = vweird.f32 %v3572
      %vm3890 = vweird.f32 %v3883
      %vm3891 = vmor %vm3889, %vm3890
      %v3892 = vsel %vm3891, %v3883, %v3888
      %v3893 = vmul.f32 %v3349, %v3582
      %v3894 = vmul.f32 %v3350, %v3592
      %v3895 = vmul.f32 %v3351, %v3602
      %v3896 = vmul.f32 %v3352, %v3612
      %v3897 = vmul.f32 %v3353, %v3622
      %v3898 = vmul.f32 %v3354, %v3632
      %v3899 = vmul.f32 %v3355, %v3642
      %v3900 = vmul.f32 %v3356, %v3652
      %v3901 = vmul.f32 %v3357, %v3662
      %v3902 = vmul.f32 %v3358, %v3672
      %v3903 = vmul.f32 %v3359, %v3682
      %v3904 = vmul.f32 %v3360, %v3692
      %v3905 = vmul.f32 %v3361, %v3702
      %v3906 = vmul.f32 %v3362, %v3712
      %v3907 = vmul.f32 %v3363, %v3722
      %v3908 = vmul.f32 %v3364, %v3732
      %v3909 = vmul.f32 %v3365, %v3742
      %v3910 = vmul.f32 %v3366, %v3752
      %v3911 = vmul.f32 %v3367, %v3762
      %v3912 = vmul.f32 %v3368, %v3772
      %v3913 = vmul.f32 %v3369, %v3782
      %v3914 = vmul.f32 %v3370, %v3792
      %v3915 = vmul.f32 %v3371, %v3802
      %v3916 = vmul.f32 %v3372, %v3812
      %v3917 = vmul.f32 %v3373, %v3822
      %v3918 = vmul.f32 %v3374, %v3832
      %v3919 = vmul.f32 %v3375, %v3842
      %v3920 = vmul.f32 %v3376, %v3852
      %v3921 = vmul.f32 %v3377, %v3862
      %v3922 = vmul.f32 %v3378, %v3872
      %v3923 = vmul.f32 %v3379, %v3882
      %v3924 = vmul.f32 %v3380, %v3892
      %v3925 = vld [vmem:[%s12] sm:$0x1]
      %v3927 = vperm.slane %v3925, 0
      %v3929 = vmul.f32 %v3893, %v3927
      %v3930 = vmul.f32 %v3894, %v3927
      %v3931 = vmul.f32 %v3895, %v3927
      %v3932 = vmul.f32 %v3896, %v3927
      %v3933 = vmul.f32 %v3897, %v3927
      %v3934 = vmul.f32 %v3898, %v3927
      %v3935 = vmul.f32 %v3899, %v3927
      %v3936 = vmul.f32 %v3900, %v3927
      %v3937 = vmul.f32 %v3901, %v3927
      %v3938 = vmul.f32 %v3902, %v3927
      %v3939 = vmul.f32 %v3903, %v3927
      %v3940 = vmul.f32 %v3904, %v3927
      %v3941 = vmul.f32 %v3905, %v3927
      %v3942 = vmul.f32 %v3906, %v3927
      %v3943 = vmul.f32 %v3907, %v3927
      %v3944 = vmul.f32 %v3908, %v3927
      %v3945 = vmul.f32 %v3909, %v3927
      %v3946 = vmul.f32 %v3910, %v3927
      %v3947 = vmul.f32 %v3911, %v3927
      %v3948 = vmul.f32 %v3912, %v3927
      %v3949 = vmul.f32 %v3913, %v3927
      %v3950 = vmul.f32 %v3914, %v3927
      %v3951 = vmul.f32 %v3915, %v3927
      %v3952 = vmul.f32 %v3916, %v3927
      %v3953 = vmul.f32 %v3917, %v3927
      %v3954 = vmul.f32 %v3918, %v3927
      %v3955 = vmul.f32 %v3919, %v3927
      %v3956 = vmul.f32 %v3920, %v3927
      %v3957 = vmul.f32 %v3921, %v3927
      %v3958 = vmul.f32 %v3922, %v3927
      %v3959 = vmul.f32 %v3923, %v3927
      %v3960 = vmul.f32 %v3924, %v3927
      %v3961 = vld [vmem:[%s13] sm:$0x1]
      %v3963 = vperm.slane %v3961, 0
      %v3965 = vadd.f32 %v3929, %v3963
      %v3966 = vadd.f32 %v3930, %v3963
      %v3967 = vadd.f32 %v3931, %v3963
      %v3968 = vadd.f32 %v3932, %v3963
      %v3969 = vadd.f32 %v3933, %v3963
      %v3970 = vadd.f32 %v3934, %v3963
      %v3971 = vadd.f32 %v3935, %v3963
      %v3972 = vadd.f32 %v3936, %v3963
      %v3973 = vadd.f32 %v3937, %v3963
      %v3974 = vadd.f32 %v3938, %v3963
      %v3975 = vadd.f32 %v3939, %v3963
      %v3976 = vadd.f32 %v3940, %v3963
      %v3977 = vadd.f32 %v3941, %v3963
      %v3978 = vadd.f32 %v3942, %v3963
      %v3979 = vadd.f32 %v3943, %v3963
      %v3980 = vadd.f32 %v3944, %v3963
      %v3981 = vadd.f32 %v3945, %v3963
      %v3982 = vadd.f32 %v3946, %v3963
      %v3983 = vadd.f32 %v3947, %v3963
      %v3984 = vadd.f32 %v3948, %v3963
      %v3985 = vadd.f32 %v3949, %v3963
      %v3986 = vadd.f32 %v3950, %v3963
      %v3987 = vadd.f32 %v3951, %v3963
      %v3988 = vadd.f32 %v3952, %v3963
      %v3989 = vadd.f32 %v3953, %v3963
      %v3990 = vadd.f32 %v3954, %v3963
      %v3991 = vadd.f32 %v3955, %v3963
      %v3992 = vadd.f32 %v3956, %v3963
      %v3993 = vadd.f32 %v3957, %v3963
      %v3994 = vadd.f32 %v3958, %v3963
      %v3995 = vadd.f32 %v3959, %v3963
      %v3996 = vadd.f32 %v3960, %v3963
      %v3997 = vld [vmem:[%s14] sm:$0xff]
      %v3998 = vld [vmem:[%s14 + $0x8] sm:$0xff]
      %v3999 = vld [vmem:[%s15] sm:$0x1]
      %v4001 = vperm.slane %v3999, 0
      %v4004 = vsel %vm635, %v3965, 0
      %v4007 = vsel %vm635, %v3966, 0
      %v4010 = vsel %vm635, %v3967, 0
      %v4013 = vsel %vm635, %v3968, 0
      %v4016 = vsel %vm635, %v3969, 0
      %v4019 = vsel %vm635, %v3970, 0
      %v4022 = vsel %vm635, %v3971, 0
      %v4025 = vsel %vm635, %v3972, 0
      %v4028 = vsel %vm635, %v3973, 0
      %v4031 = vsel %vm635, %v3974, 0
      %v4034 = vsel %vm635, %v3975, 0
      %v4037 = vsel %vm635, %v3976, 0
      %v4040 = vsel %vm635, %v3977, 0
      %v4043 = vsel %vm635, %v3978, 0
      %v4046 = vsel %vm635, %v3979, 0
      %v4049 = vsel %vm635, %v3980, 0
      %v4052 = vsel %vm635, %v3981, 0
      %v4055 = vsel %vm635, %v3982, 0
      %v4058 = vsel %vm635, %v3983, 0
      %v4061 = vsel %vm635, %v3984, 0
      %v4064 = vsel %vm635, %v3985, 0
      %v4067 = vsel %vm635, %v3986, 0
      %v4070 = vsel %vm635, %v3987, 0
      %v4073 = vsel %vm635, %v3988, 0
      %v4076 = vsel %vm635, %v3989, 0
      %v4079 = vsel %vm635, %v3990, 0
      %v4082 = vsel %vm635, %v3991, 0
      %v4085 = vsel %vm635, %v3992, 0
      %v4088 = vsel %vm635, %v3993, 0
      %v4091 = vsel %vm635, %v3994, 0
      %v4094 = vsel %vm635, %v3995, 0
      %v4097 = vsel %vm635, %v3996, 0
      %4099 = vmatpush.msra.mxu0 0.0
      %4100 = vmatpush.msra.mxu0 0.0
      %4101 = vmatpush.msra.mxu0 0.0
      %4102 = vmatpush.msra.mxu0 0.0
      %4103 = vmatpush.msra.mxu0 0.0
      %4104 = vmatpush.msra.mxu0 0.0
      %4105 = vmatpush.msra.mxu0 0.0
      %4106 = vmatpush.msra.mxu0 0.0
      %4107 = vmatpush.msra.mxu0 0.0
      %4108 = vmatpush.msra.mxu0 0.0
      %4109 = vmatpush.msra.mxu0 0.0
      %4110 = vmatpush.msra.mxu0 0.0
      %4111 = vmatpush.msra.mxu0 0.0
      %4112 = vmatpush.msra.mxu0 0.0
      %4113 = vmatpush.msra.mxu0 %v3998
      %4114 = vmatpush.msra.mxu0 %v3997
      %4115 = vmatmul.f32.gmra.mxu0 %v4004
      %v4116 = vpop.f32.mrf.mxu0
      %v4117 = vadd.f32 %v4001, %v4116
      %4118 = vmatmul.f32.gmra.mxu0 %v4007
      %v4119 = vpop.f32.mrf.mxu0
      %v4120 = vadd.f32 %v4001, %v4119
      %4121 = vmatmul.f32.gmra.mxu0 %v4010
      %v4122 = vpop.f32.mrf.mxu0
      %v4123 = vadd.f32 %v4001, %v4122
      %4124 = vmatmul.f32.gmra.mxu0 %v4013
      %v4125 = vpop.f32.mrf.mxu0
      %v4126 = vadd.f32 %v4001, %v4125
      %4127 = vmatmul.f32.gmra.mxu0 %v4016
      %v4128 = vpop.f32.mrf.mxu0
      %v4129 = vadd.f32 %v4001, %v4128
      %4130 = vmatmul.f32.gmra.mxu0 %v4019
      %v4131 = vpop.f32.mrf.mxu0
      %v4132 = vadd.f32 %v4001, %v4131
      %4133 = vmatmul.f32.gmra.mxu0 %v4022
      %v4134 = vpop.f32.mrf.mxu0
      %v4135 = vadd.f32 %v4001, %v4134
      %4136 = vmatmul.f32.gmra.mxu0 %v4025
      %v4137 = vpop.f32.mrf.mxu0
      %v4138 = vadd.f32 %v4001, %v4137
      %4139 = vmatmul.f32.gmra.mxu0 %v4028
      %v4140 = vpop.f32.mrf.mxu0
      %v4141 = vadd.f32 %v4001, %v4140
      %4142 = vmatmul.f32.gmra.mxu0 %v4031
      %v4143 = vpop.f32.mrf.mxu0
      %v4144 = vadd.f32 %v4001, %v4143
      %4145 = vmatmul.f32.gmra.mxu0 %v4034
      %v4146 = vpop.f32.mrf.mxu0
      %v4147 = vadd.f32 %v4001, %v4146
      %4148 = vmatmul.f32.gmra.mxu0 %v4037
      %v4149 = vpop.f32.mrf.mxu0
      %v4150 = vadd.f32 %v4001, %v4149
      %4151 = vmatmul.f32.gmra.mxu0 %v4040
      %v4152 = vpop.f32.mrf.mxu0
      %v4153 = vadd.f32 %v4001, %v4152
      %4154 = vmatmul.f32.gmra.mxu0 %v4043
      %v4155 = vpop.f32.mrf.mxu0
      %v4156 = vadd.f32 %v4001, %v4155
      %4157 = vmatmul.f32.gmra.mxu0 %v4046
      %v4158 = vpop.f32.mrf.mxu0
      %v4159 = vadd.f32 %v4001, %v4158
      %4160 = vmatmul.f32.gmra.mxu0 %v4049
      %v4161 = vpop.f32.mrf.mxu0
      %v4162 = vadd.f32 %v4001, %v4161
      %4163 = vmatmul.f32.gmra.mxu0 %v4052
      %v4164 = vpop.f32.mrf.mxu0
      %v4165 = vadd.f32 %v4001, %v4164
      %4166 = vmatmul.f32.gmra.mxu0 %v4055
      %v4167 = vpop.f32.mrf.mxu0
      %v4168 = vadd.f32 %v4001, %v4167
      %4169 = vmatmul.f32.gmra.mxu0 %v4058
      %v4170 = vpop.f32.mrf.mxu0
      %v4171 = vadd.f32 %v4001, %v4170
      %4172 = vmatmul.f32.gmra.mxu0 %v4061
      %v4173 = vpop.f32.mrf.mxu0
      %v4174 = vadd.f32 %v4001, %v4173
      %4175 = vmatmul.f32.gmra.mxu0 %v4064
      %v4176 = vpop.f32.mrf.mxu0
      %v4177 = vadd.f32 %v4001, %v4176
      %4178 = vmatmul.f32.gmra.mxu0 %v4067
      %v4179 = vpop.f32.mrf.mxu0
      %v4180 = vadd.f32 %v4001, %v4179
      %4181 = vmatmul.f32.gmra.mxu0 %v4070
      %v4182 = vpop.f32.mrf.mxu0
      %v4183 = vadd.f32 %v4001, %v4182
      %4184 = vmatmul.f32.gmra.mxu0 %v4073
      %v4185 = vpop.f32.mrf.mxu0
      %v4186 = vadd.f32 %v4001, %v4185
      %4187 = vmatmul.f32.gmra.mxu0 %v4076
      %v4188 = vpop.f32.mrf.mxu0
      %v4189 = vadd.f32 %v4001, %v4188
      %4190 = vmatmul.f32.gmra.mxu0 %v4079
      %v4191 = vpop.f32.mrf.mxu0
      %v4192 = vadd.f32 %v4001, %v4191
      %4193 = vmatmul.f32.gmra.mxu0 %v4082
      %v4194 = vpop.f32.mrf.mxu0
      %v4195 = vadd.f32 %v4001, %v4194
      %4196 = vmatmul.f32.gmra.mxu0 %v4085
      %v4197 = vpop.f32.mrf.mxu0
      %v4198 = vadd.f32 %v4001, %v4197
      %4199 = vmatmul.f32.gmra.mxu0 %v4088
      %v4200 = vpop.f32.mrf.mxu0
      %v4201 = vadd.f32 %v4001, %v4200
      %4202 = vmatmul.f32.gmra.mxu0 %v4091
      %v4203 = vpop.f32.mrf.mxu0
      %v4204 = vadd.f32 %v4001, %v4203
      %4205 = vmatmul.f32.gmra.mxu0 %v4094
      %v4206 = vpop.f32.mrf.mxu0
      %v4207 = vadd.f32 %v4001, %v4206
      %4208 = vmatmul.f32.gmra.mxu0 %v4097
      %v4209 = vpop.f32.mrf.mxu0
      %v4210 = vadd.f32 %v4001, %v4209
      %4211 = vdwg.mxu0
      %4244 = vrot.lane.b32.xlu0 %v4117, 112
      %v4245 = vpop.permute.xlu0 %4244
      %4246 = vrot.lane.b32.xlu0 %v4120, 112
      %v4247 = vpop.permute.xlu0 %4246
      %4248 = vrot.lane.b32.xlu0 %v4123, 112
      %v4249 = vpop.permute.xlu0 %4248
      %4250 = vrot.lane.b32.xlu0 %v4126, 112
      %v4251 = vpop.permute.xlu0 %4250
      %4252 = vrot.lane.b32.xlu0 %v4129, 112
      %v4253 = vpop.permute.xlu0 %4252
      %4254 = vrot.lane.b32.xlu0 %v4132, 112
      %v4255 = vpop.permute.xlu0 %4254
      %4256 = vrot.lane.b32.xlu0 %v4135, 112
      %v4257 = vpop.permute.xlu0 %4256
      %4258 = vrot.lane.b32.xlu0 %v4138, 112
      %v4259 = vpop.permute.xlu0 %4258
      %4260 = vrot.lane.b32.xlu0 %v4141, 112
      %v4261 = vpop.permute.xlu0 %4260
      %4262 = vrot.lane.b32.xlu0 %v4144, 112
      %v4263 = vpop.permute.xlu0 %4262
      %4264 = vrot.lane.b32.xlu0 %v4147, 112
      %v4265 = vpop.permute.xlu0 %4264
      %4266 = vrot.lane.b32.xlu0 %v4150, 112
      %v4267 = vpop.permute.xlu0 %4266
      %4268 = vrot.lane.b32.xlu0 %v4153, 112
      %v4269 = vpop.permute.xlu0 %4268
      %4270 = vrot.lane.b32.xlu0 %v4156, 112
      %v4271 = vpop.permute.xlu0 %4270
      %4272 = vrot.lane.b32.xlu0 %v4159, 112
      %v4273 = vpop.permute.xlu0 %4272
      %4274 = vrot.lane.b32.xlu0 %v4162, 112
      %v4275 = vpop.permute.xlu0 %4274
      %4276 = vrot.lane.b32.xlu0 %v4165, 112
      %v4277 = vpop.permute.xlu0 %4276
      %4278 = vrot.lane.b32.xlu0 %v4168, 112
      %v4279 = vpop.permute.xlu0 %4278
      %4280 = vrot.lane.b32.xlu0 %v4171, 112
      %v4281 = vpop.permute.xlu0 %4280
      %4282 = vrot.lane.b32.xlu0 %v4174, 112
      %v4283 = vpop.permute.xlu0 %4282
      %4284 = vrot.lane.b32.xlu0 %v4177, 112
      %v4285 = vpop.permute.xlu0 %4284
      %4286 = vrot.lane.b32.xlu0 %v4180, 112
      %v4287 = vpop.permute.xlu0 %4286
      %4288 = vrot.lane.b32.xlu0 %v4183, 112
      %v4289 = vpop.permute.xlu0 %4288
      %4290 = vrot.lane.b32.xlu0 %v4186, 112
      %v4291 = vpop.permute.xlu0 %4290
      %4292 = vrot.lane.b32.xlu0 %v4189, 112
      %v4293 = vpop.permute.xlu0 %4292
      %4294 = vrot.lane.b32.xlu0 %v4192, 112
      %v4295 = vpop.permute.xlu0 %4294
      %4296 = vrot.lane.b32.xlu0 %v4195, 112
      %v4297 = vpop.permute.xlu0 %4296
      %4298 = vrot.lane.b32.xlu0 %v4198, 112
      %v4299 = vpop.permute.xlu0 %4298
      %4300 = vrot.lane.b32.xlu0 %v4201, 112
      %v4301 = vpop.permute.xlu0 %4300
      %4302 = vrot.lane.b32.xlu0 %v4204, 112
      %v4303 = vpop.permute.xlu0 %4302
      %4304 = vrot.lane.b32.xlu0 %v4207, 112
      %v4305 = vpop.permute.xlu0 %4304
      %4306 = vrot.lane.b32.xlu0 %v4210, 112
      %v4307 = vpop.permute.xlu0 %4306
      %v4340 = vmul.f32 %v4117, %v4245
      %v4341 = vmul.f32 %v4120, %v4247
      %v4342 = vmul.f32 %v4123, %v4249
      %v4343 = vmul.f32 %v4126, %v4251
      %v4344 = vmul.f32 %v4129, %v4253
      %v4345 = vmul.f32 %v4132, %v4255
      %v4346 = vmul.f32 %v4135, %v4257
      %v4347 = vmul.f32 %v4138, %v4259
      %v4348 = vmul.f32 %v4141, %v4261
      %v4349 = vmul.f32 %v4144, %v4263
      %v4350 = vmul.f32 %v4147, %v4265
      %v4351 = vmul.f32 %v4150, %v4267
      %v4352 = vmul.f32 %v4153, %v4269
      %v4353 = vmul.f32 %v4156, %v4271
      %v4354 = vmul.f32 %v4159, %v4273
      %v4355 = vmul.f32 %v4162, %v4275
      %v4356 = vmul.f32 %v4165, %v4277
      %v4357 = vmul.f32 %v4168, %v4279
      %v4358 = vmul.f32 %v4171, %v4281
      %v4359 = vmul.f32 %v4174, %v4283
      %v4360 = vmul.f32 %v4177, %v4285
      %v4361 = vmul.f32 %v4180, %v4287
      %v4362 = vmul.f32 %v4183, %v4289
      %v4363 = vmul.f32 %v4186, %v4291
      %v4364 = vmul.f32 %v4189, %v4293
      %v4365 = vmul.f32 %v4192, %v4295
      %v4366 = vmul.f32 %v4195, %v4297
      %v4367 = vmul.f32 %v4198, %v4299
      %v4368 = vmul.f32 %v4201, %v4301
      %v4369 = vmul.f32 %v4204, %v4303
      %v4370 = vmul.f32 %v4207, %v4305
      %v4371 = vmul.f32 %v4210, %v4307
      %v4372 = vld [vmem:[%s16] sm:$0xff]
      %v4373 = vld [vmem:[%s16 + $0x8] sm:$0xff]
      %v4374 = vld [vmem:[%s17] sm:$0x1]
      %v4376 = vperm.slane %v4374, 0
      %v4379 = vsel %vm635, %v4340, 0
      %v4382 = vsel %vm635, %v4341, 0
      %v4385 = vsel %vm635, %v4342, 0
      %v4388 = vsel %vm635, %v4343, 0
      %v4391 = vsel %vm635, %v4344, 0
      %v4394 = vsel %vm635, %v4345, 0
      %v4397 = vsel %vm635, %v4346, 0
      %v4400 = vsel %vm635, %v4347, 0
      %v4403 = vsel %vm635, %v4348, 0
      %v4406 = vsel %vm635, %v4349, 0
      %v4409 = vsel %vm635, %v4350, 0
      %v4412 = vsel %vm635, %v4351, 0
      %v4415 = vsel %vm635, %v4352, 0
      %v4418 = vsel %vm635, %v4353, 0
      %v4421 = vsel %vm635, %v4354, 0
      %v4424 = vsel %vm635, %v4355, 0
      %v4427 = vsel %vm635, %v4356, 0
      %v4430 = vsel %vm635, %v4357, 0
      %v4433 = vsel %vm635, %v4358, 0
      %v4436 = vsel %vm635, %v4359, 0
      %v4439 = vsel %vm635, %v4360, 0
      %v4442 = vsel %vm635, %v4361, 0
      %v4445 = vsel %vm635, %v4362, 0
      %v4448 = vsel %vm635, %v4363, 0
      %v4451 = vsel %vm635, %v4364, 0
      %v4454 = vsel %vm635, %v4365, 0
      %v4457 = vsel %vm635, %v4366, 0
      %v4460 = vsel %vm635, %v4367, 0
      %v4463 = vsel %vm635, %v4368, 0
      %v4466 = vsel %vm635, %v4369, 0
      %v4469 = vsel %vm635, %v4370, 0
      %v4472 = vsel %vm635, %v4371, 0
      %4474 = vmatpush.msra.mxu0 0.0
      %4475 = vmatpush.msra.mxu0 0.0
      %4476 = vmatpush.msra.mxu0 0.0
      %4477 = vmatpush.msra.mxu0 0.0
      %4478 = vmatpush.msra.mxu0 0.0
      %4479 = vmatpush.msra.mxu0 0.0
      %4480 = vmatpush.msra.mxu0 0.0
      %4481 = vmatpush.msra.mxu0 0.0
      %4482 = vmatpush.msra.mxu0 0.0
      %4483 = vmatpush.msra.mxu0 0.0
      %4484 = vmatpush.msra.mxu0 0.0
      %4485 = vmatpush.msra.mxu0 0.0
      %4486 = vmatpush.msra.mxu0 0.0
      %4487 = vmatpush.msra.mxu0 0.0
      %4488 = vmatpush.msra.mxu0 %v4373
      %4489 = vmatpush.msra.mxu0 %v4372
      %4490 = vmatmul.f32.gmra.mxu0 %v4379
      %v4491 = vpop.f32.mrf.mxu0
      %v4492 = vadd.f32 %v4376, %v4491
      %4493 = vmatmul.f32.gmra.mxu0 %v4382
      %v4494 = vpop.f32.mrf.mxu0
      %v4495 = vadd.f32 %v4376, %v4494
      %4496 = vmatmul.f32.gmra.mxu0 %v4385
      %v4497 = vpop.f32.mrf.mxu0
      %v4498 = vadd.f32 %v4376, %v4497
      %4499 = vmatmul.f32.gmra.mxu0 %v4388
      %v4500 = vpop.f32.mrf.mxu0
      %v4501 = vadd.f32 %v4376, %v4500
      %4502 = vmatmul.f32.gmra.mxu0 %v4391
      %v4503 = vpop.f32.mrf.mxu0
      %v4504 = vadd.f32 %v4376, %v4503
      %4505 = vmatmul.f32.gmra.mxu0 %v4394
      %v4506 = vpop.f32.mrf.mxu0
      %v4507 = vadd.f32 %v4376, %v4506
      %4508 = vmatmul.f32.gmra.mxu0 %v4397
      %v4509 = vpop.f32.mrf.mxu0
      %v4510 = vadd.f32 %v4376, %v4509
      %4511 = vmatmul.f32.gmra.mxu0 %v4400
      %v4512 = vpop.f32.mrf.mxu0
      %v4513 = vadd.f32 %v4376, %v4512
      %4514 = vmatmul.f32.gmra.mxu0 %v4403
      %v4515 = vpop.f32.mrf.mxu0
      %v4516 = vadd.f32 %v4376, %v4515
      %4517 = vmatmul.f32.gmra.mxu0 %v4406
      %v4518 = vpop.f32.mrf.mxu0
      %v4519 = vadd.f32 %v4376, %v4518
      %4520 = vmatmul.f32.gmra.mxu0 %v4409
      %v4521 = vpop.f32.mrf.mxu0
      %v4522 = vadd.f32 %v4376, %v4521
      %4523 = vmatmul.f32.gmra.mxu0 %v4412
      %v4524 = vpop.f32.mrf.mxu0
      %v4525 = vadd.f32 %v4376, %v4524
      %4526 = vmatmul.f32.gmra.mxu0 %v4415
      %v4527 = vpop.f32.mrf.mxu0
      %v4528 = vadd.f32 %v4376, %v4527
      %4529 = vmatmul.f32.gmra.mxu0 %v4418
      %v4530 = vpop.f32.mrf.mxu0
      %v4531 = vadd.f32 %v4376, %v4530
      %4532 = vmatmul.f32.gmra.mxu0 %v4421
      %v4533 = vpop.f32.mrf.mxu0
      %v4534 = vadd.f32 %v4376, %v4533
      %4535 = vmatmul.f32.gmra.mxu0 %v4424
      %v4536 = vpop.f32.mrf.mxu0
      %v4537 = vadd.f32 %v4376, %v4536
      %4538 = vmatmul.f32.gmra.mxu0 %v4427
      %v4539 = vpop.f32.mrf.mxu0
      %v4540 = vadd.f32 %v4376, %v4539
      %4541 = vmatmul.f32.gmra.mxu0 %v4430
      %v4542 = vpop.f32.mrf.mxu0
      %v4543 = vadd.f32 %v4376, %v4542
      %4544 = vmatmul.f32.gmra.mxu0 %v4433
      %v4545 = vpop.f32.mrf.mxu0
      %v4546 = vadd.f32 %v4376, %v4545
      %4547 = vmatmul.f32.gmra.mxu0 %v4436
      %v4548 = vpop.f32.mrf.mxu0
      %v4549 = vadd.f32 %v4376, %v4548
      %4550 = vmatmul.f32.gmra.mxu0 %v4439
      %v4551 = vpop.f32.mrf.mxu0
      %v4552 = vadd.f32 %v4376, %v4551
      %4553 = vmatmul.f32.gmra.mxu0 %v4442
      %v4554 = vpop.f32.mrf.mxu0
      %v4555 = vadd.f32 %v4376, %v4554
      %4556 = vmatmul.f32.gmra.mxu0 %v4445
      %v4557 = vpop.f32.mrf.mxu0
      %v4558 = vadd.f32 %v4376, %v4557
      %4559 = vmatmul.f32.gmra.mxu0 %v4448
      %v4560 = vpop.f32.mrf.mxu0
      %v4561 = vadd.f32 %v4376, %v4560
      %4562 = vmatmul.f32.gmra.mxu0 %v4451
      %v4563 = vpop.f32.mrf.mxu0
      %v4564 = vadd.f32 %v4376, %v4563
      %4565 = vmatmul.f32.gmra.mxu0 %v4454
      %v4566 = vpop.f32.mrf.mxu0
      %v4567 = vadd.f32 %v4376, %v4566
      %4568 = vmatmul.f32.gmra.mxu0 %v4457
      %v4569 = vpop.f32.mrf.mxu0
      %v4570 = vadd.f32 %v4376, %v4569
      %4571 = vmatmul.f32.gmra.mxu0 %v4460
      %v4572 = vpop.f32.mrf.mxu0
      %v4573 = vadd.f32 %v4376, %v4572
      %4574 = vmatmul.f32.gmra.mxu0 %v4463
      %v4575 = vpop.f32.mrf.mxu0
      %v4576 = vadd.f32 %v4376, %v4575
      %4577 = vmatmul.f32.gmra.mxu0 %v4466
      %v4578 = vpop.f32.mrf.mxu0
      %v4579 = vadd.f32 %v4376, %v4578
      %4580 = vmatmul.f32.gmra.mxu0 %v4469
      %v4581 = vpop.f32.mrf.mxu0
      %v4582 = vadd.f32 %v4376, %v4581
      %4583 = vmatmul.f32.gmra.mxu0 %v4472
      %v4584 = vpop.f32.mrf.mxu0
      %v4585 = vadd.f32 %v4376, %v4584
      %4586 = vdwg.mxu0
      %v4587 = vld [vmem:[%s18] sm:$0x1]
      %v4589 = vperm.slane %v4587, 0
      %v4591 = vmul.f32 %v4492, %v4589
      %v4592 = vmul.f32 %v4495, %v4589
      %v4593 = vmul.f32 %v4498, %v4589
      %v4594 = vmul.f32 %v4501, %v4589
      %v4595 = vmul.f32 %v4504, %v4589
      %v4596 = vmul.f32 %v4507, %v4589
      %v4597 = vmul.f32 %v4510, %v4589
      %v4598 = vmul.f32 %v4513, %v4589
      %v4599 = vmul.f32 %v4516, %v4589
      %v4600 = vmul.f32 %v4519, %v4589
      %v4601 = vmul.f32 %v4522, %v4589
      %v4602 = vmul.f32 %v4525, %v4589
      %v4603 = vmul.f32 %v4528, %v4589
      %v4604 = vmul.f32 %v4531, %v4589
      %v4605 = vmul.f32 %v4534, %v4589
      %v4606 = vmul.f32 %v4537, %v4589
      %v4607 = vmul.f32 %v4540, %v4589
      %v4608 = vmul.f32 %v4543, %v4589
      %v4609 = vmul.f32 %v4546, %v4589
      %v4610 = vmul.f32 %v4549, %v4589
      %v4611 = vmul.f32 %v4552, %v4589
      %v4612 = vmul.f32 %v4555, %v4589
      %v4613 = vmul.f32 %v4558, %v4589
      %v4614 = vmul.f32 %v4561, %v4589
      %v4615 = vmul.f32 %v4564, %v4589
      %v4616 = vmul.f32 %v4567, %v4589
      %v4617 = vmul.f32 %v4570, %v4589
      %v4618 = vmul.f32 %v4573, %v4589
      %v4619 = vmul.f32 %v4576, %v4589
      %v4620 = vmul.f32 %v4579, %v4589
      %v4621 = vmul.f32 %v4582, %v4589
      %v4622 = vmul.f32 %v4585, %v4589
      %v4623 = vadd.f32 %v3189, %v4591
      %v4624 = vadd.f32 %v3190, %v4592
      %v4625 = vadd.f32 %v3191, %v4593
      %v4626 = vadd.f32 %v3192, %v4594
      %v4627 = vadd.f32 %v3193, %v4595
      %v4628 = vadd.f32 %v3194, %v4596
      %v4629 = vadd.f32 %v3195, %v4597
      %v4630 = vadd.f32 %v3196, %v4598
      %v4631 = vadd.f32 %v3197, %v4599
      %v4632 = vadd.f32 %v3198, %v4600
      %v4633 = vadd.f32 %v3199, %v4601
      %v4634 = vadd.f32 %v3200, %v4602
      %v4635 = vadd.f32 %v3201, %v4603
      %v4636 = vadd.f32 %v3202, %v4604
      %v4637 = vadd.f32 %v3203, %v4605
      %v4638 = vadd.f32 %v3204, %v4606
      %v4639 = vadd.f32 %v3205, %v4607
      %v4640 = vadd.f32 %v3206, %v4608
      %v4641 = vadd.f32 %v3207, %v4609
      %v4642 = vadd.f32 %v3208, %v4610
      %v4643 = vadd.f32 %v3209, %v4611
      %v4644 = vadd.f32 %v3210, %v4612
      %v4645 = vadd.f32 %v3211, %v4613
      %v4646 = vadd.f32 %v3212, %v4614
      %v4647 = vadd.f32 %v3213, %v4615
      %v4648 = vadd.f32 %v3214, %v4616
      %v4649 = vadd.f32 %v3215, %v4617
      %v4650 = vadd.f32 %v3216, %v4618
      %v4651 = vadd.f32 %v3217, %v4619
      %v4652 = vadd.f32 %v3218, %v4620
      %v4653 = vadd.f32 %v3219, %v4621
      %v4654 = vadd.f32 %v3220, %v4622
      %4655 = vst.msk [vmem:[%s602] sm:$0xff] %vm635, %v4623
      %4656 = vst.msk [vmem:[%s602 + $0x8] sm:$0xff] %vm635, %v4624
      %4657 = vst.msk [vmem:[%s602 + $0x10] sm:$0xff] %vm635, %v4625
      %4658 = vst.msk [vmem:[%s602 + $0x18] sm:$0xff] %vm635, %v4626
      %4659 = vst.msk [vmem:[%s602 + $0x20] sm:$0xff] %vm635, %v4627
      %4660 = vst.msk [vmem:[%s602 + $0x28] sm:$0xff] %vm635, %v4628
      %4661 = vst.msk [vmem:[%s602 + $0x30] sm:$0xff] %vm635, %v4629
      %4662 = vst.msk [vmem:[%s602 + $0x38] sm:$0xff] %vm635, %v4630
      %4663 = vst.msk [vmem:[%s602 + $0x40] sm:$0xff] %vm635, %v4631
      %4664 = vst.msk [vmem:[%s602 + $0x48] sm:$0xff] %vm635, %v4632
      %4665 = vst.msk [vmem:[%s602 + $0x50] sm:$0xff] %vm635, %v4633
      %4666 = vst.msk [vmem:[%s602 + $0x58] sm:$0xff] %vm635, %v4634
      %4667 = vst.msk [vmem:[%s602 + $0x60] sm:$0xff] %vm635, %v4635
      %4668 = vst.msk [vmem:[%s602 + $0x68] sm:$0xff] %vm635, %v4636
      %4669 = vst.msk [vmem:[%s602 + $0x70] sm:$0xff] %vm635, %v4637
      %4670 = vst.msk [vmem:[%s602 + $0x78] sm:$0xff] %vm635, %v4638
      %4671 = vst.msk [vmem:[%s602 + $0x80] sm:$0xff] %vm635, %v4639
      %4672 = vst.msk [vmem:[%s602 + $0x88] sm:$0xff] %vm635, %v4640
      %4673 = vst.msk [vmem:[%s602 + $0x90] sm:$0xff] %vm635, %v4641
      %4674 = vst.msk [vmem:[%s602 + $0x98] sm:$0xff] %vm635, %v4642
      %4675 = vst.msk [vmem:[%s602 + $0xa0] sm:$0xff] %vm635, %v4643
      %4676 = vst.msk [vmem:[%s602 + $0xa8] sm:$0xff] %vm635, %v4644
      %4677 = vst.msk [vmem:[%s602 + $0xb0] sm:$0xff] %vm635, %v4645
      %4678 = vst.msk [vmem:[%s602 + $0xb8] sm:$0xff] %vm635, %v4646
      %4679 = vst.msk [vmem:[%s602 + $0xc0] sm:$0xff] %vm635, %v4647
      %4680 = vst.msk [vmem:[%s602 + $0xc8] sm:$0xff] %vm635, %v4648
      %4681 = vst.msk [vmem:[%s602 + $0xd0] sm:$0xff] %vm635, %v4649
      %4682 = vst.msk [vmem:[%s602 + $0xd8] sm:$0xff] %vm635, %v4650
      %4683 = vst.msk [vmem:[%s602 + $0xe0] sm:$0xff] %vm635, %v4651
      %4684 = vst.msk [vmem:[%s602 + $0xe8] sm:$0xff] %vm635, %v4652
      %4685 = vst.msk [vmem:[%s602 + $0xf0] sm:$0xff] %vm635, %v4653
      %4686 = vst.msk [vmem:[%s602 + $0xf8] sm:$0xff] %vm635, %v4654
      %p4687 = scmp.lt.s32.totalorder %s30, 1
      %s4688 = scalar_select %p4687, %s30, 1
      %s4689 = smul.addr %s4688, 32
      %s4690 = smul.addr %s4689, 8
      %s4691 = scalar_lea.vmem %s19, %s4690
      // Predicated region
      $region97: #{encoder_forward.6} parent=95 // pred_check
        %p4692 = pneg %p452
      $region98: #{encoder_forward.6} parent=95 // pred_check_branch
        %4694 = sbr.rel (%p4692) target = $region100
      $region99: #{encoder_forward.6} parent=95 // pred_region
        _
      $region100: #{encoder_forward.6} parent=95 // pred_fallthru
        _
    $region96: #{encoder_forward.6} parent=5 // pred_fallthru
      _
    %p4695 = scmp.le.s32.totalorder 2, %s25
    // Predicated region
    $region101: #{encoder_forward.6} parent=5 // pred_check
      %p4696 = pneg %p4695
    $region102: #{encoder_forward.6} parent=5 // pred_check_branch
      %4698 = sbr.rel (%p4696) target = $region104
    $region103: #{encoder_forward.6} parent=5 // pred_region
      %s4699 = ssub.s32 %s25, 2
      // Predicated region
      $region105: #{encoder_forward.6} parent=103 // pred_check
        %p4700 = pneg %p458
      $region106: #{encoder_forward.6} parent=103 // pred_check_branch
        %4702 = sbr.rel (%p4700) target = $region108
      $region107: #{encoder_forward.6} parent=103 // pred_region
        %p4703 = scmp.lt.s32.totalorder %s31, 1
        %s4704 = scalar_select %p4703, %s31, 1
        %s4705 = smul.addr %s4704, 32
        %s4706 = smul.addr %s4705, 8
        %s4707 = scalar_lea.vmem %s19, %s4706
      $region108: #{encoder_forward.6} parent=103 // pred_fallthru
        _
    $region104: #{encoder_forward.6} parent=5 // pred_fallthru
      _
  $region6: #{encoder_forward.6} parent=0 // loop_footer
    %s29 = sadd.s32 1, %s25
  $region7: #{encoder_forward.6} parent=0 // loop_footer_branch
    %24 = sbr.rel target = $region3
  $region8: #{encoder_forward.6} parent=0 // loop_exit
    _

</llo_original>
